<compile_context>
chip_gen: v7x
topology: tpu7x:2x2x1
jax: 0.10.0
libtpu: 0.0.40
codegen_flags: <defaults>
</compile_context>

<pallas_src>
import functools

import jax
import jax.numpy as jnp
from jax.experimental import pallas as pl
from jax.experimental.pallas import tpu as pltpu

LSTM_IN = 252
LSTM_IN_PAD = 256          # 252 padded to a lane multiple (zero rows in W_ih)
LSTM_HIDDEN = 128
MLP_LAYERS = [512, 512, 512, 512, 512]


# ----------------------------------------------------------------------------- kernel
def dmcnet_kernel(
    z_ref,          # (bt, T, 256)      f32 batch tile of LSTM input (feature-padded)
    xa_ref,         # (bt, 64)          f32 concat([x, actions]) (feature-padded)
    wih_ref,        # (256, 4*128)      bf16 (rows 252:256 are zero)
    whh_ref,        # (128, 4*128)      bf16
    blstm_ref,      # (1, 4*128)        f32  (b_ih + b_hh)
    w1xa_ref,       # (64, 512)         bf16 first FC, x/action input segments merged
    w1h_ref,        # (128, 512)        bf16 first FC, lstm-hidden input segment
    b1_ref,         # (1, 512)          f32
    wmlp_ref,       # (4, 512, 512)     bf16 stacked FC2..FC5 weights
    bmlp_ref,       # (4, 1, 512)       f32  stacked FC2..FC5 biases
    wout_ref,       # (1, 512)          f32 row vector (used on the VPU)
    bout_ref,       # (1, 1)            f32
    out_ref,        # (bt, 1)           f32
    *,
    gate_dtype,     # jnp.bfloat16 on chips with bf16 EUP (v6e/v7x), else jnp.float32
):
    bt, T, zin = z_ref.shape
    H = whh_ref.shape[0]  # 128

    # ---- LSTM input projection hoisted out of the recurrence: one big MXU matmul.
    # (bt, T, 256) -> (bt*T, 256) is a pure leading-dim merge (layout-free); K=256 is a
    # clean lane multiple thanks to the 252->256 feature pad.
    z2d = z_ref[...].reshape(bt * T, zin).astype(jnp.bfloat16)
    proj = jnp.dot(z2d, wih_ref[...], preferred_element_type=jnp.float32)
    proj = (proj + blstm_ref[...]).reshape(bt, T, 4 * H)   # stays f32 (safe slicing)

    whh = whh_ref[...]

    # ---- Unrolled recurrence (T small & static) — only h @ W_hh + gate math here.
    h = jnp.zeros((bt, H), jnp.float32)
    c = jnp.zeros((bt, H), jnp.float32)
    for t in range(T):
        gates = (
            proj[:, t, :]
            + jnp.dot(h.astype(jnp.bfloat16), whh, preferred_element_type=jnp.float32)
        ).astype(gate_dtype)                 # bf16 pre-activations -> bf16 EUP (v6e/v7x)
        # PyTorch gate order: input, forget, cell(g), output
        i_g = jax.nn.sigmoid(gates[:, 0 * H:1 * H]).astype(jnp.float32)
        f_g = jax.nn.sigmoid(gates[:, 1 * H:2 * H]).astype(jnp.float32)
        g_g = jnp.tanh(gates[:, 2 * H:3 * H]).astype(jnp.float32)
        o_g = jax.nn.sigmoid(gates[:, 3 * H:4 * H]).astype(jnp.float32)
        c = f_g * c + i_g * g_g              # cell/hidden state updates stay f32
        h = o_g * jnp.tanh(c)

    # ---- First FC as a split matmul => no in-kernel concatenation needed:
    # cat([x, h, a]) @ W1 == [x,a]@W1xa + h@W1h   (x/a weight slices merged offline)
    y = (
        jnp.dot(xa_ref[...].astype(jnp.bfloat16), w1xa_ref[...],
                preferred_element_type=jnp.float32)
        + jnp.dot(h.astype(jnp.bfloat16), w1h_ref[...],
                  preferred_element_type=jnp.float32)
        + b1_ref[...]
    )
    y = jnp.maximum(y, 0.0)

    # ---- FC2..FC5 from the stacked weight/bias arrays (static unroll, 4 layers).
    for l in range(4):
        y = jnp.dot(y.astype(jnp.bfloat16), wmlp_ref[l],
                    preferred_element_type=jnp.float32) + bmlp_ref[l]
        y = jnp.maximum(y, 0.0)

    # ---- Final (512 -> 1) as a VPU reduction instead of an N=1 MXU matmul.
    out_ref[...] = jnp.sum(y * wout_ref[...], axis=-1, keepdims=True) + bout_ref[...]


# ----------------------------------------------------------------------------- helpers
def _round_up(n, m):
    return ((n + m - 1) // m) * m


def _chip_defaults():
    """Pick tile size / VMEM budget / gate dtype per TPU generation."""
    kind = ""
    try:
        kind = jax.devices()[0].device_kind.lower()
    except Exception:
        pass
    vmem_cap = None
    try:
        vmem_cap = pltpu.get_tpu_info().vmem_capacity_bytes
    except Exception:
        pass
    is_v7 = "7" in kind                                    # v7x: 64 MiB VMEM / 2 TCs
    small_vmem = is_v7 or (vmem_cap is not None and vmem_cap <= (64 << 20))
    old_gen = any(t in kind for t in ("v2", "v3", "v4", "v5"))   # no bf16 EUP/VPU
    block_b = 512 if small_vmem else 1024
    vmem_limit = (48 << 20) if small_vmem else (100 << 20)
    gates_bf16 = not old_gen
    return is_v7, block_b, vmem_limit, gates_bf16


def _choose_tiling(B, block_b):
    """Pick (bt, padded_B). Prefer a tile that divides the 8-rounded batch exactly so no
    batch padding (= full HBM copy of z) is ever needed."""
    block_b = max(8, (block_b // 8) * 8)
    b8 = _round_up(B, 8)
    best = 0
    for d in range(8, min(b8, block_b) + 1, 8):
        if b8 % d == 0:
            best = d
    if best and (best == b8 or best >= max(8, block_b // 2)):
        return best, b8
    bt = min(block_b, b8)
    return bt, _round_up(b8, bt)


def _resident_spec(shape):
    """Weight BlockSpec: full array, block index constant across the batch grid."""
    nd = len(shape)
    return pl.BlockSpec(shape, lambda i, _nd=nd: (0,) * _nd)


_WEIGHT_KEYS = ["wih", "whh", "blstm", "w1xa", "w1h", "b1",
                "wmlp", "bmlp", "wout", "bout"]


# ----------------------------------------------------------------------------- wrapper
@functools.partial(
    jax.jit,
    static_argnames=("bt", "b_pad", "vmem_limit_bytes", "gates_bf16", "core_parallel"))
def _forward_impl(x, z, actions, params, *, bt, b_pad, vmem_limit_bytes,
                  gates_bf16, core_parallel):
    B = x.shape[0]
    T = z.shape[1]

    # ---- Data prep (ideally done once at data-prep time rather than per forward):
    # pad the LSTM feature dim to 256 lanes and merge x/actions into one padded slab.
    zin = params["wih"].shape[0]
    if z.shape[2] != zin:
        z = jnp.pad(z, ((0, 0), (0, 0), (0, zin - z.shape[2])))
    xa = jnp.concatenate([x, actions], axis=1)
    xa_dim = params["w1xa"].shape[0]
    if xa.shape[1] != xa_dim:
        xa = jnp.pad(xa, ((0, 0), (0, xa_dim - xa.shape[1])))

    # Batch padding only when no good divisor tile exists (see _choose_tiling).
    if b_pad != B:
        z = jnp.pad(z, ((0, b_pad - B), (0, 0), (0, 0)))
        xa = jnp.pad(xa, ((0, b_pad - B), (0, 0)))

    num_tiles = b_pad // bt
    weights = [params[k] for k in _WEIGHT_KEYS]

    in_specs = (
        [pl.BlockSpec((bt, T, zin), lambda i: (i, 0, 0)),
         pl.BlockSpec((bt, xa_dim), lambda i: (i, 0))]
        + [_resident_spec(w.shape) for w in weights]
    )

    if core_parallel:
        # v7x: actually shard batch tiles across the two TensorCores.
        dim_sem = (pltpu.CORE_PARALLEL,)
    else:
        dim_sem = ("parallel",)

    kernel = functools.partial(
        dmcnet_kernel,
        gate_dtype=jnp.bfloat16 if gates_bf16 else jnp.float32)

    out = pl.pallas_call(
        kernel,
        out_shape=jax.ShapeDtypeStruct((b_pad, 1), jnp.float32),
        grid=(num_tiles,),
        in_specs=in_specs,
        out_specs=pl.BlockSpec((bt, 1), lambda i: (i, 0)),
        compiler_params=pltpu.CompilerParams(
            dimension_semantics=dim_sem,
            vmem_limit_bytes=vmem_limit_bytes,
        ),
    )(z, xa, *weights)

    return out[:B, 0]   # drop batch padding; .flatten() in the PyTorch module


def dmcnet_forward(x, z, actions, params, block_b=None):
    """x: (B, state_dim) f32; z: (B, T, 252 or 256) f32; actions: (B, action_dim) f32."""
    is_v7, default_bt, vmem_limit, gates_bf16 = _chip_defaults()
    if block_b is None:
        block_b = default_bt
    B = x.shape[0]
    bt, b_pad = _choose_tiling(B, block_b)
    num_tiles = b_pad // bt
    core_parallel = bool(is_v7 and num_tiles >= 2)
    return _forward_impl(x, z, actions, params, bt=bt, b_pad=b_pad,
                         vmem_limit_bytes=vmem_limit, gates_bf16=gates_bf16,
                         core_parallel=core_parallel)


# ----------------------------------------------------------------------------- params
def init_params(key, state_dim, action_dim):
    dims = [state_dim + LSTM_HIDDEN + action_dim] + MLP_LAYERS + [1]

    def uniform(k, shape, fan_in):
        s = 1.0 / jnp.sqrt(jnp.float32(fan_in))
        return jax.random.uniform(k, shape, jnp.float32, -s, s)

    bf16 = jnp.bfloat16
    keys = jax.random.split(key, 20)
    p = {}
    # LSTM (stored as (in, 4H); PyTorch stores (4H, in)); input dim zero-padded 252->256;
    # combined bias stays f32.
    wih = uniform(keys[0], (LSTM_IN, 4 * LSTM_HIDDEN), LSTM_HIDDEN)
    p["wih"] = jnp.pad(wih, ((0, LSTM_IN_PAD - LSTM_IN), (0, 0))).astype(bf16)
    p["whh"] = uniform(keys[1], (LSTM_HIDDEN, 4 * LSTM_HIDDEN), LSTM_HIDDEN).astype(bf16)
    p["blstm"] = (uniform(keys[2], (1, 4 * LSTM_HIDDEN), LSTM_HIDDEN)
                  + uniform(keys[3], (1, 4 * LSTM_HIDDEN), LSTM_HIDDEN))
    # First FC split across the concatenated input segments; x/action slices merged and
    # zero-padded to a multiple of 8 features.
    w1 = uniform(keys[4], (dims[0], dims[1]), dims[0])
    w1xa = jnp.concatenate([w1[:state_dim], w1[state_dim + LSTM_HIDDEN:]], axis=0)
    xa_pad = _round_up(state_dim + action_dim, 8)
    p["w1xa"] = jnp.pad(w1xa, ((0, xa_pad - w1xa.shape[0]), (0, 0))).astype(bf16)
    p["w1h"] = w1[state_dim:state_dim + LSTM_HIDDEN].astype(bf16)
    p["b1"] = uniform(keys[5], (1, dims[1]), dims[0])
    # Remaining FCs stacked into single arrays: (4,512,512) bf16 / (4,1,512) f32.
    wl, bl = [], []
    for li, kidx in zip(range(2, 6), range(6, 14, 2)):
        wl.append(uniform(keys[kidx], (dims[li - 1], dims[li]), dims[li - 1]))
        bl.append(uniform(keys[kidx + 1], (1, dims[li]), dims[li - 1]))
    p["wmlp"] = jnp.stack(wl).astype(bf16)
    p["bmlp"] = jnp.stack(bl)
    # Output layer kept in f32 (used on the VPU as a row-vector reduction).
    p["wout"] = uniform(keys[14], (1, dims[5]), dims[5])
    p["bout"] = uniform(keys[15], (1, 1), dims[5])
    return p


# ----------------------------------------------------------------------------- reference
def dmcnet_reference(x, z, actions, params):
    f32 = lambda a: a.astype(jnp.float32)
    B, T, zdim = z.shape
    H = LSTM_HIDDEN
    h = jnp.zeros((B, H), jnp.float32)
    c = jnp.zeros((B, H), jnp.float32)
    wih = f32(params["wih"])[:zdim]          # drop zero-padded feature rows
    whh = f32(params["whh"])
    for t in range(T):
        gates = z[:, t, :] @ wih + h @ whh + params["blstm"]
        i = jax.nn.sigmoid(gates[:, 0:H])
        f = jax.nn.sigmoid(gates[:, H:2 * H])
        g = jnp.tanh(gates[:, 2 * H:3 * H])
        o = jax.nn.sigmoid(gates[:, 3 * H:4 * H])
        c = f * c + i * g
        h = o * jnp.tanh(c)
    xa = jnp.concatenate([x, actions], axis=1)
    w1xa = f32(params["w1xa"])[:xa.shape[1]]
    y = jnp.maximum(xa @ w1xa + h @ f32(params["w1h"]) + params["b1"], 0.0)
    for l in range(4):
        y = jnp.maximum(y @ f32(params["wmlp"][l]) + params["bmlp"][l], 0.0)
    return jnp.sum(y * params["wout"], axis=-1) + params["bout"][0, 0]


# ----------------------------------------------------------------------------- main
if __name__ == "__main__":
    B, T = 2, 8
    state_dim, action_dim = 30, 30   # state_shape=(30,), action_shape=(30,)

    key = jax.random.PRNGKey(0)
    kx, kz, ka, kp = jax.random.split(key, 4)
    x = jax.random.normal(kx, (B, state_dim), jnp.float32)
    z = jax.random.normal(kz, (B, T, LSTM_IN), jnp.float32)
    actions = jax.random.normal(ka, (B, action_dim), jnp.float32)
    params = init_params(kp, state_dim, action_dim)

    values = dmcnet_forward(x, z, actions, params)
    values = jax.block_until_ready(values)

    ref = dmcnet_reference(x, z, actions, params)
    assert values.shape == (B,)
    assert jnp.allclose(values, ref, rtol=2e-2, atol=2e-2), (values, ref)

    print("KERNEL_OK")
</pallas_src>

<mosaic_0001>
module attributes {stable_mosaic.version = 11 : i64} {
  func.func @dmcnet_kernel(%arg0: i32, %arg1: memref<8x8x256xf32, #tpu.memory_space<vmem>>, %arg2: memref<8x64xf32, #tpu.memory_space<vmem>>, %arg3: memref<256x512xbf16, #tpu.memory_space<vmem>>, %arg4: memref<128x512xbf16, #tpu.memory_space<vmem>>, %arg5: memref<1x512xf32, #tpu.memory_space<vmem>>, %arg6: memref<64x512xbf16, #tpu.memory_space<vmem>>, %arg7: memref<128x512xbf16, #tpu.memory_space<vmem>>, %arg8: memref<1x512xf32, #tpu.memory_space<vmem>>, %arg9: memref<4x512x512xbf16, #tpu.memory_space<vmem>>, %arg10: memref<4x1x512xf32, #tpu.memory_space<vmem>>, %arg11: memref<1x512xf32, #tpu.memory_space<vmem>>, %arg12: memref<1x1xf32, #tpu.memory_space<vmem>>, %arg13: memref<8x1xf32, #tpu.memory_space<vmem>>) attributes {dimension_semantics = [#tpu.dimension_semantics<parallel>], iteration_bounds = array<i64: 1>, scalar_prefetch = 0 : i64, scratch_operands = 0 : i64, tpu.core_type = #tpu.core_type<tc>, window_params = [{transform_indices = @transform_0, window_bounds = array<i64: 8, 8, 256>}, {transform_indices = @transform_1, window_bounds = array<i64: 8, 64>}, {pipeline_mode = #tpu.pipeline_mode<synchronous>, transform_indices = @transform_2, window_bounds = array<i64: 256, 512>}, {pipeline_mode = #tpu.pipeline_mode<synchronous>, transform_indices = @transform_3, window_bounds = array<i64: 128, 512>}, {pipeline_mode = #tpu.pipeline_mode<synchronous>, transform_indices = @transform_4, window_bounds = array<i64: 1, 512>}, {pipeline_mode = #tpu.pipeline_mode<synchronous>, transform_indices = @transform_5, window_bounds = array<i64: 64, 512>}, {pipeline_mode = #tpu.pipeline_mode<synchronous>, transform_indices = @transform_6, window_bounds = array<i64: 128, 512>}, {pipeline_mode = #tpu.pipeline_mode<synchronous>, transform_indices = @transform_7, window_bounds = array<i64: 1, 512>}, {pipeline_mode = #tpu.pipeline_mode<synchronous>, transform_indices = @transform_8, window_bounds = array<i64: 4, 512, 512>}, {pipeline_mode = #tpu.pipeline_mode<synchronous>, transform_indices = @transform_9, window_bounds = array<i64: 4, 1, 512>}, {pipeline_mode = #tpu.pipeline_mode<synchronous>, transform_indices = @transform_10, window_bounds = array<i64: 1, 512>}, {pipeline_mode = #tpu.pipeline_mode<synchronous>, transform_indices = @transform_11, window_bounds = array<i64: 1, 1>}, {transform_indices = @transform_12, window_bounds = array<i64: 8, 1>}]} {
    %c0 = arith.constant 0 : index
    %c0_0 = arith.constant 0 : index
    %c0_1 = arith.constant 0 : index
    %0 = vector.load %arg1[%c0, %c0_0, %c0_1] : memref<8x8x256xf32, #tpu.memory_space<vmem>>, vector<8x8x256xf32>
    %1 = vector.shape_cast %0 : vector<8x8x256xf32> to vector<64x256xf32>
    %2 = arith.truncf %1 : vector<64x256xf32> to vector<64x256xbf16>
    %c0_2 = arith.constant 0 : index
    %c0_3 = arith.constant 0 : index
    %3 = vector.load %arg3[%c0_2, %c0_3] : memref<256x512xbf16, #tpu.memory_space<vmem>>, vector<256x512xbf16>
    %cst = arith.constant dense<0.000000e+00> : vector<64x512xf32>
    %4 = tpu.matmul %2, %3, %cst {dimension_numbers = #tpu.dot_dimension_numbers<[1], [0], [0], [1], [0, 0, 1, 1], [], []>} : vector<64x256xbf16>, vector<256x512xbf16>, vector<64x512xf32> -> vector<64x512xf32>
    %c0_4 = arith.constant 0 : index
    %c0_5 = arith.constant 0 : index
    %5 = vector.load %arg5[%c0_4, %c0_5] : memref<1x512xf32, #tpu.memory_space<vmem>>, vector<1x512xf32>
    %6 = vector.broadcast %5 : vector<1x512xf32> to vector<64x512xf32>
    %7 = arith.addf %4, %6 : vector<64x512xf32>
    %8 = vector.shape_cast %7 : vector<64x512xf32> to vector<8x8x512xf32>
    %c0_6 = arith.constant 0 : index
    %c0_7 = arith.constant 0 : index
    %9 = vector.load %arg4[%c0_6, %c0_7] : memref<128x512xbf16, #tpu.memory_space<vmem>>, vector<128x512xbf16>
    %cst_8 = arith.constant 0.000000e+00 : f32
    %10 = vector.broadcast %cst_8 : f32 to vector<8x128xf32>
    %cst_9 = arith.constant 0.000000e+00 : f32
    %11 = vector.broadcast %cst_9 : f32 to vector<8x128xf32>
    %12 = vector.extract_strided_slice %8 {offsets = [0, 0, 0], sizes = [8, 1, 512], strides = [1, 1, 1]} : vector<8x8x512xf32> to vector<8x1x512xf32>
    %13 = vector.shape_cast %12 : vector<8x1x512xf32> to vector<8x512xf32>
    %14 = arith.truncf %10 : vector<8x128xf32> to vector<8x128xbf16>
    %cst_10 = arith.constant dense<0.000000e+00> : vector<8x512xf32>
    %15 = tpu.matmul %14, %9, %cst_10 {dimension_numbers = #tpu.dot_dimension_numbers<[1], [0], [0], [1], [0, 0, 1, 1], [], []>} : vector<8x128xbf16>, vector<128x512xbf16>, vector<8x512xf32> -> vector<8x512xf32>
    %16 = arith.addf %13, %15 : vector<8x512xf32>
    %17 = arith.truncf %16 : vector<8x512xf32> to vector<8x512xbf16>
    %18 = vector.extract_strided_slice %17 {offsets = [0, 0], sizes = [8, 128], strides = [1, 1]} : vector<8x512xbf16> to vector<8x128xbf16>
    %19 = arith.negf %18 : vector<8x128xbf16>
    %20 = math.exp %19 : vector<8x128xbf16>
    %cst_11 = arith.constant 1.000000e+00 : bf16
    %21 = vector.broadcast %cst_11 : bf16 to vector<8x128xbf16>
    %22 = arith.addf %21, %20 : vector<8x128xbf16>
    %23 = arith.divf %21, %22 : vector<8x128xbf16>
    %24 = arith.extf %23 : vector<8x128xbf16> to vector<8x128xf32>
    %25 = vector.extract_strided_slice %17 {offsets = [0, 128], sizes = [8, 128], strides = [1, 1]} : vector<8x512xbf16> to vector<8x128xbf16>
    %26 = arith.negf %25 : vector<8x128xbf16>
    %27 = math.exp %26 : vector<8x128xbf16>
    %cst_12 = arith.constant 1.000000e+00 : bf16
    %28 = vector.broadcast %cst_12 : bf16 to vector<8x128xbf16>
    %29 = arith.addf %28, %27 : vector<8x128xbf16>
    %30 = arith.divf %28, %29 : vector<8x128xbf16>
    %31 = arith.extf %30 : vector<8x128xbf16> to vector<8x128xf32>
    %32 = vector.extract_strided_slice %17 {offsets = [0, 256], sizes = [8, 128], strides = [1, 1]} : vector<8x512xbf16> to vector<8x128xbf16>
    %33 = math.tanh %32 : vector<8x128xbf16>
    %34 = arith.extf %33 : vector<8x128xbf16> to vector<8x128xf32>
    %35 = vector.extract_strided_slice %17 {offsets = [0, 384], sizes = [8, 128], strides = [1, 1]} : vector<8x512xbf16> to vector<8x128xbf16>
    %36 = arith.negf %35 : vector<8x128xbf16>
    %37 = math.exp %36 : vector<8x128xbf16>
    %cst_13 = arith.constant 1.000000e+00 : bf16
    %38 = vector.broadcast %cst_13 : bf16 to vector<8x128xbf16>
    %39 = arith.addf %38, %37 : vector<8x128xbf16>
    %40 = arith.divf %38, %39 : vector<8x128xbf16>
    %41 = arith.extf %40 : vector<8x128xbf16> to vector<8x128xf32>
    %42 = arith.mulf %31, %11 : vector<8x128xf32>
    %43 = arith.mulf %24, %34 : vector<8x128xf32>
    %44 = arith.addf %42, %43 : vector<8x128xf32>
    %45 = math.tanh %44 : vector<8x128xf32>
    %46 = arith.mulf %41, %45 : vector<8x128xf32>
    %47 = vector.extract_strided_slice %8 {offsets = [0, 1, 0], sizes = [8, 1, 512], strides = [1, 1, 1]} : vector<8x8x512xf32> to vector<8x1x512xf32>
    %48 = vector.shape_cast %47 : vector<8x1x512xf32> to vector<8x512xf32>
    %49 = arith.truncf %46 : vector<8x128xf32> to vector<8x128xbf16>
    %cst_14 = arith.constant dense<0.000000e+00> : vector<8x512xf32>
    %50 = tpu.matmul %49, %9, %cst_14 {dimension_numbers = #tpu.dot_dimension_numbers<[1], [0], [0], [1], [0, 0, 1, 1], [], []>} : vector<8x128xbf16>, vector<128x512xbf16>, vector<8x512xf32> -> vector<8x512xf32>
    %51 = arith.addf %48, %50 : vector<8x512xf32>
    %52 = arith.truncf %51 : vector<8x512xf32> to vector<8x512xbf16>
    %53 = vector.extract_strided_slice %52 {offsets = [0, 0], sizes = [8, 128], strides = [1, 1]} : vector<8x512xbf16> to vector<8x128xbf16>
    %54 = arith.negf %53 : vector<8x128xbf16>
    %55 = math.exp %54 : vector<8x128xbf16>
    %cst_15 = arith.constant 1.000000e+00 : bf16
    %56 = vector.broadcast %cst_15 : bf16 to vector<8x128xbf16>
    %57 = arith.addf %56, %55 : vector<8x128xbf16>
    %58 = arith.divf %56, %57 : vector<8x128xbf16>
    %59 = arith.extf %58 : vector<8x128xbf16> to vector<8x128xf32>
    %60 = vector.extract_strided_slice %52 {offsets = [0, 128], sizes = [8, 128], strides = [1, 1]} : vector<8x512xbf16> to vector<8x128xbf16>
    %61 = arith.negf %60 : vector<8x128xbf16>
    %62 = math.exp %61 : vector<8x128xbf16>
    %cst_16 = arith.constant 1.000000e+00 : bf16
    %63 = vector.broadcast %cst_16 : bf16 to vector<8x128xbf16>
    %64 = arith.addf %63, %62 : vector<8x128xbf16>
    %65 = arith.divf %63, %64 : vector<8x128xbf16>
    %66 = arith.extf %65 : vector<8x128xbf16> to vector<8x128xf32>
    %67 = vector.extract_strided_slice %52 {offsets = [0, 256], sizes = [8, 128], strides = [1, 1]} : vector<8x512xbf16> to vector<8x128xbf16>
    %68 = math.tanh %67 : vector<8x128xbf16>
    %69 = arith.extf %68 : vector<8x128xbf16> to vector<8x128xf32>
    %70 = vector.extract_strided_slice %52 {offsets = [0, 384], sizes = [8, 128], strides = [1, 1]} : vector<8x512xbf16> to vector<8x128xbf16>
    %71 = arith.negf %70 : vector<8x128xbf16>
    %72 = math.exp %71 : vector<8x128xbf16>
    %cst_17 = arith.constant 1.000000e+00 : bf16
    %73 = vector.broadcast %cst_17 : bf16 to vector<8x128xbf16>
    %74 = arith.addf %73, %72 : vector<8x128xbf16>
    %75 = arith.divf %73, %74 : vector<8x128xbf16>
    %76 = arith.extf %75 : vector<8x128xbf16> to vector<8x128xf32>
    %77 = arith.mulf %66, %44 : vector<8x128xf32>
    %78 = arith.mulf %59, %69 : vector<8x128xf32>
    %79 = arith.addf %77, %78 : vector<8x128xf32>
    %80 = math.tanh %79 : vector<8x128xf32>
    %81 = arith.mulf %76, %80 : vector<8x128xf32>
    %82 = vector.extract_strided_slice %8 {offsets = [0, 2, 0], sizes = [8, 1, 512], strides = [1, 1, 1]} : vector<8x8x512xf32> to vector<8x1x512xf32>
    %83 = vector.shape_cast %82 : vector<8x1x512xf32> to vector<8x512xf32>
    %84 = arith.truncf %81 : vector<8x128xf32> to vector<8x128xbf16>
    %cst_18 = arith.constant dense<0.000000e+00> : vector<8x512xf32>
    %85 = tpu.matmul %84, %9, %cst_18 {dimension_numbers = #tpu.dot_dimension_numbers<[1], [0], [0], [1], [0, 0, 1, 1], [], []>} : vector<8x128xbf16>, vector<128x512xbf16>, vector<8x512xf32> -> vector<8x512xf32>
    %86 = arith.addf %83, %85 : vector<8x512xf32>
    %87 = arith.truncf %86 : vector<8x512xf32> to vector<8x512xbf16>
    %88 = vector.extract_strided_slice %87 {offsets = [0, 0], sizes = [8, 128], strides = [1, 1]} : vector<8x512xbf16> to vector<8x128xbf16>
    %89 = arith.negf %88 : vector<8x128xbf16>
    %90 = math.exp %89 : vector<8x128xbf16>
    %cst_19 = arith.constant 1.000000e+00 : bf16
    %91 = vector.broadcast %cst_19 : bf16 to vector<8x128xbf16>
    %92 = arith.addf %91, %90 : vector<8x128xbf16>
    %93 = arith.divf %91, %92 : vector<8x128xbf16>
    %94 = arith.extf %93 : vector<8x128xbf16> to vector<8x128xf32>
    %95 = vector.extract_strided_slice %87 {offsets = [0, 128], sizes = [8, 128], strides = [1, 1]} : vector<8x512xbf16> to vector<8x128xbf16>
    %96 = arith.negf %95 : vector<8x128xbf16>
    %97 = math.exp %96 : vector<8x128xbf16>
    %cst_20 = arith.constant 1.000000e+00 : bf16
    %98 = vector.broadcast %cst_20 : bf16 to vector<8x128xbf16>
    %99 = arith.addf %98, %97 : vector<8x128xbf16>
    %100 = arith.divf %98, %99 : vector<8x128xbf16>
    %101 = arith.extf %100 : vector<8x128xbf16> to vector<8x128xf32>
    %102 = vector.extract_strided_slice %87 {offsets = [0, 256], sizes = [8, 128], strides = [1, 1]} : vector<8x512xbf16> to vector<8x128xbf16>
    %103 = math.tanh %102 : vector<8x128xbf16>
    %104 = arith.extf %103 : vector<8x128xbf16> to vector<8x128xf32>
    %105 = vector.extract_strided_slice %87 {offsets = [0, 384], sizes = [8, 128], strides = [1, 1]} : vector<8x512xbf16> to vector<8x128xbf16>
    %106 = arith.negf %105 : vector<8x128xbf16>
    %107 = math.exp %106 : vector<8x128xbf16>
    %cst_21 = arith.constant 1.000000e+00 : bf16
    %108 = vector.broadcast %cst_21 : bf16 to vector<8x128xbf16>
    %109 = arith.addf %108, %107 : vector<8x128xbf16>
    %110 = arith.divf %108, %109 : vector<8x128xbf16>
    %111 = arith.extf %110 : vector<8x128xbf16> to vector<8x128xf32>
    %112 = arith.mulf %101, %79 : vector<8x128xf32>
    %113 = arith.mulf %94, %104 : vector<8x128xf32>
    %114 = arith.addf %112, %113 : vector<8x128xf32>
    %115 = math.tanh %114 : vector<8x128xf32>
    %116 = arith.mulf %111, %115 : vector<8x128xf32>
    %117 = vector.extract_strided_slice %8 {offsets = [0, 3, 0], sizes = [8, 1, 512], strides = [1, 1, 1]} : vector<8x8x512xf32> to vector<8x1x512xf32>
    %118 = vector.shape_cast %117 : vector<8x1x512xf32> to vector<8x512xf32>
    %119 = arith.truncf %116 : vector<8x128xf32> to vector<8x128xbf16>
    %cst_22 = arith.constant dense<0.000000e+00> : vector<8x512xf32>
    %120 = tpu.matmul %119, %9, %cst_22 {dimension_numbers = #tpu.dot_dimension_numbers<[1], [0], [0], [1], [0, 0, 1, 1], [], []>} : vector<8x128xbf16>, vector<128x512xbf16>, vector<8x512xf32> -> vector<8x512xf32>
    %121 = arith.addf %118, %120 : vector<8x512xf32>
    %122 = arith.truncf %121 : vector<8x512xf32> to vector<8x512xbf16>
    %123 = vector.extract_strided_slice %122 {offsets = [0, 0], sizes = [8, 128], strides = [1, 1]} : vector<8x512xbf16> to vector<8x128xbf16>
    %124 = arith.negf %123 : vector<8x128xbf16>
    %125 = math.exp %124 : vector<8x128xbf16>
    %cst_23 = arith.constant 1.000000e+00 : bf16
    %126 = vector.broadcast %cst_23 : bf16 to vector<8x128xbf16>
    %127 = arith.addf %126, %125 : vector<8x128xbf16>
    %128 = arith.divf %126, %127 : vector<8x128xbf16>
    %129 = arith.extf %128 : vector<8x128xbf16> to vector<8x128xf32>
    %130 = vector.extract_strided_slice %122 {offsets = [0, 128], sizes = [8, 128], strides = [1, 1]} : vector<8x512xbf16> to vector<8x128xbf16>
    %131 = arith.negf %130 : vector<8x128xbf16>
    %132 = math.exp %131 : vector<8x128xbf16>
    %cst_24 = arith.constant 1.000000e+00 : bf16
    %133 = vector.broadcast %cst_24 : bf16 to vector<8x128xbf16>
    %134 = arith.addf %133, %132 : vector<8x128xbf16>
    %135 = arith.divf %133, %134 : vector<8x128xbf16>
    %136 = arith.extf %135 : vector<8x128xbf16> to vector<8x128xf32>
    %137 = vector.extract_strided_slice %122 {offsets = [0, 256], sizes = [8, 128], strides = [1, 1]} : vector<8x512xbf16> to vector<8x128xbf16>
    %138 = math.tanh %137 : vector<8x128xbf16>
    %139 = arith.extf %138 : vector<8x128xbf16> to vector<8x128xf32>
    %140 = vector.extract_strided_slice %122 {offsets = [0, 384], sizes = [8, 128], strides = [1, 1]} : vector<8x512xbf16> to vector<8x128xbf16>
    %141 = arith.negf %140 : vector<8x128xbf16>
    %142 = math.exp %141 : vector<8x128xbf16>
    %cst_25 = arith.constant 1.000000e+00 : bf16
    %143 = vector.broadcast %cst_25 : bf16 to vector<8x128xbf16>
    %144 = arith.addf %143, %142 : vector<8x128xbf16>
    %145 = arith.divf %143, %144 : vector<8x128xbf16>
    %146 = arith.extf %145 : vector<8x128xbf16> to vector<8x128xf32>
    %147 = arith.mulf %136, %114 : vector<8x128xf32>
    %148 = arith.mulf %129, %139 : vector<8x128xf32>
    %149 = arith.addf %147, %148 : vector<8x128xf32>
    %150 = math.tanh %149 : vector<8x128xf32>
    %151 = arith.mulf %146, %150 : vector<8x128xf32>
    %152 = vector.extract_strided_slice %8 {offsets = [0, 4, 0], sizes = [8, 1, 512], strides = [1, 1, 1]} : vector<8x8x512xf32> to vector<8x1x512xf32>
    %153 = vector.shape_cast %152 : vector<8x1x512xf32> to vector<8x512xf32>
    %154 = arith.truncf %151 : vector<8x128xf32> to vector<8x128xbf16>
    %cst_26 = arith.constant dense<0.000000e+00> : vector<8x512xf32>
    %155 = tpu.matmul %154, %9, %cst_26 {dimension_numbers = #tpu.dot_dimension_numbers<[1], [0], [0], [1], [0, 0, 1, 1], [], []>} : vector<8x128xbf16>, vector<128x512xbf16>, vector<8x512xf32> -> vector<8x512xf32>
    %156 = arith.addf %153, %155 : vector<8x512xf32>
    %157 = arith.truncf %156 : vector<8x512xf32> to vector<8x512xbf16>
    %158 = vector.extract_strided_slice %157 {offsets = [0, 0], sizes = [8, 128], strides = [1, 1]} : vector<8x512xbf16> to vector<8x128xbf16>
    %159 = arith.negf %158 : vector<8x128xbf16>
    %160 = math.exp %159 : vector<8x128xbf16>
    %cst_27 = arith.constant 1.000000e+00 : bf16
    %161 = vector.broadcast %cst_27 : bf16 to vector<8x128xbf16>
    %162 = arith.addf %161, %160 : vector<8x128xbf16>
    %163 = arith.divf %161, %162 : vector<8x128xbf16>
    %164 = arith.extf %163 : vector<8x128xbf16> to vector<8x128xf32>
    %165 = vector.extract_strided_slice %157 {offsets = [0, 128], sizes = [8, 128], strides = [1, 1]} : vector<8x512xbf16> to vector<8x128xbf16>
    %166 = arith.negf %165 : vector<8x128xbf16>
    %167 = math.exp %166 : vector<8x128xbf16>
    %cst_28 = arith.constant 1.000000e+00 : bf16
    %168 = vector.broadcast %cst_28 : bf16 to vector<8x128xbf16>
    %169 = arith.addf %168, %167 : vector<8x128xbf16>
    %170 = arith.divf %168, %169 : vector<8x128xbf16>
    %171 = arith.extf %170 : vector<8x128xbf16> to vector<8x128xf32>
    %172 = vector.extract_strided_slice %157 {offsets = [0, 256], sizes = [8, 128], strides = [1, 1]} : vector<8x512xbf16> to vector<8x128xbf16>
    %173 = math.tanh %172 : vector<8x128xbf16>
    %174 = arith.extf %173 : vector<8x128xbf16> to vector<8x128xf32>
    %175 = vector.extract_strided_slice %157 {offsets = [0, 384], sizes = [8, 128], strides = [1, 1]} : vector<8x512xbf16> to vector<8x128xbf16>
    %176 = arith.negf %175 : vector<8x128xbf16>
    %177 = math.exp %176 : vector<8x128xbf16>
    %cst_29 = arith.constant 1.000000e+00 : bf16
    %178 = vector.broadcast %cst_29 : bf16 to vector<8x128xbf16>
    %179 = arith.addf %178, %177 : vector<8x128xbf16>
    %180 = arith.divf %178, %179 : vector<8x128xbf16>
    %181 = arith.extf %180 : vector<8x128xbf16> to vector<8x128xf32>
    %182 = arith.mulf %171, %149 : vector<8x128xf32>
    %183 = arith.mulf %164, %174 : vector<8x128xf32>
    %184 = arith.addf %182, %183 : vector<8x128xf32>
    %185 = math.tanh %184 : vector<8x128xf32>
    %186 = arith.mulf %181, %185 : vector<8x128xf32>
    %187 = vector.extract_strided_slice %8 {offsets = [0, 5, 0], sizes = [8, 1, 512], strides = [1, 1, 1]} : vector<8x8x512xf32> to vector<8x1x512xf32>
    %188 = vector.shape_cast %187 : vector<8x1x512xf32> to vector<8x512xf32>
    %189 = arith.truncf %186 : vector<8x128xf32> to vector<8x128xbf16>
    %cst_30 = arith.constant dense<0.000000e+00> : vector<8x512xf32>
    %190 = tpu.matmul %189, %9, %cst_30 {dimension_numbers = #tpu.dot_dimension_numbers<[1], [0], [0], [1], [0, 0, 1, 1], [], []>} : vector<8x128xbf16>, vector<128x512xbf16>, vector<8x512xf32> -> vector<8x512xf32>
    %191 = arith.addf %188, %190 : vector<8x512xf32>
    %192 = arith.truncf %191 : vector<8x512xf32> to vector<8x512xbf16>
    %193 = vector.extract_strided_slice %192 {offsets = [0, 0], sizes = [8, 128], strides = [1, 1]} : vector<8x512xbf16> to vector<8x128xbf16>
    %194 = arith.negf %193 : vector<8x128xbf16>
    %195 = math.exp %194 : vector<8x128xbf16>
    %cst_31 = arith.constant 1.000000e+00 : bf16
    %196 = vector.broadcast %cst_31 : bf16 to vector<8x128xbf16>
    %197 = arith.addf %196, %195 : vector<8x128xbf16>
    %198 = arith.divf %196, %197 : vector<8x128xbf16>
    %199 = arith.extf %198 : vector<8x128xbf16> to vector<8x128xf32>
    %200 = vector.extract_strided_slice %192 {offsets = [0, 128], sizes = [8, 128], strides = [1, 1]} : vector<8x512xbf16> to vector<8x128xbf16>
    %201 = arith.negf %200 : vector<8x128xbf16>
    %202 = math.exp %201 : vector<8x128xbf16>
    %cst_32 = arith.constant 1.000000e+00 : bf16
    %203 = vector.broadcast %cst_32 : bf16 to vector<8x128xbf16>
    %204 = arith.addf %203, %202 : vector<8x128xbf16>
    %205 = arith.divf %203, %204 : vector<8x128xbf16>
    %206 = arith.extf %205 : vector<8x128xbf16> to vector<8x128xf32>
    %207 = vector.extract_strided_slice %192 {offsets = [0, 256], sizes = [8, 128], strides = [1, 1]} : vector<8x512xbf16> to vector<8x128xbf16>
    %208 = math.tanh %207 : vector<8x128xbf16>
    %209 = arith.extf %208 : vector<8x128xbf16> to vector<8x128xf32>
    %210 = vector.extract_strided_slice %192 {offsets = [0, 384], sizes = [8, 128], strides = [1, 1]} : vector<8x512xbf16> to vector<8x128xbf16>
    %211 = arith.negf %210 : vector<8x128xbf16>
    %212 = math.exp %211 : vector<8x128xbf16>
    %cst_33 = arith.constant 1.000000e+00 : bf16
    %213 = vector.broadcast %cst_33 : bf16 to vector<8x128xbf16>
    %214 = arith.addf %213, %212 : vector<8x128xbf16>
    %215 = arith.divf %213, %214 : vector<8x128xbf16>
    %216 = arith.extf %215 : vector<8x128xbf16> to vector<8x128xf32>
    %217 = arith.mulf %206, %184 : vector<8x128xf32>
    %218 = arith.mulf %199, %209 : vector<8x128xf32>
    %219 = arith.addf %217, %218 : vector<8x128xf32>
    %220 = math.tanh %219 : vector<8x128xf32>
    %221 = arith.mulf %216, %220 : vector<8x128xf32>
    %222 = vector.extract_strided_slice %8 {offsets = [0, 6, 0], sizes = [8, 1, 512], strides = [1, 1, 1]} : vector<8x8x512xf32> to vector<8x1x512xf32>
    %223 = vector.shape_cast %222 : vector<8x1x512xf32> to vector<8x512xf32>
    %224 = arith.truncf %221 : vector<8x128xf32> to vector<8x128xbf16>
    %cst_34 = arith.constant dense<0.000000e+00> : vector<8x512xf32>
    %225 = tpu.matmul %224, %9, %cst_34 {dimension_numbers = #tpu.dot_dimension_numbers<[1], [0], [0], [1], [0, 0, 1, 1], [], []>} : vector<8x128xbf16>, vector<128x512xbf16>, vector<8x512xf32> -> vector<8x512xf32>
    %226 = arith.addf %223, %225 : vector<8x512xf32>
    %227 = arith.truncf %226 : vector<8x512xf32> to vector<8x512xbf16>
    %228 = vector.extract_strided_slice %227 {offsets = [0, 0], sizes = [8, 128], strides = [1, 1]} : vector<8x512xbf16> to vector<8x128xbf16>
    %229 = arith.negf %228 : vector<8x128xbf16>
    %230 = math.exp %229 : vector<8x128xbf16>
    %cst_35 = arith.constant 1.000000e+00 : bf16
    %231 = vector.broadcast %cst_35 : bf16 to vector<8x128xbf16>
    %232 = arith.addf %231, %230 : vector<8x128xbf16>
    %233 = arith.divf %231, %232 : vector<8x128xbf16>
    %234 = arith.extf %233 : vector<8x128xbf16> to vector<8x128xf32>
    %235 = vector.extract_strided_slice %227 {offsets = [0, 128], sizes = [8, 128], strides = [1, 1]} : vector<8x512xbf16> to vector<8x128xbf16>
    %236 = arith.negf %235 : vector<8x128xbf16>
    %237 = math.exp %236 : vector<8x128xbf16>
    %cst_36 = arith.constant 1.000000e+00 : bf16
    %238 = vector.broadcast %cst_36 : bf16 to vector<8x128xbf16>
    %239 = arith.addf %238, %237 : vector<8x128xbf16>
    %240 = arith.divf %238, %239 : vector<8x128xbf16>
    %241 = arith.extf %240 : vector<8x128xbf16> to vector<8x128xf32>
    %242 = vector.extract_strided_slice %227 {offsets = [0, 256], sizes = [8, 128], strides = [1, 1]} : vector<8x512xbf16> to vector<8x128xbf16>
    %243 = math.tanh %242 : vector<8x128xbf16>
    %244 = arith.extf %243 : vector<8x128xbf16> to vector<8x128xf32>
    %245 = vector.extract_strided_slice %227 {offsets = [0, 384], sizes = [8, 128], strides = [1, 1]} : vector<8x512xbf16> to vector<8x128xbf16>
    %246 = arith.negf %245 : vector<8x128xbf16>
    %247 = math.exp %246 : vector<8x128xbf16>
    %cst_37 = arith.constant 1.000000e+00 : bf16
    %248 = vector.broadcast %cst_37 : bf16 to vector<8x128xbf16>
    %249 = arith.addf %248, %247 : vector<8x128xbf16>
    %250 = arith.divf %248, %249 : vector<8x128xbf16>
    %251 = arith.extf %250 : vector<8x128xbf16> to vector<8x128xf32>
    %252 = arith.mulf %241, %219 : vector<8x128xf32>
    %253 = arith.mulf %234, %244 : vector<8x128xf32>
    %254 = arith.addf %252, %253 : vector<8x128xf32>
    %255 = math.tanh %254 : vector<8x128xf32>
    %256 = arith.mulf %251, %255 : vector<8x128xf32>
    %257 = vector.extract_strided_slice %8 {offsets = [0, 7, 0], sizes = [8, 1, 512], strides = [1, 1, 1]} : vector<8x8x512xf32> to vector<8x1x512xf32>
    %258 = vector.shape_cast %257 : vector<8x1x512xf32> to vector<8x512xf32>
    %259 = arith.truncf %256 : vector<8x128xf32> to vector<8x128xbf16>
    %cst_38 = arith.constant dense<0.000000e+00> : vector<8x512xf32>
    %260 = tpu.matmul %259, %9, %cst_38 {dimension_numbers = #tpu.dot_dimension_numbers<[1], [0], [0], [1], [0, 0, 1, 1], [], []>} : vector<8x128xbf16>, vector<128x512xbf16>, vector<8x512xf32> -> vector<8x512xf32>
    %261 = arith.addf %258, %260 : vector<8x512xf32>
    %262 = arith.truncf %261 : vector<8x512xf32> to vector<8x512xbf16>
    %263 = vector.extract_strided_slice %262 {offsets = [0, 0], sizes = [8, 128], strides = [1, 1]} : vector<8x512xbf16> to vector<8x128xbf16>
    %264 = arith.negf %263 : vector<8x128xbf16>
    %265 = math.exp %264 : vector<8x128xbf16>
    %cst_39 = arith.constant 1.000000e+00 : bf16
    %266 = vector.broadcast %cst_39 : bf16 to vector<8x128xbf16>
    %267 = arith.addf %266, %265 : vector<8x128xbf16>
    %268 = arith.divf %266, %267 : vector<8x128xbf16>
    %269 = arith.extf %268 : vector<8x128xbf16> to vector<8x128xf32>
    %270 = vector.extract_strided_slice %262 {offsets = [0, 128], sizes = [8, 128], strides = [1, 1]} : vector<8x512xbf16> to vector<8x128xbf16>
    %271 = arith.negf %270 : vector<8x128xbf16>
    %272 = math.exp %271 : vector<8x128xbf16>
    %cst_40 = arith.constant 1.000000e+00 : bf16
    %273 = vector.broadcast %cst_40 : bf16 to vector<8x128xbf16>
    %274 = arith.addf %273, %272 : vector<8x128xbf16>
    %275 = arith.divf %273, %274 : vector<8x128xbf16>
    %276 = arith.extf %275 : vector<8x128xbf16> to vector<8x128xf32>
    %277 = vector.extract_strided_slice %262 {offsets = [0, 256], sizes = [8, 128], strides = [1, 1]} : vector<8x512xbf16> to vector<8x128xbf16>
    %278 = math.tanh %277 : vector<8x128xbf16>
    %279 = arith.extf %278 : vector<8x128xbf16> to vector<8x128xf32>
    %280 = vector.extract_strided_slice %262 {offsets = [0, 384], sizes = [8, 128], strides = [1, 1]} : vector<8x512xbf16> to vector<8x128xbf16>
    %281 = arith.negf %280 : vector<8x128xbf16>
    %282 = math.exp %281 : vector<8x128xbf16>
    %cst_41 = arith.constant 1.000000e+00 : bf16
    %283 = vector.broadcast %cst_41 : bf16 to vector<8x128xbf16>
    %284 = arith.addf %283, %282 : vector<8x128xbf16>
    %285 = arith.divf %283, %284 : vector<8x128xbf16>
    %286 = arith.extf %285 : vector<8x128xbf16> to vector<8x128xf32>
    %287 = arith.mulf %276, %254 : vector<8x128xf32>
    %288 = arith.mulf %269, %279 : vector<8x128xf32>
    %289 = arith.addf %287, %288 : vector<8x128xf32>
    %290 = math.tanh %289 : vector<8x128xf32>
    %291 = arith.mulf %286, %290 : vector<8x128xf32>
    %c0_42 = arith.constant 0 : index
    %c0_43 = arith.constant 0 : index
    %292 = vector.load %arg2[%c0_42, %c0_43] : memref<8x64xf32, #tpu.memory_space<vmem>>, vector<8x64xf32>
    %293 = arith.truncf %292 : vector<8x64xf32> to vector<8x64xbf16>
    %c0_44 = arith.constant 0 : index
    %c0_45 = arith.constant 0 : index
    %294 = vector.load %arg6[%c0_44, %c0_45] : memref<64x512xbf16, #tpu.memory_space<vmem>>, vector<64x512xbf16>
    %cst_46 = arith.constant dense<0.000000e+00> : vector<8x512xf32>
    %295 = tpu.matmul %293, %294, %cst_46 {dimension_numbers = #tpu.dot_dimension_numbers<[1], [0], [0], [1], [0, 0, 1, 1], [], []>} : vector<8x64xbf16>, vector<64x512xbf16>, vector<8x512xf32> -> vector<8x512xf32>
    %296 = arith.truncf %291 : vector<8x128xf32> to vector<8x128xbf16>
    %c0_47 = arith.constant 0 : index
    %c0_48 = arith.constant 0 : index
    %297 = vector.load %arg7[%c0_47, %c0_48] : memref<128x512xbf16, #tpu.memory_space<vmem>>, vector<128x512xbf16>
    %cst_49 = arith.constant dense<0.000000e+00> : vector<8x512xf32>
    %298 = tpu.matmul %296, %297, %cst_49 {dimension_numbers = #tpu.dot_dimension_numbers<[1], [0], [0], [1], [0, 0, 1, 1], [], []>} : vector<8x128xbf16>, vector<128x512xbf16>, vector<8x512xf32> -> vector<8x512xf32>
    %299 = arith.addf %295, %298 : vector<8x512xf32>
    %c0_50 = arith.constant 0 : index
    %c0_51 = arith.constant 0 : index
    %300 = vector.load %arg8[%c0_50, %c0_51] : memref<1x512xf32, #tpu.memory_space<vmem>>, vector<1x512xf32>
    %301 = vector.broadcast %300 : vector<1x512xf32> to vector<8x512xf32>
    %302 = arith.addf %299, %301 : vector<8x512xf32>
    %cst_52 = arith.constant 0.000000e+00 : f32
    %303 = vector.broadcast %cst_52 : f32 to vector<8x512xf32>
    %304 = arith.maximumf %302, %303 : vector<8x512xf32>
    %305 = arith.truncf %304 : vector<8x512xf32> to vector<8x512xbf16>
    %c0_53 = arith.constant 0 : index
    %c0_54 = arith.constant 0 : index
    %c0_55 = arith.constant 0 : index
    %306 = vector.load %arg9[%c0_53, %c0_54, %c0_55] : memref<4x512x512xbf16, #tpu.memory_space<vmem>>, vector<1x512x512xbf16>
    %307 = vector.shape_cast %306 : vector<1x512x512xbf16> to vector<512x512xbf16>
    %cst_56 = arith.constant dense<0.000000e+00> : vector<8x512xf32>
    %308 = tpu.matmul %305, %307, %cst_56 {dimension_numbers = #tpu.dot_dimension_numbers<[1], [0], [0], [1], [0, 0, 1, 1], [], []>} : vector<8x512xbf16>, vector<512x512xbf16>, vector<8x512xf32> -> vector<8x512xf32>
    %c0_57 = arith.constant 0 : index
    %c0_58 = arith.constant 0 : index
    %c0_59 = arith.constant 0 : index
    %309 = vector.load %arg10[%c0_57, %c0_58, %c0_59] : memref<4x1x512xf32, #tpu.memory_space<vmem>>, vector<1x1x512xf32>
    %310 = vector.shape_cast %309 : vector<1x1x512xf32> to vector<1x512xf32>
    %311 = vector.broadcast %310 : vector<1x512xf32> to vector<8x512xf32>
    %312 = arith.addf %308, %311 : vector<8x512xf32>
    %cst_60 = arith.constant 0.000000e+00 : f32
    %313 = vector.broadcast %cst_60 : f32 to vector<8x512xf32>
    %314 = arith.maximumf %312, %313 : vector<8x512xf32>
    %315 = arith.truncf %314 : vector<8x512xf32> to vector<8x512xbf16>
    %c1 = arith.constant 1 : index
    %c0_61 = arith.constant 0 : index
    %c0_62 = arith.constant 0 : index
    %316 = vector.load %arg9[%c1, %c0_61, %c0_62] : memref<4x512x512xbf16, #tpu.memory_space<vmem>>, vector<1x512x512xbf16>
    %317 = vector.shape_cast %316 : vector<1x512x512xbf16> to vector<512x512xbf16>
    %cst_63 = arith.constant dense<0.000000e+00> : vector<8x512xf32>
    %318 = tpu.matmul %315, %317, %cst_63 {dimension_numbers = #tpu.dot_dimension_numbers<[1], [0], [0], [1], [0, 0, 1, 1], [], []>} : vector<8x512xbf16>, vector<512x512xbf16>, vector<8x512xf32> -> vector<8x512xf32>
    %c1_64 = arith.constant 1 : index
    %c0_65 = arith.constant 0 : index
    %c0_66 = arith.constant 0 : index
    %319 = vector.load %arg10[%c1_64, %c0_65, %c0_66] : memref<4x1x512xf32, #tpu.memory_space<vmem>>, vector<1x1x512xf32>
    %320 = vector.shape_cast %319 : vector<1x1x512xf32> to vector<1x512xf32>
    %321 = vector.broadcast %320 : vector<1x512xf32> to vector<8x512xf32>
    %322 = arith.addf %318, %321 : vector<8x512xf32>
    %cst_67 = arith.constant 0.000000e+00 : f32
    %323 = vector.broadcast %cst_67 : f32 to vector<8x512xf32>
    %324 = arith.maximumf %322, %323 : vector<8x512xf32>
    %325 = arith.truncf %324 : vector<8x512xf32> to vector<8x512xbf16>
    %c2 = arith.constant 2 : index
    %c0_68 = arith.constant 0 : index
    %c0_69 = arith.constant 0 : index
    %326 = vector.load %arg9[%c2, %c0_68, %c0_69] : memref<4x512x512xbf16, #tpu.memory_space<vmem>>, vector<1x512x512xbf16>
    %327 = vector.shape_cast %326 : vector<1x512x512xbf16> to vector<512x512xbf16>
    %cst_70 = arith.constant dense<0.000000e+00> : vector<8x512xf32>
    %328 = tpu.matmul %325, %327, %cst_70 {dimension_numbers = #tpu.dot_dimension_numbers<[1], [0], [0], [1], [0, 0, 1, 1], [], []>} : vector<8x512xbf16>, vector<512x512xbf16>, vector<8x512xf32> -> vector<8x512xf32>
    %c2_71 = arith.constant 2 : index
    %c0_72 = arith.constant 0 : index
    %c0_73 = arith.constant 0 : index
    %329 = vector.load %arg10[%c2_71, %c0_72, %c0_73] : memref<4x1x512xf32, #tpu.memory_space<vmem>>, vector<1x1x512xf32>
    %330 = vector.shape_cast %329 : vector<1x1x512xf32> to vector<1x512xf32>
    %331 = vector.broadcast %330 : vector<1x512xf32> to vector<8x512xf32>
    %332 = arith.addf %328, %331 : vector<8x512xf32>
    %cst_74 = arith.constant 0.000000e+00 : f32
    %333 = vector.broadcast %cst_74 : f32 to vector<8x512xf32>
    %334 = arith.maximumf %332, %333 : vector<8x512xf32>
    %335 = arith.truncf %334 : vector<8x512xf32> to vector<8x512xbf16>
    %c3 = arith.constant 3 : index
    %c0_75 = arith.constant 0 : index
    %c0_76 = arith.constant 0 : index
    %336 = vector.load %arg9[%c3, %c0_75, %c0_76] : memref<4x512x512xbf16, #tpu.memory_space<vmem>>, vector<1x512x512xbf16>
    %337 = vector.shape_cast %336 : vector<1x512x512xbf16> to vector<512x512xbf16>
    %cst_77 = arith.constant dense<0.000000e+00> : vector<8x512xf32>
    %338 = tpu.matmul %335, %337, %cst_77 {dimension_numbers = #tpu.dot_dimension_numbers<[1], [0], [0], [1], [0, 0, 1, 1], [], []>} : vector<8x512xbf16>, vector<512x512xbf16>, vector<8x512xf32> -> vector<8x512xf32>
    %c3_78 = arith.constant 3 : index
    %c0_79 = arith.constant 0 : index
    %c0_80 = arith.constant 0 : index
    %339 = vector.load %arg10[%c3_78, %c0_79, %c0_80] : memref<4x1x512xf32, #tpu.memory_space<vmem>>, vector<1x1x512xf32>
    %340 = vector.shape_cast %339 : vector<1x1x512xf32> to vector<1x512xf32>
    %341 = vector.broadcast %340 : vector<1x512xf32> to vector<8x512xf32>
    %342 = arith.addf %338, %341 : vector<8x512xf32>
    %cst_81 = arith.constant 0.000000e+00 : f32
    %343 = vector.broadcast %cst_81 : f32 to vector<8x512xf32>
    %344 = arith.maximumf %342, %343 : vector<8x512xf32>
    %c0_82 = arith.constant 0 : index
    %c0_83 = arith.constant 0 : index
    %345 = vector.load %arg11[%c0_82, %c0_83] : memref<1x512xf32, #tpu.memory_space<vmem>>, vector<1x512xf32>
    %346 = vector.broadcast %345 : vector<1x512xf32> to vector<8x512xf32>
    %347 = arith.mulf %344, %346 : vector<8x512xf32>
    %cst_84 = arith.constant dense<0.000000e+00> : vector<8xf32>
    %348 = vector.multi_reduction <add>, %347, %cst_84 [1] : vector<8x512xf32> to vector<8xf32>
    %349 = vector.shape_cast %348 : vector<8xf32> to vector<8x1xf32>
    %c0_85 = arith.constant 0 : index
    %c0_86 = arith.constant 0 : index
    %350 = vector.load %arg12[%c0_85, %c0_86] : memref<1x1xf32, #tpu.memory_space<vmem>>, vector<1x1xf32>
    %351 = vector.broadcast %350 : vector<1x1xf32> to vector<8x1xf32>
    %352 = arith.addf %349, %351 : vector<8x1xf32>
    %c0_87 = arith.constant 0 : index
    %c0_88 = arith.constant 0 : index
    %353 = vector.load %arg13[%c0_87, %c0_88] : memref<8x1xf32, #tpu.memory_space<vmem>>, vector<8x1xf32>
    tpu.vector_store %arg13[%c0_87, %c0_88], %352 {strides = array<i32>} : memref<8x1xf32, #tpu.memory_space<vmem>>, vector<8x1xf32>,
    return
  }
  func.func @transform_0(%arg0: i32) -> (i32, i32, i32) {
    %c0_i32 = arith.constant 0 : i32
    %c0_i32_0 = arith.constant 0 : i32
    %c0_i32_1 = arith.constant 0 : i32
    return %arg0, %c0_i32, %c0_i32_0 : i32, i32, i32
  }
  func.func @transform_1(%arg0: i32) -> (i32, i32) {
    %c0_i32 = arith.constant 0 : i32
    %c0_i32_0 = arith.constant 0 : i32
    return %arg0, %c0_i32 : i32, i32
  }
  func.func @transform_2(%arg0: i32) -> (i32, i32) {
    %c0_i32 = arith.constant 0 : i32
    %c0_i32_0 = arith.constant 0 : i32
    %c0_i32_1 = arith.constant 0 : i32
    return %c0_i32, %c0_i32_0 : i32, i32
  }
  func.func @transform_3(%arg0: i32) -> (i32, i32) {
    %c0_i32 = arith.constant 0 : i32
    %c0_i32_0 = arith.constant 0 : i32
    %c0_i32_1 = arith.constant 0 : i32
    return %c0_i32, %c0_i32_0 : i32, i32
  }
  func.func @transform_4(%arg0: i32) -> (i32, i32) {
    %c0_i32 = arith.constant 0 : i32
    %c0_i32_0 = arith.constant 0 : i32
    %c0_i32_1 = arith.constant 0 : i32
    return %c0_i32, %c0_i32_0 : i32, i32
  }
  func.func @transform_5(%arg0: i32) -> (i32, i32) {
    %c0_i32 = arith.constant 0 : i32
    %c0_i32_0 = arith.constant 0 : i32
    %c0_i32_1 = arith.constant 0 : i32
    return %c0_i32, %c0_i32_0 : i32, i32
  }
  func.func @transform_6(%arg0: i32) -> (i32, i32) {
    %c0_i32 = arith.constant 0 : i32
    %c0_i32_0 = arith.constant 0 : i32
    %c0_i32_1 = arith.constant 0 : i32
    return %c0_i32, %c0_i32_0 : i32, i32
  }
  func.func @transform_7(%arg0: i32) -> (i32, i32) {
    %c0_i32 = arith.constant 0 : i32
    %c0_i32_0 = arith.constant 0 : i32
    %c0_i32_1 = arith.constant 0 : i32
    return %c0_i32, %c0_i32_0 : i32, i32
  }
  func.func @transform_8(%arg0: i32) -> (i32, i32, i32) {
    %c0_i32 = arith.constant 0 : i32
    %c0_i32_0 = arith.constant 0 : i32
    %c0_i32_1 = arith.constant 0 : i32
    %c0_i32_2 = arith.constant 0 : i32
    return %c0_i32, %c0_i32_0, %c0_i32_1 : i32, i32, i32
  }
  func.func @transform_9(%arg0: i32) -> (i32, i32, i32) {
    %c0_i32 = arith.constant 0 : i32
    %c0_i32_0 = arith.constant 0 : i32
    %c0_i32_1 = arith.constant 0 : i32
    %c0_i32_2 = arith.constant 0 : i32
    return %c0_i32, %c0_i32_0, %c0_i32_1 : i32, i32, i32
  }
  func.func @transform_10(%arg0: i32) -> (i32, i32) {
    %c0_i32 = arith.constant 0 : i32
    %c0_i32_0 = arith.constant 0 : i32
    %c0_i32_1 = arith.constant 0 : i32
    return %c0_i32, %c0_i32_0 : i32, i32
  }
  func.func @transform_11(%arg0: i32) -> (i32, i32) {
    %c0_i32 = arith.constant 0 : i32
    %c0_i32_0 = arith.constant 0 : i32
    %c0_i32_1 = arith.constant 0 : i32
    return %c0_i32, %c0_i32_0 : i32, i32
  }
  func.func @transform_12(%arg0: i32) -> (i32, i32) {
    %c0_i32 = arith.constant 0 : i32
    %c0_i32_0 = arith.constant 0 : i32
    return %arg0, %c0_i32 : i32, i32
  }
}

</mosaic_0001>

<llo_original>
// kernel: _forward_impl.1
$region0: #{_forward_impl.1}
  #allocation0 [shape = 'u32[]', space=smem, size = 0x4, offset = 0x4, fixed_abs, tag = 'smem constant byte address 0x4 - core index']
  #allocation1 [shape = 'u32[144,128]{1,0:T(1,128)}', space=vmem, size = 0x12000, scoped, tag = 'internal scratch']
  #allocation2 [shape = 'f32[1,1]{1,0:T(1,128)S(1)}', space=vmem, size = 0x200, scoped, tag = 'scoped memory for _forward_impl.1']
  %s0 = inlined_call_operand.hbm [shape: f32[8,8,256], index: 0, kind: input, shape index: {}]
  %s1 = inlined_call_operand.hbm [shape: f32[8,64], index: 1, kind: input, shape index: {}]
  %s2 = inlined_call_operand.hbm [shape: bf16[256,512], index: 2, kind: input, shape index: {}]
  %s3 = inlined_call_operand.hbm [shape: bf16[128,512], index: 3, kind: input, shape index: {}]
  %s4 = inlined_call_operand.hbm [shape: f32[1,512], index: 4, kind: input, shape index: {}]
  %s5 = inlined_call_operand.hbm [shape: bf16[64,512], index: 5, kind: input, shape index: {}]
  %s6 = inlined_call_operand.hbm [shape: bf16[128,512], index: 6, kind: input, shape index: {}]
  %s7 = inlined_call_operand.hbm [shape: f32[1,512], index: 7, kind: input, shape index: {}]
  %s8 = inlined_call_operand.hbm [shape: bf16[4,512,512], index: 8, kind: input, shape index: {}]
  %s9 = inlined_call_operand.hbm [shape: f32[4,1,512], index: 9, kind: input, shape index: {}]
  %s10 = inlined_call_operand.hbm [shape: f32[1,512], index: 10, kind: input, shape index: {}]
  %s11 = inlined_call_operand.<no memory space> [shape: f32[1,1], index: 11, kind: input, shape index: {}]
  %s12 = inlined_call_operand.hbm [shape: f32[8,1], index: 12, kind: output, shape index: {}]
  %s13 = sld [smem:[#allocation0]]
  $region102: #{_forward_impl.1} parent=0
    _
  %s15 = ssub.s32 1, %s13
  %s16 = scalar_select 0, %s15, %s13
  %v17 = vstv %s11
  %18 = vst [vmem:[#allocation2] sm:$0x1] %v17
  $region1: #{_forward_impl.1} parent=0
    #allocation3 [shape = 'u8[65536]{0}', space=vmem, size = 0x10000, scoped, tag = 'input window, operand 0, single buffered']
    #allocation4 [shape = 's32[1]{0}', space=sflag, size = 0x4, scoped, tag = 'scoped memory for _forward_impl.1']
    #allocation5 [shape = 's32[1]{0}', space=sflag, size = 0x4, scoped, tag = 'scoped memory for _forward_impl.1']
    #allocation6 [shape = 'u8[4096]{0}', space=vmem, size = 0x1000, scoped, tag = 'input window, operand 1, single buffered']
    #allocation7 [shape = 's32[1]{0}', space=sflag, size = 0x4, scoped, tag = 'scoped memory for _forward_impl.1']
    #allocation8 [shape = 'u8[262144]{0}', space=vmem, size = 0x40000, scoped, tag = 'input window, operand 2, single buffered']
    #allocation9 [shape = 'u8[131072]{0}', space=vmem, size = 0x20000, scoped, tag = 'input window, operand 3, single buffered']
    #allocation10 [shape = 's32[1]{0}', space=sflag, size = 0x4, scoped, tag = 'scoped memory for _forward_impl.1']
    #allocation11 [shape = 'u8[2048]{0}', space=vmem, size = 0x800, scoped, tag = 'input window, operand 4, single buffered']
    #allocation12 [shape = 'u8[65536]{0}', space=vmem, size = 0x10000, scoped, tag = 'input window, operand 5, single buffered']
    #allocation13 [shape = 's32[1]{0}', space=sflag, size = 0x4, scoped, tag = 'scoped memory for _forward_impl.1']
    #allocation14 [shape = 'u8[131072]{0}', space=vmem, size = 0x20000, scoped, tag = 'input window, operand 6, single buffered']
    #allocation15 [shape = 'u8[2048]{0}', space=vmem, size = 0x800, scoped, tag = 'input window, operand 7, single buffered']
    #allocation16 [shape = 's32[1]{0}', space=sflag, size = 0x4, scoped, tag = 'scoped memory for _forward_impl.1']
    #allocation17 [shape = 'u8[2097152]{0}', space=vmem, size = 0x200000, scoped, tag = 'input window, operand 8, single buffered']
    #allocation18 [shape = 'u8[8192]{0}', space=vmem, size = 0x2000, scoped, tag = 'input window, operand 9, single buffered']
    #allocation19 [shape = 's32[1]{0}', space=sflag, size = 0x4, scoped, tag = 'scoped memory for _forward_impl.1']
    #allocation20 [shape = 'u8[2048]{0}', space=vmem, size = 0x800, scoped, tag = 'input window, operand 10, single buffered']
    #allocation21 [shape = 'u8[4096]{0}', space=vmem, size = 0x1000, scoped, tag = 'output window, operand 0, single buffered']
    %19 = vsyncpa [#allocation4], 0
    %20 = vsyncpa [#allocation7], 0
    %21 = vsyncpa [#allocation10], 0
    %22 = vsyncpa [#allocation13], 0
    %23 = vsyncpa [#allocation16], 0
    %24 = vsyncpa [#allocation19], 0
    %25 = vsyncpa [#allocation5], 0
    // Predicated region
    $region2: #{_forward_impl.1} parent=1 // pred_check
      _
    $region3: #{_forward_impl.1} parent=1 // pred_check_branch
      %27 = sbr.rel (0) target = $region5
    $region4: #{_forward_impl.1} parent=1 // pred_region
      %s29 = ssub.s32 2048, 2048
      %30 = vsyncadd [#allocation4], %s29
      %s31 = sshll.u32 [#allocation3], 4
      %s32 = int_to_ptr.vmem [resolvable:$true] %s31
      %37 = dma.hbm_to_vmem [thread:$0]  %s0, 2048, %s32, [#allocation4], 256, 256, 16
    $region5: #{_forward_impl.1} parent=1 // pred_fallthru
      _
    // Predicated region
    $region6: #{_forward_impl.1} parent=1 // pred_check
      _
    $region7: #{_forward_impl.1} parent=1 // pred_check_branch
      %39 = sbr.rel (0) target = $region9
    $region8: #{_forward_impl.1} parent=1 // pred_region
      %s41 = ssub.s32 128, 128
      %42 = vsyncadd [#allocation7], %s41
      %s44 = sshll.u32 [#allocation6], 4
      %s45 = int_to_ptr.vmem [resolvable:$true] %s44
      %47 = dma.hbm_to_vmem [thread:$0]  %s1, 128, %s45, [#allocation7]
    $region9: #{_forward_impl.1} parent=1 // pred_fallthru
      _
    // Predicated region
    $region10: #{_forward_impl.1} parent=1 // pred_check
      _
    $region11: #{_forward_impl.1} parent=1 // pred_check_branch
      %49 = sbr.rel (0) target = $region13
    $region12: #{_forward_impl.1} parent=1 // pred_region
      %s51 = ssub.s32 8192, 8192
      %52 = vsyncadd [#allocation7], %s51
      %s53 = sshll.u32 [#allocation8], 4
      %s54 = int_to_ptr.vmem [resolvable:$true] %s53
      %59 = dma.hbm_to_vmem [thread:$0]  %s2, 8192, %s54, [#allocation7], 256, 256, 16
    $region13: #{_forward_impl.1} parent=1 // pred_fallthru
      _
    // Predicated region
    $region14: #{_forward_impl.1} parent=1 // pred_check
      _
    $region15: #{_forward_impl.1} parent=1 // pred_check_branch
      %61 = sbr.rel (0) target = $region17
    $region16: #{_forward_impl.1} parent=1 // pred_region
      %s63 = ssub.s32 4096, 4096
      %64 = vsyncadd [#allocation10], %s63
      %s65 = sshll.u32 [#allocation9], 4
      %s66 = int_to_ptr.vmem [resolvable:$true] %s65
      %71 = dma.hbm_to_vmem [thread:$0]  %s3, 4096, %s66, [#allocation10], 256, 256, 16
    $region17: #{_forward_impl.1} parent=1 // pred_fallthru
      _
    // Predicated region
    $region18: #{_forward_impl.1} parent=1 // pred_check
      _
    $region19: #{_forward_impl.1} parent=1 // pred_check_branch
      %73 = sbr.rel (0) target = $region21
    $region20: #{_forward_impl.1} parent=1 // pred_region
      %s75 = ssub.s32 64, 64
      %76 = vsyncadd [#allocation10], %s75
      %s78 = sshll.u32 [#allocation11], 4
      %s79 = int_to_ptr.vmem [resolvable:$true] %s78
      %81 = dma.hbm_to_vmem [thread:$0]  %s4, 64, %s79, [#allocation10]
    $region21: #{_forward_impl.1} parent=1 // pred_fallthru
      _
    // Predicated region
    $region22: #{_forward_impl.1} parent=1 // pred_check
      _
    $region23: #{_forward_impl.1} parent=1 // pred_check_branch
      %83 = sbr.rel (0) target = $region25
    $region24: #{_forward_impl.1} parent=1 // pred_region
      %s85 = ssub.s32 2048, 2048
      %86 = vsyncadd [#allocation13], %s85
      %s87 = sshll.u32 [#allocation12], 4
      %s88 = int_to_ptr.vmem [resolvable:$true] %s87
      %93 = dma.hbm_to_vmem [thread:$0]  %s5, 2048, %s88, [#allocation13], 256, 256, 16
    $region25: #{_forward_impl.1} parent=1 // pred_fallthru
      _
    // Predicated region
    $region26: #{_forward_impl.1} parent=1 // pred_check
      _
    $region27: #{_forward_impl.1} parent=1 // pred_check_branch
      %95 = sbr.rel (0) target = $region29
    $region28: #{_forward_impl.1} parent=1 // pred_region
      %s97 = ssub.s32 4096, 4096
      %98 = vsyncadd [#allocation13], %s97
      %s99 = sshll.u32 [#allocation14], 4
      %s100 = int_to_ptr.vmem [resolvable:$true] %s99
      %105 = dma.hbm_to_vmem [thread:$0]  %s6, 4096, %s100, [#allocation13], 256, 256, 16
    $region29: #{_forward_impl.1} parent=1 // pred_fallthru
      _
    // Predicated region
    $region30: #{_forward_impl.1} parent=1 // pred_check
      _
    $region31: #{_forward_impl.1} parent=1 // pred_check_branch
      %107 = sbr.rel (0) target = $region33
    $region32: #{_forward_impl.1} parent=1 // pred_region
      %s109 = ssub.s32 64, 64
      %110 = vsyncadd [#allocation16], %s109
      %s112 = sshll.u32 [#allocation15], 4
      %s113 = int_to_ptr.vmem [resolvable:$true] %s112
      %115 = dma.hbm_to_vmem [thread:$0]  %s7, 64, %s113, [#allocation16]
    $region33: #{_forward_impl.1} parent=1 // pred_fallthru
      _
    // Predicated region
    $region34: #{_forward_impl.1} parent=1 // pred_check
      _
    $region35: #{_forward_impl.1} parent=1 // pred_check_branch
      %117 = sbr.rel (0) target = $region37
    $region36: #{_forward_impl.1} parent=1 // pred_region
      %s119 = ssub.s32 65536, 65536
      %120 = vsyncadd [#allocation16], %s119
      %s121 = sshll.u32 [#allocation17], 4
      %s122 = int_to_ptr.vmem [resolvable:$true] %s121
      %127 = dma.hbm_to_vmem [thread:$0]  %s8, 65536, %s122, [#allocation16], 256, 256, 16
    $region37: #{_forward_impl.1} parent=1 // pred_fallthru
      _
    // Predicated region
    $region38: #{_forward_impl.1} parent=1 // pred_check
      _
    $region39: #{_forward_impl.1} parent=1 // pred_check_branch
      %129 = sbr.rel (0) target = $region41
    $region40: #{_forward_impl.1} parent=1 // pred_region
      %s131 = ssub.s32 256, 256
      %132 = vsyncadd [#allocation19], %s131
      %s133 = sshll.u32 [#allocation18], 4
      %s134 = int_to_ptr.vmem [resolvable:$true] %s133
      %139 = dma.hbm_to_vmem [thread:$0]  %s9, 256, %s134, [#allocation19], 64, 64, 4
    $region41: #{_forward_impl.1} parent=1 // pred_fallthru
      _
    // Predicated region
    $region42: #{_forward_impl.1} parent=1 // pred_check
      _
    $region43: #{_forward_impl.1} parent=1 // pred_check_branch
      %141 = sbr.rel (0) target = $region45
    $region44: #{_forward_impl.1} parent=1 // pred_region
      %s143 = ssub.s32 64, 64
      %144 = vsyncadd [#allocation19], %s143
      %s146 = sshll.u32 [#allocation20], 4
      %s147 = int_to_ptr.vmem [resolvable:$true] %s146
      %149 = dma.hbm_to_vmem [thread:$0]  %s10, 64, %s147, [#allocation19]
    $region45: #{_forward_impl.1} parent=1 // pred_fallthru
      _
    // Predicated region
    $region46: #{_forward_impl.1} parent=1 // pred_check
      _
    $region47: #{_forward_impl.1} parent=1 // pred_check_branch
      %151 = sbr.rel (0) target = $region49
    $region48: #{_forward_impl.1} parent=1 // pred_region
      _
    $region49: #{_forward_impl.1} parent=1 // pred_fallthru
      _
    // Predicated region
    $region50: #{_forward_impl.1} parent=1 // pred_check
      _
    $region51: #{_forward_impl.1} parent=1 // pred_check_branch
      %153 = sbr.rel (0) target = $region53
    $region52: #{_forward_impl.1} parent=1 // pred_region
      %154 = dma.done [#allocation4], 2048
    $region53: #{_forward_impl.1} parent=1 // pred_fallthru
      _
    // Predicated region
    $region54: #{_forward_impl.1} parent=1 // pred_check
      _
    $region55: #{_forward_impl.1} parent=1 // pred_check_branch
      %156 = sbr.rel (0) target = $region57
    $region56: #{_forward_impl.1} parent=1 // pred_region
      %157 = dma.done [#allocation7], 128
    $region57: #{_forward_impl.1} parent=1 // pred_fallthru
      _
    // Predicated region
    $region58: #{_forward_impl.1} parent=1 // pred_check
      _
    $region59: #{_forward_impl.1} parent=1 // pred_check_branch
      %159 = sbr.rel (0) target = $region61
    $region60: #{_forward_impl.1} parent=1 // pred_region
      %160 = dma.done [#allocation7], 8192
    $region61: #{_forward_impl.1} parent=1 // pred_fallthru
      _
    // Predicated region
    $region62: #{_forward_impl.1} parent=1 // pred_check
      _
    $region63: #{_forward_impl.1} parent=1 // pred_check_branch
      %162 = sbr.rel (0) target = $region65
    $region64: #{_forward_impl.1} parent=1 // pred_region
      %163 = dma.done [#allocation10], 4096
    $region65: #{_forward_impl.1} parent=1 // pred_fallthru
      _
    // Predicated region
    $region66: #{_forward_impl.1} parent=1 // pred_check
      _
    $region67: #{_forward_impl.1} parent=1 // pred_check_branch
      %165 = sbr.rel (0) target = $region69
    $region68: #{_forward_impl.1} parent=1 // pred_region
      %166 = dma.done [#allocation10], 64
    $region69: #{_forward_impl.1} parent=1 // pred_fallthru
      _
    // Predicated region
    $region70: #{_forward_impl.1} parent=1 // pred_check
      _
    $region71: #{_forward_impl.1} parent=1 // pred_check_branch
      %168 = sbr.rel (0) target = $region73
    $region72: #{_forward_impl.1} parent=1 // pred_region
      %169 = dma.done [#allocation13], 2048
    $region73: #{_forward_impl.1} parent=1 // pred_fallthru
      _
    // Predicated region
    $region74: #{_forward_impl.1} parent=1 // pred_check
      _
    $region75: #{_forward_impl.1} parent=1 // pred_check_branch
      %171 = sbr.rel (0) target = $region77
    $region76: #{_forward_impl.1} parent=1 // pred_region
      %172 = dma.done [#allocation13], 4096
    $region77: #{_forward_impl.1} parent=1 // pred_fallthru
      _
    // Predicated region
    $region78: #{_forward_impl.1} parent=1 // pred_check
      _
    $region79: #{_forward_impl.1} parent=1 // pred_check_branch
      %174 = sbr.rel (0) target = $region81
    $region80: #{_forward_impl.1} parent=1 // pred_region
      %175 = dma.done [#allocation16], 64
    $region81: #{_forward_impl.1} parent=1 // pred_fallthru
      _
    // Predicated region
    $region82: #{_forward_impl.1} parent=1 // pred_check
      _
    $region83: #{_forward_impl.1} parent=1 // pred_check_branch
      %177 = sbr.rel (0) target = $region85
    $region84: #{_forward_impl.1} parent=1 // pred_region
      %178 = dma.done [#allocation16], 65536
    $region85: #{_forward_impl.1} parent=1 // pred_fallthru
      _
    // Predicated region
    $region86: #{_forward_impl.1} parent=1 // pred_check
      _
    $region87: #{_forward_impl.1} parent=1 // pred_check_branch
      %180 = sbr.rel (0) target = $region89
    $region88: #{_forward_impl.1} parent=1 // pred_region
      %181 = dma.done [#allocation19], 256
    $region89: #{_forward_impl.1} parent=1 // pred_fallthru
      _
    // Predicated region
    $region90: #{_forward_impl.1} parent=1 // pred_check
      _
    $region91: #{_forward_impl.1} parent=1 // pred_check_branch
      %183 = sbr.rel (0) target = $region93
    $region92: #{_forward_impl.1} parent=1 // pred_region
      %184 = dma.done [#allocation19], 64
    $region93: #{_forward_impl.1} parent=1 // pred_fallthru
      _
    %v187 = vld [vmem:[#allocation3] sm:$0xff]
    %v188 = vld [vmem:[#allocation3 + $0x8] sm:$0xff]
    %v189 = vld [vmem:[#allocation3 + $0x10] sm:$0xff]
    %v190 = vld [vmem:[#allocation3 + $0x18] sm:$0xff]
    %v191 = vld [vmem:[#allocation3 + $0x20] sm:$0xff]
    %v192 = vld [vmem:[#allocation3 + $0x28] sm:$0xff]
    %v193 = vld [vmem:[#allocation3 + $0x30] sm:$0xff]
    %v194 = vld [vmem:[#allocation3 + $0x38] sm:$0xff]
    %v195 = vld [vmem:[#allocation3 + $0x40] sm:$0xff]
    %v196 = vld [vmem:[#allocation3 + $0x48] sm:$0xff]
    %v197 = vld [vmem:[#allocation3 + $0x50] sm:$0xff]
    %v198 = vld [vmem:[#allocation3 + $0x58] sm:$0xff]
    %v199 = vld [vmem:[#allocation3 + $0x60] sm:$0xff]
    %v200 = vld [vmem:[#allocation3 + $0x68] sm:$0xff]
    %v201 = vld [vmem:[#allocation3 + $0x70] sm:$0xff]
    %v202 = vld [vmem:[#allocation3 + $0x78] sm:$0xff]
    %v203 = vpack.c.bf16 %v189, %v187
    %v204 = vpack.c.bf16 %v190, %v188
    %v205 = vpack.c.bf16 %v193, %v191
    %v206 = vpack.c.bf16 %v194, %v192
    %v207 = vpack.c.bf16 %v197, %v195
    %v208 = vpack.c.bf16 %v198, %v196
    %v209 = vpack.c.bf16 %v201, %v199
    %v210 = vpack.c.bf16 %v202, %v200
    %v211 = vld [vmem:[#allocation8] sm:$0xff]
    %v212 = vld [vmem:[#allocation8 + $0x8] sm:$0xff]
    %v213 = vld [vmem:[#allocation8 + $0x10] sm:$0xff]
    %v214 = vld [vmem:[#allocation8 + $0x18] sm:$0xff]
    %v215 = vld [vmem:[#allocation8 + $0x20] sm:$0xff]
    %v216 = vld [vmem:[#allocation8 + $0x28] sm:$0xff]
    %v217 = vld [vmem:[#allocation8 + $0x30] sm:$0xff]
    %v218 = vld [vmem:[#allocation8 + $0x38] sm:$0xff]
    %v219 = vld [vmem:[#allocation8 + $0x40] sm:$0xff]
    %v220 = vld [vmem:[#allocation8 + $0x48] sm:$0xff]
    %v221 = vld [vmem:[#allocation8 + $0x50] sm:$0xff]
    %v222 = vld [vmem:[#allocation8 + $0x58] sm:$0xff]
    %v223 = vld [vmem:[#allocation8 + $0x60] sm:$0xff]
    %v224 = vld [vmem:[#allocation8 + $0x68] sm:$0xff]
    %v225 = vld [vmem:[#allocation8 + $0x70] sm:$0xff]
    %v226 = vld [vmem:[#allocation8 + $0x78] sm:$0xff]
    %v227 = vld [vmem:[#allocation8 + $0x80] sm:$0xff]
    %v228 = vld [vmem:[#allocation8 + $0x88] sm:$0xff]
    %v229 = vld [vmem:[#allocation8 + $0x90] sm:$0xff]
    %v230 = vld [vmem:[#allocation8 + $0x98] sm:$0xff]
    %v231 = vld [vmem:[#allocation8 + $0xa0] sm:$0xff]
    %v232 = vld [vmem:[#allocation8 + $0xa8] sm:$0xff]
    %v233 = vld [vmem:[#allocation8 + $0xb0] sm:$0xff]
    %v234 = vld [vmem:[#allocation8 + $0xb8] sm:$0xff]
    %v235 = vld [vmem:[#allocation8 + $0xc0] sm:$0xff]
    %v236 = vld [vmem:[#allocation8 + $0xc8] sm:$0xff]
    %v237 = vld [vmem:[#allocation8 + $0xd0] sm:$0xff]
    %v238 = vld [vmem:[#allocation8 + $0xd8] sm:$0xff]
    %v239 = vld [vmem:[#allocation8 + $0xe0] sm:$0xff]
    %v240 = vld [vmem:[#allocation8 + $0xe8] sm:$0xff]
    %v241 = vld [vmem:[#allocation8 + $0xf0] sm:$0xff]
    %v242 = vld [vmem:[#allocation8 + $0xf8] sm:$0xff]
    %v243 = vld [vmem:[#allocation8 + $0x100] sm:$0xff]
    %v244 = vld [vmem:[#allocation8 + $0x108] sm:$0xff]
    %v245 = vld [vmem:[#allocation8 + $0x110] sm:$0xff]
    %v246 = vld [vmem:[#allocation8 + $0x118] sm:$0xff]
    %v247 = vld [vmem:[#allocation8 + $0x120] sm:$0xff]
    %v248 = vld [vmem:[#allocation8 + $0x128] sm:$0xff]
    %v249 = vld [vmem:[#allocation8 + $0x130] sm:$0xff]
    %v250 = vld [vmem:[#allocation8 + $0x138] sm:$0xff]
    %v251 = vld [vmem:[#allocation8 + $0x140] sm:$0xff]
    %v252 = vld [vmem:[#allocation8 + $0x148] sm:$0xff]
    %v253 = vld [vmem:[#allocation8 + $0x150] sm:$0xff]
    %v254 = vld [vmem:[#allocation8 + $0x158] sm:$0xff]
    %v255 = vld [vmem:[#allocation8 + $0x160] sm:$0xff]
    %v256 = vld [vmem:[#allocation8 + $0x168] sm:$0xff]
    %v257 = vld [vmem:[#allocation8 + $0x170] sm:$0xff]
    %v258 = vld [vmem:[#allocation8 + $0x178] sm:$0xff]
    %v259 = vld [vmem:[#allocation8 + $0x180] sm:$0xff]
    %v260 = vld [vmem:[#allocation8 + $0x188] sm:$0xff]
    %v261 = vld [vmem:[#allocation8 + $0x190] sm:$0xff]
    %v262 = vld [vmem:[#allocation8 + $0x198] sm:$0xff]
    %v263 = vld [vmem:[#allocation8 + $0x1a0] sm:$0xff]
    %v264 = vld [vmem:[#allocation8 + $0x1a8] sm:$0xff]
    %v265 = vld [vmem:[#allocation8 + $0x1b0] sm:$0xff]
    %v266 = vld [vmem:[#allocation8 + $0x1b8] sm:$0xff]
    %v267 = vld [vmem:[#allocation8 + $0x1c0] sm:$0xff]
    %v268 = vld [vmem:[#allocation8 + $0x1c8] sm:$0xff]
    %v269 = vld [vmem:[#allocation8 + $0x1d0] sm:$0xff]
    %v270 = vld [vmem:[#allocation8 + $0x1d8] sm:$0xff]
    %v271 = vld [vmem:[#allocation8 + $0x1e0] sm:$0xff]
    %v272 = vld [vmem:[#allocation8 + $0x1e8] sm:$0xff]
    %v273 = vld [vmem:[#allocation8 + $0x1f0] sm:$0xff]
    %v274 = vld [vmem:[#allocation8 + $0x1f8] sm:$0xff]
    %v275 = vld [vmem:[#allocation11] sm:$0xf]
    %v277 = vlaneseq
    %v278 = vshrl.u32 %v277, 7
    %v279 = vsub.s32 0, %v278
    %v280 = vrot.slane %v275, %v279
    %v281 = vlaneseq
    %v282 = vshrl.u32 %v281, 7
    %v283 = vsub.s32 1, %v282
    %v284 = vrot.slane %v275, %v283
    %v285 = vlaneseq
    %v286 = vshrl.u32 %v285, 7
    %v287 = vsub.s32 2, %v286
    %v288 = vrot.slane %v275, %v287
    %v289 = vlaneseq
    %v290 = vshrl.u32 %v289, 7
    %v291 = vsub.s32 3, %v290
    %v292 = vrot.slane %v275, %v291
    %v361 = vunpack.c.l.b16 %v211
    %v362 = vunpack.c.h.b16 %v211
    %v363 = vunpack.c.l.b16 %v212
    %v364 = vunpack.c.h.b16 %v212
    %v365 = vunpack.c.l.b16 %v213
    %v366 = vunpack.c.h.b16 %v213
    %v367 = vunpack.c.l.b16 %v214
    %v368 = vunpack.c.h.b16 %v214
    %v369 = vunpack.c.l.b16 %v215
    %v370 = vunpack.c.h.b16 %v215
    %v371 = vunpack.c.l.b16 %v216
    %v372 = vunpack.c.h.b16 %v216
    %v373 = vunpack.c.l.b16 %v217
    %v374 = vunpack.c.h.b16 %v217
    %v375 = vunpack.c.l.b16 %v218
    %v376 = vunpack.c.h.b16 %v218
    %v377 = vunpack.c.l.b16 %v219
    %v378 = vunpack.c.h.b16 %v219
    %v379 = vunpack.c.l.b16 %v220
    %v380 = vunpack.c.h.b16 %v220
    %v381 = vunpack.c.l.b16 %v221
    %v382 = vunpack.c.h.b16 %v221
    %v383 = vunpack.c.l.b16 %v222
    %v384 = vunpack.c.h.b16 %v222
    %v385 = vunpack.c.l.b16 %v223
    %v386 = vunpack.c.h.b16 %v223
    %v387 = vunpack.c.l.b16 %v224
    %v388 = vunpack.c.h.b16 %v224
    %v389 = vunpack.c.l.b16 %v225
    %v390 = vunpack.c.h.b16 %v225
    %v391 = vunpack.c.l.b16 %v226
    %v392 = vunpack.c.h.b16 %v226
    %v393 = vunpack.c.l.b16 %v227
    %v394 = vunpack.c.h.b16 %v227
    %v395 = vunpack.c.l.b16 %v228
    %v396 = vunpack.c.h.b16 %v228
    %v397 = vunpack.c.l.b16 %v229
    %v398 = vunpack.c.h.b16 %v229
    %v399 = vunpack.c.l.b16 %v230
    %v400 = vunpack.c.h.b16 %v230
    %v401 = vunpack.c.l.b16 %v231
    %v402 = vunpack.c.h.b16 %v231
    %v403 = vunpack.c.l.b16 %v232
    %v404 = vunpack.c.h.b16 %v232
    %v405 = vunpack.c.l.b16 %v233
    %v406 = vunpack.c.h.b16 %v233
    %v407 = vunpack.c.l.b16 %v234
    %v408 = vunpack.c.h.b16 %v234
    %v409 = vunpack.c.l.b16 %v235
    %v410 = vunpack.c.h.b16 %v235
    %v411 = vunpack.c.l.b16 %v236
    %v412 = vunpack.c.h.b16 %v236
    %v413 = vunpack.c.l.b16 %v237
    %v414 = vunpack.c.h.b16 %v237
    %v415 = vunpack.c.l.b16 %v238
    %v416 = vunpack.c.h.b16 %v238
    %v417 = vunpack.c.l.b16 %v239
    %v418 = vunpack.c.h.b16 %v239
    %v419 = vunpack.c.l.b16 %v240
    %v420 = vunpack.c.h.b16 %v240
    %v421 = vunpack.c.l.b16 %v241
    %v422 = vunpack.c.h.b16 %v241
    %v423 = vunpack.c.l.b16 %v242
    %v424 = vunpack.c.h.b16 %v242
    %v425 = vunpack.c.l.b16 %v243
    %v426 = vunpack.c.h.b16 %v243
    %v427 = vunpack.c.l.b16 %v244
    %v428 = vunpack.c.h.b16 %v244
    %v429 = vunpack.c.l.b16 %v245
    %v430 = vunpack.c.h.b16 %v245
    %v431 = vunpack.c.l.b16 %v246
    %v432 = vunpack.c.h.b16 %v246
    %v433 = vunpack.c.l.b16 %v247
    %v434 = vunpack.c.h.b16 %v247
    %v435 = vunpack.c.l.b16 %v248
    %v436 = vunpack.c.h.b16 %v248
    %v437 = vunpack.c.l.b16 %v249
    %v438 = vunpack.c.h.b16 %v249
    %v439 = vunpack.c.l.b16 %v250
    %v440 = vunpack.c.h.b16 %v250
    %v441 = vunpack.c.l.b16 %v251
    %v442 = vunpack.c.h.b16 %v251
    %v443 = vunpack.c.l.b16 %v252
    %v444 = vunpack.c.h.b16 %v252
    %v445 = vunpack.c.l.b16 %v253
    %v446 = vunpack.c.h.b16 %v253
    %v447 = vunpack.c.l.b16 %v254
    %v448 = vunpack.c.h.b16 %v254
    %v449 = vunpack.c.l.b16 %v255
    %v450 = vunpack.c.h.b16 %v255
    %v451 = vunpack.c.l.b16 %v256
    %v452 = vunpack.c.h.b16 %v256
    %v453 = vunpack.c.l.b16 %v257
    %v454 = vunpack.c.h.b16 %v257
    %v455 = vunpack.c.l.b16 %v258
    %v456 = vunpack.c.h.b16 %v258
    %v457 = vunpack.c.l.b16 %v259
    %v458 = vunpack.c.h.b16 %v259
    %v459 = vunpack.c.l.b16 %v260
    %v460 = vunpack.c.h.b16 %v260
    %v461 = vunpack.c.l.b16 %v261
    %v462 = vunpack.c.h.b16 %v261
    %v463 = vunpack.c.l.b16 %v262
    %v464 = vunpack.c.h.b16 %v262
    %v465 = vunpack.c.l.b16 %v263
    %v466 = vunpack.c.h.b16 %v263
    %v467 = vunpack.c.l.b16 %v264
    %v468 = vunpack.c.h.b16 %v264
    %v469 = vunpack.c.l.b16 %v265
    %v470 = vunpack.c.h.b16 %v265
    %v471 = vunpack.c.l.b16 %v266
    %v472 = vunpack.c.h.b16 %v266
    %v473 = vunpack.c.l.b16 %v267
    %v474 = vunpack.c.h.b16 %v267
    %v475 = vunpack.c.l.b16 %v268
    %v476 = vunpack.c.h.b16 %v268
    %v477 = vunpack.c.l.b16 %v269
    %v478 = vunpack.c.h.b16 %v269
    %v479 = vunpack.c.l.b16 %v270
    %v480 = vunpack.c.h.b16 %v270
    %v481 = vunpack.c.l.b16 %v271
    %v482 = vunpack.c.h.b16 %v271
    %v483 = vunpack.c.l.b16 %v272
    %v484 = vunpack.c.h.b16 %v272
    %v485 = vunpack.c.l.b16 %v273
    %v486 = vunpack.c.h.b16 %v273
    %v487 = vunpack.c.l.b16 %v274
    %v488 = vunpack.c.h.b16 %v274
    %v489 = vpack.c.b16 %v365, %v361
    %v490 = vpack.c.b16 %v366, %v362
    %v491 = vpack.c.b16 %v367, %v363
    %v492 = vpack.c.b16 %v368, %v364
    %v493 = vpack.c.b16 %v373, %v369
    %v494 = vpack.c.b16 %v374, %v370
    %v495 = vpack.c.b16 %v375, %v371
    %v496 = vpack.c.b16 %v376, %v372
    %v497 = vpack.c.b16 %v381, %v377
    %v498 = vpack.c.b16 %v382, %v378
    %v499 = vpack.c.b16 %v383, %v379
    %v500 = vpack.c.b16 %v384, %v380
    %v501 = vpack.c.b16 %v389, %v385
    %v502 = vpack.c.b16 %v390, %v386
    %v503 = vpack.c.b16 %v391, %v387
    %v504 = vpack.c.b16 %v392, %v388
    %v505 = vpack.c.b16 %v397, %v393
    %v506 = vpack.c.b16 %v398, %v394
    %v507 = vpack.c.b16 %v399, %v395
    %v508 = vpack.c.b16 %v400, %v396
    %v509 = vpack.c.b16 %v405, %v401
    %v510 = vpack.c.b16 %v406, %v402
    %v511 = vpack.c.b16 %v407, %v403
    %v512 = vpack.c.b16 %v408, %v404
    %v513 = vpack.c.b16 %v413, %v409
    %v514 = vpack.c.b16 %v414, %v410
    %v515 = vpack.c.b16 %v415, %v411
    %v516 = vpack.c.b16 %v416, %v412
    %v517 = vpack.c.b16 %v421, %v417
    %v518 = vpack.c.b16 %v422, %v418
    %v519 = vpack.c.b16 %v423, %v419
    %v520 = vpack.c.b16 %v424, %v420
    %v521 = vpack.c.b16 %v429, %v425
    %v522 = vpack.c.b16 %v430, %v426
    %v523 = vpack.c.b16 %v431, %v427
    %v524 = vpack.c.b16 %v432, %v428
    %v525 = vpack.c.b16 %v437, %v433
    %v526 = vpack.c.b16 %v438, %v434
    %v527 = vpack.c.b16 %v439, %v435
    %v528 = vpack.c.b16 %v440, %v436
    %v529 = vpack.c.b16 %v445, %v441
    %v530 = vpack.c.b16 %v446, %v442
    %v531 = vpack.c.b16 %v447, %v443
    %v532 = vpack.c.b16 %v448, %v444
    %v533 = vpack.c.b16 %v453, %v449
    %v534 = vpack.c.b16 %v454, %v450
    %v535 = vpack.c.b16 %v455, %v451
    %v536 = vpack.c.b16 %v456, %v452
    %v537 = vpack.c.b16 %v461, %v457
    %v538 = vpack.c.b16 %v462, %v458
    %v539 = vpack.c.b16 %v463, %v459
    %v540 = vpack.c.b16 %v464, %v460
    %v541 = vpack.c.b16 %v469, %v465
    %v542 = vpack.c.b16 %v470, %v466
    %v543 = vpack.c.b16 %v471, %v467
    %v544 = vpack.c.b16 %v472, %v468
    %v545 = vpack.c.b16 %v477, %v473
    %v546 = vpack.c.b16 %v478, %v474
    %v547 = vpack.c.b16 %v479, %v475
    %v548 = vpack.c.b16 %v480, %v476
    %v549 = vpack.c.b16 %v485, %v481
    %v550 = vpack.c.b16 %v486, %v482
    %v551 = vpack.c.b16 %v487, %v483
    %v552 = vpack.c.b16 %v488, %v484
    %617 = vmatprep.subr.bf16.mxu0 %v490
    %618 = vmatpush1.bf16.msra.mxu0 %v489
    %619 = vmatprep.subr.bf16.mxu0 %v494
    %620 = vmatpush1.bf16.msra.mxu0 %v493
    %621 = vmatprep.subr.bf16.mxu0 %v498
    %622 = vmatpush1.bf16.msra.mxu0 %v497
    %623 = vmatprep.subr.bf16.mxu0 %v502
    %624 = vmatpush1.bf16.msra.mxu0 %v501
    %625 = vmatprep.subr.bf16.mxu0 %v506
    %626 = vmatpush1.bf16.msra.mxu0 %v505
    %627 = vmatprep.subr.bf16.mxu0 %v510
    %628 = vmatpush1.bf16.msra.mxu0 %v509
    %629 = vmatprep.subr.bf16.mxu0 %v514
    %630 = vmatpush1.bf16.msra.mxu0 %v513
    %631 = vmatprep.subr.bf16.mxu0 %v518
    %632 = vmatpush1.bf16.msra.mxu0 %v517
    %633 = vmatprep.subr.bf16.mxu0 %v522
    %634 = vmatpush1.bf16.msra.mxu0 %v521
    %635 = vmatprep.subr.bf16.mxu0 %v526
    %636 = vmatpush1.bf16.msra.mxu0 %v525
    %637 = vmatprep.subr.bf16.mxu0 %v530
    %638 = vmatpush1.bf16.msra.mxu0 %v529
    %639 = vmatprep.subr.bf16.mxu0 %v534
    %640 = vmatpush1.bf16.msra.mxu0 %v533
    %641 = vmatprep.subr.bf16.mxu0 %v538
    %642 = vmatpush1.bf16.msra.mxu0 %v537
    %643 = vmatprep.subr.bf16.mxu0 %v542
    %644 = vmatpush1.bf16.msra.mxu0 %v541
    %645 = vmatprep.subr.bf16.mxu0 %v546
    %646 = vmatpush1.bf16.msra.mxu0 %v545
    %647 = vmatprep.subr.bf16.mxu0 %v550
    %648 = vmatpush1.bf16.msra.mxu0 %v549
    %649 = vmatprep.mubr.bf16.mxu0 %v204
    %650 = vmatmul.mubr.bf16.gmra.mrb[0].mxu0 %v203
    %v651 = vpop.f32.mrb[0].mxu0
    %v652 = vadd.f32 %v280, %v651
    %v653 = vpop.f32.mrb[0].mxu0
    %v654 = vadd.f32 %v284, %v653
    %v655 = vpop.f32.mrb[0].mxu0
    %v656 = vadd.f32 %v280, %v655
    %v657 = vpop.f32.mrb[0].mxu0
    %v658 = vadd.f32 %v284, %v657
    %659 = vmatprep.mubr.bf16.mxu0 %v206
    %660 = vmatmul.mubr.bf16.gmra.mrb[0].mxu0 %v205
    %v661 = vpop.f32.mrb[0].mxu0
    %v662 = vadd.f32 %v280, %v661
    %v663 = vpop.f32.mrb[0].mxu0
    %v664 = vadd.f32 %v284, %v663
    %v665 = vpop.f32.mrb[0].mxu0
    %v666 = vadd.f32 %v280, %v665
    %v667 = vpop.f32.mrb[0].mxu0
    %v668 = vadd.f32 %v284, %v667
    %669 = vmatprep.mubr.bf16.mxu0 %v208
    %670 = vmatmul.mubr.bf16.gmra.mrb[0].mxu0 %v207
    %v671 = vpop.f32.mrb[0].mxu0
    %v672 = vadd.f32 %v280, %v671
    %v673 = vpop.f32.mrb[0].mxu0
    %v674 = vadd.f32 %v284, %v673
    %v675 = vpop.f32.mrb[0].mxu0
    %v676 = vadd.f32 %v280, %v675
    %v677 = vpop.f32.mrb[0].mxu0
    %v678 = vadd.f32 %v284, %v677
    %679 = vmatprep.mubr.bf16.mxu0 %v210
    %680 = vmatmul.mubr.bf16.gmra.mrb[0].mxu0 %v209
    %v681 = vpop.f32.mrb[0].mxu0
    %v682 = vadd.f32 %v280, %v681
    %v683 = vpop.f32.mrb[0].mxu0
    %v684 = vadd.f32 %v284, %v683
    %v685 = vpop.f32.mrb[0].mxu0
    %v686 = vadd.f32 %v280, %v685
    %v687 = vpop.f32.mrb[0].mxu0
    %v688 = vadd.f32 %v284, %v687
    %689 = vdwg.mxu0
    %690 = vmatprep.subr.bf16.mxu0 %v492
    %691 = vmatpush1.bf16.msra.mxu0 %v491
    %692 = vmatprep.subr.bf16.mxu0 %v496
    %693 = vmatpush1.bf16.msra.mxu0 %v495
    %694 = vmatprep.subr.bf16.mxu0 %v500
    %695 = vmatpush1.bf16.msra.mxu0 %v499
    %696 = vmatprep.subr.bf16.mxu0 %v504
    %697 = vmatpush1.bf16.msra.mxu0 %v503
    %698 = vmatprep.subr.bf16.mxu0 %v508
    %699 = vmatpush1.bf16.msra.mxu0 %v507
    %700 = vmatprep.subr.bf16.mxu0 %v512
    %701 = vmatpush1.bf16.msra.mxu0 %v511
    %702 = vmatprep.subr.bf16.mxu0 %v516
    %703 = vmatpush1.bf16.msra.mxu0 %v515
    %704 = vmatprep.subr.bf16.mxu0 %v520
    %705 = vmatpush1.bf16.msra.mxu0 %v519
    %706 = vmatprep.subr.bf16.mxu0 %v524
    %707 = vmatpush1.bf16.msra.mxu0 %v523
    %708 = vmatprep.subr.bf16.mxu0 %v528
    %709 = vmatpush1.bf16.msra.mxu0 %v527
    %710 = vmatprep.subr.bf16.mxu0 %v532
    %711 = vmatpush1.bf16.msra.mxu0 %v531
    %712 = vmatprep.subr.bf16.mxu0 %v536
    %713 = vmatpush1.bf16.msra.mxu0 %v535
    %714 = vmatprep.subr.bf16.mxu0 %v540
    %715 = vmatpush1.bf16.msra.mxu0 %v539
    %716 = vmatprep.subr.bf16.mxu0 %v544
    %717 = vmatpush1.bf16.msra.mxu0 %v543
    %718 = vmatprep.subr.bf16.mxu0 %v548
    %719 = vmatpush1.bf16.msra.mxu0 %v547
    %720 = vmatprep.subr.bf16.mxu0 %v552
    %721 = vmatpush1.bf16.msra.mxu0 %v551
    %722 = vmatprep.mubr.bf16.mxu0 %v204
    %723 = vmatmul.mubr.bf16.gmra.mrb[0].mxu0 %v203
    %v724 = vpop.f32.mrb[0].mxu0
    %v725 = vadd.f32 %v288, %v724
    %v726 = vpop.f32.mrb[0].mxu0
    %v727 = vadd.f32 %v292, %v726
    %v728 = vpop.f32.mrb[0].mxu0
    %v729 = vadd.f32 %v288, %v728
    %v730 = vpop.f32.mrb[0].mxu0
    %v731 = vadd.f32 %v292, %v730
    %732 = vmatprep.mubr.bf16.mxu0 %v206
    %733 = vmatmul.mubr.bf16.gmra.mrb[0].mxu0 %v205
    %v734 = vpop.f32.mrb[0].mxu0
    %v735 = vadd.f32 %v288, %v734
    %v736 = vpop.f32.mrb[0].mxu0
    %v737 = vadd.f32 %v292, %v736
    %v738 = vpop.f32.mrb[0].mxu0
    %v739 = vadd.f32 %v288, %v738
    %v740 = vpop.f32.mrb[0].mxu0
    %v741 = vadd.f32 %v292, %v740
    %742 = vmatprep.mubr.bf16.mxu0 %v208
    %743 = vmatmul.mubr.bf16.gmra.mrb[0].mxu0 %v207
    %v744 = vpop.f32.mrb[0].mxu0
    %v745 = vadd.f32 %v288, %v744
    %v746 = vpop.f32.mrb[0].mxu0
    %v747 = vadd.f32 %v292, %v746
    %v748 = vpop.f32.mrb[0].mxu0
    %v749 = vadd.f32 %v288, %v748
    %v750 = vpop.f32.mrb[0].mxu0
    %v751 = vadd.f32 %v292, %v750
    %752 = vmatprep.mubr.bf16.mxu0 %v210
    %753 = vmatmul.mubr.bf16.gmra.mrb[0].mxu0 %v209
    %v754 = vpop.f32.mrb[0].mxu0
    %v755 = vadd.f32 %v288, %v754
    %v756 = vpop.f32.mrb[0].mxu0
    %v757 = vadd.f32 %v292, %v756
    %v758 = vpop.f32.mrb[0].mxu0
    %v759 = vadd.f32 %v288, %v758
    %v760 = vpop.f32.mrb[0].mxu0
    %v761 = vadd.f32 %v292, %v760
    %762 = vdwg.mxu0
    %v763 = vld [vmem:[#allocation9] sm:$0xff]
    %v764 = vld [vmem:[#allocation9 + $0x8] sm:$0xff]
    %v765 = vld [vmem:[#allocation9 + $0x10] sm:$0xff]
    %v766 = vld [vmem:[#allocation9 + $0x18] sm:$0xff]
    %v767 = vld [vmem:[#allocation9 + $0x20] sm:$0xff]
    %v768 = vld [vmem:[#allocation9 + $0x28] sm:$0xff]
    %v769 = vld [vmem:[#allocation9 + $0x30] sm:$0xff]
    %v770 = vld [vmem:[#allocation9 + $0x38] sm:$0xff]
    %v771 = vld [vmem:[#allocation9 + $0x40] sm:$0xff]
    %v772 = vld [vmem:[#allocation9 + $0x48] sm:$0xff]
    %v773 = vld [vmem:[#allocation9 + $0x50] sm:$0xff]
    %v774 = vld [vmem:[#allocation9 + $0x58] sm:$0xff]
    %v775 = vld [vmem:[#allocation9 + $0x60] sm:$0xff]
    %v776 = vld [vmem:[#allocation9 + $0x68] sm:$0xff]
    %v777 = vld [vmem:[#allocation9 + $0x70] sm:$0xff]
    %v778 = vld [vmem:[#allocation9 + $0x78] sm:$0xff]
    %v779 = vld [vmem:[#allocation9 + $0x80] sm:$0xff]
    %v780 = vld [vmem:[#allocation9 + $0x88] sm:$0xff]
    %v781 = vld [vmem:[#allocation9 + $0x90] sm:$0xff]
    %v782 = vld [vmem:[#allocation9 + $0x98] sm:$0xff]
    %v783 = vld [vmem:[#allocation9 + $0xa0] sm:$0xff]
    %v784 = vld [vmem:[#allocation9 + $0xa8] sm:$0xff]
    %v785 = vld [vmem:[#allocation9 + $0xb0] sm:$0xff]
    %v786 = vld [vmem:[#allocation9 + $0xb8] sm:$0xff]
    %v787 = vld [vmem:[#allocation9 + $0xc0] sm:$0xff]
    %v788 = vld [vmem:[#allocation9 + $0xc8] sm:$0xff]
    %v789 = vld [vmem:[#allocation9 + $0xd0] sm:$0xff]
    %v790 = vld [vmem:[#allocation9 + $0xd8] sm:$0xff]
    %v791 = vld [vmem:[#allocation9 + $0xe0] sm:$0xff]
    %v792 = vld [vmem:[#allocation9 + $0xe8] sm:$0xff]
    %v793 = vld [vmem:[#allocation9 + $0xf0] sm:$0xff]
    %v794 = vld [vmem:[#allocation9 + $0xf8] sm:$0xff]
    %v827 = vunpack.c.l.b16 %v763
    %v828 = vunpack.c.h.b16 %v763
    %v829 = vunpack.c.l.b16 %v764
    %v830 = vunpack.c.h.b16 %v764
    %v831 = vunpack.c.l.b16 %v765
    %v832 = vunpack.c.h.b16 %v765
    %v833 = vunpack.c.l.b16 %v766
    %v834 = vunpack.c.h.b16 %v766
    %v835 = vunpack.c.l.b16 %v767
    %v836 = vunpack.c.h.b16 %v767
    %v837 = vunpack.c.l.b16 %v768
    %v838 = vunpack.c.h.b16 %v768
    %v839 = vunpack.c.l.b16 %v769
    %v840 = vunpack.c.h.b16 %v769
    %v841 = vunpack.c.l.b16 %v770
    %v842 = vunpack.c.h.b16 %v770
    %v843 = vunpack.c.l.b16 %v771
    %v844 = vunpack.c.h.b16 %v771
    %v845 = vunpack.c.l.b16 %v772
    %v846 = vunpack.c.h.b16 %v772
    %v847 = vunpack.c.l.b16 %v773
    %v848 = vunpack.c.h.b16 %v773
    %v849 = vunpack.c.l.b16 %v774
    %v850 = vunpack.c.h.b16 %v774
    %v851 = vunpack.c.l.b16 %v775
    %v852 = vunpack.c.h.b16 %v775
    %v853 = vunpack.c.l.b16 %v776
    %v854 = vunpack.c.h.b16 %v776
    %v855 = vunpack.c.l.b16 %v777
    %v856 = vunpack.c.h.b16 %v777
    %v857 = vunpack.c.l.b16 %v778
    %v858 = vunpack.c.h.b16 %v778
    %v859 = vunpack.c.l.b16 %v779
    %v860 = vunpack.c.h.b16 %v779
    %v861 = vunpack.c.l.b16 %v780
    %v862 = vunpack.c.h.b16 %v780
    %v863 = vunpack.c.l.b16 %v781
    %v864 = vunpack.c.h.b16 %v781
    %v865 = vunpack.c.l.b16 %v782
    %v866 = vunpack.c.h.b16 %v782
    %v867 = vunpack.c.l.b16 %v783
    %v868 = vunpack.c.h.b16 %v783
    %v869 = vunpack.c.l.b16 %v784
    %v870 = vunpack.c.h.b16 %v784
    %v871 = vunpack.c.l.b16 %v785
    %v872 = vunpack.c.h.b16 %v785
    %v873 = vunpack.c.l.b16 %v786
    %v874 = vunpack.c.h.b16 %v786
    %v875 = vunpack.c.l.b16 %v787
    %v876 = vunpack.c.h.b16 %v787
    %v877 = vunpack.c.l.b16 %v788
    %v878 = vunpack.c.h.b16 %v788
    %v879 = vunpack.c.l.b16 %v789
    %v880 = vunpack.c.h.b16 %v789
    %v881 = vunpack.c.l.b16 %v790
    %v882 = vunpack.c.h.b16 %v790
    %v883 = vunpack.c.l.b16 %v791
    %v884 = vunpack.c.h.b16 %v791
    %v885 = vunpack.c.l.b16 %v792
    %v886 = vunpack.c.h.b16 %v792
    %v887 = vunpack.c.l.b16 %v793
    %v888 = vunpack.c.h.b16 %v793
    %v889 = vunpack.c.l.b16 %v794
    %v890 = vunpack.c.h.b16 %v794
    %v891 = vpack.c.b16 %v831, %v827
    %v892 = vpack.c.b16 %v832, %v828
    %v893 = vpack.c.b16 %v833, %v829
    %v894 = vpack.c.b16 %v834, %v830
    %v895 = vpack.c.b16 %v839, %v835
    %v896 = vpack.c.b16 %v840, %v836
    %v897 = vpack.c.b16 %v841, %v837
    %v898 = vpack.c.b16 %v842, %v838
    %v899 = vpack.c.b16 %v847, %v843
    %v900 = vpack.c.b16 %v848, %v844
    %v901 = vpack.c.b16 %v849, %v845
    %v902 = vpack.c.b16 %v850, %v846
    %v903 = vpack.c.b16 %v855, %v851
    %v904 = vpack.c.b16 %v856, %v852
    %v905 = vpack.c.b16 %v857, %v853
    %v906 = vpack.c.b16 %v858, %v854
    %v907 = vpack.c.b16 %v863, %v859
    %v908 = vpack.c.b16 %v864, %v860
    %v909 = vpack.c.b16 %v865, %v861
    %v910 = vpack.c.b16 %v866, %v862
    %v911 = vpack.c.b16 %v871, %v867
    %v912 = vpack.c.b16 %v872, %v868
    %v913 = vpack.c.b16 %v873, %v869
    %v914 = vpack.c.b16 %v874, %v870
    %v915 = vpack.c.b16 %v879, %v875
    %v916 = vpack.c.b16 %v880, %v876
    %v917 = vpack.c.b16 %v881, %v877
    %v918 = vpack.c.b16 %v882, %v878
    %v919 = vpack.c.b16 %v887, %v883
    %v920 = vpack.c.b16 %v888, %v884
    %v921 = vpack.c.b16 %v889, %v885
    %v922 = vpack.c.b16 %v890, %v886
    %955 = vmatprep.subr.bf16.mxu0 %v892
    %956 = vmatpush1.bf16.msra.mxu0 %v891
    %957 = vmatprep.subr.bf16.mxu0 %v896
    %958 = vmatpush1.bf16.msra.mxu0 %v895
    %959 = vmatprep.subr.bf16.mxu0 %v900
    %960 = vmatpush1.bf16.msra.mxu0 %v899
    %961 = vmatprep.subr.bf16.mxu0 %v904
    %962 = vmatpush1.bf16.msra.mxu0 %v903
    %963 = vmatprep.subr.bf16.mxu0 %v908
    %964 = vmatpush1.bf16.msra.mxu0 %v907
    %965 = vmatprep.subr.bf16.mxu0 %v912
    %966 = vmatpush1.bf16.msra.mxu0 %v911
    %967 = vmatprep.subr.bf16.mxu0 %v916
    %968 = vmatpush1.bf16.msra.mxu0 %v915
    %969 = vmatprep.subr.bf16.mxu0 %v920
    %970 = vmatpush1.bf16.msra.mxu0 %v919
    %971 = vmatprep.subr.bf16.mxu0 0
    %972 = vmatpush1.bf16.msra.mxu0 0
    %973 = vmatprep.subr.bf16.mxu0 0
    %974 = vmatpush1.bf16.msra.mxu0 0
    %975 = vmatprep.subr.bf16.mxu0 0
    %976 = vmatpush1.bf16.msra.mxu0 0
    %977 = vmatprep.subr.bf16.mxu0 0
    %978 = vmatpush1.bf16.msra.mxu0 0
    %979 = vmatprep.subr.bf16.mxu0 0
    %980 = vmatpush1.bf16.msra.mxu0 0
    %981 = vmatprep.subr.bf16.mxu0 0
    %982 = vmatpush1.bf16.msra.mxu0 0
    %983 = vmatprep.subr.bf16.mxu0 0
    %984 = vmatpush1.bf16.msra.mxu0 0
    %985 = vmatprep.subr.bf16.mxu0 0
    %986 = vmatpush1.bf16.msra.mxu0 0
    %987 = vmatprep.mubr.bf16.mxu0 0
    %988 = vmatmul.mubr.bf16.gmra.mrb[0].mxu0 0
    %v989 = vpop.f32.mrb[0].mxu0
    %v990 = vadd.f32 0.0, %v989
    %v991 = vpop.f32.mrb[0].mxu0
    %v992 = vadd.f32 0.0, %v991
    %v993 = vpop.f32.mrb[0].mxu0
    %v994 = vpop.f32.mrb[0].mxu0
    %995 = vdwg.mxu0
    %996 = vmatprep.subr.bf16.mxu0 %v894
    %997 = vmatpush1.bf16.msra.mxu0 %v893
    %998 = vmatprep.subr.bf16.mxu0 %v898
    %999 = vmatpush1.bf16.msra.mxu0 %v897
    %1000 = vmatprep.subr.bf16.mxu0 %v902
    %1001 = vmatpush1.bf16.msra.mxu0 %v901
    %1002 = vmatprep.subr.bf16.mxu0 %v906
    %1003 = vmatpush1.bf16.msra.mxu0 %v905
    %1004 = vmatprep.subr.bf16.mxu0 %v910
    %1005 = vmatpush1.bf16.msra.mxu0 %v909
    %1006 = vmatprep.subr.bf16.mxu0 %v914
    %1007 = vmatpush1.bf16.msra.mxu0 %v913
    %1008 = vmatprep.subr.bf16.mxu0 %v918
    %1009 = vmatpush1.bf16.msra.mxu0 %v917
    %1010 = vmatprep.subr.bf16.mxu0 %v922
    %1011 = vmatpush1.bf16.msra.mxu0 %v921
    %1012 = vmatprep.subr.bf16.mxu0 0
    %1013 = vmatpush1.bf16.msra.mxu0 0
    %1014 = vmatprep.subr.bf16.mxu0 0
    %1015 = vmatpush1.bf16.msra.mxu0 0
    %1016 = vmatprep.subr.bf16.mxu0 0
    %1017 = vmatpush1.bf16.msra.mxu0 0
    %1018 = vmatprep.subr.bf16.mxu0 0
    %1019 = vmatpush1.bf16.msra.mxu0 0
    %1020 = vmatprep.subr.bf16.mxu0 0
    %1021 = vmatpush1.bf16.msra.mxu0 0
    %1022 = vmatprep.subr.bf16.mxu0 0
    %1023 = vmatpush1.bf16.msra.mxu0 0
    %1024 = vmatprep.subr.bf16.mxu0 0
    %1025 = vmatpush1.bf16.msra.mxu0 0
    %1026 = vmatprep.subr.bf16.mxu0 0
    %1027 = vmatpush1.bf16.msra.mxu0 0
    %1028 = vmatprep.mubr.bf16.mxu0 0
    %1029 = vmatmul.mubr.bf16.gmra.mrb[0].mxu0 0
    %v1030 = vpop.f32.mrb[0].mxu0
    %v1031 = vadd.f32 0.0, %v1030
    %v1032 = vpop.f32.mrb[0].mxu0
    %v1033 = vadd.f32 0.0, %v1032
    %v1034 = vpop.f32.mrb[0].mxu0
    %v1035 = vpop.f32.mrb[0].mxu0
    %1036 = vdwg.mxu0
    %v1041 = vrot.slane %v990, 1
    %v1042 = vrot.slane %v992, 1
    %v1043 = vrot.slane %v1031, 1
    %v1044 = vrot.slane %v1033, 1
    %v1045 = vrot.slane %v990, 2
    %v1046 = vrot.slane %v992, 2
    %v1047 = vrot.slane %v1031, 2
    %v1048 = vrot.slane %v1033, 2
    %v1049 = vrot.slane %v990, 3
    %v1050 = vrot.slane %v992, 3
    %v1051 = vrot.slane %v1031, 3
    %v1052 = vrot.slane %v1033, 3
    %v1053 = vrot.slane %v990, 4
    %v1054 = vrot.slane %v992, 4
    %v1055 = vrot.slane %v1031, 4
    %v1056 = vrot.slane %v1033, 4
    %v1057 = vrot.slane %v990, 5
    %v1058 = vrot.slane %v992, 5
    %v1059 = vrot.slane %v1031, 5
    %v1060 = vrot.slane %v1033, 5
    %v1061 = vrot.slane %v990, 6
    %v1062 = vrot.slane %v992, 6
    %v1063 = vrot.slane %v1031, 6
    %v1064 = vrot.slane %v1033, 6
    %v1065 = vrot.slane %v990, 7
    %v1066 = vrot.slane %v992, 7
    %v1067 = vrot.slane %v1031, 7
    %v1068 = vrot.slane %v1033, 7
    %v1101 = vadd.f32 %v652, %v990
    %v1102 = vadd.f32 %v654, %v992
    %v1103 = vadd.f32 %v725, %v1031
    %v1104 = vadd.f32 %v727, %v1033
    %v1105 = vadd.f32 %v656, %v1041
    %v1106 = vadd.f32 %v658, %v1042
    %v1107 = vadd.f32 %v729, %v1043
    %v1108 = vadd.f32 %v731, %v1044
    %v1109 = vadd.f32 %v662, %v1045
    %v1110 = vadd.f32 %v664, %v1046
    %v1111 = vadd.f32 %v735, %v1047
    %v1112 = vadd.f32 %v737, %v1048
    %v1113 = vadd.f32 %v666, %v1049
    %v1114 = vadd.f32 %v668, %v1050
    %v1115 = vadd.f32 %v739, %v1051
    %v1116 = vadd.f32 %v741, %v1052
    %v1117 = vadd.f32 %v672, %v1053
    %v1118 = vadd.f32 %v674, %v1054
    %v1119 = vadd.f32 %v745, %v1055
    %v1120 = vadd.f32 %v747, %v1056
    %v1121 = vadd.f32 %v676, %v1057
    %v1122 = vadd.f32 %v678, %v1058
    %v1123 = vadd.f32 %v749, %v1059
    %v1124 = vadd.f32 %v751, %v1060
    %v1125 = vadd.f32 %v682, %v1061
    %v1126 = vadd.f32 %v684, %v1062
    %v1127 = vadd.f32 %v755, %v1063
    %v1128 = vadd.f32 %v757, %v1064
    %v1129 = vadd.f32 %v686, %v1065
    %v1130 = vadd.f32 %v688, %v1066
    %v1131 = vadd.f32 %v759, %v1067
    %v1132 = vadd.f32 %v761, %v1068
    %v1133 = vpack.c.bf16 %v1101, %v1101
    %v1134 = vpack.c.bf16 %v1102, %v1102
    %v1135 = vpack.c.bf16 %v1103, %v1103
    %v1136 = vpack.c.bf16 %v1104, %v1104
    %v1137 = vpack.c.bf16 %v1105, %v1105
    %v1138 = vpack.c.bf16 %v1106, %v1106
    %v1139 = vpack.c.bf16 %v1107, %v1107
    %v1140 = vpack.c.bf16 %v1108, %v1108
    %v1141 = vpack.c.bf16 %v1109, %v1109
    %v1142 = vpack.c.bf16 %v1110, %v1110
    %v1143 = vpack.c.bf16 %v1111, %v1111
    %v1144 = vpack.c.bf16 %v1112, %v1112
    %v1145 = vpack.c.bf16 %v1113, %v1113
    %v1146 = vpack.c.bf16 %v1114, %v1114
    %v1147 = vpack.c.bf16 %v1115, %v1115
    %v1148 = vpack.c.bf16 %v1116, %v1116
    %v1149 = vpack.c.bf16 %v1117, %v1117
    %v1150 = vpack.c.bf16 %v1118, %v1118
    %v1151 = vpack.c.bf16 %v1119, %v1119
    %v1152 = vpack.c.bf16 %v1120, %v1120
    %v1153 = vpack.c.bf16 %v1121, %v1121
    %v1154 = vpack.c.bf16 %v1122, %v1122
    %v1155 = vpack.c.bf16 %v1123, %v1123
    %v1156 = vpack.c.bf16 %v1124, %v1124
    %v1157 = vpack.c.bf16 %v1125, %v1125
    %v1158 = vpack.c.bf16 %v1126, %v1126
    %v1159 = vpack.c.bf16 %v1127, %v1127
    %v1160 = vpack.c.bf16 %v1128, %v1128
    %v1161 = vpack.c.bf16 %v1129, %v1129
    %v1162 = vpack.c.bf16 %v1130, %v1130
    %v1163 = vpack.c.bf16 %v1131, %v1131
    %v1164 = vpack.c.bf16 %v1132, %v1132
    %v1165 = vxor.u32 %v1133, 2147516416
    %v1166 = vxor.u32 %v1137, 2147516416
    %v1167 = vxor.u32 %v1141, 2147516416
    %v1168 = vxor.u32 %v1145, 2147516416
    %v1169 = vxor.u32 %v1149, 2147516416
    %v1170 = vxor.u32 %v1153, 2147516416
    %v1171 = vxor.u32 %v1157, 2147516416
    %v1172 = vxor.u32 %v1161, 2147516416
    %v1174 = vmul.bf16 %v1165, 1069105081
    %v1175 = vpow.bf16.pop %v1174
    %v1177 = vmul.bf16 %v1166, 1069105081
    %v1178 = vpow.bf16.pop %v1177
    %v1180 = vmul.bf16 %v1167, 1069105081
    %v1181 = vpow.bf16.pop %v1180
    %v1183 = vmul.bf16 %v1168, 1069105081
    %v1184 = vpow.bf16.pop %v1183
    %v1186 = vmul.bf16 %v1169, 1069105081
    %v1187 = vpow.bf16.pop %v1186
    %v1189 = vmul.bf16 %v1170, 1069105081
    %v1190 = vpow.bf16.pop %v1189
    %v1192 = vmul.bf16 %v1171, 1069105081
    %v1193 = vpow.bf16.pop %v1192
    %v1195 = vmul.bf16 %v1172, 1069105081
    %v1196 = vpow.bf16.pop %v1195
    %v1197 = vadd.bf16 %v1175, 1065369472
    %v1198 = vadd.bf16 %v1178, 1065369472
    %v1199 = vadd.bf16 %v1181, 1065369472
    %v1200 = vadd.bf16 %v1184, 1065369472
    %v1201 = vadd.bf16 %v1187, 1065369472
    %v1202 = vadd.bf16 %v1190, 1065369472
    %v1203 = vadd.bf16 %v1193, 1065369472
    %v1204 = vadd.bf16 %v1196, 1065369472
    %v1205 = vrcp.bf16.pop %v1197
    %v1206 = vmul.bf16 1065369472, %v1205
    %v1207 = vrcp.bf16.pop %v1198
    %v1208 = vmul.bf16 1065369472, %v1207
    %v1209 = vrcp.bf16.pop %v1199
    %v1210 = vmul.bf16 1065369472, %v1209
    %v1211 = vrcp.bf16.pop %v1200
    %v1212 = vmul.bf16 1065369472, %v1211
    %v1213 = vrcp.bf16.pop %v1201
    %v1214 = vmul.bf16 1065369472, %v1213
    %v1215 = vrcp.bf16.pop %v1202
    %v1216 = vmul.bf16 1065369472, %v1215
    %v1217 = vrcp.bf16.pop %v1203
    %v1218 = vmul.bf16 1065369472, %v1217
    %v1219 = vrcp.bf16.pop %v1204
    %v1220 = vmul.bf16 1065369472, %v1219
    %v1221 = vunpack.c.l.bf16 %v1206
    %v1222 = vunpack.c.l.bf16 %v1208
    %v1223 = vunpack.c.l.bf16 %v1210
    %v1224 = vunpack.c.l.bf16 %v1212
    %v1225 = vunpack.c.l.bf16 %v1214
    %v1226 = vunpack.c.l.bf16 %v1216
    %v1227 = vunpack.c.l.bf16 %v1218
    %v1228 = vunpack.c.l.bf16 %v1220
    %v1229 = vxor.u32 %v1134, 2147516416
    %v1230 = vxor.u32 %v1138, 2147516416
    %v1231 = vxor.u32 %v1142, 2147516416
    %v1232 = vxor.u32 %v1146, 2147516416
    %v1233 = vxor.u32 %v1150, 2147516416
    %v1234 = vxor.u32 %v1154, 2147516416
    %v1235 = vxor.u32 %v1158, 2147516416
    %v1236 = vxor.u32 %v1162, 2147516416
    %v1238 = vmul.bf16 %v1229, 1069105081
    %v1239 = vpow.bf16.pop %v1238
    %v1241 = vmul.bf16 %v1230, 1069105081
    %v1242 = vpow.bf16.pop %v1241
    %v1244 = vmul.bf16 %v1231, 1069105081
    %v1245 = vpow.bf16.pop %v1244
    %v1247 = vmul.bf16 %v1232, 1069105081
    %v1248 = vpow.bf16.pop %v1247
    %v1250 = vmul.bf16 %v1233, 1069105081
    %v1251 = vpow.bf16.pop %v1250
    %v1253 = vmul.bf16 %v1234, 1069105081
    %v1254 = vpow.bf16.pop %v1253
    %v1256 = vmul.bf16 %v1235, 1069105081
    %v1257 = vpow.bf16.pop %v1256
    %v1259 = vmul.bf16 %v1236, 1069105081
    %v1260 = vpow.bf16.pop %v1259
    %v1261 = vadd.bf16 %v1239, 1065369472
    %v1262 = vadd.bf16 %v1242, 1065369472
    %v1263 = vadd.bf16 %v1245, 1065369472
    %v1264 = vadd.bf16 %v1248, 1065369472
    %v1265 = vadd.bf16 %v1251, 1065369472
    %v1266 = vadd.bf16 %v1254, 1065369472
    %v1267 = vadd.bf16 %v1257, 1065369472
    %v1268 = vadd.bf16 %v1260, 1065369472
    %v1269 = vrcp.bf16.pop %v1261
    %v1270 = vmul.bf16 1065369472, %v1269
    %v1271 = vrcp.bf16.pop %v1262
    %v1272 = vmul.bf16 1065369472, %v1271
    %v1273 = vrcp.bf16.pop %v1263
    %v1274 = vmul.bf16 1065369472, %v1273
    %v1275 = vrcp.bf16.pop %v1264
    %v1276 = vmul.bf16 1065369472, %v1275
    %v1277 = vrcp.bf16.pop %v1265
    %v1278 = vmul.bf16 1065369472, %v1277
    %v1279 = vrcp.bf16.pop %v1266
    %v1280 = vmul.bf16 1065369472, %v1279
    %v1281 = vrcp.bf16.pop %v1267
    %v1282 = vmul.bf16 1065369472, %v1281
    %v1283 = vrcp.bf16.pop %v1268
    %v1284 = vmul.bf16 1065369472, %v1283
    %v1285 = vunpack.c.l.bf16 %v1270
    %v1286 = vunpack.c.l.bf16 %v1272
    %v1287 = vunpack.c.l.bf16 %v1274
    %v1288 = vunpack.c.l.bf16 %v1276
    %v1289 = vunpack.c.l.bf16 %v1278
    %v1290 = vunpack.c.l.bf16 %v1280
    %v1291 = vunpack.c.l.bf16 %v1282
    %v1292 = vunpack.c.l.bf16 %v1284
    %v1293 = vtanh.bf16.pop %v1135
    %v1294 = vtanh.bf16.pop %v1139
    %v1295 = vtanh.bf16.pop %v1143
    %v1296 = vtanh.bf16.pop %v1147
    %v1297 = vtanh.bf16.pop %v1151
    %v1298 = vtanh.bf16.pop %v1155
    %v1299 = vtanh.bf16.pop %v1159
    %v1300 = vtanh.bf16.pop %v1163
    %v1301 = vunpack.c.l.bf16 %v1293
    %v1302 = vunpack.c.l.bf16 %v1294
    %v1303 = vunpack.c.l.bf16 %v1295
    %v1304 = vunpack.c.l.bf16 %v1296
    %v1305 = vunpack.c.l.bf16 %v1297
    %v1306 = vunpack.c.l.bf16 %v1298
    %v1307 = vunpack.c.l.bf16 %v1299
    %v1308 = vunpack.c.l.bf16 %v1300
    %v1309 = vxor.u32 %v1136, 2147516416
    %v1310 = vxor.u32 %v1140, 2147516416
    %v1311 = vxor.u32 %v1144, 2147516416
    %v1312 = vxor.u32 %v1148, 2147516416
    %v1313 = vxor.u32 %v1152, 2147516416
    %v1314 = vxor.u32 %v1156, 2147516416
    %v1315 = vxor.u32 %v1160, 2147516416
    %v1316 = vxor.u32 %v1164, 2147516416
    %v1318 = vmul.bf16 %v1309, 1069105081
    %v1319 = vpow.bf16.pop %v1318
    %v1321 = vmul.bf16 %v1310, 1069105081
    %v1322 = vpow.bf16.pop %v1321
    %v1324 = vmul.bf16 %v1311, 1069105081
    %v1325 = vpow.bf16.pop %v1324
    %v1327 = vmul.bf16 %v1312, 1069105081
    %v1328 = vpow.bf16.pop %v1327
    %v1330 = vmul.bf16 %v1313, 1069105081
    %v1331 = vpow.bf16.pop %v1330
    %v1333 = vmul.bf16 %v1314, 1069105081
    %v1334 = vpow.bf16.pop %v1333
    %v1336 = vmul.bf16 %v1315, 1069105081
    %v1337 = vpow.bf16.pop %v1336
    %v1339 = vmul.bf16 %v1316, 1069105081
    %v1340 = vpow.bf16.pop %v1339
    %v1341 = vadd.bf16 %v1319, 1065369472
    %v1342 = vadd.bf16 %v1322, 1065369472
    %v1343 = vadd.bf16 %v1325, 1065369472
    %v1344 = vadd.bf16 %v1328, 1065369472
    %v1345 = vadd.bf16 %v1331, 1065369472
    %v1346 = vadd.bf16 %v1334, 1065369472
    %v1347 = vadd.bf16 %v1337, 1065369472
    %v1348 = vadd.bf16 %v1340, 1065369472
    %v1349 = vrcp.bf16.pop %v1341
    %v1350 = vmul.bf16 1065369472, %v1349
    %v1351 = vrcp.bf16.pop %v1342
    %v1352 = vmul.bf16 1065369472, %v1351
    %v1353 = vrcp.bf16.pop %v1343
    %v1354 = vmul.bf16 1065369472, %v1353
    %v1355 = vrcp.bf16.pop %v1344
    %v1356 = vmul.bf16 1065369472, %v1355
    %v1357 = vrcp.bf16.pop %v1345
    %v1358 = vmul.bf16 1065369472, %v1357
    %v1359 = vrcp.bf16.pop %v1346
    %v1360 = vmul.bf16 1065369472, %v1359
    %v1361 = vrcp.bf16.pop %v1347
    %v1362 = vmul.bf16 1065369472, %v1361
    %v1363 = vrcp.bf16.pop %v1348
    %v1364 = vmul.bf16 1065369472, %v1363
    %v1365 = vunpack.c.l.bf16 %v1350
    %v1366 = vunpack.c.l.bf16 %v1352
    %v1367 = vunpack.c.l.bf16 %v1354
    %v1368 = vunpack.c.l.bf16 %v1356
    %v1369 = vunpack.c.l.bf16 %v1358
    %v1370 = vunpack.c.l.bf16 %v1360
    %v1371 = vunpack.c.l.bf16 %v1362
    %v1372 = vunpack.c.l.bf16 %v1364
    %v1373 = vmul.f32 %v1285, 0.0
    %v1374 = vmul.f32 %v1286, 0.0
    %v1375 = vmul.f32 %v1287, 0.0
    %v1376 = vmul.f32 %v1288, 0.0
    %v1377 = vmul.f32 %v1289, 0.0
    %v1378 = vmul.f32 %v1290, 0.0
    %v1379 = vmul.f32 %v1291, 0.0
    %v1380 = vmul.f32 %v1292, 0.0
    %v1381 = vmul.f32 %v1221, %v1301
    %v1382 = vmul.f32 %v1222, %v1302
    %v1383 = vmul.f32 %v1223, %v1303
    %v1384 = vmul.f32 %v1224, %v1304
    %v1385 = vmul.f32 %v1225, %v1305
    %v1386 = vmul.f32 %v1226, %v1306
    %v1387 = vmul.f32 %v1227, %v1307
    %v1388 = vmul.f32 %v1228, %v1308
    %v1389 = vadd.f32 %v1373, %v1381
    %v1390 = vadd.f32 %v1374, %v1382
    %v1391 = vadd.f32 %v1375, %v1383
    %v1392 = vadd.f32 %v1376, %v1384
    %v1393 = vadd.f32 %v1377, %v1385
    %v1394 = vadd.f32 %v1378, %v1386
    %v1395 = vadd.f32 %v1379, %v1387
    %v1396 = vadd.f32 %v1380, %v1388
    %v1397 = vtanh.pop %v1389
    %v1398 = vtanh.pop %v1390
    %v1399 = vtanh.pop %v1391
    %v1400 = vtanh.pop %v1392
    %v1401 = vtanh.pop %v1393
    %v1402 = vtanh.pop %v1394
    %v1403 = vtanh.pop %v1395
    %v1404 = vtanh.pop %v1396
    %v1405 = vmul.f32 %v1365, %v1397
    %v1406 = vmul.f32 %v1366, %v1398
    %v1407 = vmul.f32 %v1367, %v1399
    %v1408 = vmul.f32 %v1368, %v1400
    %v1409 = vmul.f32 %v1369, %v1401
    %v1410 = vmul.f32 %v1370, %v1402
    %v1411 = vmul.f32 %v1371, %v1403
    %v1412 = vmul.f32 %v1372, %v1404
    %v1413 = vpack.c.bf16 %v1405, %v1405
    %v1414 = vpack.c.bf16 %v1406, %v1406
    %v1415 = vpack.c.bf16 %v1407, %v1407
    %v1416 = vpack.c.bf16 %v1408, %v1408
    %v1417 = vpack.c.bf16 %v1409, %v1409
    %v1418 = vpack.c.bf16 %v1410, %v1410
    %v1419 = vpack.c.bf16 %v1411, %v1411
    %v1420 = vpack.c.bf16 %v1412, %v1412
    %v1429 = vunpack.c.l.b16 %v1413
    %v1430 = vunpack.c.l.b16 %v1414
    %v1431 = vunpack.c.l.b16 %v1415
    %v1432 = vunpack.c.l.b16 %v1416
    %v1433 = vunpack.c.l.b16 %v1417
    %v1434 = vunpack.c.l.b16 %v1418
    %v1435 = vunpack.c.l.b16 %v1419
    %v1436 = vunpack.c.l.b16 %v1420
    %v1437 = vrot.slane %v1430, 7
    %vm1438 = vcmask 1041409
    %v1439 = vsel %vm1438, %v1437, %v1429
    %v1440 = vrot.slane %v1431, 6
    %vm1441 = vcmask 1042434
    %v1442 = vsel %vm1441, %v1440, %v1439
    %v1443 = vrot.slane %v1432, 5
    %vm1444 = vcmask 1043459
    %v1445 = vsel %vm1444, %v1443, %v1442
    %v1446 = vrot.slane %v1433, 4
    %vm1447 = vcmask 1044484
    %v1448 = vsel %vm1447, %v1446, %v1445
    %v1449 = vrot.slane %v1434, 3
    %vm1450 = vcmask 1045509
    %v1451 = vsel %vm1450, %v1449, %v1448
    %v1452 = vrot.slane %v1435, 2
    %vm1453 = vcmask 1046534
    %v1454 = vsel %vm1453, %v1452, %v1451
    %v1455 = vrot.slane %v1436, 1
    %vm1456 = vcmask 1047559
    %v1457 = vsel %vm1456, %v1455, %v1454
    %v1458 = vpack.c.b16 %v1457, %v1457
    %1460 = vmatprep.subr.bf16.mxu0 %v892
    %1461 = vmatpush1.bf16.msra.mxu0 %v891
    %1462 = vmatprep.subr.bf16.mxu0 %v896
    %1463 = vmatpush1.bf16.msra.mxu0 %v895
    %1464 = vmatprep.subr.bf16.mxu0 %v900
    %1465 = vmatpush1.bf16.msra.mxu0 %v899
    %1466 = vmatprep.subr.bf16.mxu0 %v904
    %1467 = vmatpush1.bf16.msra.mxu0 %v903
    %1468 = vmatprep.subr.bf16.mxu0 %v908
    %1469 = vmatpush1.bf16.msra.mxu0 %v907
    %1470 = vmatprep.subr.bf16.mxu0 %v912
    %1471 = vmatpush1.bf16.msra.mxu0 %v911
    %1472 = vmatprep.subr.bf16.mxu0 %v916
    %1473 = vmatpush1.bf16.msra.mxu0 %v915
    %1474 = vmatprep.subr.bf16.mxu0 %v920
    %1475 = vmatpush1.bf16.msra.mxu0 %v919
    %1476 = vmatprep.subr.bf16.mxu0 0
    %1477 = vmatpush1.bf16.msra.mxu0 0
    %1478 = vmatprep.subr.bf16.mxu0 0
    %1479 = vmatpush1.bf16.msra.mxu0 0
    %1480 = vmatprep.subr.bf16.mxu0 0
    %1481 = vmatpush1.bf16.msra.mxu0 0
    %1482 = vmatprep.subr.bf16.mxu0 0
    %1483 = vmatpush1.bf16.msra.mxu0 0
    %1484 = vmatprep.subr.bf16.mxu0 0
    %1485 = vmatpush1.bf16.msra.mxu0 0
    %1486 = vmatprep.subr.bf16.mxu0 0
    %1487 = vmatpush1.bf16.msra.mxu0 0
    %1488 = vmatprep.subr.bf16.mxu0 0
    %1489 = vmatpush1.bf16.msra.mxu0 0
    %1490 = vmatprep.subr.bf16.mxu0 0
    %1491 = vmatpush1.bf16.msra.mxu0 0
    %1492 = vmatprep.mubr.bf16.mxu0 0
    %1493 = vmatmul.mubr.bf16.gmra.mrb[0].mxu0 %v1458
    %v1494 = vpop.f32.mrb[0].mxu0
    %v1495 = vadd.f32 0.0, %v1494
    %v1496 = vpop.f32.mrb[0].mxu0
    %v1497 = vadd.f32 0.0, %v1496
    %v1498 = vpop.f32.mrb[0].mxu0
    %v1499 = vpop.f32.mrb[0].mxu0
    %1500 = vdwg.mxu0
    %1501 = vmatprep.subr.bf16.mxu0 %v894
    %1502 = vmatpush1.bf16.msra.mxu0 %v893
    %1503 = vmatprep.subr.bf16.mxu0 %v898
    %1504 = vmatpush1.bf16.msra.mxu0 %v897
    %1505 = vmatprep.subr.bf16.mxu0 %v902
    %1506 = vmatpush1.bf16.msra.mxu0 %v901
    %1507 = vmatprep.subr.bf16.mxu0 %v906
    %1508 = vmatpush1.bf16.msra.mxu0 %v905
    %1509 = vmatprep.subr.bf16.mxu0 %v910
    %1510 = vmatpush1.bf16.msra.mxu0 %v909
    %1511 = vmatprep.subr.bf16.mxu0 %v914
    %1512 = vmatpush1.bf16.msra.mxu0 %v913
    %1513 = vmatprep.subr.bf16.mxu0 %v918
    %1514 = vmatpush1.bf16.msra.mxu0 %v917
    %1515 = vmatprep.subr.bf16.mxu0 %v922
    %1516 = vmatpush1.bf16.msra.mxu0 %v921
    %1517 = vmatprep.subr.bf16.mxu0 0
    %1518 = vmatpush1.bf16.msra.mxu0 0
    %1519 = vmatprep.subr.bf16.mxu0 0
    %1520 = vmatpush1.bf16.msra.mxu0 0
    %1521 = vmatprep.subr.bf16.mxu0 0
    %1522 = vmatpush1.bf16.msra.mxu0 0
    %1523 = vmatprep.subr.bf16.mxu0 0
    %1524 = vmatpush1.bf16.msra.mxu0 0
    %1525 = vmatprep.subr.bf16.mxu0 0
    %1526 = vmatpush1.bf16.msra.mxu0 0
    %1527 = vmatprep.subr.bf16.mxu0 0
    %1528 = vmatpush1.bf16.msra.mxu0 0
    %1529 = vmatprep.subr.bf16.mxu0 0
    %1530 = vmatpush1.bf16.msra.mxu0 0
    %1531 = vmatprep.subr.bf16.mxu0 0
    %1532 = vmatpush1.bf16.msra.mxu0 0
    %1533 = vmatprep.mubr.bf16.mxu0 0
    %1534 = vmatmul.mubr.bf16.gmra.mrb[0].mxu0 %v1458
    %v1535 = vpop.f32.mrb[0].mxu0
    %v1536 = vadd.f32 0.0, %v1535
    %v1537 = vpop.f32.mrb[0].mxu0
    %v1538 = vadd.f32 0.0, %v1537
    %v1539 = vpop.f32.mrb[0].mxu0
    %v1540 = vpop.f32.mrb[0].mxu0
    %1541 = vdwg.mxu0
    %v1546 = vrot.slane %v1495, 7
    %v1547 = vrot.slane %v1497, 7
    %v1548 = vrot.slane %v1536, 7
    %v1549 = vrot.slane %v1538, 7
    %v1550 = vrot.slane %v1495, 1
    %v1551 = vrot.slane %v1497, 1
    %v1552 = vrot.slane %v1536, 1
    %v1553 = vrot.slane %v1538, 1
    %v1554 = vrot.slane %v1495, 2
    %v1555 = vrot.slane %v1497, 2
    %v1556 = vrot.slane %v1536, 2
    %v1557 = vrot.slane %v1538, 2
    %v1558 = vrot.slane %v1495, 3
    %v1559 = vrot.slane %v1497, 3
    %v1560 = vrot.slane %v1536, 3
    %v1561 = vrot.slane %v1538, 3
    %v1562 = vrot.slane %v1495, 4
    %v1563 = vrot.slane %v1497, 4
    %v1564 = vrot.slane %v1536, 4
    %v1565 = vrot.slane %v1538, 4
    %v1566 = vrot.slane %v1495, 5
    %v1567 = vrot.slane %v1497, 5
    %v1568 = vrot.slane %v1536, 5
    %v1569 = vrot.slane %v1538, 5
    %v1570 = vrot.slane %v1495, 6
    %v1571 = vrot.slane %v1497, 6
    %v1572 = vrot.slane %v1536, 6
    %v1573 = vrot.slane %v1538, 6
    %v1606 = vadd.f32 %v652, %v1546
    %v1607 = vadd.f32 %v654, %v1547
    %v1608 = vadd.f32 %v725, %v1548
    %v1609 = vadd.f32 %v727, %v1549
    %v1610 = vadd.f32 %v656, %v1495
    %v1611 = vadd.f32 %v658, %v1497
    %v1612 = vadd.f32 %v729, %v1536
    %v1613 = vadd.f32 %v731, %v1538
    %v1614 = vadd.f32 %v662, %v1550
    %v1615 = vadd.f32 %v664, %v1551
    %v1616 = vadd.f32 %v735, %v1552
    %v1617 = vadd.f32 %v737, %v1553
    %v1618 = vadd.f32 %v666, %v1554
    %v1619 = vadd.f32 %v668, %v1555
    %v1620 = vadd.f32 %v739, %v1556
    %v1621 = vadd.f32 %v741, %v1557
    %v1622 = vadd.f32 %v672, %v1558
    %v1623 = vadd.f32 %v674, %v1559
    %v1624 = vadd.f32 %v745, %v1560
    %v1625 = vadd.f32 %v747, %v1561
    %v1626 = vadd.f32 %v676, %v1562
    %v1627 = vadd.f32 %v678, %v1563
    %v1628 = vadd.f32 %v749, %v1564
    %v1629 = vadd.f32 %v751, %v1565
    %v1630 = vadd.f32 %v682, %v1566
    %v1631 = vadd.f32 %v684, %v1567
    %v1632 = vadd.f32 %v755, %v1568
    %v1633 = vadd.f32 %v757, %v1569
    %v1634 = vadd.f32 %v686, %v1570
    %v1635 = vadd.f32 %v688, %v1571
    %v1636 = vadd.f32 %v759, %v1572
    %v1637 = vadd.f32 %v761, %v1573
    %v1638 = vpack.c.bf16 %v1606, %v1606
    %v1639 = vpack.c.bf16 %v1607, %v1607
    %v1640 = vpack.c.bf16 %v1608, %v1608
    %v1641 = vpack.c.bf16 %v1609, %v1609
    %v1642 = vpack.c.bf16 %v1610, %v1610
    %v1643 = vpack.c.bf16 %v1611, %v1611
    %v1644 = vpack.c.bf16 %v1612, %v1612
    %v1645 = vpack.c.bf16 %v1613, %v1613
    %v1646 = vpack.c.bf16 %v1614, %v1614
    %v1647 = vpack.c.bf16 %v1615, %v1615
    %v1648 = vpack.c.bf16 %v1616, %v1616
    %v1649 = vpack.c.bf16 %v1617, %v1617
    %v1650 = vpack.c.bf16 %v1618, %v1618
    %v1651 = vpack.c.bf16 %v1619, %v1619
    %v1652 = vpack.c.bf16 %v1620, %v1620
    %v1653 = vpack.c.bf16 %v1621, %v1621
    %v1654 = vpack.c.bf16 %v1622, %v1622
    %v1655 = vpack.c.bf16 %v1623, %v1623
    %v1656 = vpack.c.bf16 %v1624, %v1624
    %v1657 = vpack.c.bf16 %v1625, %v1625
    %v1658 = vpack.c.bf16 %v1626, %v1626
    %v1659 = vpack.c.bf16 %v1627, %v1627
    %v1660 = vpack.c.bf16 %v1628, %v1628
    %v1661 = vpack.c.bf16 %v1629, %v1629
    %v1662 = vpack.c.bf16 %v1630, %v1630
    %v1663 = vpack.c.bf16 %v1631, %v1631
    %v1664 = vpack.c.bf16 %v1632, %v1632
    %v1665 = vpack.c.bf16 %v1633, %v1633
    %v1666 = vpack.c.bf16 %v1634, %v1634
    %v1667 = vpack.c.bf16 %v1635, %v1635
    %v1668 = vpack.c.bf16 %v1636, %v1636
    %v1669 = vpack.c.bf16 %v1637, %v1637
    %v1670 = vxor.u32 %v1638, 2147516416
    %v1671 = vxor.u32 %v1642, 2147516416
    %v1672 = vxor.u32 %v1646, 2147516416
    %v1673 = vxor.u32 %v1650, 2147516416
    %v1674 = vxor.u32 %v1654, 2147516416
    %v1675 = vxor.u32 %v1658, 2147516416
    %v1676 = vxor.u32 %v1662, 2147516416
    %v1677 = vxor.u32 %v1666, 2147516416
    %v1679 = vmul.bf16 %v1670, 1069105081
    %v1680 = vpow.bf16.pop %v1679
    %v1682 = vmul.bf16 %v1671, 1069105081
    %v1683 = vpow.bf16.pop %v1682
    %v1685 = vmul.bf16 %v1672, 1069105081
    %v1686 = vpow.bf16.pop %v1685
    %v1688 = vmul.bf16 %v1673, 1069105081
    %v1689 = vpow.bf16.pop %v1688
    %v1691 = vmul.bf16 %v1674, 1069105081
    %v1692 = vpow.bf16.pop %v1691
    %v1694 = vmul.bf16 %v1675, 1069105081
    %v1695 = vpow.bf16.pop %v1694
    %v1697 = vmul.bf16 %v1676, 1069105081
    %v1698 = vpow.bf16.pop %v1697
    %v1700 = vmul.bf16 %v1677, 1069105081
    %v1701 = vpow.bf16.pop %v1700
    %v1702 = vadd.bf16 %v1680, 1065369472
    %v1703 = vadd.bf16 %v1683, 1065369472
    %v1704 = vadd.bf16 %v1686, 1065369472
    %v1705 = vadd.bf16 %v1689, 1065369472
    %v1706 = vadd.bf16 %v1692, 1065369472
    %v1707 = vadd.bf16 %v1695, 1065369472
    %v1708 = vadd.bf16 %v1698, 1065369472
    %v1709 = vadd.bf16 %v1701, 1065369472
    %v1710 = vrcp.bf16.pop %v1702
    %v1711 = vmul.bf16 1065369472, %v1710
    %v1712 = vrcp.bf16.pop %v1703
    %v1713 = vmul.bf16 1065369472, %v1712
    %v1714 = vrcp.bf16.pop %v1704
    %v1715 = vmul.bf16 1065369472, %v1714
    %v1716 = vrcp.bf16.pop %v1705
    %v1717 = vmul.bf16 1065369472, %v1716
    %v1718 = vrcp.bf16.pop %v1706
    %v1719 = vmul.bf16 1065369472, %v1718
    %v1720 = vrcp.bf16.pop %v1707
    %v1721 = vmul.bf16 1065369472, %v1720
    %v1722 = vrcp.bf16.pop %v1708
    %v1723 = vmul.bf16 1065369472, %v1722
    %v1724 = vrcp.bf16.pop %v1709
    %v1725 = vmul.bf16 1065369472, %v1724
    %v1726 = vunpack.c.l.bf16 %v1711
    %v1727 = vunpack.c.l.bf16 %v1713
    %v1728 = vunpack.c.l.bf16 %v1715
    %v1729 = vunpack.c.l.bf16 %v1717
    %v1730 = vunpack.c.l.bf16 %v1719
    %v1731 = vunpack.c.l.bf16 %v1721
    %v1732 = vunpack.c.l.bf16 %v1723
    %v1733 = vunpack.c.l.bf16 %v1725
    %v1734 = vxor.u32 %v1639, 2147516416
    %v1735 = vxor.u32 %v1643, 2147516416
    %v1736 = vxor.u32 %v1647, 2147516416
    %v1737 = vxor.u32 %v1651, 2147516416
    %v1738 = vxor.u32 %v1655, 2147516416
    %v1739 = vxor.u32 %v1659, 2147516416
    %v1740 = vxor.u32 %v1663, 2147516416
    %v1741 = vxor.u32 %v1667, 2147516416
    %v1743 = vmul.bf16 %v1734, 1069105081
    %v1744 = vpow.bf16.pop %v1743
    %v1746 = vmul.bf16 %v1735, 1069105081
    %v1747 = vpow.bf16.pop %v1746
    %v1749 = vmul.bf16 %v1736, 1069105081
    %v1750 = vpow.bf16.pop %v1749
    %v1752 = vmul.bf16 %v1737, 1069105081
    %v1753 = vpow.bf16.pop %v1752
    %v1755 = vmul.bf16 %v1738, 1069105081
    %v1756 = vpow.bf16.pop %v1755
    %v1758 = vmul.bf16 %v1739, 1069105081
    %v1759 = vpow.bf16.pop %v1758
    %v1761 = vmul.bf16 %v1740, 1069105081
    %v1762 = vpow.bf16.pop %v1761
    %v1764 = vmul.bf16 %v1741, 1069105081
    %v1765 = vpow.bf16.pop %v1764
    %v1766 = vadd.bf16 %v1744, 1065369472
    %v1767 = vadd.bf16 %v1747, 1065369472
    %v1768 = vadd.bf16 %v1750, 1065369472
    %v1769 = vadd.bf16 %v1753, 1065369472
    %v1770 = vadd.bf16 %v1756, 1065369472
    %v1771 = vadd.bf16 %v1759, 1065369472
    %v1772 = vadd.bf16 %v1762, 1065369472
    %v1773 = vadd.bf16 %v1765, 1065369472
    %v1774 = vrcp.bf16.pop %v1766
    %v1775 = vmul.bf16 1065369472, %v1774
    %v1776 = vrcp.bf16.pop %v1767
    %v1777 = vmul.bf16 1065369472, %v1776
    %v1778 = vrcp.bf16.pop %v1768
    %v1779 = vmul.bf16 1065369472, %v1778
    %v1780 = vrcp.bf16.pop %v1769
    %v1781 = vmul.bf16 1065369472, %v1780
    %v1782 = vrcp.bf16.pop %v1770
    %v1783 = vmul.bf16 1065369472, %v1782
    %v1784 = vrcp.bf16.pop %v1771
    %v1785 = vmul.bf16 1065369472, %v1784
    %v1786 = vrcp.bf16.pop %v1772
    %v1787 = vmul.bf16 1065369472, %v1786
    %v1788 = vrcp.bf16.pop %v1773
    %v1789 = vmul.bf16 1065369472, %v1788
    %v1790 = vunpack.c.l.bf16 %v1775
    %v1791 = vunpack.c.l.bf16 %v1777
    %v1792 = vunpack.c.l.bf16 %v1779
    %v1793 = vunpack.c.l.bf16 %v1781
    %v1794 = vunpack.c.l.bf16 %v1783
    %v1795 = vunpack.c.l.bf16 %v1785
    %v1796 = vunpack.c.l.bf16 %v1787
    %v1797 = vunpack.c.l.bf16 %v1789
    %v1798 = vtanh.bf16.pop %v1640
    %v1799 = vtanh.bf16.pop %v1644
    %v1800 = vtanh.bf16.pop %v1648
    %v1801 = vtanh.bf16.pop %v1652
    %v1802 = vtanh.bf16.pop %v1656
    %v1803 = vtanh.bf16.pop %v1660
    %v1804 = vtanh.bf16.pop %v1664
    %v1805 = vtanh.bf16.pop %v1668
    %v1806 = vunpack.c.l.bf16 %v1798
    %v1807 = vunpack.c.l.bf16 %v1799
    %v1808 = vunpack.c.l.bf16 %v1800
    %v1809 = vunpack.c.l.bf16 %v1801
    %v1810 = vunpack.c.l.bf16 %v1802
    %v1811 = vunpack.c.l.bf16 %v1803
    %v1812 = vunpack.c.l.bf16 %v1804
    %v1813 = vunpack.c.l.bf16 %v1805
    %v1814 = vxor.u32 %v1641, 2147516416
    %v1815 = vxor.u32 %v1645, 2147516416
    %v1816 = vxor.u32 %v1649, 2147516416
    %v1817 = vxor.u32 %v1653, 2147516416
    %v1818 = vxor.u32 %v1657, 2147516416
    %v1819 = vxor.u32 %v1661, 2147516416
    %v1820 = vxor.u32 %v1665, 2147516416
    %v1821 = vxor.u32 %v1669, 2147516416
    %v1823 = vmul.bf16 %v1814, 1069105081
    %v1824 = vpow.bf16.pop %v1823
    %v1826 = vmul.bf16 %v1815, 1069105081
    %v1827 = vpow.bf16.pop %v1826
    %v1829 = vmul.bf16 %v1816, 1069105081
    %v1830 = vpow.bf16.pop %v1829
    %v1832 = vmul.bf16 %v1817, 1069105081
    %v1833 = vpow.bf16.pop %v1832
    %v1835 = vmul.bf16 %v1818, 1069105081
    %v1836 = vpow.bf16.pop %v1835
    %v1838 = vmul.bf16 %v1819, 1069105081
    %v1839 = vpow.bf16.pop %v1838
    %v1841 = vmul.bf16 %v1820, 1069105081
    %v1842 = vpow.bf16.pop %v1841
    %v1844 = vmul.bf16 %v1821, 1069105081
    %v1845 = vpow.bf16.pop %v1844
    %v1846 = vadd.bf16 %v1824, 1065369472
    %v1847 = vadd.bf16 %v1827, 1065369472
    %v1848 = vadd.bf16 %v1830, 1065369472
    %v1849 = vadd.bf16 %v1833, 1065369472
    %v1850 = vadd.bf16 %v1836, 1065369472
    %v1851 = vadd.bf16 %v1839, 1065369472
    %v1852 = vadd.bf16 %v1842, 1065369472
    %v1853 = vadd.bf16 %v1845, 1065369472
    %v1854 = vrcp.bf16.pop %v1846
    %v1855 = vmul.bf16 1065369472, %v1854
    %v1856 = vrcp.bf16.pop %v1847
    %v1857 = vmul.bf16 1065369472, %v1856
    %v1858 = vrcp.bf16.pop %v1848
    %v1859 = vmul.bf16 1065369472, %v1858
    %v1860 = vrcp.bf16.pop %v1849
    %v1861 = vmul.bf16 1065369472, %v1860
    %v1862 = vrcp.bf16.pop %v1850
    %v1863 = vmul.bf16 1065369472, %v1862
    %v1864 = vrcp.bf16.pop %v1851
    %v1865 = vmul.bf16 1065369472, %v1864
    %v1866 = vrcp.bf16.pop %v1852
    %v1867 = vmul.bf16 1065369472, %v1866
    %v1868 = vrcp.bf16.pop %v1853
    %v1869 = vmul.bf16 1065369472, %v1868
    %v1870 = vunpack.c.l.bf16 %v1855
    %v1871 = vunpack.c.l.bf16 %v1857
    %v1872 = vunpack.c.l.bf16 %v1859
    %v1873 = vunpack.c.l.bf16 %v1861
    %v1874 = vunpack.c.l.bf16 %v1863
    %v1875 = vunpack.c.l.bf16 %v1865
    %v1876 = vunpack.c.l.bf16 %v1867
    %v1877 = vunpack.c.l.bf16 %v1869
    %v1886 = vrot.slane %v1389, 7
    %v1887 = vrot.slane %v1390, 7
    %v1888 = vrot.slane %v1391, 7
    %v1889 = vrot.slane %v1392, 7
    %v1890 = vrot.slane %v1393, 7
    %v1891 = vrot.slane %v1394, 7
    %v1892 = vrot.slane %v1395, 7
    %v1893 = vrot.slane %v1396, 7
    %v1902 = vmul.f32 %v1790, %v1886
    %v1903 = vmul.f32 %v1791, %v1887
    %v1904 = vmul.f32 %v1792, %v1888
    %v1905 = vmul.f32 %v1793, %v1889
    %v1906 = vmul.f32 %v1794, %v1890
    %v1907 = vmul.f32 %v1795, %v1891
    %v1908 = vmul.f32 %v1796, %v1892
    %v1909 = vmul.f32 %v1797, %v1893
    %v1910 = vmul.f32 %v1726, %v1806
    %v1911 = vmul.f32 %v1727, %v1807
    %v1912 = vmul.f32 %v1728, %v1808
    %v1913 = vmul.f32 %v1729, %v1809
    %v1914 = vmul.f32 %v1730, %v1810
    %v1915 = vmul.f32 %v1731, %v1811
    %v1916 = vmul.f32 %v1732, %v1812
    %v1917 = vmul.f32 %v1733, %v1813
    %v1918 = vadd.f32 %v1902, %v1910
    %v1919 = vadd.f32 %v1903, %v1911
    %v1920 = vadd.f32 %v1904, %v1912
    %v1921 = vadd.f32 %v1905, %v1913
    %v1922 = vadd.f32 %v1906, %v1914
    %v1923 = vadd.f32 %v1907, %v1915
    %v1924 = vadd.f32 %v1908, %v1916
    %v1925 = vadd.f32 %v1909, %v1917
    %v1926 = vtanh.pop %v1918
    %v1927 = vtanh.pop %v1919
    %v1928 = vtanh.pop %v1920
    %v1929 = vtanh.pop %v1921
    %v1930 = vtanh.pop %v1922
    %v1931 = vtanh.pop %v1923
    %v1932 = vtanh.pop %v1924
    %v1933 = vtanh.pop %v1925
    %v1934 = vmul.f32 %v1870, %v1926
    %v1935 = vmul.f32 %v1871, %v1927
    %v1936 = vmul.f32 %v1872, %v1928
    %v1937 = vmul.f32 %v1873, %v1929
    %v1938 = vmul.f32 %v1874, %v1930
    %v1939 = vmul.f32 %v1875, %v1931
    %v1940 = vmul.f32 %v1876, %v1932
    %v1941 = vmul.f32 %v1877, %v1933
    %v1942 = vpack.c.bf16 %v1934, %v1934
    %v1943 = vpack.c.bf16 %v1935, %v1935
    %v1944 = vpack.c.bf16 %v1936, %v1936
    %v1945 = vpack.c.bf16 %v1937, %v1937
    %v1946 = vpack.c.bf16 %v1938, %v1938
    %v1947 = vpack.c.bf16 %v1939, %v1939
    %v1948 = vpack.c.bf16 %v1940, %v1940
    %v1949 = vpack.c.bf16 %v1941, %v1941
    %v1958 = vunpack.c.l.b16 %v1942
    %v1959 = vunpack.c.l.b16 %v1943
    %v1960 = vunpack.c.l.b16 %v1944
    %v1961 = vunpack.c.l.b16 %v1945
    %v1962 = vunpack.c.l.b16 %v1946
    %v1963 = vunpack.c.l.b16 %v1947
    %v1964 = vunpack.c.l.b16 %v1948
    %v1965 = vunpack.c.l.b16 %v1949
    %v1966 = vrot.slane %v1958, 1
    %v1967 = vsel %vm1438, %v1959, %v1966
    %v1968 = vrot.slane %v1960, 7
    %v1969 = vsel %vm1441, %v1968, %v1967
    %v1970 = vrot.slane %v1961, 6
    %v1971 = vsel %vm1444, %v1970, %v1969
    %v1972 = vrot.slane %v1962, 5
    %v1973 = vsel %vm1447, %v1972, %v1971
    %v1974 = vrot.slane %v1963, 4
    %v1975 = vsel %vm1450, %v1974, %v1973
    %v1976 = vrot.slane %v1964, 3
    %v1977 = vsel %vm1453, %v1976, %v1975
    %v1978 = vrot.slane %v1965, 2
    %v1979 = vsel %vm1456, %v1978, %v1977
    %v1980 = vpack.c.b16 %v1979, %v1979
    %1982 = vmatprep.subr.bf16.mxu0 %v892
    %1983 = vmatpush1.bf16.msra.mxu0 %v891
    %1984 = vmatprep.subr.bf16.mxu0 %v896
    %1985 = vmatpush1.bf16.msra.mxu0 %v895
    %1986 = vmatprep.subr.bf16.mxu0 %v900
    %1987 = vmatpush1.bf16.msra.mxu0 %v899
    %1988 = vmatprep.subr.bf16.mxu0 %v904
    %1989 = vmatpush1.bf16.msra.mxu0 %v903
    %1990 = vmatprep.subr.bf16.mxu0 %v908
    %1991 = vmatpush1.bf16.msra.mxu0 %v907
    %1992 = vmatprep.subr.bf16.mxu0 %v912
    %1993 = vmatpush1.bf16.msra.mxu0 %v911
    %1994 = vmatprep.subr.bf16.mxu0 %v916
    %1995 = vmatpush1.bf16.msra.mxu0 %v915
    %1996 = vmatprep.subr.bf16.mxu0 %v920
    %1997 = vmatpush1.bf16.msra.mxu0 %v919
    %1998 = vmatprep.subr.bf16.mxu0 0
    %1999 = vmatpush1.bf16.msra.mxu0 0
    %2000 = vmatprep.subr.bf16.mxu0 0
    %2001 = vmatpush1.bf16.msra.mxu0 0
    %2002 = vmatprep.subr.bf16.mxu0 0
    %2003 = vmatpush1.bf16.msra.mxu0 0
    %2004 = vmatprep.subr.bf16.mxu0 0
    %2005 = vmatpush1.bf16.msra.mxu0 0
    %2006 = vmatprep.subr.bf16.mxu0 0
    %2007 = vmatpush1.bf16.msra.mxu0 0
    %2008 = vmatprep.subr.bf16.mxu0 0
    %2009 = vmatpush1.bf16.msra.mxu0 0
    %2010 = vmatprep.subr.bf16.mxu0 0
    %2011 = vmatpush1.bf16.msra.mxu0 0
    %2012 = vmatprep.subr.bf16.mxu0 0
    %2013 = vmatpush1.bf16.msra.mxu0 0
    %2014 = vmatprep.mubr.bf16.mxu0 0
    %2015 = vmatmul.mubr.bf16.gmra.mrb[0].mxu0 %v1980
    %v2016 = vpop.f32.mrb[0].mxu0
    %v2017 = vadd.f32 0.0, %v2016
    %v2018 = vpop.f32.mrb[0].mxu0
    %v2019 = vadd.f32 0.0, %v2018
    %v2020 = vpop.f32.mrb[0].mxu0
    %v2021 = vpop.f32.mrb[0].mxu0
    %2022 = vdwg.mxu0
    %2023 = vmatprep.subr.bf16.mxu0 %v894
    %2024 = vmatpush1.bf16.msra.mxu0 %v893
    %2025 = vmatprep.subr.bf16.mxu0 %v898
    %2026 = vmatpush1.bf16.msra.mxu0 %v897
    %2027 = vmatprep.subr.bf16.mxu0 %v902
    %2028 = vmatpush1.bf16.msra.mxu0 %v901
    %2029 = vmatprep.subr.bf16.mxu0 %v906
    %2030 = vmatpush1.bf16.msra.mxu0 %v905
    %2031 = vmatprep.subr.bf16.mxu0 %v910
    %2032 = vmatpush1.bf16.msra.mxu0 %v909
    %2033 = vmatprep.subr.bf16.mxu0 %v914
    %2034 = vmatpush1.bf16.msra.mxu0 %v913
    %2035 = vmatprep.subr.bf16.mxu0 %v918
    %2036 = vmatpush1.bf16.msra.mxu0 %v917
    %2037 = vmatprep.subr.bf16.mxu0 %v922
    %2038 = vmatpush1.bf16.msra.mxu0 %v921
    %2039 = vmatprep.subr.bf16.mxu0 0
    %2040 = vmatpush1.bf16.msra.mxu0 0
    %2041 = vmatprep.subr.bf16.mxu0 0
    %2042 = vmatpush1.bf16.msra.mxu0 0
    %2043 = vmatprep.subr.bf16.mxu0 0
    %2044 = vmatpush1.bf16.msra.mxu0 0
    %2045 = vmatprep.subr.bf16.mxu0 0
    %2046 = vmatpush1.bf16.msra.mxu0 0
    %2047 = vmatprep.subr.bf16.mxu0 0
    %2048 = vmatpush1.bf16.msra.mxu0 0
    %2049 = vmatprep.subr.bf16.mxu0 0
    %2050 = vmatpush1.bf16.msra.mxu0 0
    %2051 = vmatprep.subr.bf16.mxu0 0
    %2052 = vmatpush1.bf16.msra.mxu0 0
    %2053 = vmatprep.subr.bf16.mxu0 0
    %2054 = vmatpush1.bf16.msra.mxu0 0
    %2055 = vmatprep.mubr.bf16.mxu0 0
    %2056 = vmatmul.mubr.bf16.gmra.mrb[0].mxu0 %v1980
    %v2057 = vpop.f32.mrb[0].mxu0
    %v2058 = vadd.f32 0.0, %v2057
    %v2059 = vpop.f32.mrb[0].mxu0
    %v2060 = vadd.f32 0.0, %v2059
    %v2061 = vpop.f32.mrb[0].mxu0
    %v2062 = vpop.f32.mrb[0].mxu0
    %2063 = vdwg.mxu0
    %v2068 = vrot.slane %v2017, 6
    %v2069 = vrot.slane %v2019, 6
    %v2070 = vrot.slane %v2058, 6
    %v2071 = vrot.slane %v2060, 6
    %v2072 = vrot.slane %v2017, 7
    %v2073 = vrot.slane %v2019, 7
    %v2074 = vrot.slane %v2058, 7
    %v2075 = vrot.slane %v2060, 7
    %v2076 = vrot.slane %v2017, 1
    %v2077 = vrot.slane %v2019, 1
    %v2078 = vrot.slane %v2058, 1
    %v2079 = vrot.slane %v2060, 1
    %v2080 = vrot.slane %v2017, 2
    %v2081 = vrot.slane %v2019, 2
    %v2082 = vrot.slane %v2058, 2
    %v2083 = vrot.slane %v2060, 2
    %v2084 = vrot.slane %v2017, 3
    %v2085 = vrot.slane %v2019, 3
    %v2086 = vrot.slane %v2058, 3
    %v2087 = vrot.slane %v2060, 3
    %v2088 = vrot.slane %v2017, 4
    %v2089 = vrot.slane %v2019, 4
    %v2090 = vrot.slane %v2058, 4
    %v2091 = vrot.slane %v2060, 4
    %v2092 = vrot.slane %v2017, 5
    %v2093 = vrot.slane %v2019, 5
    %v2094 = vrot.slane %v2058, 5
    %v2095 = vrot.slane %v2060, 5
    %v2128 = vadd.f32 %v652, %v2068
    %v2129 = vadd.f32 %v654, %v2069
    %v2130 = vadd.f32 %v725, %v2070
    %v2131 = vadd.f32 %v727, %v2071
    %v2132 = vadd.f32 %v656, %v2072
    %v2133 = vadd.f32 %v658, %v2073
    %v2134 = vadd.f32 %v729, %v2074
    %v2135 = vadd.f32 %v731, %v2075
    %v2136 = vadd.f32 %v662, %v2017
    %v2137 = vadd.f32 %v664, %v2019
    %v2138 = vadd.f32 %v735, %v2058
    %v2139 = vadd.f32 %v737, %v2060
    %v2140 = vadd.f32 %v666, %v2076
    %v2141 = vadd.f32 %v668, %v2077
    %v2142 = vadd.f32 %v739, %v2078
    %v2143 = vadd.f32 %v741, %v2079
    %v2144 = vadd.f32 %v672, %v2080
    %v2145 = vadd.f32 %v674, %v2081
    %v2146 = vadd.f32 %v745, %v2082
    %v2147 = vadd.f32 %v747, %v2083
    %v2148 = vadd.f32 %v676, %v2084
    %v2149 = vadd.f32 %v678, %v2085
    %v2150 = vadd.f32 %v749, %v2086
    %v2151 = vadd.f32 %v751, %v2087
    %v2152 = vadd.f32 %v682, %v2088
    %v2153 = vadd.f32 %v684, %v2089
    %v2154 = vadd.f32 %v755, %v2090
    %v2155 = vadd.f32 %v757, %v2091
    %v2156 = vadd.f32 %v686, %v2092
    %v2157 = vadd.f32 %v688, %v2093
    %v2158 = vadd.f32 %v759, %v2094
    %v2159 = vadd.f32 %v761, %v2095
    %v2160 = vpack.c.bf16 %v2128, %v2128
    %v2161 = vpack.c.bf16 %v2129, %v2129
    %v2162 = vpack.c.bf16 %v2130, %v2130
    %v2163 = vpack.c.bf16 %v2131, %v2131
    %v2164 = vpack.c.bf16 %v2132, %v2132
    %v2165 = vpack.c.bf16 %v2133, %v2133
    %v2166 = vpack.c.bf16 %v2134, %v2134
    %v2167 = vpack.c.bf16 %v2135, %v2135
    %v2168 = vpack.c.bf16 %v2136, %v2136
    %v2169 = vpack.c.bf16 %v2137, %v2137
    %v2170 = vpack.c.bf16 %v2138, %v2138
    %v2171 = vpack.c.bf16 %v2139, %v2139
    %v2172 = vpack.c.bf16 %v2140, %v2140
    %v2173 = vpack.c.bf16 %v2141, %v2141
    %v2174 = vpack.c.bf16 %v2142, %v2142
    %v2175 = vpack.c.bf16 %v2143, %v2143
    %v2176 = vpack.c.bf16 %v2144, %v2144
    %v2177 = vpack.c.bf16 %v2145, %v2145
    %v2178 = vpack.c.bf16 %v2146, %v2146
    %v2179 = vpack.c.bf16 %v2147, %v2147
    %v2180 = vpack.c.bf16 %v2148, %v2148
    %v2181 = vpack.c.bf16 %v2149, %v2149
    %v2182 = vpack.c.bf16 %v2150, %v2150
    %v2183 = vpack.c.bf16 %v2151, %v2151
    %v2184 = vpack.c.bf16 %v2152, %v2152
    %v2185 = vpack.c.bf16 %v2153, %v2153
    %v2186 = vpack.c.bf16 %v2154, %v2154
    %v2187 = vpack.c.bf16 %v2155, %v2155
    %v2188 = vpack.c.bf16 %v2156, %v2156
    %v2189 = vpack.c.bf16 %v2157, %v2157
    %v2190 = vpack.c.bf16 %v2158, %v2158
    %v2191 = vpack.c.bf16 %v2159, %v2159
    %v2192 = vxor.u32 %v2160, 2147516416
    %v2193 = vxor.u32 %v2164, 2147516416
    %v2194 = vxor.u32 %v2168, 2147516416
    %v2195 = vxor.u32 %v2172, 2147516416
    %v2196 = vxor.u32 %v2176, 2147516416
    %v2197 = vxor.u32 %v2180, 2147516416
    %v2198 = vxor.u32 %v2184, 2147516416
    %v2199 = vxor.u32 %v2188, 2147516416
    %v2201 = vmul.bf16 %v2192, 1069105081
    %v2202 = vpow.bf16.pop %v2201
    %v2204 = vmul.bf16 %v2193, 1069105081
    %v2205 = vpow.bf16.pop %v2204
    %v2207 = vmul.bf16 %v2194, 1069105081
    %v2208 = vpow.bf16.pop %v2207
    %v2210 = vmul.bf16 %v2195, 1069105081
    %v2211 = vpow.bf16.pop %v2210
    %v2213 = vmul.bf16 %v2196, 1069105081
    %v2214 = vpow.bf16.pop %v2213
    %v2216 = vmul.bf16 %v2197, 1069105081
    %v2217 = vpow.bf16.pop %v2216
    %v2219 = vmul.bf16 %v2198, 1069105081
    %v2220 = vpow.bf16.pop %v2219
    %v2222 = vmul.bf16 %v2199, 1069105081
    %v2223 = vpow.bf16.pop %v2222
    %v2224 = vadd.bf16 %v2202, 1065369472
    %v2225 = vadd.bf16 %v2205, 1065369472
    %v2226 = vadd.bf16 %v2208, 1065369472
    %v2227 = vadd.bf16 %v2211, 1065369472
    %v2228 = vadd.bf16 %v2214, 1065369472
    %v2229 = vadd.bf16 %v2217, 1065369472
    %v2230 = vadd.bf16 %v2220, 1065369472
    %v2231 = vadd.bf16 %v2223, 1065369472
    %v2232 = vrcp.bf16.pop %v2224
    %v2233 = vmul.bf16 1065369472, %v2232
    %v2234 = vrcp.bf16.pop %v2225
    %v2235 = vmul.bf16 1065369472, %v2234
    %v2236 = vrcp.bf16.pop %v2226
    %v2237 = vmul.bf16 1065369472, %v2236
    %v2238 = vrcp.bf16.pop %v2227
    %v2239 = vmul.bf16 1065369472, %v2238
    %v2240 = vrcp.bf16.pop %v2228
    %v2241 = vmul.bf16 1065369472, %v2240
    %v2242 = vrcp.bf16.pop %v2229
    %v2243 = vmul.bf16 1065369472, %v2242
    %v2244 = vrcp.bf16.pop %v2230
    %v2245 = vmul.bf16 1065369472, %v2244
    %v2246 = vrcp.bf16.pop %v2231
    %v2247 = vmul.bf16 1065369472, %v2246
    %v2248 = vunpack.c.l.bf16 %v2233
    %v2249 = vunpack.c.l.bf16 %v2235
    %v2250 = vunpack.c.l.bf16 %v2237
    %v2251 = vunpack.c.l.bf16 %v2239
    %v2252 = vunpack.c.l.bf16 %v2241
    %v2253 = vunpack.c.l.bf16 %v2243
    %v2254 = vunpack.c.l.bf16 %v2245
    %v2255 = vunpack.c.l.bf16 %v2247
    %v2256 = vxor.u32 %v2161, 2147516416
    %v2257 = vxor.u32 %v2165, 2147516416
    %v2258 = vxor.u32 %v2169, 2147516416
    %v2259 = vxor.u32 %v2173, 2147516416
    %v2260 = vxor.u32 %v2177, 2147516416
    %v2261 = vxor.u32 %v2181, 2147516416
    %v2262 = vxor.u32 %v2185, 2147516416
    %v2263 = vxor.u32 %v2189, 2147516416
    %v2265 = vmul.bf16 %v2256, 1069105081
    %v2266 = vpow.bf16.pop %v2265
    %v2268 = vmul.bf16 %v2257, 1069105081
    %v2269 = vpow.bf16.pop %v2268
    %v2271 = vmul.bf16 %v2258, 1069105081
    %v2272 = vpow.bf16.pop %v2271
    %v2274 = vmul.bf16 %v2259, 1069105081
    %v2275 = vpow.bf16.pop %v2274
    %v2277 = vmul.bf16 %v2260, 1069105081
    %v2278 = vpow.bf16.pop %v2277
    %v2280 = vmul.bf16 %v2261, 1069105081
    %v2281 = vpow.bf16.pop %v2280
    %v2283 = vmul.bf16 %v2262, 1069105081
    %v2284 = vpow.bf16.pop %v2283
    %v2286 = vmul.bf16 %v2263, 1069105081
    %v2287 = vpow.bf16.pop %v2286
    %v2288 = vadd.bf16 %v2266, 1065369472
    %v2289 = vadd.bf16 %v2269, 1065369472
    %v2290 = vadd.bf16 %v2272, 1065369472
    %v2291 = vadd.bf16 %v2275, 1065369472
    %v2292 = vadd.bf16 %v2278, 1065369472
    %v2293 = vadd.bf16 %v2281, 1065369472
    %v2294 = vadd.bf16 %v2284, 1065369472
    %v2295 = vadd.bf16 %v2287, 1065369472
    %v2296 = vrcp.bf16.pop %v2288
    %v2297 = vmul.bf16 1065369472, %v2296
    %v2298 = vrcp.bf16.pop %v2289
    %v2299 = vmul.bf16 1065369472, %v2298
    %v2300 = vrcp.bf16.pop %v2290
    %v2301 = vmul.bf16 1065369472, %v2300
    %v2302 = vrcp.bf16.pop %v2291
    %v2303 = vmul.bf16 1065369472, %v2302
    %v2304 = vrcp.bf16.pop %v2292
    %v2305 = vmul.bf16 1065369472, %v2304
    %v2306 = vrcp.bf16.pop %v2293
    %v2307 = vmul.bf16 1065369472, %v2306
    %v2308 = vrcp.bf16.pop %v2294
    %v2309 = vmul.bf16 1065369472, %v2308
    %v2310 = vrcp.bf16.pop %v2295
    %v2311 = vmul.bf16 1065369472, %v2310
    %v2312 = vunpack.c.l.bf16 %v2297
    %v2313 = vunpack.c.l.bf16 %v2299
    %v2314 = vunpack.c.l.bf16 %v2301
    %v2315 = vunpack.c.l.bf16 %v2303
    %v2316 = vunpack.c.l.bf16 %v2305
    %v2317 = vunpack.c.l.bf16 %v2307
    %v2318 = vunpack.c.l.bf16 %v2309
    %v2319 = vunpack.c.l.bf16 %v2311
    %v2320 = vtanh.bf16.pop %v2162
    %v2321 = vtanh.bf16.pop %v2166
    %v2322 = vtanh.bf16.pop %v2170
    %v2323 = vtanh.bf16.pop %v2174
    %v2324 = vtanh.bf16.pop %v2178
    %v2325 = vtanh.bf16.pop %v2182
    %v2326 = vtanh.bf16.pop %v2186
    %v2327 = vtanh.bf16.pop %v2190
    %v2328 = vunpack.c.l.bf16 %v2320
    %v2329 = vunpack.c.l.bf16 %v2321
    %v2330 = vunpack.c.l.bf16 %v2322
    %v2331 = vunpack.c.l.bf16 %v2323
    %v2332 = vunpack.c.l.bf16 %v2324
    %v2333 = vunpack.c.l.bf16 %v2325
    %v2334 = vunpack.c.l.bf16 %v2326
    %v2335 = vunpack.c.l.bf16 %v2327
    %v2336 = vxor.u32 %v2163, 2147516416
    %v2337 = vxor.u32 %v2167, 2147516416
    %v2338 = vxor.u32 %v2171, 2147516416
    %v2339 = vxor.u32 %v2175, 2147516416
    %v2340 = vxor.u32 %v2179, 2147516416
    %v2341 = vxor.u32 %v2183, 2147516416
    %v2342 = vxor.u32 %v2187, 2147516416
    %v2343 = vxor.u32 %v2191, 2147516416
    %v2345 = vmul.bf16 %v2336, 1069105081
    %v2346 = vpow.bf16.pop %v2345
    %v2348 = vmul.bf16 %v2337, 1069105081
    %v2349 = vpow.bf16.pop %v2348
    %v2351 = vmul.bf16 %v2338, 1069105081
    %v2352 = vpow.bf16.pop %v2351
    %v2354 = vmul.bf16 %v2339, 1069105081
    %v2355 = vpow.bf16.pop %v2354
    %v2357 = vmul.bf16 %v2340, 1069105081
    %v2358 = vpow.bf16.pop %v2357
    %v2360 = vmul.bf16 %v2341, 1069105081
    %v2361 = vpow.bf16.pop %v2360
    %v2363 = vmul.bf16 %v2342, 1069105081
    %v2364 = vpow.bf16.pop %v2363
    %v2366 = vmul.bf16 %v2343, 1069105081
    %v2367 = vpow.bf16.pop %v2366
    %v2368 = vadd.bf16 %v2346, 1065369472
    %v2369 = vadd.bf16 %v2349, 1065369472
    %v2370 = vadd.bf16 %v2352, 1065369472
    %v2371 = vadd.bf16 %v2355, 1065369472
    %v2372 = vadd.bf16 %v2358, 1065369472
    %v2373 = vadd.bf16 %v2361, 1065369472
    %v2374 = vadd.bf16 %v2364, 1065369472
    %v2375 = vadd.bf16 %v2367, 1065369472
    %v2376 = vrcp.bf16.pop %v2368
    %v2377 = vmul.bf16 1065369472, %v2376
    %v2378 = vrcp.bf16.pop %v2369
    %v2379 = vmul.bf16 1065369472, %v2378
    %v2380 = vrcp.bf16.pop %v2370
    %v2381 = vmul.bf16 1065369472, %v2380
    %v2382 = vrcp.bf16.pop %v2371
    %v2383 = vmul.bf16 1065369472, %v2382
    %v2384 = vrcp.bf16.pop %v2372
    %v2385 = vmul.bf16 1065369472, %v2384
    %v2386 = vrcp.bf16.pop %v2373
    %v2387 = vmul.bf16 1065369472, %v2386
    %v2388 = vrcp.bf16.pop %v2374
    %v2389 = vmul.bf16 1065369472, %v2388
    %v2390 = vrcp.bf16.pop %v2375
    %v2391 = vmul.bf16 1065369472, %v2390
    %v2392 = vunpack.c.l.bf16 %v2377
    %v2393 = vunpack.c.l.bf16 %v2379
    %v2394 = vunpack.c.l.bf16 %v2381
    %v2395 = vunpack.c.l.bf16 %v2383
    %v2396 = vunpack.c.l.bf16 %v2385
    %v2397 = vunpack.c.l.bf16 %v2387
    %v2398 = vunpack.c.l.bf16 %v2389
    %v2399 = vunpack.c.l.bf16 %v2391
    %v2408 = vrot.slane %v1918, 7
    %v2409 = vrot.slane %v1919, 7
    %v2410 = vrot.slane %v1920, 7
    %v2411 = vrot.slane %v1921, 7
    %v2412 = vrot.slane %v1922, 7
    %v2413 = vrot.slane %v1923, 7
    %v2414 = vrot.slane %v1924, 7
    %v2415 = vrot.slane %v1925, 7
    %v2424 = vmul.f32 %v2312, %v2408
    %v2425 = vmul.f32 %v2313, %v2409
    %v2426 = vmul.f32 %v2314, %v2410
    %v2427 = vmul.f32 %v2315, %v2411
    %v2428 = vmul.f32 %v2316, %v2412
    %v2429 = vmul.f32 %v2317, %v2413
    %v2430 = vmul.f32 %v2318, %v2414
    %v2431 = vmul.f32 %v2319, %v2415
    %v2432 = vmul.f32 %v2248, %v2328
    %v2433 = vmul.f32 %v2249, %v2329
    %v2434 = vmul.f32 %v2250, %v2330
    %v2435 = vmul.f32 %v2251, %v2331
    %v2436 = vmul.f32 %v2252, %v2332
    %v2437 = vmul.f32 %v2253, %v2333
    %v2438 = vmul.f32 %v2254, %v2334
    %v2439 = vmul.f32 %v2255, %v2335
    %v2440 = vadd.f32 %v2424, %v2432
    %v2441 = vadd.f32 %v2425, %v2433
    %v2442 = vadd.f32 %v2426, %v2434
    %v2443 = vadd.f32 %v2427, %v2435
    %v2444 = vadd.f32 %v2428, %v2436
    %v2445 = vadd.f32 %v2429, %v2437
    %v2446 = vadd.f32 %v2430, %v2438
    %v2447 = vadd.f32 %v2431, %v2439
    %v2448 = vtanh.pop %v2440
    %v2449 = vtanh.pop %v2441
    %v2450 = vtanh.pop %v2442
    %v2451 = vtanh.pop %v2443
    %v2452 = vtanh.pop %v2444
    %v2453 = vtanh.pop %v2445
    %v2454 = vtanh.pop %v2446
    %v2455 = vtanh.pop %v2447
    %v2456 = vmul.f32 %v2392, %v2448
    %v2457 = vmul.f32 %v2393, %v2449
    %v2458 = vmul.f32 %v2394, %v2450
    %v2459 = vmul.f32 %v2395, %v2451
    %v2460 = vmul.f32 %v2396, %v2452
    %v2461 = vmul.f32 %v2397, %v2453
    %v2462 = vmul.f32 %v2398, %v2454
    %v2463 = vmul.f32 %v2399, %v2455
    %v2464 = vpack.c.bf16 %v2456, %v2456
    %v2465 = vpack.c.bf16 %v2457, %v2457
    %v2466 = vpack.c.bf16 %v2458, %v2458
    %v2467 = vpack.c.bf16 %v2459, %v2459
    %v2468 = vpack.c.bf16 %v2460, %v2460
    %v2469 = vpack.c.bf16 %v2461, %v2461
    %v2470 = vpack.c.bf16 %v2462, %v2462
    %v2471 = vpack.c.bf16 %v2463, %v2463
    %v2480 = vunpack.c.l.b16 %v2464
    %v2481 = vunpack.c.l.b16 %v2465
    %v2482 = vunpack.c.l.b16 %v2466
    %v2483 = vunpack.c.l.b16 %v2467
    %v2484 = vunpack.c.l.b16 %v2468
    %v2485 = vunpack.c.l.b16 %v2469
    %v2486 = vunpack.c.l.b16 %v2470
    %v2487 = vunpack.c.l.b16 %v2471
    %v2488 = vrot.slane %v2480, 2
    %v2489 = vrot.slane %v2481, 1
    %v2490 = vsel %vm1438, %v2489, %v2488
    %v2491 = vsel %vm1441, %v2482, %v2490
    %v2492 = vrot.slane %v2483, 7
    %v2493 = vsel %vm1444, %v2492, %v2491
    %v2494 = vrot.slane %v2484, 6
    %v2495 = vsel %vm1447, %v2494, %v2493
    %v2496 = vrot.slane %v2485, 5
    %v2497 = vsel %vm1450, %v2496, %v2495
    %v2498 = vrot.slane %v2486, 4
    %v2499 = vsel %vm1453, %v2498, %v2497
    %v2500 = vrot.slane %v2487, 3
    %v2501 = vsel %vm1456, %v2500, %v2499
    %v2502 = vpack.c.b16 %v2501, %v2501
    %2504 = vmatprep.subr.bf16.mxu0 %v892
    %2505 = vmatpush1.bf16.msra.mxu0 %v891
    %2506 = vmatprep.subr.bf16.mxu0 %v896
    %2507 = vmatpush1.bf16.msra.mxu0 %v895
    %2508 = vmatprep.subr.bf16.mxu0 %v900
    %2509 = vmatpush1.bf16.msra.mxu0 %v899
    %2510 = vmatprep.subr.bf16.mxu0 %v904
    %2511 = vmatpush1.bf16.msra.mxu0 %v903
    %2512 = vmatprep.subr.bf16.mxu0 %v908
    %2513 = vmatpush1.bf16.msra.mxu0 %v907
    %2514 = vmatprep.subr.bf16.mxu0 %v912
    %2515 = vmatpush1.bf16.msra.mxu0 %v911
    %2516 = vmatprep.subr.bf16.mxu0 %v916
    %2517 = vmatpush1.bf16.msra.mxu0 %v915
    %2518 = vmatprep.subr.bf16.mxu0 %v920
    %2519 = vmatpush1.bf16.msra.mxu0 %v919
    %2520 = vmatprep.subr.bf16.mxu0 0
    %2521 = vmatpush1.bf16.msra.mxu0 0
    %2522 = vmatprep.subr.bf16.mxu0 0
    %2523 = vmatpush1.bf16.msra.mxu0 0
    %2524 = vmatprep.subr.bf16.mxu0 0
    %2525 = vmatpush1.bf16.msra.mxu0 0
    %2526 = vmatprep.subr.bf16.mxu0 0
    %2527 = vmatpush1.bf16.msra.mxu0 0
    %2528 = vmatprep.subr.bf16.mxu0 0
    %2529 = vmatpush1.bf16.msra.mxu0 0
    %2530 = vmatprep.subr.bf16.mxu0 0
    %2531 = vmatpush1.bf16.msra.mxu0 0
    %2532 = vmatprep.subr.bf16.mxu0 0
    %2533 = vmatpush1.bf16.msra.mxu0 0
    %2534 = vmatprep.subr.bf16.mxu0 0
    %2535 = vmatpush1.bf16.msra.mxu0 0
    %2536 = vmatprep.mubr.bf16.mxu0 0
    %2537 = vmatmul.mubr.bf16.gmra.mrb[0].mxu0 %v2502
    %v2538 = vpop.f32.mrb[0].mxu0
    %v2539 = vadd.f32 0.0, %v2538
    %v2540 = vpop.f32.mrb[0].mxu0
    %v2541 = vadd.f32 0.0, %v2540
    %v2542 = vpop.f32.mrb[0].mxu0
    %v2543 = vpop.f32.mrb[0].mxu0
    %2544 = vdwg.mxu0
    %2545 = vmatprep.subr.bf16.mxu0 %v894
    %2546 = vmatpush1.bf16.msra.mxu0 %v893
    %2547 = vmatprep.subr.bf16.mxu0 %v898
    %2548 = vmatpush1.bf16.msra.mxu0 %v897
    %2549 = vmatprep.subr.bf16.mxu0 %v902
    %2550 = vmatpush1.bf16.msra.mxu0 %v901
    %2551 = vmatprep.subr.bf16.mxu0 %v906
    %2552 = vmatpush1.bf16.msra.mxu0 %v905
    %2553 = vmatprep.subr.bf16.mxu0 %v910
    %2554 = vmatpush1.bf16.msra.mxu0 %v909
    %2555 = vmatprep.subr.bf16.mxu0 %v914
    %2556 = vmatpush1.bf16.msra.mxu0 %v913
    %2557 = vmatprep.subr.bf16.mxu0 %v918
    %2558 = vmatpush1.bf16.msra.mxu0 %v917
    %2559 = vmatprep.subr.bf16.mxu0 %v922
    %2560 = vmatpush1.bf16.msra.mxu0 %v921
    %2561 = vmatprep.subr.bf16.mxu0 0
    %2562 = vmatpush1.bf16.msra.mxu0 0
    %2563 = vmatprep.subr.bf16.mxu0 0
    %2564 = vmatpush1.bf16.msra.mxu0 0
    %2565 = vmatprep.subr.bf16.mxu0 0
    %2566 = vmatpush1.bf16.msra.mxu0 0
    %2567 = vmatprep.subr.bf16.mxu0 0
    %2568 = vmatpush1.bf16.msra.mxu0 0
    %2569 = vmatprep.subr.bf16.mxu0 0
    %2570 = vmatpush1.bf16.msra.mxu0 0
    %2571 = vmatprep.subr.bf16.mxu0 0
    %2572 = vmatpush1.bf16.msra.mxu0 0
    %2573 = vmatprep.subr.bf16.mxu0 0
    %2574 = vmatpush1.bf16.msra.mxu0 0
    %2575 = vmatprep.subr.bf16.mxu0 0
    %2576 = vmatpush1.bf16.msra.mxu0 0
    %2577 = vmatprep.mubr.bf16.mxu0 0
    %2578 = vmatmul.mubr.bf16.gmra.mrb[0].mxu0 %v2502
    %v2579 = vpop.f32.mrb[0].mxu0
    %v2580 = vadd.f32 0.0, %v2579
    %v2581 = vpop.f32.mrb[0].mxu0
    %v2582 = vadd.f32 0.0, %v2581
    %v2583 = vpop.f32.mrb[0].mxu0
    %v2584 = vpop.f32.mrb[0].mxu0
    %2585 = vdwg.mxu0
    %v2590 = vrot.slane %v2539, 5
    %v2591 = vrot.slane %v2541, 5
    %v2592 = vrot.slane %v2580, 5
    %v2593 = vrot.slane %v2582, 5
    %v2594 = vrot.slane %v2539, 6
    %v2595 = vrot.slane %v2541, 6
    %v2596 = vrot.slane %v2580, 6
    %v2597 = vrot.slane %v2582, 6
    %v2598 = vrot.slane %v2539, 7
    %v2599 = vrot.slane %v2541, 7
    %v2600 = vrot.slane %v2580, 7
    %v2601 = vrot.slane %v2582, 7
    %v2602 = vrot.slane %v2539, 1
    %v2603 = vrot.slane %v2541, 1
    %v2604 = vrot.slane %v2580, 1
    %v2605 = vrot.slane %v2582, 1
    %v2606 = vrot.slane %v2539, 2
    %v2607 = vrot.slane %v2541, 2
    %v2608 = vrot.slane %v2580, 2
    %v2609 = vrot.slane %v2582, 2
    %v2610 = vrot.slane %v2539, 3
    %v2611 = vrot.slane %v2541, 3
    %v2612 = vrot.slane %v2580, 3
    %v2613 = vrot.slane %v2582, 3
    %v2614 = vrot.slane %v2539, 4
    %v2615 = vrot.slane %v2541, 4
    %v2616 = vrot.slane %v2580, 4
    %v2617 = vrot.slane %v2582, 4
    %v2650 = vadd.f32 %v652, %v2590
    %v2651 = vadd.f32 %v654, %v2591
    %v2652 = vadd.f32 %v725, %v2592
    %v2653 = vadd.f32 %v727, %v2593
    %v2654 = vadd.f32 %v656, %v2594
    %v2655 = vadd.f32 %v658, %v2595
    %v2656 = vadd.f32 %v729, %v2596
    %v2657 = vadd.f32 %v731, %v2597
    %v2658 = vadd.f32 %v662, %v2598
    %v2659 = vadd.f32 %v664, %v2599
    %v2660 = vadd.f32 %v735, %v2600
    %v2661 = vadd.f32 %v737, %v2601
    %v2662 = vadd.f32 %v666, %v2539
    %v2663 = vadd.f32 %v668, %v2541
    %v2664 = vadd.f32 %v739, %v2580
    %v2665 = vadd.f32 %v741, %v2582
    %v2666 = vadd.f32 %v672, %v2602
    %v2667 = vadd.f32 %v674, %v2603
    %v2668 = vadd.f32 %v745, %v2604
    %v2669 = vadd.f32 %v747, %v2605
    %v2670 = vadd.f32 %v676, %v2606
    %v2671 = vadd.f32 %v678, %v2607
    %v2672 = vadd.f32 %v749, %v2608
    %v2673 = vadd.f32 %v751, %v2609
    %v2674 = vadd.f32 %v682, %v2610
    %v2675 = vadd.f32 %v684, %v2611
    %v2676 = vadd.f32 %v755, %v2612
    %v2677 = vadd.f32 %v757, %v2613
    %v2678 = vadd.f32 %v686, %v2614
    %v2679 = vadd.f32 %v688, %v2615
    %v2680 = vadd.f32 %v759, %v2616
    %v2681 = vadd.f32 %v761, %v2617
    %v2682 = vpack.c.bf16 %v2650, %v2650
    %v2683 = vpack.c.bf16 %v2651, %v2651
    %v2684 = vpack.c.bf16 %v2652, %v2652
    %v2685 = vpack.c.bf16 %v2653, %v2653
    %v2686 = vpack.c.bf16 %v2654, %v2654
    %v2687 = vpack.c.bf16 %v2655, %v2655
    %v2688 = vpack.c.bf16 %v2656, %v2656
    %v2689 = vpack.c.bf16 %v2657, %v2657
    %v2690 = vpack.c.bf16 %v2658, %v2658
    %v2691 = vpack.c.bf16 %v2659, %v2659
    %v2692 = vpack.c.bf16 %v2660, %v2660
    %v2693 = vpack.c.bf16 %v2661, %v2661
    %v2694 = vpack.c.bf16 %v2662, %v2662
    %v2695 = vpack.c.bf16 %v2663, %v2663
    %v2696 = vpack.c.bf16 %v2664, %v2664
    %v2697 = vpack.c.bf16 %v2665, %v2665
    %v2698 = vpack.c.bf16 %v2666, %v2666
    %v2699 = vpack.c.bf16 %v2667, %v2667
    %v2700 = vpack.c.bf16 %v2668, %v2668
    %v2701 = vpack.c.bf16 %v2669, %v2669
    %v2702 = vpack.c.bf16 %v2670, %v2670
    %v2703 = vpack.c.bf16 %v2671, %v2671
    %v2704 = vpack.c.bf16 %v2672, %v2672
    %v2705 = vpack.c.bf16 %v2673, %v2673
    %v2706 = vpack.c.bf16 %v2674, %v2674
    %v2707 = vpack.c.bf16 %v2675, %v2675
    %v2708 = vpack.c.bf16 %v2676, %v2676
    %v2709 = vpack.c.bf16 %v2677, %v2677
    %v2710 = vpack.c.bf16 %v2678, %v2678
    %v2711 = vpack.c.bf16 %v2679, %v2679
    %v2712 = vpack.c.bf16 %v2680, %v2680
    %v2713 = vpack.c.bf16 %v2681, %v2681
    %v2714 = vxor.u32 %v2682, 2147516416
    %v2715 = vxor.u32 %v2686, 2147516416
    %v2716 = vxor.u32 %v2690, 2147516416
    %v2717 = vxor.u32 %v2694, 2147516416
    %v2718 = vxor.u32 %v2698, 2147516416
    %v2719 = vxor.u32 %v2702, 2147516416
    %v2720 = vxor.u32 %v2706, 2147516416
    %v2721 = vxor.u32 %v2710, 2147516416
    %v2723 = vmul.bf16 %v2714, 1069105081
    %v2724 = vpow.bf16.pop %v2723
    %v2726 = vmul.bf16 %v2715, 1069105081
    %v2727 = vpow.bf16.pop %v2726
    %v2729 = vmul.bf16 %v2716, 1069105081
    %v2730 = vpow.bf16.pop %v2729
    %v2732 = vmul.bf16 %v2717, 1069105081
    %v2733 = vpow.bf16.pop %v2732
    %v2735 = vmul.bf16 %v2718, 1069105081
    %v2736 = vpow.bf16.pop %v2735
    %v2738 = vmul.bf16 %v2719, 1069105081
    %v2739 = vpow.bf16.pop %v2738
    %v2741 = vmul.bf16 %v2720, 1069105081
    %v2742 = vpow.bf16.pop %v2741
    %v2744 = vmul.bf16 %v2721, 1069105081
    %v2745 = vpow.bf16.pop %v2744
    %v2746 = vadd.bf16 %v2724, 1065369472
    %v2747 = vadd.bf16 %v2727, 1065369472
    %v2748 = vadd.bf16 %v2730, 1065369472
    %v2749 = vadd.bf16 %v2733, 1065369472
    %v2750 = vadd.bf16 %v2736, 1065369472
    %v2751 = vadd.bf16 %v2739, 1065369472
    %v2752 = vadd.bf16 %v2742, 1065369472
    %v2753 = vadd.bf16 %v2745, 1065369472
    %v2754 = vrcp.bf16.pop %v2746
    %v2755 = vmul.bf16 1065369472, %v2754
    %v2756 = vrcp.bf16.pop %v2747
    %v2757 = vmul.bf16 1065369472, %v2756
    %v2758 = vrcp.bf16.pop %v2748
    %v2759 = vmul.bf16 1065369472, %v2758
    %v2760 = vrcp.bf16.pop %v2749
    %v2761 = vmul.bf16 1065369472, %v2760
    %v2762 = vrcp.bf16.pop %v2750
    %v2763 = vmul.bf16 1065369472, %v2762
    %v2764 = vrcp.bf16.pop %v2751
    %v2765 = vmul.bf16 1065369472, %v2764
    %v2766 = vrcp.bf16.pop %v2752
    %v2767 = vmul.bf16 1065369472, %v2766
    %v2768 = vrcp.bf16.pop %v2753
    %v2769 = vmul.bf16 1065369472, %v2768
    %v2770 = vunpack.c.l.bf16 %v2755
    %v2771 = vunpack.c.l.bf16 %v2757
    %v2772 = vunpack.c.l.bf16 %v2759
    %v2773 = vunpack.c.l.bf16 %v2761
    %v2774 = vunpack.c.l.bf16 %v2763
    %v2775 = vunpack.c.l.bf16 %v2765
    %v2776 = vunpack.c.l.bf16 %v2767
    %v2777 = vunpack.c.l.bf16 %v2769
    %v2778 = vxor.u32 %v2683, 2147516416
    %v2779 = vxor.u32 %v2687, 2147516416
    %v2780 = vxor.u32 %v2691, 2147516416
    %v2781 = vxor.u32 %v2695, 2147516416
    %v2782 = vxor.u32 %v2699, 2147516416
    %v2783 = vxor.u32 %v2703, 2147516416
    %v2784 = vxor.u32 %v2707, 2147516416
    %v2785 = vxor.u32 %v2711, 2147516416
    %v2787 = vmul.bf16 %v2778, 1069105081
    %v2788 = vpow.bf16.pop %v2787
    %v2790 = vmul.bf16 %v2779, 1069105081
    %v2791 = vpow.bf16.pop %v2790
    %v2793 = vmul.bf16 %v2780, 1069105081
    %v2794 = vpow.bf16.pop %v2793
    %v2796 = vmul.bf16 %v2781, 1069105081
    %v2797 = vpow.bf16.pop %v2796
    %v2799 = vmul.bf16 %v2782, 1069105081
    %v2800 = vpow.bf16.pop %v2799
    %v2802 = vmul.bf16 %v2783, 1069105081
    %v2803 = vpow.bf16.pop %v2802
    %v2805 = vmul.bf16 %v2784, 1069105081
    %v2806 = vpow.bf16.pop %v2805
    %v2808 = vmul.bf16 %v2785, 1069105081
    %v2809 = vpow.bf16.pop %v2808
    %v2810 = vadd.bf16 %v2788, 1065369472
    %v2811 = vadd.bf16 %v2791, 1065369472
    %v2812 = vadd.bf16 %v2794, 1065369472
    %v2813 = vadd.bf16 %v2797, 1065369472
    %v2814 = vadd.bf16 %v2800, 1065369472
    %v2815 = vadd.bf16 %v2803, 1065369472
    %v2816 = vadd.bf16 %v2806, 1065369472
    %v2817 = vadd.bf16 %v2809, 1065369472
    %v2818 = vrcp.bf16.pop %v2810
    %v2819 = vmul.bf16 1065369472, %v2818
    %v2820 = vrcp.bf16.pop %v2811
    %v2821 = vmul.bf16 1065369472, %v2820
    %v2822 = vrcp.bf16.pop %v2812
    %v2823 = vmul.bf16 1065369472, %v2822
    %v2824 = vrcp.bf16.pop %v2813
    %v2825 = vmul.bf16 1065369472, %v2824
    %v2826 = vrcp.bf16.pop %v2814
    %v2827 = vmul.bf16 1065369472, %v2826
    %v2828 = vrcp.bf16.pop %v2815
    %v2829 = vmul.bf16 1065369472, %v2828
    %v2830 = vrcp.bf16.pop %v2816
    %v2831 = vmul.bf16 1065369472, %v2830
    %v2832 = vrcp.bf16.pop %v2817
    %v2833 = vmul.bf16 1065369472, %v2832
    %v2834 = vunpack.c.l.bf16 %v2819
    %v2835 = vunpack.c.l.bf16 %v2821
    %v2836 = vunpack.c.l.bf16 %v2823
    %v2837 = vunpack.c.l.bf16 %v2825
    %v2838 = vunpack.c.l.bf16 %v2827
    %v2839 = vunpack.c.l.bf16 %v2829
    %v2840 = vunpack.c.l.bf16 %v2831
    %v2841 = vunpack.c.l.bf16 %v2833
    %v2842 = vtanh.bf16.pop %v2684
    %v2843 = vtanh.bf16.pop %v2688
    %v2844 = vtanh.bf16.pop %v2692
    %v2845 = vtanh.bf16.pop %v2696
    %v2846 = vtanh.bf16.pop %v2700
    %v2847 = vtanh.bf16.pop %v2704
    %v2848 = vtanh.bf16.pop %v2708
    %v2849 = vtanh.bf16.pop %v2712
    %v2850 = vunpack.c.l.bf16 %v2842
    %v2851 = vunpack.c.l.bf16 %v2843
    %v2852 = vunpack.c.l.bf16 %v2844
    %v2853 = vunpack.c.l.bf16 %v2845
    %v2854 = vunpack.c.l.bf16 %v2846
    %v2855 = vunpack.c.l.bf16 %v2847
    %v2856 = vunpack.c.l.bf16 %v2848
    %v2857 = vunpack.c.l.bf16 %v2849
    %v2858 = vxor.u32 %v2685, 2147516416
    %v2859 = vxor.u32 %v2689, 2147516416
    %v2860 = vxor.u32 %v2693, 2147516416
    %v2861 = vxor.u32 %v2697, 2147516416
    %v2862 = vxor.u32 %v2701, 2147516416
    %v2863 = vxor.u32 %v2705, 2147516416
    %v2864 = vxor.u32 %v2709, 2147516416
    %v2865 = vxor.u32 %v2713, 2147516416
    %v2867 = vmul.bf16 %v2858, 1069105081
    %v2868 = vpow.bf16.pop %v2867
    %v2870 = vmul.bf16 %v2859, 1069105081
    %v2871 = vpow.bf16.pop %v2870
    %v2873 = vmul.bf16 %v2860, 1069105081
    %v2874 = vpow.bf16.pop %v2873
    %v2876 = vmul.bf16 %v2861, 1069105081
    %v2877 = vpow.bf16.pop %v2876
    %v2879 = vmul.bf16 %v2862, 1069105081
    %v2880 = vpow.bf16.pop %v2879
    %v2882 = vmul.bf16 %v2863, 1069105081
    %v2883 = vpow.bf16.pop %v2882
    %v2885 = vmul.bf16 %v2864, 1069105081
    %v2886 = vpow.bf16.pop %v2885
    %v2888 = vmul.bf16 %v2865, 1069105081
    %v2889 = vpow.bf16.pop %v2888
    %v2890 = vadd.bf16 %v2868, 1065369472
    %v2891 = vadd.bf16 %v2871, 1065369472
    %v2892 = vadd.bf16 %v2874, 1065369472
    %v2893 = vadd.bf16 %v2877, 1065369472
    %v2894 = vadd.bf16 %v2880, 1065369472
    %v2895 = vadd.bf16 %v2883, 1065369472
    %v2896 = vadd.bf16 %v2886, 1065369472
    %v2897 = vadd.bf16 %v2889, 1065369472
    %v2898 = vrcp.bf16.pop %v2890
    %v2899 = vmul.bf16 1065369472, %v2898
    %v2900 = vrcp.bf16.pop %v2891
    %v2901 = vmul.bf16 1065369472, %v2900
    %v2902 = vrcp.bf16.pop %v2892
    %v2903 = vmul.bf16 1065369472, %v2902
    %v2904 = vrcp.bf16.pop %v2893
    %v2905 = vmul.bf16 1065369472, %v2904
    %v2906 = vrcp.bf16.pop %v2894
    %v2907 = vmul.bf16 1065369472, %v2906
    %v2908 = vrcp.bf16.pop %v2895
    %v2909 = vmul.bf16 1065369472, %v2908
    %v2910 = vrcp.bf16.pop %v2896
    %v2911 = vmul.bf16 1065369472, %v2910
    %v2912 = vrcp.bf16.pop %v2897
    %v2913 = vmul.bf16 1065369472, %v2912
    %v2914 = vunpack.c.l.bf16 %v2899
    %v2915 = vunpack.c.l.bf16 %v2901
    %v2916 = vunpack.c.l.bf16 %v2903
    %v2917 = vunpack.c.l.bf16 %v2905
    %v2918 = vunpack.c.l.bf16 %v2907
    %v2919 = vunpack.c.l.bf16 %v2909
    %v2920 = vunpack.c.l.bf16 %v2911
    %v2921 = vunpack.c.l.bf16 %v2913
    %v2930 = vrot.slane %v2440, 7
    %v2931 = vrot.slane %v2441, 7
    %v2932 = vrot.slane %v2442, 7
    %v2933 = vrot.slane %v2443, 7
    %v2934 = vrot.slane %v2444, 7
    %v2935 = vrot.slane %v2445, 7
    %v2936 = vrot.slane %v2446, 7
    %v2937 = vrot.slane %v2447, 7
    %v2946 = vmul.f32 %v2834, %v2930
    %v2947 = vmul.f32 %v2835, %v2931
    %v2948 = vmul.f32 %v2836, %v2932
    %v2949 = vmul.f32 %v2837, %v2933
    %v2950 = vmul.f32 %v2838, %v2934
    %v2951 = vmul.f32 %v2839, %v2935
    %v2952 = vmul.f32 %v2840, %v2936
    %v2953 = vmul.f32 %v2841, %v2937
    %v2954 = vmul.f32 %v2770, %v2850
    %v2955 = vmul.f32 %v2771, %v2851
    %v2956 = vmul.f32 %v2772, %v2852
    %v2957 = vmul.f32 %v2773, %v2853
    %v2958 = vmul.f32 %v2774, %v2854
    %v2959 = vmul.f32 %v2775, %v2855
    %v2960 = vmul.f32 %v2776, %v2856
    %v2961 = vmul.f32 %v2777, %v2857
    %v2962 = vadd.f32 %v2946, %v2954
    %v2963 = vadd.f32 %v2947, %v2955
    %v2964 = vadd.f32 %v2948, %v2956
    %v2965 = vadd.f32 %v2949, %v2957
    %v2966 = vadd.f32 %v2950, %v2958
    %v2967 = vadd.f32 %v2951, %v2959
    %v2968 = vadd.f32 %v2952, %v2960
    %v2969 = vadd.f32 %v2953, %v2961
    %v2970 = vtanh.pop %v2962
    %v2971 = vtanh.pop %v2963
    %v2972 = vtanh.pop %v2964
    %v2973 = vtanh.pop %v2965
    %v2974 = vtanh.pop %v2966
    %v2975 = vtanh.pop %v2967
    %v2976 = vtanh.pop %v2968
    %v2977 = vtanh.pop %v2969
    %v2978 = vmul.f32 %v2914, %v2970
    %v2979 = vmul.f32 %v2915, %v2971
    %v2980 = vmul.f32 %v2916, %v2972
    %v2981 = vmul.f32 %v2917, %v2973
    %v2982 = vmul.f32 %v2918, %v2974
    %v2983 = vmul.f32 %v2919, %v2975
    %v2984 = vmul.f32 %v2920, %v2976
    %v2985 = vmul.f32 %v2921, %v2977
    %v2986 = vpack.c.bf16 %v2978, %v2978
    %v2987 = vpack.c.bf16 %v2979, %v2979
    %v2988 = vpack.c.bf16 %v2980, %v2980
    %v2989 = vpack.c.bf16 %v2981, %v2981
    %v2990 = vpack.c.bf16 %v2982, %v2982
    %v2991 = vpack.c.bf16 %v2983, %v2983
    %v2992 = vpack.c.bf16 %v2984, %v2984
    %v2993 = vpack.c.bf16 %v2985, %v2985
    %v3002 = vunpack.c.l.b16 %v2986
    %v3003 = vunpack.c.l.b16 %v2987
    %v3004 = vunpack.c.l.b16 %v2988
    %v3005 = vunpack.c.l.b16 %v2989
    %v3006 = vunpack.c.l.b16 %v2990
    %v3007 = vunpack.c.l.b16 %v2991
    %v3008 = vunpack.c.l.b16 %v2992
    %v3009 = vunpack.c.l.b16 %v2993
    %v3010 = vrot.slane %v3002, 3
    %v3011 = vrot.slane %v3003, 2
    %v3012 = vsel %vm1438, %v3011, %v3010
    %v3013 = vrot.slane %v3004, 1
    %v3014 = vsel %vm1441, %v3013, %v3012
    %v3015 = vsel %vm1444, %v3005, %v3014
    %v3016 = vrot.slane %v3006, 7
    %v3017 = vsel %vm1447, %v3016, %v3015
    %v3018 = vrot.slane %v3007, 6
    %v3019 = vsel %vm1450, %v3018, %v3017
    %v3020 = vrot.slane %v3008, 5
    %v3021 = vsel %vm1453, %v3020, %v3019
    %v3022 = vrot.slane %v3009, 4
    %v3023 = vsel %vm1456, %v3022, %v3021
    %v3024 = vpack.c.b16 %v3023, %v3023
    %3026 = vmatprep.subr.bf16.mxu0 %v892
    %3027 = vmatpush1.bf16.msra.mxu0 %v891
    %3028 = vmatprep.subr.bf16.mxu0 %v896
    %3029 = vmatpush1.bf16.msra.mxu0 %v895
    %3030 = vmatprep.subr.bf16.mxu0 %v900
    %3031 = vmatpush1.bf16.msra.mxu0 %v899
    %3032 = vmatprep.subr.bf16.mxu0 %v904
    %3033 = vmatpush1.bf16.msra.mxu0 %v903
    %3034 = vmatprep.subr.bf16.mxu0 %v908
    %3035 = vmatpush1.bf16.msra.mxu0 %v907
    %3036 = vmatprep.subr.bf16.mxu0 %v912
    %3037 = vmatpush1.bf16.msra.mxu0 %v911
    %3038 = vmatprep.subr.bf16.mxu0 %v916
    %3039 = vmatpush1.bf16.msra.mxu0 %v915
    %3040 = vmatprep.subr.bf16.mxu0 %v920
    %3041 = vmatpush1.bf16.msra.mxu0 %v919
    %3042 = vmatprep.subr.bf16.mxu0 0
    %3043 = vmatpush1.bf16.msra.mxu0 0
    %3044 = vmatprep.subr.bf16.mxu0 0
    %3045 = vmatpush1.bf16.msra.mxu0 0
    %3046 = vmatprep.subr.bf16.mxu0 0
    %3047 = vmatpush1.bf16.msra.mxu0 0
    %3048 = vmatprep.subr.bf16.mxu0 0
    %3049 = vmatpush1.bf16.msra.mxu0 0
    %3050 = vmatprep.subr.bf16.mxu0 0
    %3051 = vmatpush1.bf16.msra.mxu0 0
    %3052 = vmatprep.subr.bf16.mxu0 0
    %3053 = vmatpush1.bf16.msra.mxu0 0
    %3054 = vmatprep.subr.bf16.mxu0 0
    %3055 = vmatpush1.bf16.msra.mxu0 0
    %3056 = vmatprep.subr.bf16.mxu0 0
    %3057 = vmatpush1.bf16.msra.mxu0 0
    %3058 = vmatprep.mubr.bf16.mxu0 0
    %3059 = vmatmul.mubr.bf16.gmra.mrb[0].mxu0 %v3024
    %v3060 = vpop.f32.mrb[0].mxu0
    %v3061 = vadd.f32 0.0, %v3060
    %v3062 = vpop.f32.mrb[0].mxu0
    %v3063 = vadd.f32 0.0, %v3062
    %v3064 = vpop.f32.mrb[0].mxu0
    %v3065 = vpop.f32.mrb[0].mxu0
    %3066 = vdwg.mxu0
    %3067 = vmatprep.subr.bf16.mxu0 %v894
    %3068 = vmatpush1.bf16.msra.mxu0 %v893
    %3069 = vmatprep.subr.bf16.mxu0 %v898
    %3070 = vmatpush1.bf16.msra.mxu0 %v897
    %3071 = vmatprep.subr.bf16.mxu0 %v902
    %3072 = vmatpush1.bf16.msra.mxu0 %v901
    %3073 = vmatprep.subr.bf16.mxu0 %v906
    %3074 = vmatpush1.bf16.msra.mxu0 %v905
    %3075 = vmatprep.subr.bf16.mxu0 %v910
    %3076 = vmatpush1.bf16.msra.mxu0 %v909
    %3077 = vmatprep.subr.bf16.mxu0 %v914
    %3078 = vmatpush1.bf16.msra.mxu0 %v913
    %3079 = vmatprep.subr.bf16.mxu0 %v918
    %3080 = vmatpush1.bf16.msra.mxu0 %v917
    %3081 = vmatprep.subr.bf16.mxu0 %v922
    %3082 = vmatpush1.bf16.msra.mxu0 %v921
    %3083 = vmatprep.subr.bf16.mxu0 0
    %3084 = vmatpush1.bf16.msra.mxu0 0
    %3085 = vmatprep.subr.bf16.mxu0 0
    %3086 = vmatpush1.bf16.msra.mxu0 0
    %3087 = vmatprep.subr.bf16.mxu0 0
    %3088 = vmatpush1.bf16.msra.mxu0 0
    %3089 = vmatprep.subr.bf16.mxu0 0
    %3090 = vmatpush1.bf16.msra.mxu0 0
    %3091 = vmatprep.subr.bf16.mxu0 0
    %3092 = vmatpush1.bf16.msra.mxu0 0
    %3093 = vmatprep.subr.bf16.mxu0 0
    %3094 = vmatpush1.bf16.msra.mxu0 0
    %3095 = vmatprep.subr.bf16.mxu0 0
    %3096 = vmatpush1.bf16.msra.mxu0 0
    %3097 = vmatprep.subr.bf16.mxu0 0
    %3098 = vmatpush1.bf16.msra.mxu0 0
    %3099 = vmatprep.mubr.bf16.mxu0 0
    %3100 = vmatmul.mubr.bf16.gmra.mrb[0].mxu0 %v3024
    %v3101 = vpop.f32.mrb[0].mxu0
    %v3102 = vadd.f32 0.0, %v3101
    %v3103 = vpop.f32.mrb[0].mxu0
    %v3104 = vadd.f32 0.0, %v3103
    %v3105 = vpop.f32.mrb[0].mxu0
    %v3106 = vpop.f32.mrb[0].mxu0
    %3107 = vdwg.mxu0
    %v3112 = vrot.slane %v3061, 4
    %v3113 = vrot.slane %v3063, 4
    %v3114 = vrot.slane %v3102, 4
    %v3115 = vrot.slane %v3104, 4
    %v3116 = vrot.slane %v3061, 5
    %v3117 = vrot.slane %v3063, 5
    %v3118 = vrot.slane %v3102, 5
    %v3119 = vrot.slane %v3104, 5
    %v3120 = vrot.slane %v3061, 6
    %v3121 = vrot.slane %v3063, 6
    %v3122 = vrot.slane %v3102, 6
    %v3123 = vrot.slane %v3104, 6
    %v3124 = vrot.slane %v3061, 7
    %v3125 = vrot.slane %v3063, 7
    %v3126 = vrot.slane %v3102, 7
    %v3127 = vrot.slane %v3104, 7
    %v3128 = vrot.slane %v3061, 1
    %v3129 = vrot.slane %v3063, 1
    %v3130 = vrot.slane %v3102, 1
    %v3131 = vrot.slane %v3104, 1
    %v3132 = vrot.slane %v3061, 2
    %v3133 = vrot.slane %v3063, 2
    %v3134 = vrot.slane %v3102, 2
    %v3135 = vrot.slane %v3104, 2
    %v3136 = vrot.slane %v3061, 3
    %v3137 = vrot.slane %v3063, 3
    %v3138 = vrot.slane %v3102, 3
    %v3139 = vrot.slane %v3104, 3
    %v3172 = vadd.f32 %v652, %v3112
    %v3173 = vadd.f32 %v654, %v3113
    %v3174 = vadd.f32 %v725, %v3114
    %v3175 = vadd.f32 %v727, %v3115
    %v3176 = vadd.f32 %v656, %v3116
    %v3177 = vadd.f32 %v658, %v3117
    %v3178 = vadd.f32 %v729, %v3118
    %v3179 = vadd.f32 %v731, %v3119
    %v3180 = vadd.f32 %v662, %v3120
    %v3181 = vadd.f32 %v664, %v3121
    %v3182 = vadd.f32 %v735, %v3122
    %v3183 = vadd.f32 %v737, %v3123
    %v3184 = vadd.f32 %v666, %v3124
    %v3185 = vadd.f32 %v668, %v3125
    %v3186 = vadd.f32 %v739, %v3126
    %v3187 = vadd.f32 %v741, %v3127
    %v3188 = vadd.f32 %v672, %v3061
    %v3189 = vadd.f32 %v674, %v3063
    %v3190 = vadd.f32 %v745, %v3102
    %v3191 = vadd.f32 %v747, %v3104
    %v3192 = vadd.f32 %v676, %v3128
    %v3193 = vadd.f32 %v678, %v3129
    %v3194 = vadd.f32 %v749, %v3130
    %v3195 = vadd.f32 %v751, %v3131
    %v3196 = vadd.f32 %v682, %v3132
    %v3197 = vadd.f32 %v684, %v3133
    %v3198 = vadd.f32 %v755, %v3134
    %v3199 = vadd.f32 %v757, %v3135
    %v3200 = vadd.f32 %v686, %v3136
    %v3201 = vadd.f32 %v688, %v3137
    %v3202 = vadd.f32 %v759, %v3138
    %v3203 = vadd.f32 %v761, %v3139
    %v3204 = vpack.c.bf16 %v3172, %v3172
    %v3205 = vpack.c.bf16 %v3173, %v3173
    %v3206 = vpack.c.bf16 %v3174, %v3174
    %v3207 = vpack.c.bf16 %v3175, %v3175
    %v3208 = vpack.c.bf16 %v3176, %v3176
    %v3209 = vpack.c.bf16 %v3177, %v3177
    %v3210 = vpack.c.bf16 %v3178, %v3178
    %v3211 = vpack.c.bf16 %v3179, %v3179
    %v3212 = vpack.c.bf16 %v3180, %v3180
    %v3213 = vpack.c.bf16 %v3181, %v3181
    %v3214 = vpack.c.bf16 %v3182, %v3182
    %v3215 = vpack.c.bf16 %v3183, %v3183
    %v3216 = vpack.c.bf16 %v3184, %v3184
    %v3217 = vpack.c.bf16 %v3185, %v3185
    %v3218 = vpack.c.bf16 %v3186, %v3186
    %v3219 = vpack.c.bf16 %v3187, %v3187
    %v3220 = vpack.c.bf16 %v3188, %v3188
    %v3221 = vpack.c.bf16 %v3189, %v3189
    %v3222 = vpack.c.bf16 %v3190, %v3190
    %v3223 = vpack.c.bf16 %v3191, %v3191
    %v3224 = vpack.c.bf16 %v3192, %v3192
    %v3225 = vpack.c.bf16 %v3193, %v3193
    %v3226 = vpack.c.bf16 %v3194, %v3194
    %v3227 = vpack.c.bf16 %v3195, %v3195
    %v3228 = vpack.c.bf16 %v3196, %v3196
    %v3229 = vpack.c.bf16 %v3197, %v3197
    %v3230 = vpack.c.bf16 %v3198, %v3198
    %v3231 = vpack.c.bf16 %v3199, %v3199
    %v3232 = vpack.c.bf16 %v3200, %v3200
    %v3233 = vpack.c.bf16 %v3201, %v3201
    %v3234 = vpack.c.bf16 %v3202, %v3202
    %v3235 = vpack.c.bf16 %v3203, %v3203
    %v3236 = vxor.u32 %v3204, 2147516416
    %v3237 = vxor.u32 %v3208, 2147516416
    %v3238 = vxor.u32 %v3212, 2147516416
    %v3239 = vxor.u32 %v3216, 2147516416
    %v3240 = vxor.u32 %v3220, 2147516416
    %v3241 = vxor.u32 %v3224, 2147516416
    %v3242 = vxor.u32 %v3228, 2147516416
    %v3243 = vxor.u32 %v3232, 2147516416
    %v3245 = vmul.bf16 %v3236, 1069105081
    %v3246 = vpow.bf16.pop %v3245
    %v3248 = vmul.bf16 %v3237, 1069105081
    %v3249 = vpow.bf16.pop %v3248
    %v3251 = vmul.bf16 %v3238, 1069105081
    %v3252 = vpow.bf16.pop %v3251
    %v3254 = vmul.bf16 %v3239, 1069105081
    %v3255 = vpow.bf16.pop %v3254
    %v3257 = vmul.bf16 %v3240, 1069105081
    %v3258 = vpow.bf16.pop %v3257
    %v3260 = vmul.bf16 %v3241, 1069105081
    %v3261 = vpow.bf16.pop %v3260
    %v3263 = vmul.bf16 %v3242, 1069105081
    %v3264 = vpow.bf16.pop %v3263
    %v3266 = vmul.bf16 %v3243, 1069105081
    %v3267 = vpow.bf16.pop %v3266
    %v3268 = vadd.bf16 %v3246, 1065369472
    %v3269 = vadd.bf16 %v3249, 1065369472
    %v3270 = vadd.bf16 %v3252, 1065369472
    %v3271 = vadd.bf16 %v3255, 1065369472
    %v3272 = vadd.bf16 %v3258, 1065369472
    %v3273 = vadd.bf16 %v3261, 1065369472
    %v3274 = vadd.bf16 %v3264, 1065369472
    %v3275 = vadd.bf16 %v3267, 1065369472
    %v3276 = vrcp.bf16.pop %v3268
    %v3277 = vmul.bf16 1065369472, %v3276
    %v3278 = vrcp.bf16.pop %v3269
    %v3279 = vmul.bf16 1065369472, %v3278
    %v3280 = vrcp.bf16.pop %v3270
    %v3281 = vmul.bf16 1065369472, %v3280
    %v3282 = vrcp.bf16.pop %v3271
    %v3283 = vmul.bf16 1065369472, %v3282
    %v3284 = vrcp.bf16.pop %v3272
    %v3285 = vmul.bf16 1065369472, %v3284
    %v3286 = vrcp.bf16.pop %v3273
    %v3287 = vmul.bf16 1065369472, %v3286
    %v3288 = vrcp.bf16.pop %v3274
    %v3289 = vmul.bf16 1065369472, %v3288
    %v3290 = vrcp.bf16.pop %v3275
    %v3291 = vmul.bf16 1065369472, %v3290
    %v3292 = vunpack.c.l.bf16 %v3277
    %v3293 = vunpack.c.l.bf16 %v3279
    %v3294 = vunpack.c.l.bf16 %v3281
    %v3295 = vunpack.c.l.bf16 %v3283
    %v3296 = vunpack.c.l.bf16 %v3285
    %v3297 = vunpack.c.l.bf16 %v3287
    %v3298 = vunpack.c.l.bf16 %v3289
    %v3299 = vunpack.c.l.bf16 %v3291
    %v3300 = vxor.u32 %v3205, 2147516416
    %v3301 = vxor.u32 %v3209, 2147516416
    %v3302 = vxor.u32 %v3213, 2147516416
    %v3303 = vxor.u32 %v3217, 2147516416
    %v3304 = vxor.u32 %v3221, 2147516416
    %v3305 = vxor.u32 %v3225, 2147516416
    %v3306 = vxor.u32 %v3229, 2147516416
    %v3307 = vxor.u32 %v3233, 2147516416
    %v3309 = vmul.bf16 %v3300, 1069105081
    %v3310 = vpow.bf16.pop %v3309
    %v3312 = vmul.bf16 %v3301, 1069105081
    %v3313 = vpow.bf16.pop %v3312
    %v3315 = vmul.bf16 %v3302, 1069105081
    %v3316 = vpow.bf16.pop %v3315
    %v3318 = vmul.bf16 %v3303, 1069105081
    %v3319 = vpow.bf16.pop %v3318
    %v3321 = vmul.bf16 %v3304, 1069105081
    %v3322 = vpow.bf16.pop %v3321
    %v3324 = vmul.bf16 %v3305, 1069105081
    %v3325 = vpow.bf16.pop %v3324
    %v3327 = vmul.bf16 %v3306, 1069105081
    %v3328 = vpow.bf16.pop %v3327
    %v3330 = vmul.bf16 %v3307, 1069105081
    %v3331 = vpow.bf16.pop %v3330
    %v3332 = vadd.bf16 %v3310, 1065369472
    %v3333 = vadd.bf16 %v3313, 1065369472
    %v3334 = vadd.bf16 %v3316, 1065369472
    %v3335 = vadd.bf16 %v3319, 1065369472
    %v3336 = vadd.bf16 %v3322, 1065369472
    %v3337 = vadd.bf16 %v3325, 1065369472
    %v3338 = vadd.bf16 %v3328, 1065369472
    %v3339 = vadd.bf16 %v3331, 1065369472
    %v3340 = vrcp.bf16.pop %v3332
    %v3341 = vmul.bf16 1065369472, %v3340
    %v3342 = vrcp.bf16.pop %v3333
    %v3343 = vmul.bf16 1065369472, %v3342
    %v3344 = vrcp.bf16.pop %v3334
    %v3345 = vmul.bf16 1065369472, %v3344
    %v3346 = vrcp.bf16.pop %v3335
    %v3347 = vmul.bf16 1065369472, %v3346
    %v3348 = vrcp.bf16.pop %v3336
    %v3349 = vmul.bf16 1065369472, %v3348
    %v3350 = vrcp.bf16.pop %v3337
    %v3351 = vmul.bf16 1065369472, %v3350
    %v3352 = vrcp.bf16.pop %v3338
    %v3353 = vmul.bf16 1065369472, %v3352
    %v3354 = vrcp.bf16.pop %v3339
    %v3355 = vmul.bf16 1065369472, %v3354
    %v3356 = vunpack.c.l.bf16 %v3341
    %v3357 = vunpack.c.l.bf16 %v3343
    %v3358 = vunpack.c.l.bf16 %v3345
    %v3359 = vunpack.c.l.bf16 %v3347
    %v3360 = vunpack.c.l.bf16 %v3349
    %v3361 = vunpack.c.l.bf16 %v3351
    %v3362 = vunpack.c.l.bf16 %v3353
    %v3363 = vunpack.c.l.bf16 %v3355
    %v3364 = vtanh.bf16.pop %v3206
    %v3365 = vtanh.bf16.pop %v3210
    %v3366 = vtanh.bf16.pop %v3214
    %v3367 = vtanh.bf16.pop %v3218
    %v3368 = vtanh.bf16.pop %v3222
    %v3369 = vtanh.bf16.pop %v3226
    %v3370 = vtanh.bf16.pop %v3230
    %v3371 = vtanh.bf16.pop %v3234
    %v3372 = vunpack.c.l.bf16 %v3364
    %v3373 = vunpack.c.l.bf16 %v3365
    %v3374 = vunpack.c.l.bf16 %v3366
    %v3375 = vunpack.c.l.bf16 %v3367
    %v3376 = vunpack.c.l.bf16 %v3368
    %v3377 = vunpack.c.l.bf16 %v3369
    %v3378 = vunpack.c.l.bf16 %v3370
    %v3379 = vunpack.c.l.bf16 %v3371
    %v3380 = vxor.u32 %v3207, 2147516416
    %v3381 = vxor.u32 %v3211, 2147516416
    %v3382 = vxor.u32 %v3215, 2147516416
    %v3383 = vxor.u32 %v3219, 2147516416
    %v3384 = vxor.u32 %v3223, 2147516416
    %v3385 = vxor.u32 %v3227, 2147516416
    %v3386 = vxor.u32 %v3231, 2147516416
    %v3387 = vxor.u32 %v3235, 2147516416
    %v3389 = vmul.bf16 %v3380, 1069105081
    %v3390 = vpow.bf16.pop %v3389
    %v3392 = vmul.bf16 %v3381, 1069105081
    %v3393 = vpow.bf16.pop %v3392
    %v3395 = vmul.bf16 %v3382, 1069105081
    %v3396 = vpow.bf16.pop %v3395
    %v3398 = vmul.bf16 %v3383, 1069105081
    %v3399 = vpow.bf16.pop %v3398
    %v3401 = vmul.bf16 %v3384, 1069105081
    %v3402 = vpow.bf16.pop %v3401
    %v3404 = vmul.bf16 %v3385, 1069105081
    %v3405 = vpow.bf16.pop %v3404
    %v3407 = vmul.bf16 %v3386, 1069105081
    %v3408 = vpow.bf16.pop %v3407
    %v3410 = vmul.bf16 %v3387, 1069105081
    %v3411 = vpow.bf16.pop %v3410
    %v3412 = vadd.bf16 %v3390, 1065369472
    %v3413 = vadd.bf16 %v3393, 1065369472
    %v3414 = vadd.bf16 %v3396, 1065369472
    %v3415 = vadd.bf16 %v3399, 1065369472
    %v3416 = vadd.bf16 %v3402, 1065369472
    %v3417 = vadd.bf16 %v3405, 1065369472
    %v3418 = vadd.bf16 %v3408, 1065369472
    %v3419 = vadd.bf16 %v3411, 1065369472
    %v3420 = vrcp.bf16.pop %v3412
    %v3421 = vmul.bf16 1065369472, %v3420
    %v3422 = vrcp.bf16.pop %v3413
    %v3423 = vmul.bf16 1065369472, %v3422
    %v3424 = vrcp.bf16.pop %v3414
    %v3425 = vmul.bf16 1065369472, %v3424
    %v3426 = vrcp.bf16.pop %v3415
    %v3427 = vmul.bf16 1065369472, %v3426
    %v3428 = vrcp.bf16.pop %v3416
    %v3429 = vmul.bf16 1065369472, %v3428
    %v3430 = vrcp.bf16.pop %v3417
    %v3431 = vmul.bf16 1065369472, %v3430
    %v3432 = vrcp.bf16.pop %v3418
    %v3433 = vmul.bf16 1065369472, %v3432
    %v3434 = vrcp.bf16.pop %v3419
    %v3435 = vmul.bf16 1065369472, %v3434
    %v3436 = vunpack.c.l.bf16 %v3421
    %v3437 = vunpack.c.l.bf16 %v3423
    %v3438 = vunpack.c.l.bf16 %v3425
    %v3439 = vunpack.c.l.bf16 %v3427
    %v3440 = vunpack.c.l.bf16 %v3429
    %v3441 = vunpack.c.l.bf16 %v3431
    %v3442 = vunpack.c.l.bf16 %v3433
    %v3443 = vunpack.c.l.bf16 %v3435
    %v3452 = vrot.slane %v2962, 7
    %v3453 = vrot.slane %v2963, 7
    %v3454 = vrot.slane %v2964, 7
    %v3455 = vrot.slane %v2965, 7
    %v3456 = vrot.slane %v2966, 7
    %v3457 = vrot.slane %v2967, 7
    %v3458 = vrot.slane %v2968, 7
    %v3459 = vrot.slane %v2969, 7
    %v3468 = vmul.f32 %v3356, %v3452
    %v3469 = vmul.f32 %v3357, %v3453
    %v3470 = vmul.f32 %v3358, %v3454
    %v3471 = vmul.f32 %v3359, %v3455
    %v3472 = vmul.f32 %v3360, %v3456
    %v3473 = vmul.f32 %v3361, %v3457
    %v3474 = vmul.f32 %v3362, %v3458
    %v3475 = vmul.f32 %v3363, %v3459
    %v3476 = vmul.f32 %v3292, %v3372
    %v3477 = vmul.f32 %v3293, %v3373
    %v3478 = vmul.f32 %v3294, %v3374
    %v3479 = vmul.f32 %v3295, %v3375
    %v3480 = vmul.f32 %v3296, %v3376
    %v3481 = vmul.f32 %v3297, %v3377
    %v3482 = vmul.f32 %v3298, %v3378
    %v3483 = vmul.f32 %v3299, %v3379
    %v3484 = vadd.f32 %v3468, %v3476
    %v3485 = vadd.f32 %v3469, %v3477
    %v3486 = vadd.f32 %v3470, %v3478
    %v3487 = vadd.f32 %v3471, %v3479
    %v3488 = vadd.f32 %v3472, %v3480
    %v3489 = vadd.f32 %v3473, %v3481
    %v3490 = vadd.f32 %v3474, %v3482
    %v3491 = vadd.f32 %v3475, %v3483
    %v3492 = vtanh.pop %v3484
    %v3493 = vtanh.pop %v3485
    %v3494 = vtanh.pop %v3486
    %v3495 = vtanh.pop %v3487
    %v3496 = vtanh.pop %v3488
    %v3497 = vtanh.pop %v3489
    %v3498 = vtanh.pop %v3490
    %v3499 = vtanh.pop %v3491
    %v3500 = vmul.f32 %v3436, %v3492
    %v3501 = vmul.f32 %v3437, %v3493
    %v3502 = vmul.f32 %v3438, %v3494
    %v3503 = vmul.f32 %v3439, %v3495
    %v3504 = vmul.f32 %v3440, %v3496
    %v3505 = vmul.f32 %v3441, %v3497
    %v3506 = vmul.f32 %v3442, %v3498
    %v3507 = vmul.f32 %v3443, %v3499
    %v3508 = vpack.c.bf16 %v3500, %v3500
    %v3509 = vpack.c.bf16 %v3501, %v3501
    %v3510 = vpack.c.bf16 %v3502, %v3502
    %v3511 = vpack.c.bf16 %v3503, %v3503
    %v3512 = vpack.c.bf16 %v3504, %v3504
    %v3513 = vpack.c.bf16 %v3505, %v3505
    %v3514 = vpack.c.bf16 %v3506, %v3506
    %v3515 = vpack.c.bf16 %v3507, %v3507
    %v3524 = vunpack.c.l.b16 %v3508
    %v3525 = vunpack.c.l.b16 %v3509
    %v3526 = vunpack.c.l.b16 %v3510
    %v3527 = vunpack.c.l.b16 %v3511
    %v3528 = vunpack.c.l.b16 %v3512
    %v3529 = vunpack.c.l.b16 %v3513
    %v3530 = vunpack.c.l.b16 %v3514
    %v3531 = vunpack.c.l.b16 %v3515
    %v3532 = vrot.slane %v3524, 4
    %v3533 = vrot.slane %v3525, 3
    %v3534 = vsel %vm1438, %v3533, %v3532
    %v3535 = vrot.slane %v3526, 2
    %v3536 = vsel %vm1441, %v3535, %v3534
    %v3537 = vrot.slane %v3527, 1
    %v3538 = vsel %vm1444, %v3537, %v3536
    %v3539 = vsel %vm1447, %v3528, %v3538
    %v3540 = vrot.slane %v3529, 7
    %v3541 = vsel %vm1450, %v3540, %v3539
    %v3542 = vrot.slane %v3530, 6
    %v3543 = vsel %vm1453, %v3542, %v3541
    %v3544 = vrot.slane %v3531, 5
    %v3545 = vsel %vm1456, %v3544, %v3543
    %v3546 = vpack.c.b16 %v3545, %v3545
    %3548 = vmatprep.subr.bf16.mxu0 %v892
    %3549 = vmatpush1.bf16.msra.mxu0 %v891
    %3550 = vmatprep.subr.bf16.mxu0 %v896
    %3551 = vmatpush1.bf16.msra.mxu0 %v895
    %3552 = vmatprep.subr.bf16.mxu0 %v900
    %3553 = vmatpush1.bf16.msra.mxu0 %v899
    %3554 = vmatprep.subr.bf16.mxu0 %v904
    %3555 = vmatpush1.bf16.msra.mxu0 %v903
    %3556 = vmatprep.subr.bf16.mxu0 %v908
    %3557 = vmatpush1.bf16.msra.mxu0 %v907
    %3558 = vmatprep.subr.bf16.mxu0 %v912
    %3559 = vmatpush1.bf16.msra.mxu0 %v911
    %3560 = vmatprep.subr.bf16.mxu0 %v916
    %3561 = vmatpush1.bf16.msra.mxu0 %v915
    %3562 = vmatprep.subr.bf16.mxu0 %v920
    %3563 = vmatpush1.bf16.msra.mxu0 %v919
    %3564 = vmatprep.subr.bf16.mxu0 0
    %3565 = vmatpush1.bf16.msra.mxu0 0
    %3566 = vmatprep.subr.bf16.mxu0 0
    %3567 = vmatpush1.bf16.msra.mxu0 0
    %3568 = vmatprep.subr.bf16.mxu0 0
    %3569 = vmatpush1.bf16.msra.mxu0 0
    %3570 = vmatprep.subr.bf16.mxu0 0
    %3571 = vmatpush1.bf16.msra.mxu0 0
    %3572 = vmatprep.subr.bf16.mxu0 0
    %3573 = vmatpush1.bf16.msra.mxu0 0
    %3574 = vmatprep.subr.bf16.mxu0 0
    %3575 = vmatpush1.bf16.msra.mxu0 0
    %3576 = vmatprep.subr.bf16.mxu0 0
    %3577 = vmatpush1.bf16.msra.mxu0 0
    %3578 = vmatprep.subr.bf16.mxu0 0
    %3579 = vmatpush1.bf16.msra.mxu0 0
    %3580 = vmatprep.mubr.bf16.mxu0 0
    %3581 = vmatmul.mubr.bf16.gmra.mrb[0].mxu0 %v3546
    %v3582 = vpop.f32.mrb[0].mxu0
    %v3583 = vadd.f32 0.0, %v3582
    %v3584 = vpop.f32.mrb[0].mxu0
    %v3585 = vadd.f32 0.0, %v3584
    %v3586 = vpop.f32.mrb[0].mxu0
    %v3587 = vpop.f32.mrb[0].mxu0
    %3588 = vdwg.mxu0
    %3589 = vmatprep.subr.bf16.mxu0 %v894
    %3590 = vmatpush1.bf16.msra.mxu0 %v893
    %3591 = vmatprep.subr.bf16.mxu0 %v898
    %3592 = vmatpush1.bf16.msra.mxu0 %v897
    %3593 = vmatprep.subr.bf16.mxu0 %v902
    %3594 = vmatpush1.bf16.msra.mxu0 %v901
    %3595 = vmatprep.subr.bf16.mxu0 %v906
    %3596 = vmatpush1.bf16.msra.mxu0 %v905
    %3597 = vmatprep.subr.bf16.mxu0 %v910
    %3598 = vmatpush1.bf16.msra.mxu0 %v909
    %3599 = vmatprep.subr.bf16.mxu0 %v914
    %3600 = vmatpush1.bf16.msra.mxu0 %v913
    %3601 = vmatprep.subr.bf16.mxu0 %v918
    %3602 = vmatpush1.bf16.msra.mxu0 %v917
    %3603 = vmatprep.subr.bf16.mxu0 %v922
    %3604 = vmatpush1.bf16.msra.mxu0 %v921
    %3605 = vmatprep.subr.bf16.mxu0 0
    %3606 = vmatpush1.bf16.msra.mxu0 0
    %3607 = vmatprep.subr.bf16.mxu0 0
    %3608 = vmatpush1.bf16.msra.mxu0 0
    %3609 = vmatprep.subr.bf16.mxu0 0
    %3610 = vmatpush1.bf16.msra.mxu0 0
    %3611 = vmatprep.subr.bf16.mxu0 0
    %3612 = vmatpush1.bf16.msra.mxu0 0
    %3613 = vmatprep.subr.bf16.mxu0 0
    %3614 = vmatpush1.bf16.msra.mxu0 0
    %3615 = vmatprep.subr.bf16.mxu0 0
    %3616 = vmatpush1.bf16.msra.mxu0 0
    %3617 = vmatprep.subr.bf16.mxu0 0
    %3618 = vmatpush1.bf16.msra.mxu0 0
    %3619 = vmatprep.subr.bf16.mxu0 0
    %3620 = vmatpush1.bf16.msra.mxu0 0
    %3621 = vmatprep.mubr.bf16.mxu0 0
    %3622 = vmatmul.mubr.bf16.gmra.mrb[0].mxu0 %v3546
    %v3623 = vpop.f32.mrb[0].mxu0
    %v3624 = vadd.f32 0.0, %v3623
    %v3625 = vpop.f32.mrb[0].mxu0
    %v3626 = vadd.f32 0.0, %v3625
    %v3627 = vpop.f32.mrb[0].mxu0
    %v3628 = vpop.f32.mrb[0].mxu0
    %3629 = vdwg.mxu0
    %v3634 = vrot.slane %v3583, 3
    %v3635 = vrot.slane %v3585, 3
    %v3636 = vrot.slane %v3624, 3
    %v3637 = vrot.slane %v3626, 3
    %v3638 = vrot.slane %v3583, 4
    %v3639 = vrot.slane %v3585, 4
    %v3640 = vrot.slane %v3624, 4
    %v3641 = vrot.slane %v3626, 4
    %v3642 = vrot.slane %v3583, 5
    %v3643 = vrot.slane %v3585, 5
    %v3644 = vrot.slane %v3624, 5
    %v3645 = vrot.slane %v3626, 5
    %v3646 = vrot.slane %v3583, 6
    %v3647 = vrot.slane %v3585, 6
    %v3648 = vrot.slane %v3624, 6
    %v3649 = vrot.slane %v3626, 6
    %v3650 = vrot.slane %v3583, 7
    %v3651 = vrot.slane %v3585, 7
    %v3652 = vrot.slane %v3624, 7
    %v3653 = vrot.slane %v3626, 7
    %v3654 = vrot.slane %v3583, 1
    %v3655 = vrot.slane %v3585, 1
    %v3656 = vrot.slane %v3624, 1
    %v3657 = vrot.slane %v3626, 1
    %v3658 = vrot.slane %v3583, 2
    %v3659 = vrot.slane %v3585, 2
    %v3660 = vrot.slane %v3624, 2
    %v3661 = vrot.slane %v3626, 2
    %v3694 = vadd.f32 %v652, %v3634
    %v3695 = vadd.f32 %v654, %v3635
    %v3696 = vadd.f32 %v725, %v3636
    %v3697 = vadd.f32 %v727, %v3637
    %v3698 = vadd.f32 %v656, %v3638
    %v3699 = vadd.f32 %v658, %v3639
    %v3700 = vadd.f32 %v729, %v3640
    %v3701 = vadd.f32 %v731, %v3641
    %v3702 = vadd.f32 %v662, %v3642
    %v3703 = vadd.f32 %v664, %v3643
    %v3704 = vadd.f32 %v735, %v3644
    %v3705 = vadd.f32 %v737, %v3645
    %v3706 = vadd.f32 %v666, %v3646
    %v3707 = vadd.f32 %v668, %v3647
    %v3708 = vadd.f32 %v739, %v3648
    %v3709 = vadd.f32 %v741, %v3649
    %v3710 = vadd.f32 %v672, %v3650
    %v3711 = vadd.f32 %v674, %v3651
    %v3712 = vadd.f32 %v745, %v3652
    %v3713 = vadd.f32 %v747, %v3653
    %v3714 = vadd.f32 %v676, %v3583
    %v3715 = vadd.f32 %v678, %v3585
    %v3716 = vadd.f32 %v749, %v3624
    %v3717 = vadd.f32 %v751, %v3626
    %v3718 = vadd.f32 %v682, %v3654
    %v3719 = vadd.f32 %v684, %v3655
    %v3720 = vadd.f32 %v755, %v3656
    %v3721 = vadd.f32 %v757, %v3657
    %v3722 = vadd.f32 %v686, %v3658
    %v3723 = vadd.f32 %v688, %v3659
    %v3724 = vadd.f32 %v759, %v3660
    %v3725 = vadd.f32 %v761, %v3661
    %v3726 = vpack.c.bf16 %v3694, %v3694
    %v3727 = vpack.c.bf16 %v3695, %v3695
    %v3728 = vpack.c.bf16 %v3696, %v3696
    %v3729 = vpack.c.bf16 %v3697, %v3697
    %v3730 = vpack.c.bf16 %v3698, %v3698
    %v3731 = vpack.c.bf16 %v3699, %v3699
    %v3732 = vpack.c.bf16 %v3700, %v3700
    %v3733 = vpack.c.bf16 %v3701, %v3701
    %v3734 = vpack.c.bf16 %v3702, %v3702
    %v3735 = vpack.c.bf16 %v3703, %v3703
    %v3736 = vpack.c.bf16 %v3704, %v3704
    %v3737 = vpack.c.bf16 %v3705, %v3705
    %v3738 = vpack.c.bf16 %v3706, %v3706
    %v3739 = vpack.c.bf16 %v3707, %v3707
    %v3740 = vpack.c.bf16 %v3708, %v3708
    %v3741 = vpack.c.bf16 %v3709, %v3709
    %v3742 = vpack.c.bf16 %v3710, %v3710
    %v3743 = vpack.c.bf16 %v3711, %v3711
    %v3744 = vpack.c.bf16 %v3712, %v3712
    %v3745 = vpack.c.bf16 %v3713, %v3713
    %v3746 = vpack.c.bf16 %v3714, %v3714
    %v3747 = vpack.c.bf16 %v3715, %v3715
    %v3748 = vpack.c.bf16 %v3716, %v3716
    %v3749 = vpack.c.bf16 %v3717, %v3717
    %v3750 = vpack.c.bf16 %v3718, %v3718
    %v3751 = vpack.c.bf16 %v3719, %v3719
    %v3752 = vpack.c.bf16 %v3720, %v3720
    %v3753 = vpack.c.bf16 %v3721, %v3721
    %v3754 = vpack.c.bf16 %v3722, %v3722
    %v3755 = vpack.c.bf16 %v3723, %v3723
    %v3756 = vpack.c.bf16 %v3724, %v3724
    %v3757 = vpack.c.bf16 %v3725, %v3725
    %v3758 = vxor.u32 %v3726, 2147516416
    %v3759 = vxor.u32 %v3730, 2147516416
    %v3760 = vxor.u32 %v3734, 2147516416
    %v3761 = vxor.u32 %v3738, 2147516416
    %v3762 = vxor.u32 %v3742, 2147516416
    %v3763 = vxor.u32 %v3746, 2147516416
    %v3764 = vxor.u32 %v3750, 2147516416
    %v3765 = vxor.u32 %v3754, 2147516416
    %v3767 = vmul.bf16 %v3758, 1069105081
    %v3768 = vpow.bf16.pop %v3767
    %v3770 = vmul.bf16 %v3759, 1069105081
    %v3771 = vpow.bf16.pop %v3770
    %v3773 = vmul.bf16 %v3760, 1069105081
    %v3774 = vpow.bf16.pop %v3773
    %v3776 = vmul.bf16 %v3761, 1069105081
    %v3777 = vpow.bf16.pop %v3776
    %v3779 = vmul.bf16 %v3762, 1069105081
    %v3780 = vpow.bf16.pop %v3779
    %v3782 = vmul.bf16 %v3763, 1069105081
    %v3783 = vpow.bf16.pop %v3782
    %v3785 = vmul.bf16 %v3764, 1069105081
    %v3786 = vpow.bf16.pop %v3785
    %v3788 = vmul.bf16 %v3765, 1069105081
    %v3789 = vpow.bf16.pop %v3788
    %v3790 = vadd.bf16 %v3768, 1065369472
    %v3791 = vadd.bf16 %v3771, 1065369472
    %v3792 = vadd.bf16 %v3774, 1065369472
    %v3793 = vadd.bf16 %v3777, 1065369472
    %v3794 = vadd.bf16 %v3780, 1065369472
    %v3795 = vadd.bf16 %v3783, 1065369472
    %v3796 = vadd.bf16 %v3786, 1065369472
    %v3797 = vadd.bf16 %v3789, 1065369472
    %v3798 = vrcp.bf16.pop %v3790
    %v3799 = vmul.bf16 1065369472, %v3798
    %v3800 = vrcp.bf16.pop %v3791
    %v3801 = vmul.bf16 1065369472, %v3800
    %v3802 = vrcp.bf16.pop %v3792
    %v3803 = vmul.bf16 1065369472, %v3802
    %v3804 = vrcp.bf16.pop %v3793
    %v3805 = vmul.bf16 1065369472, %v3804
    %v3806 = vrcp.bf16.pop %v3794
    %v3807 = vmul.bf16 1065369472, %v3806
    %v3808 = vrcp.bf16.pop %v3795
    %v3809 = vmul.bf16 1065369472, %v3808
    %v3810 = vrcp.bf16.pop %v3796
    %v3811 = vmul.bf16 1065369472, %v3810
    %v3812 = vrcp.bf16.pop %v3797
    %v3813 = vmul.bf16 1065369472, %v3812
    %v3814 = vunpack.c.l.bf16 %v3799
    %v3815 = vunpack.c.l.bf16 %v3801
    %v3816 = vunpack.c.l.bf16 %v3803
    %v3817 = vunpack.c.l.bf16 %v3805
    %v3818 = vunpack.c.l.bf16 %v3807
    %v3819 = vunpack.c.l.bf16 %v3809
    %v3820 = vunpack.c.l.bf16 %v3811
    %v3821 = vunpack.c.l.bf16 %v3813
    %v3822 = vxor.u32 %v3727, 2147516416
    %v3823 = vxor.u32 %v3731, 2147516416
    %v3824 = vxor.u32 %v3735, 2147516416
    %v3825 = vxor.u32 %v3739, 2147516416
    %v3826 = vxor.u32 %v3743, 2147516416
    %v3827 = vxor.u32 %v3747, 2147516416
    %v3828 = vxor.u32 %v3751, 2147516416
    %v3829 = vxor.u32 %v3755, 2147516416
    %v3831 = vmul.bf16 %v3822, 1069105081
    %v3832 = vpow.bf16.pop %v3831
    %v3834 = vmul.bf16 %v3823, 1069105081
    %v3835 = vpow.bf16.pop %v3834
    %v3837 = vmul.bf16 %v3824, 1069105081
    %v3838 = vpow.bf16.pop %v3837
    %v3840 = vmul.bf16 %v3825, 1069105081
    %v3841 = vpow.bf16.pop %v3840
    %v3843 = vmul.bf16 %v3826, 1069105081
    %v3844 = vpow.bf16.pop %v3843
    %v3846 = vmul.bf16 %v3827, 1069105081
    %v3847 = vpow.bf16.pop %v3846
    %v3849 = vmul.bf16 %v3828, 1069105081
    %v3850 = vpow.bf16.pop %v3849
    %v3852 = vmul.bf16 %v3829, 1069105081
    %v3853 = vpow.bf16.pop %v3852
    %v3854 = vadd.bf16 %v3832, 1065369472
    %v3855 = vadd.bf16 %v3835, 1065369472
    %v3856 = vadd.bf16 %v3838, 1065369472
    %v3857 = vadd.bf16 %v3841, 1065369472
    %v3858 = vadd.bf16 %v3844, 1065369472
    %v3859 = vadd.bf16 %v3847, 1065369472
    %v3860 = vadd.bf16 %v3850, 1065369472
    %v3861 = vadd.bf16 %v3853, 1065369472
    %v3862 = vrcp.bf16.pop %v3854
    %v3863 = vmul.bf16 1065369472, %v3862
    %v3864 = vrcp.bf16.pop %v3855
    %v3865 = vmul.bf16 1065369472, %v3864
    %v3866 = vrcp.bf16.pop %v3856
    %v3867 = vmul.bf16 1065369472, %v3866
    %v3868 = vrcp.bf16.pop %v3857
    %v3869 = vmul.bf16 1065369472, %v3868
    %v3870 = vrcp.bf16.pop %v3858
    %v3871 = vmul.bf16 1065369472, %v3870
    %v3872 = vrcp.bf16.pop %v3859
    %v3873 = vmul.bf16 1065369472, %v3872
    %v3874 = vrcp.bf16.pop %v3860
    %v3875 = vmul.bf16 1065369472, %v3874
    %v3876 = vrcp.bf16.pop %v3861
    %v3877 = vmul.bf16 1065369472, %v3876
    %v3878 = vunpack.c.l.bf16 %v3863
    %v3879 = vunpack.c.l.bf16 %v3865
    %v3880 = vunpack.c.l.bf16 %v3867
    %v3881 = vunpack.c.l.bf16 %v3869
    %v3882 = vunpack.c.l.bf16 %v3871
    %v3883 = vunpack.c.l.bf16 %v3873
    %v3884 = vunpack.c.l.bf16 %v3875
    %v3885 = vunpack.c.l.bf16 %v3877
    %v3886 = vtanh.bf16.pop %v3728
    %v3887 = vtanh.bf16.pop %v3732
    %v3888 = vtanh.bf16.pop %v3736
    %v3889 = vtanh.bf16.pop %v3740
    %v3890 = vtanh.bf16.pop %v3744
    %v3891 = vtanh.bf16.pop %v3748
    %v3892 = vtanh.bf16.pop %v3752
    %v3893 = vtanh.bf16.pop %v3756
    %v3894 = vunpack.c.l.bf16 %v3886
    %v3895 = vunpack.c.l.bf16 %v3887
    %v3896 = vunpack.c.l.bf16 %v3888
    %v3897 = vunpack.c.l.bf16 %v3889
    %v3898 = vunpack.c.l.bf16 %v3890
    %v3899 = vunpack.c.l.bf16 %v3891
    %v3900 = vunpack.c.l.bf16 %v3892
    %v3901 = vunpack.c.l.bf16 %v3893
    %v3902 = vxor.u32 %v3729, 2147516416
    %v3903 = vxor.u32 %v3733, 2147516416
    %v3904 = vxor.u32 %v3737, 2147516416
    %v3905 = vxor.u32 %v3741, 2147516416
    %v3906 = vxor.u32 %v3745, 2147516416
    %v3907 = vxor.u32 %v3749, 2147516416
    %v3908 = vxor.u32 %v3753, 2147516416
    %v3909 = vxor.u32 %v3757, 2147516416
    %v3911 = vmul.bf16 %v3902, 1069105081
    %v3912 = vpow.bf16.pop %v3911
    %v3914 = vmul.bf16 %v3903, 1069105081
    %v3915 = vpow.bf16.pop %v3914
    %v3917 = vmul.bf16 %v3904, 1069105081
    %v3918 = vpow.bf16.pop %v3917
    %v3920 = vmul.bf16 %v3905, 1069105081
    %v3921 = vpow.bf16.pop %v3920
    %v3923 = vmul.bf16 %v3906, 1069105081
    %v3924 = vpow.bf16.pop %v3923
    %v3926 = vmul.bf16 %v3907, 1069105081
    %v3927 = vpow.bf16.pop %v3926
    %v3929 = vmul.bf16 %v3908, 1069105081
    %v3930 = vpow.bf16.pop %v3929
    %v3932 = vmul.bf16 %v3909, 1069105081
    %v3933 = vpow.bf16.pop %v3932
    %v3934 = vadd.bf16 %v3912, 1065369472
    %v3935 = vadd.bf16 %v3915, 1065369472
    %v3936 = vadd.bf16 %v3918, 1065369472
    %v3937 = vadd.bf16 %v3921, 1065369472
    %v3938 = vadd.bf16 %v3924, 1065369472
    %v3939 = vadd.bf16 %v3927, 1065369472
    %v3940 = vadd.bf16 %v3930, 1065369472
    %v3941 = vadd.bf16 %v3933, 1065369472
    %v3942 = vrcp.bf16.pop %v3934
    %v3943 = vmul.bf16 1065369472, %v3942
    %v3944 = vrcp.bf16.pop %v3935
    %v3945 = vmul.bf16 1065369472, %v3944
    %v3946 = vrcp.bf16.pop %v3936
    %v3947 = vmul.bf16 1065369472, %v3946
    %v3948 = vrcp.bf16.pop %v3937
    %v3949 = vmul.bf16 1065369472, %v3948
    %v3950 = vrcp.bf16.pop %v3938
    %v3951 = vmul.bf16 1065369472, %v3950
    %v3952 = vrcp.bf16.pop %v3939
    %v3953 = vmul.bf16 1065369472, %v3952
    %v3954 = vrcp.bf16.pop %v3940
    %v3955 = vmul.bf16 1065369472, %v3954
    %v3956 = vrcp.bf16.pop %v3941
    %v3957 = vmul.bf16 1065369472, %v3956
    %v3958 = vunpack.c.l.bf16 %v3943
    %v3959 = vunpack.c.l.bf16 %v3945
    %v3960 = vunpack.c.l.bf16 %v3947
    %v3961 = vunpack.c.l.bf16 %v3949
    %v3962 = vunpack.c.l.bf16 %v3951
    %v3963 = vunpack.c.l.bf16 %v3953
    %v3964 = vunpack.c.l.bf16 %v3955
    %v3965 = vunpack.c.l.bf16 %v3957
    %v3974 = vrot.slane %v3484, 7
    %v3975 = vrot.slane %v3485, 7
    %v3976 = vrot.slane %v3486, 7
    %v3977 = vrot.slane %v3487, 7
    %v3978 = vrot.slane %v3488, 7
    %v3979 = vrot.slane %v3489, 7
    %v3980 = vrot.slane %v3490, 7
    %v3981 = vrot.slane %v3491, 7
    %v3990 = vmul.f32 %v3878, %v3974
    %v3991 = vmul.f32 %v3879, %v3975
    %v3992 = vmul.f32 %v3880, %v3976
    %v3993 = vmul.f32 %v3881, %v3977
    %v3994 = vmul.f32 %v3882, %v3978
    %v3995 = vmul.f32 %v3883, %v3979
    %v3996 = vmul.f32 %v3884, %v3980
    %v3997 = vmul.f32 %v3885, %v3981
    %v3998 = vmul.f32 %v3814, %v3894
    %v3999 = vmul.f32 %v3815, %v3895
    %v4000 = vmul.f32 %v3816, %v3896
    %v4001 = vmul.f32 %v3817, %v3897
    %v4002 = vmul.f32 %v3818, %v3898
    %v4003 = vmul.f32 %v3819, %v3899
    %v4004 = vmul.f32 %v3820, %v3900
    %v4005 = vmul.f32 %v3821, %v3901
    %v4006 = vadd.f32 %v3990, %v3998
    %v4007 = vadd.f32 %v3991, %v3999
    %v4008 = vadd.f32 %v3992, %v4000
    %v4009 = vadd.f32 %v3993, %v4001
    %v4010 = vadd.f32 %v3994, %v4002
    %v4011 = vadd.f32 %v3995, %v4003
    %v4012 = vadd.f32 %v3996, %v4004
    %v4013 = vadd.f32 %v3997, %v4005
    %v4014 = vtanh.pop %v4006
    %v4015 = vtanh.pop %v4007
    %v4016 = vtanh.pop %v4008
    %v4017 = vtanh.pop %v4009
    %v4018 = vtanh.pop %v4010
    %v4019 = vtanh.pop %v4011
    %v4020 = vtanh.pop %v4012
    %v4021 = vtanh.pop %v4013
    %v4022 = vmul.f32 %v3958, %v4014
    %v4023 = vmul.f32 %v3959, %v4015
    %v4024 = vmul.f32 %v3960, %v4016
    %v4025 = vmul.f32 %v3961, %v4017
    %v4026 = vmul.f32 %v3962, %v4018
    %v4027 = vmul.f32 %v3963, %v4019
    %v4028 = vmul.f32 %v3964, %v4020
    %v4029 = vmul.f32 %v3965, %v4021
    %v4030 = vpack.c.bf16 %v4022, %v4022
    %v4031 = vpack.c.bf16 %v4023, %v4023
    %v4032 = vpack.c.bf16 %v4024, %v4024
    %v4033 = vpack.c.bf16 %v4025, %v4025
    %v4034 = vpack.c.bf16 %v4026, %v4026
    %v4035 = vpack.c.bf16 %v4027, %v4027
    %v4036 = vpack.c.bf16 %v4028, %v4028
    %v4037 = vpack.c.bf16 %v4029, %v4029
    %v4046 = vunpack.c.l.b16 %v4030
    %v4047 = vunpack.c.l.b16 %v4031
    %v4048 = vunpack.c.l.b16 %v4032
    %v4049 = vunpack.c.l.b16 %v4033
    %v4050 = vunpack.c.l.b16 %v4034
    %v4051 = vunpack.c.l.b16 %v4035
    %v4052 = vunpack.c.l.b16 %v4036
    %v4053 = vunpack.c.l.b16 %v4037
    %v4054 = vrot.slane %v4046, 5
    %v4055 = vrot.slane %v4047, 4
    %v4056 = vsel %vm1438, %v4055, %v4054
    %v4057 = vrot.slane %v4048, 3
    %v4058 = vsel %vm1441, %v4057, %v4056
    %v4059 = vrot.slane %v4049, 2
    %v4060 = vsel %vm1444, %v4059, %v4058
    %v4061 = vrot.slane %v4050, 1
    %v4062 = vsel %vm1447, %v4061, %v4060
    %v4063 = vsel %vm1450, %v4051, %v4062
    %v4064 = vrot.slane %v4052, 7
    %v4065 = vsel %vm1453, %v4064, %v4063
    %v4066 = vrot.slane %v4053, 6
    %v4067 = vsel %vm1456, %v4066, %v4065
    %v4068 = vpack.c.b16 %v4067, %v4067
    %4070 = vmatprep.subr.bf16.mxu0 %v892
    %4071 = vmatpush1.bf16.msra.mxu0 %v891
    %4072 = vmatprep.subr.bf16.mxu0 %v896
    %4073 = vmatpush1.bf16.msra.mxu0 %v895
    %4074 = vmatprep.subr.bf16.mxu0 %v900
    %4075 = vmatpush1.bf16.msra.mxu0 %v899
    %4076 = vmatprep.subr.bf16.mxu0 %v904
    %4077 = vmatpush1.bf16.msra.mxu0 %v903
    %4078 = vmatprep.subr.bf16.mxu0 %v908
    %4079 = vmatpush1.bf16.msra.mxu0 %v907
    %4080 = vmatprep.subr.bf16.mxu0 %v912
    %4081 = vmatpush1.bf16.msra.mxu0 %v911
    %4082 = vmatprep.subr.bf16.mxu0 %v916
    %4083 = vmatpush1.bf16.msra.mxu0 %v915
    %4084 = vmatprep.subr.bf16.mxu0 %v920
    %4085 = vmatpush1.bf16.msra.mxu0 %v919
    %4086 = vmatprep.subr.bf16.mxu0 0
    %4087 = vmatpush1.bf16.msra.mxu0 0
    %4088 = vmatprep.subr.bf16.mxu0 0
    %4089 = vmatpush1.bf16.msra.mxu0 0
    %4090 = vmatprep.subr.bf16.mxu0 0
    %4091 = vmatpush1.bf16.msra.mxu0 0
    %4092 = vmatprep.subr.bf16.mxu0 0
    %4093 = vmatpush1.bf16.msra.mxu0 0
    %4094 = vmatprep.subr.bf16.mxu0 0
    %4095 = vmatpush1.bf16.msra.mxu0 0
    %4096 = vmatprep.subr.bf16.mxu0 0
    %4097 = vmatpush1.bf16.msra.mxu0 0
    %4098 = vmatprep.subr.bf16.mxu0 0
    %4099 = vmatpush1.bf16.msra.mxu0 0
    %4100 = vmatprep.subr.bf16.mxu0 0
    %4101 = vmatpush1.bf16.msra.mxu0 0
    %4102 = vmatprep.mubr.bf16.mxu0 0
    %4103 = vmatmul.mubr.bf16.gmra.mrb[0].mxu0 %v4068
    %v4104 = vpop.f32.mrb[0].mxu0
    %v4105 = vadd.f32 0.0, %v4104
    %v4106 = vpop.f32.mrb[0].mxu0
    %v4107 = vadd.f32 0.0, %v4106
    %v4108 = vpop.f32.mrb[0].mxu0
    %v4109 = vpop.f32.mrb[0].mxu0
    %4110 = vdwg.mxu0
    %4111 = vmatprep.subr.bf16.mxu0 %v894
    %4112 = vmatpush1.bf16.msra.mxu0 %v893
    %4113 = vmatprep.subr.bf16.mxu0 %v898
    %4114 = vmatpush1.bf16.msra.mxu0 %v897
    %4115 = vmatprep.subr.bf16.mxu0 %v902
    %4116 = vmatpush1.bf16.msra.mxu0 %v901
    %4117 = vmatprep.subr.bf16.mxu0 %v906
    %4118 = vmatpush1.bf16.msra.mxu0 %v905
    %4119 = vmatprep.subr.bf16.mxu0 %v910
    %4120 = vmatpush1.bf16.msra.mxu0 %v909
    %4121 = vmatprep.subr.bf16.mxu0 %v914
    %4122 = vmatpush1.bf16.msra.mxu0 %v913
    %4123 = vmatprep.subr.bf16.mxu0 %v918
    %4124 = vmatpush1.bf16.msra.mxu0 %v917
    %4125 = vmatprep.subr.bf16.mxu0 %v922
    %4126 = vmatpush1.bf16.msra.mxu0 %v921
    %4127 = vmatprep.subr.bf16.mxu0 0
    %4128 = vmatpush1.bf16.msra.mxu0 0
    %4129 = vmatprep.subr.bf16.mxu0 0
    %4130 = vmatpush1.bf16.msra.mxu0 0
    %4131 = vmatprep.subr.bf16.mxu0 0
    %4132 = vmatpush1.bf16.msra.mxu0 0
    %4133 = vmatprep.subr.bf16.mxu0 0
    %4134 = vmatpush1.bf16.msra.mxu0 0
    %4135 = vmatprep.subr.bf16.mxu0 0
    %4136 = vmatpush1.bf16.msra.mxu0 0
    %4137 = vmatprep.subr.bf16.mxu0 0
    %4138 = vmatpush1.bf16.msra.mxu0 0
    %4139 = vmatprep.subr.bf16.mxu0 0
    %4140 = vmatpush1.bf16.msra.mxu0 0
    %4141 = vmatprep.subr.bf16.mxu0 0
    %4142 = vmatpush1.bf16.msra.mxu0 0
    %4143 = vmatprep.mubr.bf16.mxu0 0
    %4144 = vmatmul.mubr.bf16.gmra.mrb[0].mxu0 %v4068
    %v4145 = vpop.f32.mrb[0].mxu0
    %v4146 = vadd.f32 0.0, %v4145
    %v4147 = vpop.f32.mrb[0].mxu0
    %v4148 = vadd.f32 0.0, %v4147
    %v4149 = vpop.f32.mrb[0].mxu0
    %v4150 = vpop.f32.mrb[0].mxu0
    %4151 = vdwg.mxu0
    %v4156 = vrot.slane %v4105, 2
    %v4157 = vrot.slane %v4107, 2
    %v4158 = vrot.slane %v4146, 2
    %v4159 = vrot.slane %v4148, 2
    %v4160 = vrot.slane %v4105, 3
    %v4161 = vrot.slane %v4107, 3
    %v4162 = vrot.slane %v4146, 3
    %v4163 = vrot.slane %v4148, 3
    %v4164 = vrot.slane %v4105, 4
    %v4165 = vrot.slane %v4107, 4
    %v4166 = vrot.slane %v4146, 4
    %v4167 = vrot.slane %v4148, 4
    %v4168 = vrot.slane %v4105, 5
    %v4169 = vrot.slane %v4107, 5
    %v4170 = vrot.slane %v4146, 5
    %v4171 = vrot.slane %v4148, 5
    %v4172 = vrot.slane %v4105, 6
    %v4173 = vrot.slane %v4107, 6
    %v4174 = vrot.slane %v4146, 6
    %v4175 = vrot.slane %v4148, 6
    %v4176 = vrot.slane %v4105, 7
    %v4177 = vrot.slane %v4107, 7
    %v4178 = vrot.slane %v4146, 7
    %v4179 = vrot.slane %v4148, 7
    %v4180 = vrot.slane %v4105, 1
    %v4181 = vrot.slane %v4107, 1
    %v4182 = vrot.slane %v4146, 1
    %v4183 = vrot.slane %v4148, 1
    %v4216 = vadd.f32 %v652, %v4156
    %v4217 = vadd.f32 %v654, %v4157
    %v4218 = vadd.f32 %v725, %v4158
    %v4219 = vadd.f32 %v727, %v4159
    %v4220 = vadd.f32 %v656, %v4160
    %v4221 = vadd.f32 %v658, %v4161
    %v4222 = vadd.f32 %v729, %v4162
    %v4223 = vadd.f32 %v731, %v4163
    %v4224 = vadd.f32 %v662, %v4164
    %v4225 = vadd.f32 %v664, %v4165
    %v4226 = vadd.f32 %v735, %v4166
    %v4227 = vadd.f32 %v737, %v4167
    %v4228 = vadd.f32 %v666, %v4168
    %v4229 = vadd.f32 %v668, %v4169
    %v4230 = vadd.f32 %v739, %v4170
    %v4231 = vadd.f32 %v741, %v4171
    %v4232 = vadd.f32 %v672, %v4172
    %v4233 = vadd.f32 %v674, %v4173
    %v4234 = vadd.f32 %v745, %v4174
    %v4235 = vadd.f32 %v747, %v4175
    %v4236 = vadd.f32 %v676, %v4176
    %v4237 = vadd.f32 %v678, %v4177
    %v4238 = vadd.f32 %v749, %v4178
    %v4239 = vadd.f32 %v751, %v4179
    %v4240 = vadd.f32 %v682, %v4105
    %v4241 = vadd.f32 %v684, %v4107
    %v4242 = vadd.f32 %v755, %v4146
    %v4243 = vadd.f32 %v757, %v4148
    %v4244 = vadd.f32 %v686, %v4180
    %v4245 = vadd.f32 %v688, %v4181
    %v4246 = vadd.f32 %v759, %v4182
    %v4247 = vadd.f32 %v761, %v4183
    %v4248 = vpack.c.bf16 %v4216, %v4216
    %v4249 = vpack.c.bf16 %v4217, %v4217
    %v4250 = vpack.c.bf16 %v4218, %v4218
    %v4251 = vpack.c.bf16 %v4219, %v4219
    %v4252 = vpack.c.bf16 %v4220, %v4220
    %v4253 = vpack.c.bf16 %v4221, %v4221
    %v4254 = vpack.c.bf16 %v4222, %v4222
    %v4255 = vpack.c.bf16 %v4223, %v4223
    %v4256 = vpack.c.bf16 %v4224, %v4224
    %v4257 = vpack.c.bf16 %v4225, %v4225
    %v4258 = vpack.c.bf16 %v4226, %v4226
    %v4259 = vpack.c.bf16 %v4227, %v4227
    %v4260 = vpack.c.bf16 %v4228, %v4228
    %v4261 = vpack.c.bf16 %v4229, %v4229
    %v4262 = vpack.c.bf16 %v4230, %v4230
    %v4263 = vpack.c.bf16 %v4231, %v4231
    %v4264 = vpack.c.bf16 %v4232, %v4232
    %v4265 = vpack.c.bf16 %v4233, %v4233
    %v4266 = vpack.c.bf16 %v4234, %v4234
    %v4267 = vpack.c.bf16 %v4235, %v4235
    %v4268 = vpack.c.bf16 %v4236, %v4236
    %v4269 = vpack.c.bf16 %v4237, %v4237
    %v4270 = vpack.c.bf16 %v4238, %v4238
    %v4271 = vpack.c.bf16 %v4239, %v4239
    %v4272 = vpack.c.bf16 %v4240, %v4240
    %v4273 = vpack.c.bf16 %v4241, %v4241
    %v4274 = vpack.c.bf16 %v4242, %v4242
    %v4275 = vpack.c.bf16 %v4243, %v4243
    %v4276 = vpack.c.bf16 %v4244, %v4244
    %v4277 = vpack.c.bf16 %v4245, %v4245
    %v4278 = vpack.c.bf16 %v4246, %v4246
    %v4279 = vpack.c.bf16 %v4247, %v4247
    %v4280 = vxor.u32 %v4248, 2147516416
    %v4281 = vxor.u32 %v4252, 2147516416
    %v4282 = vxor.u32 %v4256, 2147516416
    %v4283 = vxor.u32 %v4260, 2147516416
    %v4284 = vxor.u32 %v4264, 2147516416
    %v4285 = vxor.u32 %v4268, 2147516416
    %v4286 = vxor.u32 %v4272, 2147516416
    %v4287 = vxor.u32 %v4276, 2147516416
    %v4289 = vmul.bf16 %v4280, 1069105081
    %v4290 = vpow.bf16.pop %v4289
    %v4292 = vmul.bf16 %v4281, 1069105081
    %v4293 = vpow.bf16.pop %v4292
    %v4295 = vmul.bf16 %v4282, 1069105081
    %v4296 = vpow.bf16.pop %v4295
    %v4298 = vmul.bf16 %v4283, 1069105081
    %v4299 = vpow.bf16.pop %v4298
    %v4301 = vmul.bf16 %v4284, 1069105081
    %v4302 = vpow.bf16.pop %v4301
    %v4304 = vmul.bf16 %v4285, 1069105081
    %v4305 = vpow.bf16.pop %v4304
    %v4307 = vmul.bf16 %v4286, 1069105081
    %v4308 = vpow.bf16.pop %v4307
    %v4310 = vmul.bf16 %v4287, 1069105081
    %v4311 = vpow.bf16.pop %v4310
    %v4312 = vadd.bf16 %v4290, 1065369472
    %v4313 = vadd.bf16 %v4293, 1065369472
    %v4314 = vadd.bf16 %v4296, 1065369472
    %v4315 = vadd.bf16 %v4299, 1065369472
    %v4316 = vadd.bf16 %v4302, 1065369472
    %v4317 = vadd.bf16 %v4305, 1065369472
    %v4318 = vadd.bf16 %v4308, 1065369472
    %v4319 = vadd.bf16 %v4311, 1065369472
    %v4320 = vrcp.bf16.pop %v4312
    %v4321 = vmul.bf16 1065369472, %v4320
    %v4322 = vrcp.bf16.pop %v4313
    %v4323 = vmul.bf16 1065369472, %v4322
    %v4324 = vrcp.bf16.pop %v4314
    %v4325 = vmul.bf16 1065369472, %v4324
    %v4326 = vrcp.bf16.pop %v4315
    %v4327 = vmul.bf16 1065369472, %v4326
    %v4328 = vrcp.bf16.pop %v4316
    %v4329 = vmul.bf16 1065369472, %v4328
    %v4330 = vrcp.bf16.pop %v4317
    %v4331 = vmul.bf16 1065369472, %v4330
    %v4332 = vrcp.bf16.pop %v4318
    %v4333 = vmul.bf16 1065369472, %v4332
    %v4334 = vrcp.bf16.pop %v4319
    %v4335 = vmul.bf16 1065369472, %v4334
    %v4336 = vunpack.c.l.bf16 %v4321
    %v4337 = vunpack.c.l.bf16 %v4323
    %v4338 = vunpack.c.l.bf16 %v4325
    %v4339 = vunpack.c.l.bf16 %v4327
    %v4340 = vunpack.c.l.bf16 %v4329
    %v4341 = vunpack.c.l.bf16 %v4331
    %v4342 = vunpack.c.l.bf16 %v4333
    %v4343 = vunpack.c.l.bf16 %v4335
    %v4344 = vxor.u32 %v4249, 2147516416
    %v4345 = vxor.u32 %v4253, 2147516416
    %v4346 = vxor.u32 %v4257, 2147516416
    %v4347 = vxor.u32 %v4261, 2147516416
    %v4348 = vxor.u32 %v4265, 2147516416
    %v4349 = vxor.u32 %v4269, 2147516416
    %v4350 = vxor.u32 %v4273, 2147516416
    %v4351 = vxor.u32 %v4277, 2147516416
    %v4353 = vmul.bf16 %v4344, 1069105081
    %v4354 = vpow.bf16.pop %v4353
    %v4356 = vmul.bf16 %v4345, 1069105081
    %v4357 = vpow.bf16.pop %v4356
    %v4359 = vmul.bf16 %v4346, 1069105081
    %v4360 = vpow.bf16.pop %v4359
    %v4362 = vmul.bf16 %v4347, 1069105081
    %v4363 = vpow.bf16.pop %v4362
    %v4365 = vmul.bf16 %v4348, 1069105081
    %v4366 = vpow.bf16.pop %v4365
    %v4368 = vmul.bf16 %v4349, 1069105081
    %v4369 = vpow.bf16.pop %v4368
    %v4371 = vmul.bf16 %v4350, 1069105081
    %v4372 = vpow.bf16.pop %v4371
    %v4374 = vmul.bf16 %v4351, 1069105081
    %v4375 = vpow.bf16.pop %v4374
    %v4376 = vadd.bf16 %v4354, 1065369472
    %v4377 = vadd.bf16 %v4357, 1065369472
    %v4378 = vadd.bf16 %v4360, 1065369472
    %v4379 = vadd.bf16 %v4363, 1065369472
    %v4380 = vadd.bf16 %v4366, 1065369472
    %v4381 = vadd.bf16 %v4369, 1065369472
    %v4382 = vadd.bf16 %v4372, 1065369472
    %v4383 = vadd.bf16 %v4375, 1065369472
    %v4384 = vrcp.bf16.pop %v4376
    %v4385 = vmul.bf16 1065369472, %v4384
    %v4386 = vrcp.bf16.pop %v4377
    %v4387 = vmul.bf16 1065369472, %v4386
    %v4388 = vrcp.bf16.pop %v4378
    %v4389 = vmul.bf16 1065369472, %v4388
    %v4390 = vrcp.bf16.pop %v4379
    %v4391 = vmul.bf16 1065369472, %v4390
    %v4392 = vrcp.bf16.pop %v4380
    %v4393 = vmul.bf16 1065369472, %v4392
    %v4394 = vrcp.bf16.pop %v4381
    %v4395 = vmul.bf16 1065369472, %v4394
    %v4396 = vrcp.bf16.pop %v4382
    %v4397 = vmul.bf16 1065369472, %v4396
    %v4398 = vrcp.bf16.pop %v4383
    %v4399 = vmul.bf16 1065369472, %v4398
    %v4400 = vunpack.c.l.bf16 %v4385
    %v4401 = vunpack.c.l.bf16 %v4387
    %v4402 = vunpack.c.l.bf16 %v4389
    %v4403 = vunpack.c.l.bf16 %v4391
    %v4404 = vunpack.c.l.bf16 %v4393
    %v4405 = vunpack.c.l.bf16 %v4395
    %v4406 = vunpack.c.l.bf16 %v4397
    %v4407 = vunpack.c.l.bf16 %v4399
    %v4408 = vtanh.bf16.pop %v4250
    %v4409 = vtanh.bf16.pop %v4254
    %v4410 = vtanh.bf16.pop %v4258
    %v4411 = vtanh.bf16.pop %v4262
    %v4412 = vtanh.bf16.pop %v4266
    %v4413 = vtanh.bf16.pop %v4270
    %v4414 = vtanh.bf16.pop %v4274
    %v4415 = vtanh.bf16.pop %v4278
    %v4416 = vunpack.c.l.bf16 %v4408
    %v4417 = vunpack.c.l.bf16 %v4409
    %v4418 = vunpack.c.l.bf16 %v4410
    %v4419 = vunpack.c.l.bf16 %v4411
    %v4420 = vunpack.c.l.bf16 %v4412
    %v4421 = vunpack.c.l.bf16 %v4413
    %v4422 = vunpack.c.l.bf16 %v4414
    %v4423 = vunpack.c.l.bf16 %v4415
    %v4424 = vxor.u32 %v4251, 2147516416
    %v4425 = vxor.u32 %v4255, 2147516416
    %v4426 = vxor.u32 %v4259, 2147516416
    %v4427 = vxor.u32 %v4263, 2147516416
    %v4428 = vxor.u32 %v4267, 2147516416
    %v4429 = vxor.u32 %v4271, 2147516416
    %v4430 = vxor.u32 %v4275, 2147516416
    %v4431 = vxor.u32 %v4279, 2147516416
    %v4433 = vmul.bf16 %v4424, 1069105081
    %v4434 = vpow.bf16.pop %v4433
    %v4436 = vmul.bf16 %v4425, 1069105081
    %v4437 = vpow.bf16.pop %v4436
    %v4439 = vmul.bf16 %v4426, 1069105081
    %v4440 = vpow.bf16.pop %v4439
    %v4442 = vmul.bf16 %v4427, 1069105081
    %v4443 = vpow.bf16.pop %v4442
    %v4445 = vmul.bf16 %v4428, 1069105081
    %v4446 = vpow.bf16.pop %v4445
    %v4448 = vmul.bf16 %v4429, 1069105081
    %v4449 = vpow.bf16.pop %v4448
    %v4451 = vmul.bf16 %v4430, 1069105081
    %v4452 = vpow.bf16.pop %v4451
    %v4454 = vmul.bf16 %v4431, 1069105081
    %v4455 = vpow.bf16.pop %v4454
    %v4456 = vadd.bf16 %v4434, 1065369472
    %v4457 = vadd.bf16 %v4437, 1065369472
    %v4458 = vadd.bf16 %v4440, 1065369472
    %v4459 = vadd.bf16 %v4443, 1065369472
    %v4460 = vadd.bf16 %v4446, 1065369472
    %v4461 = vadd.bf16 %v4449, 1065369472
    %v4462 = vadd.bf16 %v4452, 1065369472
    %v4463 = vadd.bf16 %v4455, 1065369472
    %v4464 = vrcp.bf16.pop %v4456
    %v4465 = vmul.bf16 1065369472, %v4464
    %v4466 = vrcp.bf16.pop %v4457
    %v4467 = vmul.bf16 1065369472, %v4466
    %v4468 = vrcp.bf16.pop %v4458
    %v4469 = vmul.bf16 1065369472, %v4468
    %v4470 = vrcp.bf16.pop %v4459
    %v4471 = vmul.bf16 1065369472, %v4470
    %v4472 = vrcp.bf16.pop %v4460
    %v4473 = vmul.bf16 1065369472, %v4472
    %v4474 = vrcp.bf16.pop %v4461
    %v4475 = vmul.bf16 1065369472, %v4474
    %v4476 = vrcp.bf16.pop %v4462
    %v4477 = vmul.bf16 1065369472, %v4476
    %v4478 = vrcp.bf16.pop %v4463
    %v4479 = vmul.bf16 1065369472, %v4478
    %v4480 = vunpack.c.l.bf16 %v4465
    %v4481 = vunpack.c.l.bf16 %v4467
    %v4482 = vunpack.c.l.bf16 %v4469
    %v4483 = vunpack.c.l.bf16 %v4471
    %v4484 = vunpack.c.l.bf16 %v4473
    %v4485 = vunpack.c.l.bf16 %v4475
    %v4486 = vunpack.c.l.bf16 %v4477
    %v4487 = vunpack.c.l.bf16 %v4479
    %v4496 = vrot.slane %v4006, 7
    %v4497 = vrot.slane %v4007, 7
    %v4498 = vrot.slane %v4008, 7
    %v4499 = vrot.slane %v4009, 7
    %v4500 = vrot.slane %v4010, 7
    %v4501 = vrot.slane %v4011, 7
    %v4502 = vrot.slane %v4012, 7
    %v4503 = vrot.slane %v4013, 7
    %v4512 = vmul.f32 %v4400, %v4496
    %v4513 = vmul.f32 %v4401, %v4497
    %v4514 = vmul.f32 %v4402, %v4498
    %v4515 = vmul.f32 %v4403, %v4499
    %v4516 = vmul.f32 %v4404, %v4500
    %v4517 = vmul.f32 %v4405, %v4501
    %v4518 = vmul.f32 %v4406, %v4502
    %v4519 = vmul.f32 %v4407, %v4503
    %v4520 = vmul.f32 %v4336, %v4416
    %v4521 = vmul.f32 %v4337, %v4417
    %v4522 = vmul.f32 %v4338, %v4418
    %v4523 = vmul.f32 %v4339, %v4419
    %v4524 = vmul.f32 %v4340, %v4420
    %v4525 = vmul.f32 %v4341, %v4421
    %v4526 = vmul.f32 %v4342, %v4422
    %v4527 = vmul.f32 %v4343, %v4423
    %v4528 = vadd.f32 %v4512, %v4520
    %v4529 = vadd.f32 %v4513, %v4521
    %v4530 = vadd.f32 %v4514, %v4522
    %v4531 = vadd.f32 %v4515, %v4523
    %v4532 = vadd.f32 %v4516, %v4524
    %v4533 = vadd.f32 %v4517, %v4525
    %v4534 = vadd.f32 %v4518, %v4526
    %v4535 = vadd.f32 %v4519, %v4527
    %v4536 = vtanh.pop %v4528
    %v4537 = vtanh.pop %v4529
    %v4538 = vtanh.pop %v4530
    %v4539 = vtanh.pop %v4531
    %v4540 = vtanh.pop %v4532
    %v4541 = vtanh.pop %v4533
    %v4542 = vtanh.pop %v4534
    %v4543 = vtanh.pop %v4535
    %v4544 = vmul.f32 %v4480, %v4536
    %v4545 = vmul.f32 %v4481, %v4537
    %v4546 = vmul.f32 %v4482, %v4538
    %v4547 = vmul.f32 %v4483, %v4539
    %v4548 = vmul.f32 %v4484, %v4540
    %v4549 = vmul.f32 %v4485, %v4541
    %v4550 = vmul.f32 %v4486, %v4542
    %v4551 = vmul.f32 %v4487, %v4543
    %v4552 = vpack.c.bf16 %v4544, %v4544
    %v4553 = vpack.c.bf16 %v4545, %v4545
    %v4554 = vpack.c.bf16 %v4546, %v4546
    %v4555 = vpack.c.bf16 %v4547, %v4547
    %v4556 = vpack.c.bf16 %v4548, %v4548
    %v4557 = vpack.c.bf16 %v4549, %v4549
    %v4558 = vpack.c.bf16 %v4550, %v4550
    %v4559 = vpack.c.bf16 %v4551, %v4551
    %v4568 = vunpack.c.l.b16 %v4552
    %v4569 = vunpack.c.l.b16 %v4553
    %v4570 = vunpack.c.l.b16 %v4554
    %v4571 = vunpack.c.l.b16 %v4555
    %v4572 = vunpack.c.l.b16 %v4556
    %v4573 = vunpack.c.l.b16 %v4557
    %v4574 = vunpack.c.l.b16 %v4558
    %v4575 = vunpack.c.l.b16 %v4559
    %v4576 = vrot.slane %v4568, 6
    %v4577 = vrot.slane %v4569, 5
    %v4578 = vsel %vm1438, %v4577, %v4576
    %v4579 = vrot.slane %v4570, 4
    %v4580 = vsel %vm1441, %v4579, %v4578
    %v4581 = vrot.slane %v4571, 3
    %v4582 = vsel %vm1444, %v4581, %v4580
    %v4583 = vrot.slane %v4572, 2
    %v4584 = vsel %vm1447, %v4583, %v4582
    %v4585 = vrot.slane %v4573, 1
    %v4586 = vsel %vm1450, %v4585, %v4584
    %v4587 = vsel %vm1453, %v4574, %v4586
    %v4588 = vrot.slane %v4575, 7
    %v4589 = vsel %vm1456, %v4588, %v4587
    %v4590 = vpack.c.b16 %v4589, %v4589
    %4592 = vmatprep.subr.bf16.mxu0 %v892
    %4593 = vmatpush1.bf16.msra.mxu0 %v891
    %4594 = vmatprep.subr.bf16.mxu0 %v896
    %4595 = vmatpush1.bf16.msra.mxu0 %v895
    %4596 = vmatprep.subr.bf16.mxu0 %v900
    %4597 = vmatpush1.bf16.msra.mxu0 %v899
    %4598 = vmatprep.subr.bf16.mxu0 %v904
    %4599 = vmatpush1.bf16.msra.mxu0 %v903
    %4600 = vmatprep.subr.bf16.mxu0 %v908
    %4601 = vmatpush1.bf16.msra.mxu0 %v907
    %4602 = vmatprep.subr.bf16.mxu0 %v912
    %4603 = vmatpush1.bf16.msra.mxu0 %v911
    %4604 = vmatprep.subr.bf16.mxu0 %v916
    %4605 = vmatpush1.bf16.msra.mxu0 %v915
    %4606 = vmatprep.subr.bf16.mxu0 %v920
    %4607 = vmatpush1.bf16.msra.mxu0 %v919
    %4608 = vmatprep.subr.bf16.mxu0 0
    %4609 = vmatpush1.bf16.msra.mxu0 0
    %4610 = vmatprep.subr.bf16.mxu0 0
    %4611 = vmatpush1.bf16.msra.mxu0 0
    %4612 = vmatprep.subr.bf16.mxu0 0
    %4613 = vmatpush1.bf16.msra.mxu0 0
    %4614 = vmatprep.subr.bf16.mxu0 0
    %4615 = vmatpush1.bf16.msra.mxu0 0
    %4616 = vmatprep.subr.bf16.mxu0 0
    %4617 = vmatpush1.bf16.msra.mxu0 0
    %4618 = vmatprep.subr.bf16.mxu0 0
    %4619 = vmatpush1.bf16.msra.mxu0 0
    %4620 = vmatprep.subr.bf16.mxu0 0
    %4621 = vmatpush1.bf16.msra.mxu0 0
    %4622 = vmatprep.subr.bf16.mxu0 0
    %4623 = vmatpush1.bf16.msra.mxu0 0
    %4624 = vmatprep.mubr.bf16.mxu0 0
    %4625 = vmatmul.mubr.bf16.gmra.mrb[0].mxu0 %v4590
    %v4626 = vpop.f32.mrb[0].mxu0
    %v4627 = vadd.f32 0.0, %v4626
    %v4628 = vpop.f32.mrb[0].mxu0
    %v4629 = vadd.f32 0.0, %v4628
    %v4630 = vpop.f32.mrb[0].mxu0
    %v4631 = vpop.f32.mrb[0].mxu0
    %4632 = vdwg.mxu0
    %4633 = vmatprep.subr.bf16.mxu0 %v894
    %4634 = vmatpush1.bf16.msra.mxu0 %v893
    %4635 = vmatprep.subr.bf16.mxu0 %v898
    %4636 = vmatpush1.bf16.msra.mxu0 %v897
    %4637 = vmatprep.subr.bf16.mxu0 %v902
    %4638 = vmatpush1.bf16.msra.mxu0 %v901
    %4639 = vmatprep.subr.bf16.mxu0 %v906
    %4640 = vmatpush1.bf16.msra.mxu0 %v905
    %4641 = vmatprep.subr.bf16.mxu0 %v910
    %4642 = vmatpush1.bf16.msra.mxu0 %v909
    %4643 = vmatprep.subr.bf16.mxu0 %v914
    %4644 = vmatpush1.bf16.msra.mxu0 %v913
    %4645 = vmatprep.subr.bf16.mxu0 %v918
    %4646 = vmatpush1.bf16.msra.mxu0 %v917
    %4647 = vmatprep.subr.bf16.mxu0 %v922
    %4648 = vmatpush1.bf16.msra.mxu0 %v921
    %4649 = vmatprep.subr.bf16.mxu0 0
    %4650 = vmatpush1.bf16.msra.mxu0 0
    %4651 = vmatprep.subr.bf16.mxu0 0
    %4652 = vmatpush1.bf16.msra.mxu0 0
    %4653 = vmatprep.subr.bf16.mxu0 0
    %4654 = vmatpush1.bf16.msra.mxu0 0
    %4655 = vmatprep.subr.bf16.mxu0 0
    %4656 = vmatpush1.bf16.msra.mxu0 0
    %4657 = vmatprep.subr.bf16.mxu0 0
    %4658 = vmatpush1.bf16.msra.mxu0 0
    %4659 = vmatprep.subr.bf16.mxu0 0
    %4660 = vmatpush1.bf16.msra.mxu0 0
    %4661 = vmatprep.subr.bf16.mxu0 0
    %4662 = vmatpush1.bf16.msra.mxu0 0
    %4663 = vmatprep.subr.bf16.mxu0 0
    %4664 = vmatpush1.bf16.msra.mxu0 0
    %4665 = vmatprep.mubr.bf16.mxu0 0
    %4666 = vmatmul.mubr.bf16.gmra.mrb[0].mxu0 %v4590
    %v4667 = vpop.f32.mrb[0].mxu0
    %v4668 = vadd.f32 0.0, %v4667
    %v4669 = vpop.f32.mrb[0].mxu0
    %v4670 = vadd.f32 0.0, %v4669
    %v4671 = vpop.f32.mrb[0].mxu0
    %v4672 = vpop.f32.mrb[0].mxu0
    %4673 = vdwg.mxu0
    %v4678 = vrot.slane %v4627, 1
    %v4679 = vrot.slane %v4629, 1
    %v4680 = vrot.slane %v4668, 1
    %v4681 = vrot.slane %v4670, 1
    %v4682 = vrot.slane %v4627, 2
    %v4683 = vrot.slane %v4629, 2
    %v4684 = vrot.slane %v4668, 2
    %v4685 = vrot.slane %v4670, 2
    %v4686 = vrot.slane %v4627, 3
    %v4687 = vrot.slane %v4629, 3
    %v4688 = vrot.slane %v4668, 3
    %v4689 = vrot.slane %v4670, 3
    %v4690 = vrot.slane %v4627, 4
    %v4691 = vrot.slane %v4629, 4
    %v4692 = vrot.slane %v4668, 4
    %v4693 = vrot.slane %v4670, 4
    %v4694 = vrot.slane %v4627, 5
    %v4695 = vrot.slane %v4629, 5
    %v4696 = vrot.slane %v4668, 5
    %v4697 = vrot.slane %v4670, 5
    %v4698 = vrot.slane %v4627, 6
    %v4699 = vrot.slane %v4629, 6
    %v4700 = vrot.slane %v4668, 6
    %v4701 = vrot.slane %v4670, 6
    %v4702 = vrot.slane %v4627, 7
    %v4703 = vrot.slane %v4629, 7
    %v4704 = vrot.slane %v4668, 7
    %v4705 = vrot.slane %v4670, 7
    %v4738 = vadd.f32 %v652, %v4678
    %v4739 = vadd.f32 %v654, %v4679
    %v4740 = vadd.f32 %v725, %v4680
    %v4741 = vadd.f32 %v727, %v4681
    %v4742 = vadd.f32 %v656, %v4682
    %v4743 = vadd.f32 %v658, %v4683
    %v4744 = vadd.f32 %v729, %v4684
    %v4745 = vadd.f32 %v731, %v4685
    %v4746 = vadd.f32 %v662, %v4686
    %v4747 = vadd.f32 %v664, %v4687
    %v4748 = vadd.f32 %v735, %v4688
    %v4749 = vadd.f32 %v737, %v4689
    %v4750 = vadd.f32 %v666, %v4690
    %v4751 = vadd.f32 %v668, %v4691
    %v4752 = vadd.f32 %v739, %v4692
    %v4753 = vadd.f32 %v741, %v4693
    %v4754 = vadd.f32 %v672, %v4694
    %v4755 = vadd.f32 %v674, %v4695
    %v4756 = vadd.f32 %v745, %v4696
    %v4757 = vadd.f32 %v747, %v4697
    %v4758 = vadd.f32 %v676, %v4698
    %v4759 = vadd.f32 %v678, %v4699
    %v4760 = vadd.f32 %v749, %v4700
    %v4761 = vadd.f32 %v751, %v4701
    %v4762 = vadd.f32 %v682, %v4702
    %v4763 = vadd.f32 %v684, %v4703
    %v4764 = vadd.f32 %v755, %v4704
    %v4765 = vadd.f32 %v757, %v4705
    %v4766 = vadd.f32 %v686, %v4627
    %v4767 = vadd.f32 %v688, %v4629
    %v4768 = vadd.f32 %v759, %v4668
    %v4769 = vadd.f32 %v761, %v4670
    %v4770 = vpack.c.bf16 %v4738, %v4738
    %v4771 = vpack.c.bf16 %v4739, %v4739
    %v4772 = vpack.c.bf16 %v4740, %v4740
    %v4773 = vpack.c.bf16 %v4741, %v4741
    %v4774 = vpack.c.bf16 %v4742, %v4742
    %v4775 = vpack.c.bf16 %v4743, %v4743
    %v4776 = vpack.c.bf16 %v4744, %v4744
    %v4777 = vpack.c.bf16 %v4745, %v4745
    %v4778 = vpack.c.bf16 %v4746, %v4746
    %v4779 = vpack.c.bf16 %v4747, %v4747
    %v4780 = vpack.c.bf16 %v4748, %v4748
    %v4781 = vpack.c.bf16 %v4749, %v4749
    %v4782 = vpack.c.bf16 %v4750, %v4750
    %v4783 = vpack.c.bf16 %v4751, %v4751
    %v4784 = vpack.c.bf16 %v4752, %v4752
    %v4785 = vpack.c.bf16 %v4753, %v4753
    %v4786 = vpack.c.bf16 %v4754, %v4754
    %v4787 = vpack.c.bf16 %v4755, %v4755
    %v4788 = vpack.c.bf16 %v4756, %v4756
    %v4789 = vpack.c.bf16 %v4757, %v4757
    %v4790 = vpack.c.bf16 %v4758, %v4758
    %v4791 = vpack.c.bf16 %v4759, %v4759
    %v4792 = vpack.c.bf16 %v4760, %v4760
    %v4793 = vpack.c.bf16 %v4761, %v4761
    %v4794 = vpack.c.bf16 %v4762, %v4762
    %v4795 = vpack.c.bf16 %v4763, %v4763
    %v4796 = vpack.c.bf16 %v4764, %v4764
    %v4797 = vpack.c.bf16 %v4765, %v4765
    %v4798 = vpack.c.bf16 %v4766, %v4766
    %v4799 = vpack.c.bf16 %v4767, %v4767
    %v4800 = vpack.c.bf16 %v4768, %v4768
    %v4801 = vpack.c.bf16 %v4769, %v4769
    %v4802 = vxor.u32 %v4770, 2147516416
    %v4803 = vxor.u32 %v4774, 2147516416
    %v4804 = vxor.u32 %v4778, 2147516416
    %v4805 = vxor.u32 %v4782, 2147516416
    %v4806 = vxor.u32 %v4786, 2147516416
    %v4807 = vxor.u32 %v4790, 2147516416
    %v4808 = vxor.u32 %v4794, 2147516416
    %v4809 = vxor.u32 %v4798, 2147516416
    %v4811 = vmul.bf16 %v4802, 1069105081
    %v4812 = vpow.bf16.pop %v4811
    %v4814 = vmul.bf16 %v4803, 1069105081
    %v4815 = vpow.bf16.pop %v4814
    %v4817 = vmul.bf16 %v4804, 1069105081
    %v4818 = vpow.bf16.pop %v4817
    %v4820 = vmul.bf16 %v4805, 1069105081
    %v4821 = vpow.bf16.pop %v4820
    %v4823 = vmul.bf16 %v4806, 1069105081
    %v4824 = vpow.bf16.pop %v4823
    %v4826 = vmul.bf16 %v4807, 1069105081
    %v4827 = vpow.bf16.pop %v4826
    %v4829 = vmul.bf16 %v4808, 1069105081
    %v4830 = vpow.bf16.pop %v4829
    %v4832 = vmul.bf16 %v4809, 1069105081
    %v4833 = vpow.bf16.pop %v4832
    %v4834 = vadd.bf16 %v4812, 1065369472
    %v4835 = vadd.bf16 %v4815, 1065369472
    %v4836 = vadd.bf16 %v4818, 1065369472
    %v4837 = vadd.bf16 %v4821, 1065369472
    %v4838 = vadd.bf16 %v4824, 1065369472
    %v4839 = vadd.bf16 %v4827, 1065369472
    %v4840 = vadd.bf16 %v4830, 1065369472
    %v4841 = vadd.bf16 %v4833, 1065369472
    %v4842 = vrcp.bf16.pop %v4834
    %v4843 = vmul.bf16 1065369472, %v4842
    %v4844 = vrcp.bf16.pop %v4835
    %v4845 = vmul.bf16 1065369472, %v4844
    %v4846 = vrcp.bf16.pop %v4836
    %v4847 = vmul.bf16 1065369472, %v4846
    %v4848 = vrcp.bf16.pop %v4837
    %v4849 = vmul.bf16 1065369472, %v4848
    %v4850 = vrcp.bf16.pop %v4838
    %v4851 = vmul.bf16 1065369472, %v4850
    %v4852 = vrcp.bf16.pop %v4839
    %v4853 = vmul.bf16 1065369472, %v4852
    %v4854 = vrcp.bf16.pop %v4840
    %v4855 = vmul.bf16 1065369472, %v4854
    %v4856 = vrcp.bf16.pop %v4841
    %v4857 = vmul.bf16 1065369472, %v4856
    %v4858 = vunpack.c.l.bf16 %v4843
    %v4859 = vunpack.c.l.bf16 %v4845
    %v4860 = vunpack.c.l.bf16 %v4847
    %v4861 = vunpack.c.l.bf16 %v4849
    %v4862 = vunpack.c.l.bf16 %v4851
    %v4863 = vunpack.c.l.bf16 %v4853
    %v4864 = vunpack.c.l.bf16 %v4855
    %v4865 = vunpack.c.l.bf16 %v4857
    %v4866 = vxor.u32 %v4771, 2147516416
    %v4867 = vxor.u32 %v4775, 2147516416
    %v4868 = vxor.u32 %v4779, 2147516416
    %v4869 = vxor.u32 %v4783, 2147516416
    %v4870 = vxor.u32 %v4787, 2147516416
    %v4871 = vxor.u32 %v4791, 2147516416
    %v4872 = vxor.u32 %v4795, 2147516416
    %v4873 = vxor.u32 %v4799, 2147516416
    %v4875 = vmul.bf16 %v4866, 1069105081
    %v4876 = vpow.bf16.pop %v4875
    %v4878 = vmul.bf16 %v4867, 1069105081
    %v4879 = vpow.bf16.pop %v4878
    %v4881 = vmul.bf16 %v4868, 1069105081
    %v4882 = vpow.bf16.pop %v4881
    %v4884 = vmul.bf16 %v4869, 1069105081
    %v4885 = vpow.bf16.pop %v4884
    %v4887 = vmul.bf16 %v4870, 1069105081
    %v4888 = vpow.bf16.pop %v4887
    %v4890 = vmul.bf16 %v4871, 1069105081
    %v4891 = vpow.bf16.pop %v4890
    %v4893 = vmul.bf16 %v4872, 1069105081
    %v4894 = vpow.bf16.pop %v4893
    %v4896 = vmul.bf16 %v4873, 1069105081
    %v4897 = vpow.bf16.pop %v4896
    %v4898 = vadd.bf16 %v4876, 1065369472
    %v4899 = vadd.bf16 %v4879, 1065369472
    %v4900 = vadd.bf16 %v4882, 1065369472
    %v4901 = vadd.bf16 %v4885, 1065369472
    %v4902 = vadd.bf16 %v4888, 1065369472
    %v4903 = vadd.bf16 %v4891, 1065369472
    %v4904 = vadd.bf16 %v4894, 1065369472
    %v4905 = vadd.bf16 %v4897, 1065369472
    %v4906 = vrcp.bf16.pop %v4898
    %v4907 = vmul.bf16 1065369472, %v4906
    %v4908 = vrcp.bf16.pop %v4899
    %v4909 = vmul.bf16 1065369472, %v4908
    %v4910 = vrcp.bf16.pop %v4900
    %v4911 = vmul.bf16 1065369472, %v4910
    %v4912 = vrcp.bf16.pop %v4901
    %v4913 = vmul.bf16 1065369472, %v4912
    %v4914 = vrcp.bf16.pop %v4902
    %v4915 = vmul.bf16 1065369472, %v4914
    %v4916 = vrcp.bf16.pop %v4903
    %v4917 = vmul.bf16 1065369472, %v4916
    %v4918 = vrcp.bf16.pop %v4904
    %v4919 = vmul.bf16 1065369472, %v4918
    %v4920 = vrcp.bf16.pop %v4905
    %v4921 = vmul.bf16 1065369472, %v4920
    %v4922 = vunpack.c.l.bf16 %v4907
    %v4923 = vunpack.c.l.bf16 %v4909
    %v4924 = vunpack.c.l.bf16 %v4911
    %v4925 = vunpack.c.l.bf16 %v4913
    %v4926 = vunpack.c.l.bf16 %v4915
    %v4927 = vunpack.c.l.bf16 %v4917
    %v4928 = vunpack.c.l.bf16 %v4919
    %v4929 = vunpack.c.l.bf16 %v4921
    %v4930 = vtanh.bf16.pop %v4772
    %v4931 = vtanh.bf16.pop %v4776
    %v4932 = vtanh.bf16.pop %v4780
    %v4933 = vtanh.bf16.pop %v4784
    %v4934 = vtanh.bf16.pop %v4788
    %v4935 = vtanh.bf16.pop %v4792
    %v4936 = vtanh.bf16.pop %v4796
    %v4937 = vtanh.bf16.pop %v4800
    %v4938 = vunpack.c.l.bf16 %v4930
    %v4939 = vunpack.c.l.bf16 %v4931
    %v4940 = vunpack.c.l.bf16 %v4932
    %v4941 = vunpack.c.l.bf16 %v4933
    %v4942 = vunpack.c.l.bf16 %v4934
    %v4943 = vunpack.c.l.bf16 %v4935
    %v4944 = vunpack.c.l.bf16 %v4936
    %v4945 = vunpack.c.l.bf16 %v4937
    %v4946 = vxor.u32 %v4773, 2147516416
    %v4947 = vxor.u32 %v4777, 2147516416
    %v4948 = vxor.u32 %v4781, 2147516416
    %v4949 = vxor.u32 %v4785, 2147516416
    %v4950 = vxor.u32 %v4789, 2147516416
    %v4951 = vxor.u32 %v4793, 2147516416
    %v4952 = vxor.u32 %v4797, 2147516416
    %v4953 = vxor.u32 %v4801, 2147516416
    %v4955 = vmul.bf16 %v4946, 1069105081
    %v4956 = vpow.bf16.pop %v4955
    %v4958 = vmul.bf16 %v4947, 1069105081
    %v4959 = vpow.bf16.pop %v4958
    %v4961 = vmul.bf16 %v4948, 1069105081
    %v4962 = vpow.bf16.pop %v4961
    %v4964 = vmul.bf16 %v4949, 1069105081
    %v4965 = vpow.bf16.pop %v4964
    %v4967 = vmul.bf16 %v4950, 1069105081
    %v4968 = vpow.bf16.pop %v4967
    %v4970 = vmul.bf16 %v4951, 1069105081
    %v4971 = vpow.bf16.pop %v4970
    %v4973 = vmul.bf16 %v4952, 1069105081
    %v4974 = vpow.bf16.pop %v4973
    %v4976 = vmul.bf16 %v4953, 1069105081
    %v4977 = vpow.bf16.pop %v4976
    %v4978 = vadd.bf16 %v4956, 1065369472
    %v4979 = vadd.bf16 %v4959, 1065369472
    %v4980 = vadd.bf16 %v4962, 1065369472
    %v4981 = vadd.bf16 %v4965, 1065369472
    %v4982 = vadd.bf16 %v4968, 1065369472
    %v4983 = vadd.bf16 %v4971, 1065369472
    %v4984 = vadd.bf16 %v4974, 1065369472
    %v4985 = vadd.bf16 %v4977, 1065369472
    %v4986 = vrcp.bf16.pop %v4978
    %v4987 = vmul.bf16 1065369472, %v4986
    %v4988 = vrcp.bf16.pop %v4979
    %v4989 = vmul.bf16 1065369472, %v4988
    %v4990 = vrcp.bf16.pop %v4980
    %v4991 = vmul.bf16 1065369472, %v4990
    %v4992 = vrcp.bf16.pop %v4981
    %v4993 = vmul.bf16 1065369472, %v4992
    %v4994 = vrcp.bf16.pop %v4982
    %v4995 = vmul.bf16 1065369472, %v4994
    %v4996 = vrcp.bf16.pop %v4983
    %v4997 = vmul.bf16 1065369472, %v4996
    %v4998 = vrcp.bf16.pop %v4984
    %v4999 = vmul.bf16 1065369472, %v4998
    %v5000 = vrcp.bf16.pop %v4985
    %v5001 = vmul.bf16 1065369472, %v5000
    %v5002 = vunpack.c.l.bf16 %v4987
    %v5003 = vunpack.c.l.bf16 %v4989
    %v5004 = vunpack.c.l.bf16 %v4991
    %v5005 = vunpack.c.l.bf16 %v4993
    %v5006 = vunpack.c.l.bf16 %v4995
    %v5007 = vunpack.c.l.bf16 %v4997
    %v5008 = vunpack.c.l.bf16 %v4999
    %v5009 = vunpack.c.l.bf16 %v5001
    %v5018 = vrot.slane %v4528, 7
    %v5019 = vrot.slane %v4529, 7
    %v5020 = vrot.slane %v4530, 7
    %v5021 = vrot.slane %v4531, 7
    %v5022 = vrot.slane %v4532, 7
    %v5023 = vrot.slane %v4533, 7
    %v5024 = vrot.slane %v4534, 7
    %v5025 = vrot.slane %v4535, 7
    %v5034 = vmul.f32 %v4922, %v5018
    %v5035 = vmul.f32 %v4923, %v5019
    %v5036 = vmul.f32 %v4924, %v5020
    %v5037 = vmul.f32 %v4925, %v5021
    %v5038 = vmul.f32 %v4926, %v5022
    %v5039 = vmul.f32 %v4927, %v5023
    %v5040 = vmul.f32 %v4928, %v5024
    %v5041 = vmul.f32 %v4929, %v5025
    %v5042 = vmul.f32 %v4858, %v4938
    %v5043 = vmul.f32 %v4859, %v4939
    %v5044 = vmul.f32 %v4860, %v4940
    %v5045 = vmul.f32 %v4861, %v4941
    %v5046 = vmul.f32 %v4862, %v4942
    %v5047 = vmul.f32 %v4863, %v4943
    %v5048 = vmul.f32 %v4864, %v4944
    %v5049 = vmul.f32 %v4865, %v4945
    %v5050 = vadd.f32 %v5034, %v5042
    %v5051 = vadd.f32 %v5035, %v5043
    %v5052 = vadd.f32 %v5036, %v5044
    %v5053 = vadd.f32 %v5037, %v5045
    %v5054 = vadd.f32 %v5038, %v5046
    %v5055 = vadd.f32 %v5039, %v5047
    %v5056 = vadd.f32 %v5040, %v5048
    %v5057 = vadd.f32 %v5041, %v5049
    %v5058 = vtanh.pop %v5050
    %v5059 = vtanh.pop %v5051
    %v5060 = vtanh.pop %v5052
    %v5061 = vtanh.pop %v5053
    %v5062 = vtanh.pop %v5054
    %v5063 = vtanh.pop %v5055
    %v5064 = vtanh.pop %v5056
    %v5065 = vtanh.pop %v5057
    %v5066 = vmul.f32 %v5002, %v5058
    %v5067 = vmul.f32 %v5003, %v5059
    %v5068 = vmul.f32 %v5004, %v5060
    %v5069 = vmul.f32 %v5005, %v5061
    %v5070 = vmul.f32 %v5006, %v5062
    %v5071 = vmul.f32 %v5007, %v5063
    %v5072 = vmul.f32 %v5008, %v5064
    %v5073 = vmul.f32 %v5009, %v5065
    %v5074 = vld [vmem:[#allocation6] sm:$0xff]
    %v5075 = vpack.c.bf16 %v5074, %v5074
    %v5076 = vld [vmem:[#allocation12] sm:$0xff]
    %v5077 = vld [vmem:[#allocation12 + $0x8] sm:$0xff]
    %v5078 = vld [vmem:[#allocation12 + $0x10] sm:$0xff]
    %v5079 = vld [vmem:[#allocation12 + $0x18] sm:$0xff]
    %v5080 = vld [vmem:[#allocation12 + $0x20] sm:$0xff]
    %v5081 = vld [vmem:[#allocation12 + $0x28] sm:$0xff]
    %v5082 = vld [vmem:[#allocation12 + $0x30] sm:$0xff]
    %v5083 = vld [vmem:[#allocation12 + $0x38] sm:$0xff]
    %v5084 = vld [vmem:[#allocation12 + $0x40] sm:$0xff]
    %v5085 = vld [vmem:[#allocation12 + $0x48] sm:$0xff]
    %v5086 = vld [vmem:[#allocation12 + $0x50] sm:$0xff]
    %v5087 = vld [vmem:[#allocation12 + $0x58] sm:$0xff]
    %v5088 = vld [vmem:[#allocation12 + $0x60] sm:$0xff]
    %v5089 = vld [vmem:[#allocation12 + $0x68] sm:$0xff]
    %v5090 = vld [vmem:[#allocation12 + $0x70] sm:$0xff]
    %v5091 = vld [vmem:[#allocation12 + $0x78] sm:$0xff]
    %v5092 = vpack.c.bf16 %v5066, %v5066
    %v5093 = vpack.c.bf16 %v5067, %v5067
    %v5094 = vpack.c.bf16 %v5068, %v5068
    %v5095 = vpack.c.bf16 %v5069, %v5069
    %v5096 = vpack.c.bf16 %v5070, %v5070
    %v5097 = vpack.c.bf16 %v5071, %v5071
    %v5098 = vpack.c.bf16 %v5072, %v5072
    %v5099 = vpack.c.bf16 %v5073, %v5073
    %v5100 = vld [vmem:[#allocation14] sm:$0xff]
    %v5101 = vld [vmem:[#allocation14 + $0x8] sm:$0xff]
    %v5102 = vld [vmem:[#allocation14 + $0x10] sm:$0xff]
    %v5103 = vld [vmem:[#allocation14 + $0x18] sm:$0xff]
    %v5104 = vld [vmem:[#allocation14 + $0x20] sm:$0xff]
    %v5105 = vld [vmem:[#allocation14 + $0x28] sm:$0xff]
    %v5106 = vld [vmem:[#allocation14 + $0x30] sm:$0xff]
    %v5107 = vld [vmem:[#allocation14 + $0x38] sm:$0xff]
    %v5108 = vld [vmem:[#allocation14 + $0x40] sm:$0xff]
    %v5109 = vld [vmem:[#allocation14 + $0x48] sm:$0xff]
    %v5110 = vld [vmem:[#allocation14 + $0x50] sm:$0xff]
    %v5111 = vld [vmem:[#allocation14 + $0x58] sm:$0xff]
    %v5112 = vld [vmem:[#allocation14 + $0x60] sm:$0xff]
    %v5113 = vld [vmem:[#allocation14 + $0x68] sm:$0xff]
    %v5114 = vld [vmem:[#allocation14 + $0x70] sm:$0xff]
    %v5115 = vld [vmem:[#allocation14 + $0x78] sm:$0xff]
    %v5116 = vld [vmem:[#allocation14 + $0x80] sm:$0xff]
    %v5117 = vld [vmem:[#allocation14 + $0x88] sm:$0xff]
    %v5118 = vld [vmem:[#allocation14 + $0x90] sm:$0xff]
    %v5119 = vld [vmem:[#allocation14 + $0x98] sm:$0xff]
    %v5120 = vld [vmem:[#allocation14 + $0xa0] sm:$0xff]
    %v5121 = vld [vmem:[#allocation14 + $0xa8] sm:$0xff]
    %v5122 = vld [vmem:[#allocation14 + $0xb0] sm:$0xff]
    %v5123 = vld [vmem:[#allocation14 + $0xb8] sm:$0xff]
    %v5124 = vld [vmem:[#allocation14 + $0xc0] sm:$0xff]
    %v5125 = vld [vmem:[#allocation14 + $0xc8] sm:$0xff]
    %v5126 = vld [vmem:[#allocation14 + $0xd0] sm:$0xff]
    %v5127 = vld [vmem:[#allocation14 + $0xd8] sm:$0xff]
    %v5128 = vld [vmem:[#allocation14 + $0xe0] sm:$0xff]
    %v5129 = vld [vmem:[#allocation14 + $0xe8] sm:$0xff]
    %v5130 = vld [vmem:[#allocation14 + $0xf0] sm:$0xff]
    %v5131 = vld [vmem:[#allocation14 + $0xf8] sm:$0xff]
    %v5140 = vunpack.c.l.b16 %v5092
    %v5141 = vunpack.c.l.b16 %v5093
    %v5142 = vunpack.c.l.b16 %v5094
    %v5143 = vunpack.c.l.b16 %v5095
    %v5144 = vunpack.c.l.b16 %v5096
    %v5145 = vunpack.c.l.b16 %v5097
    %v5146 = vunpack.c.l.b16 %v5098
    %v5147 = vunpack.c.l.b16 %v5099
    %v5148 = vrot.slane %v5140, 7
    %v5149 = vrot.slane %v5141, 6
    %v5150 = vsel %vm1438, %v5149, %v5148
    %v5151 = vrot.slane %v5142, 5
    %v5152 = vsel %vm1441, %v5151, %v5150
    %v5153 = vrot.slane %v5143, 4
    %v5154 = vsel %vm1444, %v5153, %v5152
    %v5155 = vrot.slane %v5144, 3
    %v5156 = vsel %vm1447, %v5155, %v5154
    %v5157 = vrot.slane %v5145, 2
    %v5158 = vsel %vm1450, %v5157, %v5156
    %v5159 = vrot.slane %v5146, 1
    %v5160 = vsel %vm1453, %v5159, %v5158
    %v5161 = vsel %vm1456, %v5147, %v5160
    %v5162 = vpack.c.b16 %v5161, %v5161
    %v5196 = vunpack.c.l.b16 %v5100
    %v5197 = vunpack.c.h.b16 %v5100
    %v5198 = vunpack.c.l.b16 %v5101
    %v5199 = vunpack.c.h.b16 %v5101
    %v5200 = vunpack.c.l.b16 %v5102
    %v5201 = vunpack.c.h.b16 %v5102
    %v5202 = vunpack.c.l.b16 %v5103
    %v5203 = vunpack.c.h.b16 %v5103
    %v5204 = vunpack.c.l.b16 %v5104
    %v5205 = vunpack.c.h.b16 %v5104
    %v5206 = vunpack.c.l.b16 %v5105
    %v5207 = vunpack.c.h.b16 %v5105
    %v5208 = vunpack.c.l.b16 %v5106
    %v5209 = vunpack.c.h.b16 %v5106
    %v5210 = vunpack.c.l.b16 %v5107
    %v5211 = vunpack.c.h.b16 %v5107
    %v5212 = vunpack.c.l.b16 %v5108
    %v5213 = vunpack.c.h.b16 %v5108
    %v5214 = vunpack.c.l.b16 %v5109
    %v5215 = vunpack.c.h.b16 %v5109
    %v5216 = vunpack.c.l.b16 %v5110
    %v5217 = vunpack.c.h.b16 %v5110
    %v5218 = vunpack.c.l.b16 %v5111
    %v5219 = vunpack.c.h.b16 %v5111
    %v5220 = vunpack.c.l.b16 %v5112
    %v5221 = vunpack.c.h.b16 %v5112
    %v5222 = vunpack.c.l.b16 %v5113
    %v5223 = vunpack.c.h.b16 %v5113
    %v5224 = vunpack.c.l.b16 %v5114
    %v5225 = vunpack.c.h.b16 %v5114
    %v5226 = vunpack.c.l.b16 %v5115
    %v5227 = vunpack.c.h.b16 %v5115
    %v5228 = vunpack.c.l.b16 %v5116
    %v5229 = vunpack.c.h.b16 %v5116
    %v5230 = vunpack.c.l.b16 %v5117
    %v5231 = vunpack.c.h.b16 %v5117
    %v5232 = vunpack.c.l.b16 %v5118
    %v5233 = vunpack.c.h.b16 %v5118
    %v5234 = vunpack.c.l.b16 %v5119
    %v5235 = vunpack.c.h.b16 %v5119
    %v5236 = vunpack.c.l.b16 %v5120
    %v5237 = vunpack.c.h.b16 %v5120
    %v5238 = vunpack.c.l.b16 %v5121
    %v5239 = vunpack.c.h.b16 %v5121
    %v5240 = vunpack.c.l.b16 %v5122
    %v5241 = vunpack.c.h.b16 %v5122
    %v5242 = vunpack.c.l.b16 %v5123
    %v5243 = vunpack.c.h.b16 %v5123
    %v5244 = vunpack.c.l.b16 %v5124
    %v5245 = vunpack.c.h.b16 %v5124
    %v5246 = vunpack.c.l.b16 %v5125
    %v5247 = vunpack.c.h.b16 %v5125
    %v5248 = vunpack.c.l.b16 %v5126
    %v5249 = vunpack.c.h.b16 %v5126
    %v5250 = vunpack.c.l.b16 %v5127
    %v5251 = vunpack.c.h.b16 %v5127
    %v5252 = vunpack.c.l.b16 %v5128
    %v5253 = vunpack.c.h.b16 %v5128
    %v5254 = vunpack.c.l.b16 %v5129
    %v5255 = vunpack.c.h.b16 %v5129
    %v5256 = vunpack.c.l.b16 %v5130
    %v5257 = vunpack.c.h.b16 %v5130
    %v5258 = vunpack.c.l.b16 %v5131
    %v5259 = vunpack.c.h.b16 %v5131
    %v5260 = vpack.c.b16 %v5200, %v5196
    %v5261 = vpack.c.b16 %v5201, %v5197
    %v5262 = vpack.c.b16 %v5202, %v5198
    %v5263 = vpack.c.b16 %v5203, %v5199
    %v5264 = vpack.c.b16 %v5208, %v5204
    %v5265 = vpack.c.b16 %v5209, %v5205
    %v5266 = vpack.c.b16 %v5210, %v5206
    %v5267 = vpack.c.b16 %v5211, %v5207
    %v5268 = vpack.c.b16 %v5216, %v5212
    %v5269 = vpack.c.b16 %v5217, %v5213
    %v5270 = vpack.c.b16 %v5218, %v5214
    %v5271 = vpack.c.b16 %v5219, %v5215
    %v5272 = vpack.c.b16 %v5224, %v5220
    %v5273 = vpack.c.b16 %v5225, %v5221
    %v5274 = vpack.c.b16 %v5226, %v5222
    %v5275 = vpack.c.b16 %v5227, %v5223
    %v5276 = vpack.c.b16 %v5232, %v5228
    %v5277 = vpack.c.b16 %v5233, %v5229
    %v5278 = vpack.c.b16 %v5234, %v5230
    %v5279 = vpack.c.b16 %v5235, %v5231
    %v5280 = vpack.c.b16 %v5240, %v5236
    %v5281 = vpack.c.b16 %v5241, %v5237
    %v5282 = vpack.c.b16 %v5242, %v5238
    %v5283 = vpack.c.b16 %v5243, %v5239
    %v5284 = vpack.c.b16 %v5248, %v5244
    %v5285 = vpack.c.b16 %v5249, %v5245
    %v5286 = vpack.c.b16 %v5250, %v5246
    %v5287 = vpack.c.b16 %v5251, %v5247
    %v5288 = vpack.c.b16 %v5256, %v5252
    %v5289 = vpack.c.b16 %v5257, %v5253
    %v5290 = vpack.c.b16 %v5258, %v5254
    %v5291 = vpack.c.b16 %v5259, %v5255
    %5324 = vmatprep.subr.bf16.mxu0 %v5261
    %5325 = vmatpush1.bf16.msra.mxu0 %v5260
    %5326 = vmatprep.subr.bf16.mxu0 %v5265
    %5327 = vmatpush1.bf16.msra.mxu0 %v5264
    %5328 = vmatprep.subr.bf16.mxu0 %v5269
    %5329 = vmatpush1.bf16.msra.mxu0 %v5268
    %5330 = vmatprep.subr.bf16.mxu0 %v5273
    %5331 = vmatpush1.bf16.msra.mxu0 %v5272
    %5332 = vmatprep.subr.bf16.mxu0 %v5277
    %5333 = vmatpush1.bf16.msra.mxu0 %v5276
    %5334 = vmatprep.subr.bf16.mxu0 %v5281
    %5335 = vmatpush1.bf16.msra.mxu0 %v5280
    %5336 = vmatprep.subr.bf16.mxu0 %v5285
    %5337 = vmatpush1.bf16.msra.mxu0 %v5284
    %5338 = vmatprep.subr.bf16.mxu0 %v5289
    %5339 = vmatpush1.bf16.msra.mxu0 %v5288
    %5340 = vmatprep.subr.bf16.mxu0 0
    %5341 = vmatpush1.bf16.msra.mxu0 0
    %5342 = vmatprep.subr.bf16.mxu0 0
    %5343 = vmatpush1.bf16.msra.mxu0 0
    %5344 = vmatprep.subr.bf16.mxu0 0
    %5345 = vmatpush1.bf16.msra.mxu0 0
    %5346 = vmatprep.subr.bf16.mxu0 0
    %5347 = vmatpush1.bf16.msra.mxu0 0
    %5348 = vmatprep.subr.bf16.mxu0 0
    %5349 = vmatpush1.bf16.msra.mxu0 0
    %5350 = vmatprep.subr.bf16.mxu0 0
    %5351 = vmatpush1.bf16.msra.mxu0 0
    %5352 = vmatprep.subr.bf16.mxu0 0
    %5353 = vmatpush1.bf16.msra.mxu0 0
    %5354 = vmatprep.subr.bf16.mxu0 0
    %5355 = vmatpush1.bf16.msra.mxu0 0
    %5356 = vmatprep.mubr.bf16.mxu0 0
    %5357 = vmatmul.mubr.bf16.gmra.mrb[0].mxu0 %v5162
    %v5358 = vpop.f32.mrb[0].mxu0
    %v5359 = vadd.f32 0.0, %v5358
    %v5360 = vpop.f32.mrb[0].mxu0
    %v5361 = vadd.f32 0.0, %v5360
    %v5362 = vpop.f32.mrb[0].mxu0
    %v5363 = vpop.f32.mrb[0].mxu0
    %5364 = vdwg.mxu0
    %5365 = vmatprep.subr.bf16.mxu0 %v5263
    %5366 = vmatpush1.bf16.msra.mxu0 %v5262
    %5367 = vmatprep.subr.bf16.mxu0 %v5267
    %5368 = vmatpush1.bf16.msra.mxu0 %v5266
    %5369 = vmatprep.subr.bf16.mxu0 %v5271
    %5370 = vmatpush1.bf16.msra.mxu0 %v5270
    %5371 = vmatprep.subr.bf16.mxu0 %v5275
    %5372 = vmatpush1.bf16.msra.mxu0 %v5274
    %5373 = vmatprep.subr.bf16.mxu0 %v5279
    %5374 = vmatpush1.bf16.msra.mxu0 %v5278
    %5375 = vmatprep.subr.bf16.mxu0 %v5283
    %5376 = vmatpush1.bf16.msra.mxu0 %v5282
    %5377 = vmatprep.subr.bf16.mxu0 %v5287
    %5378 = vmatpush1.bf16.msra.mxu0 %v5286
    %5379 = vmatprep.subr.bf16.mxu0 %v5291
    %5380 = vmatpush1.bf16.msra.mxu0 %v5290
    %5381 = vmatprep.subr.bf16.mxu0 0
    %5382 = vmatpush1.bf16.msra.mxu0 0
    %5383 = vmatprep.subr.bf16.mxu0 0
    %5384 = vmatpush1.bf16.msra.mxu0 0
    %5385 = vmatprep.subr.bf16.mxu0 0
    %5386 = vmatpush1.bf16.msra.mxu0 0
    %5387 = vmatprep.subr.bf16.mxu0 0
    %5388 = vmatpush1.bf16.msra.mxu0 0
    %5389 = vmatprep.subr.bf16.mxu0 0
    %5390 = vmatpush1.bf16.msra.mxu0 0
    %5391 = vmatprep.subr.bf16.mxu0 0
    %5392 = vmatpush1.bf16.msra.mxu0 0
    %5393 = vmatprep.subr.bf16.mxu0 0
    %5394 = vmatpush1.bf16.msra.mxu0 0
    %5395 = vmatprep.subr.bf16.mxu0 0
    %5396 = vmatpush1.bf16.msra.mxu0 0
    %5397 = vmatprep.mubr.bf16.mxu0 0
    %5398 = vmatmul.mubr.bf16.gmra.mrb[0].mxu0 %v5162
    %v5399 = vpop.f32.mrb[0].mxu0
    %v5400 = vadd.f32 0.0, %v5399
    %v5401 = vpop.f32.mrb[0].mxu0
    %v5402 = vadd.f32 0.0, %v5401
    %v5403 = vpop.f32.mrb[0].mxu0
    %v5404 = vpop.f32.mrb[0].mxu0
    %5405 = vdwg.mxu0
    %v5422 = vunpack.c.l.b16 %v5076
    %v5423 = vunpack.c.h.b16 %v5076
    %v5424 = vunpack.c.l.b16 %v5077
    %v5425 = vunpack.c.h.b16 %v5077
    %v5426 = vunpack.c.l.b16 %v5078
    %v5427 = vunpack.c.h.b16 %v5078
    %v5428 = vunpack.c.l.b16 %v5079
    %v5429 = vunpack.c.h.b16 %v5079
    %v5430 = vunpack.c.l.b16 %v5080
    %v5431 = vunpack.c.h.b16 %v5080
    %v5432 = vunpack.c.l.b16 %v5081
    %v5433 = vunpack.c.h.b16 %v5081
    %v5434 = vunpack.c.l.b16 %v5082
    %v5435 = vunpack.c.h.b16 %v5082
    %v5436 = vunpack.c.l.b16 %v5083
    %v5437 = vunpack.c.h.b16 %v5083
    %v5438 = vunpack.c.l.b16 %v5084
    %v5439 = vunpack.c.h.b16 %v5084
    %v5440 = vunpack.c.l.b16 %v5085
    %v5441 = vunpack.c.h.b16 %v5085
    %v5442 = vunpack.c.l.b16 %v5086
    %v5443 = vunpack.c.h.b16 %v5086
    %v5444 = vunpack.c.l.b16 %v5087
    %v5445 = vunpack.c.h.b16 %v5087
    %v5446 = vunpack.c.l.b16 %v5088
    %v5447 = vunpack.c.h.b16 %v5088
    %v5448 = vunpack.c.l.b16 %v5089
    %v5449 = vunpack.c.h.b16 %v5089
    %v5450 = vunpack.c.l.b16 %v5090
    %v5451 = vunpack.c.h.b16 %v5090
    %v5452 = vunpack.c.l.b16 %v5091
    %v5453 = vunpack.c.h.b16 %v5091
    %v5454 = vpack.c.b16 %v5426, %v5422
    %v5455 = vpack.c.b16 %v5427, %v5423
    %v5456 = vpack.c.b16 %v5428, %v5424
    %v5457 = vpack.c.b16 %v5429, %v5425
    %v5458 = vpack.c.b16 %v5434, %v5430
    %v5459 = vpack.c.b16 %v5435, %v5431
    %v5460 = vpack.c.b16 %v5436, %v5432
    %v5461 = vpack.c.b16 %v5437, %v5433
    %v5462 = vpack.c.b16 %v5442, %v5438
    %v5463 = vpack.c.b16 %v5443, %v5439
    %v5464 = vpack.c.b16 %v5444, %v5440
    %v5465 = vpack.c.b16 %v5445, %v5441
    %v5466 = vpack.c.b16 %v5450, %v5446
    %v5467 = vpack.c.b16 %v5451, %v5447
    %v5468 = vpack.c.b16 %v5452, %v5448
    %v5469 = vpack.c.b16 %v5453, %v5449
    %vm5486 = vcmask 523264
    %v5488 = vsel %vm5486, %v5075, 0
    %5490 = vmatprep.subr.bf16.mxu0 %v5455
    %5491 = vmatpush1.bf16.msra.mxu0 %v5454
    %5492 = vmatprep.subr.bf16.mxu0 %v5459
    %5493 = vmatpush1.bf16.msra.mxu0 %v5458
    %5494 = vmatprep.subr.bf16.mxu0 %v5463
    %5495 = vmatpush1.bf16.msra.mxu0 %v5462
    %5496 = vmatprep.subr.bf16.mxu0 %v5467
    %5497 = vmatpush1.bf16.msra.mxu0 %v5466
    %5498 = vmatprep.subr.bf16.mxu0 0
    %5499 = vmatpush1.bf16.msra.mxu0 0
    %5500 = vmatprep.subr.bf16.mxu0 0
    %5501 = vmatpush1.bf16.msra.mxu0 0
    %5502 = vmatprep.subr.bf16.mxu0 0
    %5503 = vmatpush1.bf16.msra.mxu0 0
    %5504 = vmatprep.subr.bf16.mxu0 0
    %5505 = vmatpush1.bf16.msra.mxu0 0
    %5506 = vmatprep.subr.bf16.mxu0 0
    %5507 = vmatpush1.bf16.msra.mxu0 0
    %5508 = vmatprep.subr.bf16.mxu0 0
    %5509 = vmatpush1.bf16.msra.mxu0 0
    %5510 = vmatprep.subr.bf16.mxu0 0
    %5511 = vmatpush1.bf16.msra.mxu0 0
    %5512 = vmatprep.subr.bf16.mxu0 0
    %5513 = vmatpush1.bf16.msra.mxu0 0
    %5514 = vmatprep.subr.bf16.mxu0 0
    %5515 = vmatpush1.bf16.msra.mxu0 0
    %5516 = vmatprep.subr.bf16.mxu0 0
    %5517 = vmatpush1.bf16.msra.mxu0 0
    %5518 = vmatprep.subr.bf16.mxu0 0
    %5519 = vmatpush1.bf16.msra.mxu0 0
    %5520 = vmatprep.subr.bf16.mxu0 0
    %5521 = vmatpush1.bf16.msra.mxu0 0
    %5522 = vmatprep.mubr.bf16.mxu0 0
    %5523 = vmatmul.mubr.bf16.gmra.mrb[0].mxu0 %v5488
    %v5524 = vpop.f32.mrb[0].mxu0
    %v5525 = vadd.f32 %v5359, %v5524
    %v5526 = vpop.f32.mrb[0].mxu0
    %v5527 = vadd.f32 %v5361, %v5526
    %v5528 = vpop.f32.mrb[0].mxu0
    %v5529 = vpop.f32.mrb[0].mxu0
    %5530 = vdwg.mxu0
    %5531 = vmatprep.subr.bf16.mxu0 %v5457
    %5532 = vmatpush1.bf16.msra.mxu0 %v5456
    %5533 = vmatprep.subr.bf16.mxu0 %v5461
    %5534 = vmatpush1.bf16.msra.mxu0 %v5460
    %5535 = vmatprep.subr.bf16.mxu0 %v5465
    %5536 = vmatpush1.bf16.msra.mxu0 %v5464
    %5537 = vmatprep.subr.bf16.mxu0 %v5469
    %5538 = vmatpush1.bf16.msra.mxu0 %v5468
    %5539 = vmatprep.subr.bf16.mxu0 0
    %5540 = vmatpush1.bf16.msra.mxu0 0
    %5541 = vmatprep.subr.bf16.mxu0 0
    %5542 = vmatpush1.bf16.msra.mxu0 0
    %5543 = vmatprep.subr.bf16.mxu0 0
    %5544 = vmatpush1.bf16.msra.mxu0 0
    %5545 = vmatprep.subr.bf16.mxu0 0
    %5546 = vmatpush1.bf16.msra.mxu0 0
    %5547 = vmatprep.subr.bf16.mxu0 0
    %5548 = vmatpush1.bf16.msra.mxu0 0
    %5549 = vmatprep.subr.bf16.mxu0 0
    %5550 = vmatpush1.bf16.msra.mxu0 0
    %5551 = vmatprep.subr.bf16.mxu0 0
    %5552 = vmatpush1.bf16.msra.mxu0 0
    %5553 = vmatprep.subr.bf16.mxu0 0
    %5554 = vmatpush1.bf16.msra.mxu0 0
    %5555 = vmatprep.subr.bf16.mxu0 0
    %5556 = vmatpush1.bf16.msra.mxu0 0
    %5557 = vmatprep.subr.bf16.mxu0 0
    %5558 = vmatpush1.bf16.msra.mxu0 0
    %5559 = vmatprep.subr.bf16.mxu0 0
    %5560 = vmatpush1.bf16.msra.mxu0 0
    %5561 = vmatprep.subr.bf16.mxu0 0
    %5562 = vmatpush1.bf16.msra.mxu0 0
    %5563 = vmatprep.mubr.bf16.mxu0 0
    %5564 = vmatmul.mubr.bf16.gmra.mrb[0].mxu0 %v5488
    %v5565 = vpop.f32.mrb[0].mxu0
    %v5566 = vadd.f32 %v5400, %v5565
    %v5567 = vpop.f32.mrb[0].mxu0
    %v5568 = vadd.f32 %v5402, %v5567
    %v5569 = vpop.f32.mrb[0].mxu0
    %v5570 = vpop.f32.mrb[0].mxu0
    %5571 = vdwg.mxu0
    %v5572 = vld [vmem:[#allocation15] sm:$0xf]
    %v5574 = vlaneseq
    %v5575 = vshrl.u32 %v5574, 7
    %v5576 = vsub.s32 0, %v5575
    %v5577 = vrot.slane %v5572, %v5576
    %v5578 = vlaneseq
    %v5579 = vshrl.u32 %v5578, 7
    %v5580 = vsub.s32 1, %v5579
    %v5581 = vrot.slane %v5572, %v5580
    %v5582 = vlaneseq
    %v5583 = vshrl.u32 %v5582, 7
    %v5584 = vsub.s32 2, %v5583
    %v5585 = vrot.slane %v5572, %v5584
    %v5586 = vlaneseq
    %v5587 = vshrl.u32 %v5586, 7
    %v5588 = vsub.s32 3, %v5587
    %v5589 = vrot.slane %v5572, %v5588
    %v5594 = vadd.f32 %v5525, %v5577
    %v5595 = vadd.f32 %v5527, %v5581
    %v5596 = vadd.f32 %v5566, %v5585
    %v5597 = vadd.f32 %v5568, %v5589
    %v5598 = vmax.f32 %v5594, 0.0
    %v5599 = vmax.f32 %v5595, 0.0
    %v5600 = vmax.f32 %v5596, 0.0
    %v5601 = vmax.f32 %v5597, 0.0
    %v5602 = vpack.c.bf16 %v5598, %v5598
    %v5603 = vpack.c.bf16 %v5599, %v5599
    %v5604 = vpack.c.bf16 %v5600, %v5600
    %v5605 = vpack.c.bf16 %v5601, %v5601
    %v5606 = vld [vmem:[#allocation17] sm:$0xff]
    %v5607 = vld [vmem:[#allocation17 + $0x8] sm:$0xff]
    %v5608 = vld [vmem:[#allocation17 + $0x10] sm:$0xff]
    %v5609 = vld [vmem:[#allocation17 + $0x18] sm:$0xff]
    %v5610 = vld [vmem:[#allocation17 + $0x20] sm:$0xff]
    %v5611 = vld [vmem:[#allocation17 + $0x28] sm:$0xff]
    %v5612 = vld [vmem:[#allocation17 + $0x30] sm:$0xff]
    %v5613 = vld [vmem:[#allocation17 + $0x38] sm:$0xff]
    %v5614 = vld [vmem:[#allocation17 + $0x40] sm:$0xff]
    %v5615 = vld [vmem:[#allocation17 + $0x48] sm:$0xff]
    %v5616 = vld [vmem:[#allocation17 + $0x50] sm:$0xff]
    %v5617 = vld [vmem:[#allocation17 + $0x58] sm:$0xff]
    %v5618 = vld [vmem:[#allocation17 + $0x60] sm:$0xff]
    %v5619 = vld [vmem:[#allocation17 + $0x68] sm:$0xff]
    %v5620 = vld [vmem:[#allocation17 + $0x70] sm:$0xff]
    %v5621 = vld [vmem:[#allocation17 + $0x78] sm:$0xff]
    %v5622 = vld [vmem:[#allocation17 + $0x80] sm:$0xff]
    %v5623 = vld [vmem:[#allocation17 + $0x88] sm:$0xff]
    %v5624 = vld [vmem:[#allocation17 + $0x90] sm:$0xff]
    %v5625 = vld [vmem:[#allocation17 + $0x98] sm:$0xff]
    %v5626 = vld [vmem:[#allocation17 + $0xa0] sm:$0xff]
    %v5627 = vld [vmem:[#allocation17 + $0xa8] sm:$0xff]
    %v5628 = vld [vmem:[#allocation17 + $0xb0] sm:$0xff]
    %v5629 = vld [vmem:[#allocation17 + $0xb8] sm:$0xff]
    %v5630 = vld [vmem:[#allocation17 + $0xc0] sm:$0xff]
    %v5631 = vld [vmem:[#allocation17 + $0xc8] sm:$0xff]
    %v5632 = vld [vmem:[#allocation17 + $0xd0] sm:$0xff]
    %v5633 = vld [vmem:[#allocation17 + $0xd8] sm:$0xff]
    %v5634 = vld [vmem:[#allocation17 + $0xe0] sm:$0xff]
    %v5635 = vld [vmem:[#allocation17 + $0xe8] sm:$0xff]
    %v5636 = vld [vmem:[#allocation17 + $0xf0] sm:$0xff]
    %v5637 = vld [vmem:[#allocation17 + $0xf8] sm:$0xff]
    %v5638 = vld [vmem:[#allocation17 + $0x100] sm:$0xff]
    %v5639 = vld [vmem:[#allocation17 + $0x108] sm:$0xff]
    %v5640 = vld [vmem:[#allocation17 + $0x110] sm:$0xff]
    %v5641 = vld [vmem:[#allocation17 + $0x118] sm:$0xff]
    %v5642 = vld [vmem:[#allocation17 + $0x120] sm:$0xff]
    %v5643 = vld [vmem:[#allocation17 + $0x128] sm:$0xff]
    %v5644 = vld [vmem:[#allocation17 + $0x130] sm:$0xff]
    %v5645 = vld [vmem:[#allocation17 + $0x138] sm:$0xff]
    %v5646 = vld [vmem:[#allocation17 + $0x140] sm:$0xff]
    %v5647 = vld [vmem:[#allocation17 + $0x148] sm:$0xff]
    %v5648 = vld [vmem:[#allocation17 + $0x150] sm:$0xff]
    %v5649 = vld [vmem:[#allocation17 + $0x158] sm:$0xff]
    %v5650 = vld [vmem:[#allocation17 + $0x160] sm:$0xff]
    %v5651 = vld [vmem:[#allocation17 + $0x168] sm:$0xff]
    %v5652 = vld [vmem:[#allocation17 + $0x170] sm:$0xff]
    %v5653 = vld [vmem:[#allocation17 + $0x178] sm:$0xff]
    %v5654 = vld [vmem:[#allocation17 + $0x180] sm:$0xff]
    %v5655 = vld [vmem:[#allocation17 + $0x188] sm:$0xff]
    %v5656 = vld [vmem:[#allocation17 + $0x190] sm:$0xff]
    %v5657 = vld [vmem:[#allocation17 + $0x198] sm:$0xff]
    %v5658 = vld [vmem:[#allocation17 + $0x1a0] sm:$0xff]
    %v5659 = vld [vmem:[#allocation17 + $0x1a8] sm:$0xff]
    %v5660 = vld [vmem:[#allocation17 + $0x1b0] sm:$0xff]
    %v5661 = vld [vmem:[#allocation17 + $0x1b8] sm:$0xff]
    %v5662 = vld [vmem:[#allocation17 + $0x1c0] sm:$0xff]
    %v5663 = vld [vmem:[#allocation17 + $0x1c8] sm:$0xff]
    %v5664 = vld [vmem:[#allocation17 + $0x1d0] sm:$0xff]
    %v5665 = vld [vmem:[#allocation17 + $0x1d8] sm:$0xff]
    %v5666 = vld [vmem:[#allocation17 + $0x1e0] sm:$0xff]
    %v5667 = vld [vmem:[#allocation17 + $0x1e8] sm:$0xff]
    %v5668 = vld [vmem:[#allocation17 + $0x1f0] sm:$0xff]
    %v5669 = vld [vmem:[#allocation17 + $0x1f8] sm:$0xff]
    %v5670 = vld [vmem:[#allocation17 + $0x200] sm:$0xff]
    %v5671 = vld [vmem:[#allocation17 + $0x208] sm:$0xff]
    %v5672 = vld [vmem:[#allocation17 + $0x210] sm:$0xff]
    %v5673 = vld [vmem:[#allocation17 + $0x218] sm:$0xff]
    %v5674 = vld [vmem:[#allocation17 + $0x220] sm:$0xff]
    %v5675 = vld [vmem:[#allocation17 + $0x228] sm:$0xff]
    %v5676 = vld [vmem:[#allocation17 + $0x230] sm:$0xff]
    %v5677 = vld [vmem:[#allocation17 + $0x238] sm:$0xff]
    %v5678 = vld [vmem:[#allocation17 + $0x240] sm:$0xff]
    %v5679 = vld [vmem:[#allocation17 + $0x248] sm:$0xff]
    %v5680 = vld [vmem:[#allocation17 + $0x250] sm:$0xff]
    %v5681 = vld [vmem:[#allocation17 + $0x258] sm:$0xff]
    %v5682 = vld [vmem:[#allocation17 + $0x260] sm:$0xff]
    %v5683 = vld [vmem:[#allocation17 + $0x268] sm:$0xff]
    %v5684 = vld [vmem:[#allocation17 + $0x270] sm:$0xff]
    %v5685 = vld [vmem:[#allocation17 + $0x278] sm:$0xff]
    %v5686 = vld [vmem:[#allocation17 + $0x280] sm:$0xff]
    %v5687 = vld [vmem:[#allocation17 + $0x288] sm:$0xff]
    %v5688 = vld [vmem:[#allocation17 + $0x290] sm:$0xff]
    %v5689 = vld [vmem:[#allocation17 + $0x298] sm:$0xff]
    %v5690 = vld [vmem:[#allocation17 + $0x2a0] sm:$0xff]
    %v5691 = vld [vmem:[#allocation17 + $0x2a8] sm:$0xff]
    %v5692 = vld [vmem:[#allocation17 + $0x2b0] sm:$0xff]
    %v5693 = vld [vmem:[#allocation17 + $0x2b8] sm:$0xff]
    %v5694 = vld [vmem:[#allocation17 + $0x2c0] sm:$0xff]
    %v5695 = vld [vmem:[#allocation17 + $0x2c8] sm:$0xff]
    %v5696 = vld [vmem:[#allocation17 + $0x2d0] sm:$0xff]
    %v5697 = vld [vmem:[#allocation17 + $0x2d8] sm:$0xff]
    %v5698 = vld [vmem:[#allocation17 + $0x2e0] sm:$0xff]
    %v5699 = vld [vmem:[#allocation17 + $0x2e8] sm:$0xff]
    %v5700 = vld [vmem:[#allocation17 + $0x2f0] sm:$0xff]
    %v5701 = vld [vmem:[#allocation17 + $0x2f8] sm:$0xff]
    %v5702 = vld [vmem:[#allocation17 + $0x300] sm:$0xff]
    %v5703 = vld [vmem:[#allocation17 + $0x308] sm:$0xff]
    %v5704 = vld [vmem:[#allocation17 + $0x310] sm:$0xff]
    %v5705 = vld [vmem:[#allocation17 + $0x318] sm:$0xff]
    %v5706 = vld [vmem:[#allocation17 + $0x320] sm:$0xff]
    %v5707 = vld [vmem:[#allocation17 + $0x328] sm:$0xff]
    %v5708 = vld [vmem:[#allocation17 + $0x330] sm:$0xff]
    %v5709 = vld [vmem:[#allocation17 + $0x338] sm:$0xff]
    %v5710 = vld [vmem:[#allocation17 + $0x340] sm:$0xff]
    %v5711 = vld [vmem:[#allocation17 + $0x348] sm:$0xff]
    %v5712 = vld [vmem:[#allocation17 + $0x350] sm:$0xff]
    %v5713 = vld [vmem:[#allocation17 + $0x358] sm:$0xff]
    %v5714 = vld [vmem:[#allocation17 + $0x360] sm:$0xff]
    %v5715 = vld [vmem:[#allocation17 + $0x368] sm:$0xff]
    %v5716 = vld [vmem:[#allocation17 + $0x370] sm:$0xff]
    %v5717 = vld [vmem:[#allocation17 + $0x378] sm:$0xff]
    %v5718 = vld [vmem:[#allocation17 + $0x380] sm:$0xff]
    %v5719 = vld [vmem:[#allocation17 + $0x388] sm:$0xff]
    %v5720 = vld [vmem:[#allocation17 + $0x390] sm:$0xff]
    %v5721 = vld [vmem:[#allocation17 + $0x398] sm:$0xff]
    %v5722 = vld [vmem:[#allocation17 + $0x3a0] sm:$0xff]
    %v5723 = vld [vmem:[#allocation17 + $0x3a8] sm:$0xff]
    %v5724 = vld [vmem:[#allocation17 + $0x3b0] sm:$0xff]
    %v5725 = vld [vmem:[#allocation17 + $0x3b8] sm:$0xff]
    %v5726 = vld [vmem:[#allocation17 + $0x3c0] sm:$0xff]
    %v5727 = vld [vmem:[#allocation17 + $0x3c8] sm:$0xff]
    %v5728 = vld [vmem:[#allocation17 + $0x3d0] sm:$0xff]
    %v5729 = vld [vmem:[#allocation17 + $0x3d8] sm:$0xff]
    %v5730 = vld [vmem:[#allocation17 + $0x3e0] sm:$0xff]
    %v5731 = vld [vmem:[#allocation17 + $0x3e8] sm:$0xff]
    %v5732 = vld [vmem:[#allocation17 + $0x3f0] sm:$0xff]
    %v5733 = vld [vmem:[#allocation17 + $0x3f8] sm:$0xff]
    %v5734 = vld [vmem:[#allocation18] sm:$0xf]
    %v5736 = vlaneseq
    %v5737 = vshrl.u32 %v5736, 7
    %v5738 = vsub.s32 0, %v5737
    %v5739 = vrot.slane %v5734, %v5738
    %v5740 = vlaneseq
    %v5741 = vshrl.u32 %v5740, 7
    %v5742 = vsub.s32 1, %v5741
    %v5743 = vrot.slane %v5734, %v5742
    %v5744 = vlaneseq
    %v5745 = vshrl.u32 %v5744, 7
    %v5746 = vsub.s32 2, %v5745
    %v5747 = vrot.slane %v5734, %v5746
    %v5748 = vlaneseq
    %v5749 = vshrl.u32 %v5748, 7
    %v5750 = vsub.s32 3, %v5749
    %v5751 = vrot.slane %v5734, %v5750
    %v5884 = vunpack.c.l.b16 %v5606
    %v5885 = vunpack.c.h.b16 %v5606
    %v5886 = vunpack.c.l.b16 %v5607
    %v5887 = vunpack.c.h.b16 %v5607
    %v5888 = vunpack.c.l.b16 %v5608
    %v5889 = vunpack.c.h.b16 %v5608
    %v5890 = vunpack.c.l.b16 %v5609
    %v5891 = vunpack.c.h.b16 %v5609
    %v5892 = vunpack.c.l.b16 %v5610
    %v5893 = vunpack.c.h.b16 %v5610
    %v5894 = vunpack.c.l.b16 %v5611
    %v5895 = vunpack.c.h.b16 %v5611
    %v5896 = vunpack.c.l.b16 %v5612
    %v5897 = vunpack.c.h.b16 %v5612
    %v5898 = vunpack.c.l.b16 %v5613
    %v5899 = vunpack.c.h.b16 %v5613
    %v5900 = vunpack.c.l.b16 %v5614
    %v5901 = vunpack.c.h.b16 %v5614
    %v5902 = vunpack.c.l.b16 %v5615
    %v5903 = vunpack.c.h.b16 %v5615
    %v5904 = vunpack.c.l.b16 %v5616
    %v5905 = vunpack.c.h.b16 %v5616
    %v5906 = vunpack.c.l.b16 %v5617
    %v5907 = vunpack.c.h.b16 %v5617
    %v5908 = vunpack.c.l.b16 %v5618
    %v5909 = vunpack.c.h.b16 %v5618
    %v5910 = vunpack.c.l.b16 %v5619
    %v5911 = vunpack.c.h.b16 %v5619
    %v5912 = vunpack.c.l.b16 %v5620
    %v5913 = vunpack.c.h.b16 %v5620
    %v5914 = vunpack.c.l.b16 %v5621
    %v5915 = vunpack.c.h.b16 %v5621
    %v5916 = vunpack.c.l.b16 %v5622
    %v5917 = vunpack.c.h.b16 %v5622
    %v5918 = vunpack.c.l.b16 %v5623
    %v5919 = vunpack.c.h.b16 %v5623
    %v5920 = vunpack.c.l.b16 %v5624
    %v5921 = vunpack.c.h.b16 %v5624
    %v5922 = vunpack.c.l.b16 %v5625
    %v5923 = vunpack.c.h.b16 %v5625
    %v5924 = vunpack.c.l.b16 %v5626
    %v5925 = vunpack.c.h.b16 %v5626
    %v5926 = vunpack.c.l.b16 %v5627
    %v5927 = vunpack.c.h.b16 %v5627
    %v5928 = vunpack.c.l.b16 %v5628
    %v5929 = vunpack.c.h.b16 %v5628
    %v5930 = vunpack.c.l.b16 %v5629
    %v5931 = vunpack.c.h.b16 %v5629
    %v5932 = vunpack.c.l.b16 %v5630
    %v5933 = vunpack.c.h.b16 %v5630
    %v5934 = vunpack.c.l.b16 %v5631
    %v5935 = vunpack.c.h.b16 %v5631
    %v5936 = vunpack.c.l.b16 %v5632
    %v5937 = vunpack.c.h.b16 %v5632
    %v5938 = vunpack.c.l.b16 %v5633
    %v5939 = vunpack.c.h.b16 %v5633
    %v5940 = vunpack.c.l.b16 %v5634
    %v5941 = vunpack.c.h.b16 %v5634
    %v5942 = vunpack.c.l.b16 %v5635
    %v5943 = vunpack.c.h.b16 %v5635
    %v5944 = vunpack.c.l.b16 %v5636
    %v5945 = vunpack.c.h.b16 %v5636
    %v5946 = vunpack.c.l.b16 %v5637
    %v5947 = vunpack.c.h.b16 %v5637
    %v5948 = vunpack.c.l.b16 %v5638
    %v5949 = vunpack.c.h.b16 %v5638
    %v5950 = vunpack.c.l.b16 %v5639
    %v5951 = vunpack.c.h.b16 %v5639
    %v5952 = vunpack.c.l.b16 %v5640
    %v5953 = vunpack.c.h.b16 %v5640
    %v5954 = vunpack.c.l.b16 %v5641
    %v5955 = vunpack.c.h.b16 %v5641
    %v5956 = vunpack.c.l.b16 %v5642
    %v5957 = vunpack.c.h.b16 %v5642
    %v5958 = vunpack.c.l.b16 %v5643
    %v5959 = vunpack.c.h.b16 %v5643
    %v5960 = vunpack.c.l.b16 %v5644
    %v5961 = vunpack.c.h.b16 %v5644
    %v5962 = vunpack.c.l.b16 %v5645
    %v5963 = vunpack.c.h.b16 %v5645
    %v5964 = vunpack.c.l.b16 %v5646
    %v5965 = vunpack.c.h.b16 %v5646
    %v5966 = vunpack.c.l.b16 %v5647
    %v5967 = vunpack.c.h.b16 %v5647
    %v5968 = vunpack.c.l.b16 %v5648
    %v5969 = vunpack.c.h.b16 %v5648
    %v5970 = vunpack.c.l.b16 %v5649
    %v5971 = vunpack.c.h.b16 %v5649
    %v5972 = vunpack.c.l.b16 %v5650
    %v5973 = vunpack.c.h.b16 %v5650
    %v5974 = vunpack.c.l.b16 %v5651
    %v5975 = vunpack.c.h.b16 %v5651
    %v5976 = vunpack.c.l.b16 %v5652
    %v5977 = vunpack.c.h.b16 %v5652
    %v5978 = vunpack.c.l.b16 %v5653
    %v5979 = vunpack.c.h.b16 %v5653
    %v5980 = vunpack.c.l.b16 %v5654
    %v5981 = vunpack.c.h.b16 %v5654
    %v5982 = vunpack.c.l.b16 %v5655
    %v5983 = vunpack.c.h.b16 %v5655
    %v5984 = vunpack.c.l.b16 %v5656
    %v5985 = vunpack.c.h.b16 %v5656
    %v5986 = vunpack.c.l.b16 %v5657
    %v5987 = vunpack.c.h.b16 %v5657
    %v5988 = vunpack.c.l.b16 %v5658
    %v5989 = vunpack.c.h.b16 %v5658
    %v5990 = vunpack.c.l.b16 %v5659
    %v5991 = vunpack.c.h.b16 %v5659
    %v5992 = vunpack.c.l.b16 %v5660
    %v5993 = vunpack.c.h.b16 %v5660
    %v5994 = vunpack.c.l.b16 %v5661
    %v5995 = vunpack.c.h.b16 %v5661
    %v5996 = vunpack.c.l.b16 %v5662
    %v5997 = vunpack.c.h.b16 %v5662
    %v5998 = vunpack.c.l.b16 %v5663
    %v5999 = vunpack.c.h.b16 %v5663
    %v6000 = vunpack.c.l.b16 %v5664
    %v6001 = vunpack.c.h.b16 %v5664
    %v6002 = vunpack.c.l.b16 %v5665
    %v6003 = vunpack.c.h.b16 %v5665
    %v6004 = vunpack.c.l.b16 %v5666
    %v6005 = vunpack.c.h.b16 %v5666
    %v6006 = vunpack.c.l.b16 %v5667
    %v6007 = vunpack.c.h.b16 %v5667
    %v6008 = vunpack.c.l.b16 %v5668
    %v6009 = vunpack.c.h.b16 %v5668
    %v6010 = vunpack.c.l.b16 %v5669
    %v6011 = vunpack.c.h.b16 %v5669
    %v6012 = vunpack.c.l.b16 %v5670
    %v6013 = vunpack.c.h.b16 %v5670
    %v6014 = vunpack.c.l.b16 %v5671
    %v6015 = vunpack.c.h.b16 %v5671
    %v6016 = vunpack.c.l.b16 %v5672
    %v6017 = vunpack.c.h.b16 %v5672
    %v6018 = vunpack.c.l.b16 %v5673
    %v6019 = vunpack.c.h.b16 %v5673
    %v6020 = vunpack.c.l.b16 %v5674
    %v6021 = vunpack.c.h.b16 %v5674
    %v6022 = vunpack.c.l.b16 %v5675
    %v6023 = vunpack.c.h.b16 %v5675
    %v6024 = vunpack.c.l.b16 %v5676
    %v6025 = vunpack.c.h.b16 %v5676
    %v6026 = vunpack.c.l.b16 %v5677
    %v6027 = vunpack.c.h.b16 %v5677
    %v6028 = vunpack.c.l.b16 %v5678
    %v6029 = vunpack.c.h.b16 %v5678
    %v6030 = vunpack.c.l.b16 %v5679
    %v6031 = vunpack.c.h.b16 %v5679
    %v6032 = vunpack.c.l.b16 %v5680
    %v6033 = vunpack.c.h.b16 %v5680
    %v6034 = vunpack.c.l.b16 %v5681
    %v6035 = vunpack.c.h.b16 %v5681
    %v6036 = vunpack.c.l.b16 %v5682
    %v6037 = vunpack.c.h.b16 %v5682
    %v6038 = vunpack.c.l.b16 %v5683
    %v6039 = vunpack.c.h.b16 %v5683
    %v6040 = vunpack.c.l.b16 %v5684
    %v6041 = vunpack.c.h.b16 %v5684
    %v6042 = vunpack.c.l.b16 %v5685
    %v6043 = vunpack.c.h.b16 %v5685
    %v6044 = vunpack.c.l.b16 %v5686
    %v6045 = vunpack.c.h.b16 %v5686
    %v6046 = vunpack.c.l.b16 %v5687
    %v6047 = vunpack.c.h.b16 %v5687
    %v6048 = vunpack.c.l.b16 %v5688
    %v6049 = vunpack.c.h.b16 %v5688
    %v6050 = vunpack.c.l.b16 %v5689
    %v6051 = vunpack.c.h.b16 %v5689
    %v6052 = vunpack.c.l.b16 %v5690
    %v6053 = vunpack.c.h.b16 %v5690
    %v6054 = vunpack.c.l.b16 %v5691
    %v6055 = vunpack.c.h.b16 %v5691
    %v6056 = vunpack.c.l.b16 %v5692
    %v6057 = vunpack.c.h.b16 %v5692
    %v6058 = vunpack.c.l.b16 %v5693
    %v6059 = vunpack.c.h.b16 %v5693
    %v6060 = vunpack.c.l.b16 %v5694
    %v6061 = vunpack.c.h.b16 %v5694
    %v6062 = vunpack.c.l.b16 %v5695
    %v6063 = vunpack.c.h.b16 %v5695
    %v6064 = vunpack.c.l.b16 %v5696
    %v6065 = vunpack.c.h.b16 %v5696
    %v6066 = vunpack.c.l.b16 %v5697
    %v6067 = vunpack.c.h.b16 %v5697
    %v6068 = vunpack.c.l.b16 %v5698
    %v6069 = vunpack.c.h.b16 %v5698
    %v6070 = vunpack.c.l.b16 %v5699
    %v6071 = vunpack.c.h.b16 %v5699
    %v6072 = vunpack.c.l.b16 %v5700
    %v6073 = vunpack.c.h.b16 %v5700
    %v6074 = vunpack.c.l.b16 %v5701
    %v6075 = vunpack.c.h.b16 %v5701
    %v6076 = vunpack.c.l.b16 %v5702
    %v6077 = vunpack.c.h.b16 %v5702
    %v6078 = vunpack.c.l.b16 %v5703
    %v6079 = vunpack.c.h.b16 %v5703
    %v6080 = vunpack.c.l.b16 %v5704
    %v6081 = vunpack.c.h.b16 %v5704
    %v6082 = vunpack.c.l.b16 %v5705
    %v6083 = vunpack.c.h.b16 %v5705
    %v6084 = vunpack.c.l.b16 %v5706
    %v6085 = vunpack.c.h.b16 %v5706
    %v6086 = vunpack.c.l.b16 %v5707
    %v6087 = vunpack.c.h.b16 %v5707
    %v6088 = vunpack.c.l.b16 %v5708
    %v6089 = vunpack.c.h.b16 %v5708
    %v6090 = vunpack.c.l.b16 %v5709
    %v6091 = vunpack.c.h.b16 %v5709
    %v6092 = vunpack.c.l.b16 %v5710
    %v6093 = vunpack.c.h.b16 %v5710
    %v6094 = vunpack.c.l.b16 %v5711
    %v6095 = vunpack.c.h.b16 %v5711
    %v6096 = vunpack.c.l.b16 %v5712
    %v6097 = vunpack.c.h.b16 %v5712
    %v6098 = vunpack.c.l.b16 %v5713
    %v6099 = vunpack.c.h.b16 %v5713
    %v6100 = vunpack.c.l.b16 %v5714
    %v6101 = vunpack.c.h.b16 %v5714
    %v6102 = vunpack.c.l.b16 %v5715
    %v6103 = vunpack.c.h.b16 %v5715
    %v6104 = vunpack.c.l.b16 %v5716
    %v6105 = vunpack.c.h.b16 %v5716
    %v6106 = vunpack.c.l.b16 %v5717
    %v6107 = vunpack.c.h.b16 %v5717
    %v6108 = vunpack.c.l.b16 %v5718
    %v6109 = vunpack.c.h.b16 %v5718
    %v6110 = vunpack.c.l.b16 %v5719
    %v6111 = vunpack.c.h.b16 %v5719
    %v6112 = vunpack.c.l.b16 %v5720
    %v6113 = vunpack.c.h.b16 %v5720
    %v6114 = vunpack.c.l.b16 %v5721
    %v6115 = vunpack.c.h.b16 %v5721
    %v6116 = vunpack.c.l.b16 %v5722
    %v6117 = vunpack.c.h.b16 %v5722
    %v6118 = vunpack.c.l.b16 %v5723
    %v6119 = vunpack.c.h.b16 %v5723
    %v6120 = vunpack.c.l.b16 %v5724
    %v6121 = vunpack.c.h.b16 %v5724
    %v6122 = vunpack.c.l.b16 %v5725
    %v6123 = vunpack.c.h.b16 %v5725
    %v6124 = vunpack.c.l.b16 %v5726
    %v6125 = vunpack.c.h.b16 %v5726
    %v6126 = vunpack.c.l.b16 %v5727
    %v6127 = vunpack.c.h.b16 %v5727
    %v6128 = vunpack.c.l.b16 %v5728
    %v6129 = vunpack.c.h.b16 %v5728
    %v6130 = vunpack.c.l.b16 %v5729
    %v6131 = vunpack.c.h.b16 %v5729
    %v6132 = vunpack.c.l.b16 %v5730
    %v6133 = vunpack.c.h.b16 %v5730
    %v6134 = vunpack.c.l.b16 %v5731
    %v6135 = vunpack.c.h.b16 %v5731
    %v6136 = vunpack.c.l.b16 %v5732
    %v6137 = vunpack.c.h.b16 %v5732
    %v6138 = vunpack.c.l.b16 %v5733
    %v6139 = vunpack.c.h.b16 %v5733
    %v6140 = vpack.c.b16 %v5888, %v5884
    %v6141 = vpack.c.b16 %v5889, %v5885
    %v6142 = vpack.c.b16 %v5890, %v5886
    %v6143 = vpack.c.b16 %v5891, %v5887
    %v6144 = vpack.c.b16 %v5896, %v5892
    %v6145 = vpack.c.b16 %v5897, %v5893
    %v6146 = vpack.c.b16 %v5898, %v5894
    %v6147 = vpack.c.b16 %v5899, %v5895
    %v6148 = vpack.c.b16 %v5904, %v5900
    %v6149 = vpack.c.b16 %v5905, %v5901
    %v6150 = vpack.c.b16 %v5906, %v5902
    %v6151 = vpack.c.b16 %v5907, %v5903
    %v6152 = vpack.c.b16 %v5912, %v5908
    %v6153 = vpack.c.b16 %v5913, %v5909
    %v6154 = vpack.c.b16 %v5914, %v5910
    %v6155 = vpack.c.b16 %v5915, %v5911
    %v6156 = vpack.c.b16 %v5920, %v5916
    %v6157 = vpack.c.b16 %v5921, %v5917
    %v6158 = vpack.c.b16 %v5922, %v5918
    %v6159 = vpack.c.b16 %v5923, %v5919
    %v6160 = vpack.c.b16 %v5928, %v5924
    %v6161 = vpack.c.b16 %v5929, %v5925
    %v6162 = vpack.c.b16 %v5930, %v5926
    %v6163 = vpack.c.b16 %v5931, %v5927
    %v6164 = vpack.c.b16 %v5936, %v5932
    %v6165 = vpack.c.b16 %v5937, %v5933
    %v6166 = vpack.c.b16 %v5938, %v5934
    %v6167 = vpack.c.b16 %v5939, %v5935
    %v6168 = vpack.c.b16 %v5944, %v5940
    %v6169 = vpack.c.b16 %v5945, %v5941
    %v6170 = vpack.c.b16 %v5946, %v5942
    %v6171 = vpack.c.b16 %v5947, %v5943
    %v6172 = vpack.c.b16 %v5952, %v5948
    %v6173 = vpack.c.b16 %v5953, %v5949
    %v6174 = vpack.c.b16 %v5954, %v5950
    %v6175 = vpack.c.b16 %v5955, %v5951
    %v6176 = vpack.c.b16 %v5960, %v5956
    %v6177 = vpack.c.b16 %v5961, %v5957
    %v6178 = vpack.c.b16 %v5962, %v5958
    %v6179 = vpack.c.b16 %v5963, %v5959
    %v6180 = vpack.c.b16 %v5968, %v5964
    %v6181 = vpack.c.b16 %v5969, %v5965
    %v6182 = vpack.c.b16 %v5970, %v5966
    %v6183 = vpack.c.b16 %v5971, %v5967
    %v6184 = vpack.c.b16 %v5976, %v5972
    %v6185 = vpack.c.b16 %v5977, %v5973
    %v6186 = vpack.c.b16 %v5978, %v5974
    %v6187 = vpack.c.b16 %v5979, %v5975
    %v6188 = vpack.c.b16 %v5984, %v5980
    %v6189 = vpack.c.b16 %v5985, %v5981
    %v6190 = vpack.c.b16 %v5986, %v5982
    %v6191 = vpack.c.b16 %v5987, %v5983
    %v6192 = vpack.c.b16 %v5992, %v5988
    %v6193 = vpack.c.b16 %v5993, %v5989
    %v6194 = vpack.c.b16 %v5994, %v5990
    %v6195 = vpack.c.b16 %v5995, %v5991
    %v6196 = vpack.c.b16 %v6000, %v5996
    %v6197 = vpack.c.b16 %v6001, %v5997
    %v6198 = vpack.c.b16 %v6002, %v5998
    %v6199 = vpack.c.b16 %v6003, %v5999
    %v6200 = vpack.c.b16 %v6008, %v6004
    %v6201 = vpack.c.b16 %v6009, %v6005
    %v6202 = vpack.c.b16 %v6010, %v6006
    %v6203 = vpack.c.b16 %v6011, %v6007
    %v6204 = vpack.c.b16 %v6016, %v6012
    %v6205 = vpack.c.b16 %v6017, %v6013
    %v6206 = vpack.c.b16 %v6018, %v6014
    %v6207 = vpack.c.b16 %v6019, %v6015
    %v6208 = vpack.c.b16 %v6024, %v6020
    %v6209 = vpack.c.b16 %v6025, %v6021
    %v6210 = vpack.c.b16 %v6026, %v6022
    %v6211 = vpack.c.b16 %v6027, %v6023
    %v6212 = vpack.c.b16 %v6032, %v6028
    %v6213 = vpack.c.b16 %v6033, %v6029
    %v6214 = vpack.c.b16 %v6034, %v6030
    %v6215 = vpack.c.b16 %v6035, %v6031
    %v6216 = vpack.c.b16 %v6040, %v6036
    %v6217 = vpack.c.b16 %v6041, %v6037
    %v6218 = vpack.c.b16 %v6042, %v6038
    %v6219 = vpack.c.b16 %v6043, %v6039
    %v6220 = vpack.c.b16 %v6048, %v6044
    %v6221 = vpack.c.b16 %v6049, %v6045
    %v6222 = vpack.c.b16 %v6050, %v6046
    %v6223 = vpack.c.b16 %v6051, %v6047
    %v6224 = vpack.c.b16 %v6056, %v6052
    %v6225 = vpack.c.b16 %v6057, %v6053
    %v6226 = vpack.c.b16 %v6058, %v6054
    %v6227 = vpack.c.b16 %v6059, %v6055
    %v6228 = vpack.c.b16 %v6064, %v6060
    %v6229 = vpack.c.b16 %v6065, %v6061
    %v6230 = vpack.c.b16 %v6066, %v6062
    %v6231 = vpack.c.b16 %v6067, %v6063
    %v6232 = vpack.c.b16 %v6072, %v6068
    %v6233 = vpack.c.b16 %v6073, %v6069
    %v6234 = vpack.c.b16 %v6074, %v6070
    %v6235 = vpack.c.b16 %v6075, %v6071
    %v6236 = vpack.c.b16 %v6080, %v6076
    %v6237 = vpack.c.b16 %v6081, %v6077
    %v6238 = vpack.c.b16 %v6082, %v6078
    %v6239 = vpack.c.b16 %v6083, %v6079
    %v6240 = vpack.c.b16 %v6088, %v6084
    %v6241 = vpack.c.b16 %v6089, %v6085
    %v6242 = vpack.c.b16 %v6090, %v6086
    %v6243 = vpack.c.b16 %v6091, %v6087
    %v6244 = vpack.c.b16 %v6096, %v6092
    %v6245 = vpack.c.b16 %v6097, %v6093
    %v6246 = vpack.c.b16 %v6098, %v6094
    %v6247 = vpack.c.b16 %v6099, %v6095
    %v6248 = vpack.c.b16 %v6104, %v6100
    %v6249 = vpack.c.b16 %v6105, %v6101
    %v6250 = vpack.c.b16 %v6106, %v6102
    %v6251 = vpack.c.b16 %v6107, %v6103
    %v6252 = vpack.c.b16 %v6112, %v6108
    %v6253 = vpack.c.b16 %v6113, %v6109
    %v6254 = vpack.c.b16 %v6114, %v6110
    %v6255 = vpack.c.b16 %v6115, %v6111
    %v6256 = vpack.c.b16 %v6120, %v6116
    %v6257 = vpack.c.b16 %v6121, %v6117
    %v6258 = vpack.c.b16 %v6122, %v6118
    %v6259 = vpack.c.b16 %v6123, %v6119
    %v6260 = vpack.c.b16 %v6128, %v6124
    %v6261 = vpack.c.b16 %v6129, %v6125
    %v6262 = vpack.c.b16 %v6130, %v6126
    %v6263 = vpack.c.b16 %v6131, %v6127
    %v6264 = vpack.c.b16 %v6136, %v6132
    %v6265 = vpack.c.b16 %v6137, %v6133
    %v6266 = vpack.c.b16 %v6138, %v6134
    %v6267 = vpack.c.b16 %v6139, %v6135
    %6396 = vmatprep.subr.bf16.mxu0 %v6141
    %6397 = vmatpush1.bf16.msra.mxu0 %v6140
    %6398 = vmatprep.subr.bf16.mxu0 %v6145
    %6399 = vmatpush1.bf16.msra.mxu0 %v6144
    %6400 = vmatprep.subr.bf16.mxu0 %v6149
    %6401 = vmatpush1.bf16.msra.mxu0 %v6148
    %6402 = vmatprep.subr.bf16.mxu0 %v6153
    %6403 = vmatpush1.bf16.msra.mxu0 %v6152
    %6404 = vmatprep.subr.bf16.mxu0 %v6157
    %6405 = vmatpush1.bf16.msra.mxu0 %v6156
    %6406 = vmatprep.subr.bf16.mxu0 %v6161
    %6407 = vmatpush1.bf16.msra.mxu0 %v6160
    %6408 = vmatprep.subr.bf16.mxu0 %v6165
    %6409 = vmatpush1.bf16.msra.mxu0 %v6164
    %6410 = vmatprep.subr.bf16.mxu0 %v6169
    %6411 = vmatpush1.bf16.msra.mxu0 %v6168
    %6412 = vmatprep.subr.bf16.mxu0 %v6173
    %6413 = vmatpush1.bf16.msra.mxu0 %v6172
    %6414 = vmatprep.subr.bf16.mxu0 %v6177
    %6415 = vmatpush1.bf16.msra.mxu0 %v6176
    %6416 = vmatprep.subr.bf16.mxu0 %v6181
    %6417 = vmatpush1.bf16.msra.mxu0 %v6180
    %6418 = vmatprep.subr.bf16.mxu0 %v6185
    %6419 = vmatpush1.bf16.msra.mxu0 %v6184
    %6420 = vmatprep.subr.bf16.mxu0 %v6189
    %6421 = vmatpush1.bf16.msra.mxu0 %v6188
    %6422 = vmatprep.subr.bf16.mxu0 %v6193
    %6423 = vmatpush1.bf16.msra.mxu0 %v6192
    %6424 = vmatprep.subr.bf16.mxu0 %v6197
    %6425 = vmatpush1.bf16.msra.mxu0 %v6196
    %6426 = vmatprep.subr.bf16.mxu0 %v6201
    %6427 = vmatpush1.bf16.msra.mxu0 %v6200
    %6428 = vmatprep.mubr.bf16.mxu0 %v5603
    %6429 = vmatmul.mubr.bf16.gmra.mrb[0].mxu0 %v5602
    %v6430 = vpop.f32.mrb[0].mxu0
    %v6431 = vadd.f32 %v5739, %v6430
    %v6432 = vpop.f32.mrb[0].mxu0
    %v6433 = vadd.f32 %v5743, %v6432
    %v6434 = vpop.f32.mrb[0].mxu0
    %v6435 = vpop.f32.mrb[0].mxu0
    %6436 = vdwg.mxu0
    %6437 = vmatprep.subr.bf16.mxu0 %v6205
    %6438 = vmatpush1.bf16.msra.mxu0 %v6204
    %6439 = vmatprep.subr.bf16.mxu0 %v6209
    %6440 = vmatpush1.bf16.msra.mxu0 %v6208
    %6441 = vmatprep.subr.bf16.mxu0 %v6213
    %6442 = vmatpush1.bf16.msra.mxu0 %v6212
    %6443 = vmatprep.subr.bf16.mxu0 %v6217
    %6444 = vmatpush1.bf16.msra.mxu0 %v6216
    %6445 = vmatprep.subr.bf16.mxu0 %v6221
    %6446 = vmatpush1.bf16.msra.mxu0 %v6220
    %6447 = vmatprep.subr.bf16.mxu0 %v6225
    %6448 = vmatpush1.bf16.msra.mxu0 %v6224
    %6449 = vmatprep.subr.bf16.mxu0 %v6229
    %6450 = vmatpush1.bf16.msra.mxu0 %v6228
    %6451 = vmatprep.subr.bf16.mxu0 %v6233
    %6452 = vmatpush1.bf16.msra.mxu0 %v6232
    %6453 = vmatprep.subr.bf16.mxu0 %v6237
    %6454 = vmatpush1.bf16.msra.mxu0 %v6236
    %6455 = vmatprep.subr.bf16.mxu0 %v6241
    %6456 = vmatpush1.bf16.msra.mxu0 %v6240
    %6457 = vmatprep.subr.bf16.mxu0 %v6245
    %6458 = vmatpush1.bf16.msra.mxu0 %v6244
    %6459 = vmatprep.subr.bf16.mxu0 %v6249
    %6460 = vmatpush1.bf16.msra.mxu0 %v6248
    %6461 = vmatprep.subr.bf16.mxu0 %v6253
    %6462 = vmatpush1.bf16.msra.mxu0 %v6252
    %6463 = vmatprep.subr.bf16.mxu0 %v6257
    %6464 = vmatpush1.bf16.msra.mxu0 %v6256
    %6465 = vmatprep.subr.bf16.mxu0 %v6261
    %6466 = vmatpush1.bf16.msra.mxu0 %v6260
    %6467 = vmatprep.subr.bf16.mxu0 %v6265
    %6468 = vmatpush1.bf16.msra.mxu0 %v6264
    %6469 = vmatprep.mubr.bf16.mxu0 %v5605
    %6470 = vmatmul.mubr.bf16.gmra.mrb[0].mxu0 %v5604
    %v6471 = vpop.f32.mrb[0].mxu0
    %v6472 = vadd.f32 %v6431, %v6471
    %v6473 = vpop.f32.mrb[0].mxu0
    %v6474 = vadd.f32 %v6433, %v6473
    %v6475 = vpop.f32.mrb[0].mxu0
    %v6476 = vpop.f32.mrb[0].mxu0
    %6477 = vdwg.mxu0
    %6478 = vmatprep.subr.bf16.mxu0 %v6143
    %6479 = vmatpush1.bf16.msra.mxu0 %v6142
    %6480 = vmatprep.subr.bf16.mxu0 %v6147
    %6481 = vmatpush1.bf16.msra.mxu0 %v6146
    %6482 = vmatprep.subr.bf16.mxu0 %v6151
    %6483 = vmatpush1.bf16.msra.mxu0 %v6150
    %6484 = vmatprep.subr.bf16.mxu0 %v6155
    %6485 = vmatpush1.bf16.msra.mxu0 %v6154
    %6486 = vmatprep.subr.bf16.mxu0 %v6159
    %6487 = vmatpush1.bf16.msra.mxu0 %v6158
    %6488 = vmatprep.subr.bf16.mxu0 %v6163
    %6489 = vmatpush1.bf16.msra.mxu0 %v6162
    %6490 = vmatprep.subr.bf16.mxu0 %v6167
    %6491 = vmatpush1.bf16.msra.mxu0 %v6166
    %6492 = vmatprep.subr.bf16.mxu0 %v6171
    %6493 = vmatpush1.bf16.msra.mxu0 %v6170
    %6494 = vmatprep.subr.bf16.mxu0 %v6175
    %6495 = vmatpush1.bf16.msra.mxu0 %v6174
    %6496 = vmatprep.subr.bf16.mxu0 %v6179
    %6497 = vmatpush1.bf16.msra.mxu0 %v6178
    %6498 = vmatprep.subr.bf16.mxu0 %v6183
    %6499 = vmatpush1.bf16.msra.mxu0 %v6182
    %6500 = vmatprep.subr.bf16.mxu0 %v6187
    %6501 = vmatpush1.bf16.msra.mxu0 %v6186
    %6502 = vmatprep.subr.bf16.mxu0 %v6191
    %6503 = vmatpush1.bf16.msra.mxu0 %v6190
    %6504 = vmatprep.subr.bf16.mxu0 %v6195
    %6505 = vmatpush1.bf16.msra.mxu0 %v6194
    %6506 = vmatprep.subr.bf16.mxu0 %v6199
    %6507 = vmatpush1.bf16.msra.mxu0 %v6198
    %6508 = vmatprep.subr.bf16.mxu0 %v6203
    %6509 = vmatpush1.bf16.msra.mxu0 %v6202
    %6510 = vmatprep.mubr.bf16.mxu0 %v5603
    %6511 = vmatmul.mubr.bf16.gmra.mrb[0].mxu0 %v5602
    %v6512 = vpop.f32.mrb[0].mxu0
    %v6513 = vadd.f32 %v5747, %v6512
    %v6514 = vpop.f32.mrb[0].mxu0
    %v6515 = vadd.f32 %v5751, %v6514
    %v6516 = vpop.f32.mrb[0].mxu0
    %v6517 = vpop.f32.mrb[0].mxu0
    %6518 = vdwg.mxu0
    %6519 = vmatprep.subr.bf16.mxu0 %v6207
    %6520 = vmatpush1.bf16.msra.mxu0 %v6206
    %6521 = vmatprep.subr.bf16.mxu0 %v6211
    %6522 = vmatpush1.bf16.msra.mxu0 %v6210
    %6523 = vmatprep.subr.bf16.mxu0 %v6215
    %6524 = vmatpush1.bf16.msra.mxu0 %v6214
    %6525 = vmatprep.subr.bf16.mxu0 %v6219
    %6526 = vmatpush1.bf16.msra.mxu0 %v6218
    %6527 = vmatprep.subr.bf16.mxu0 %v6223
    %6528 = vmatpush1.bf16.msra.mxu0 %v6222
    %6529 = vmatprep.subr.bf16.mxu0 %v6227
    %6530 = vmatpush1.bf16.msra.mxu0 %v6226
    %6531 = vmatprep.subr.bf16.mxu0 %v6231
    %6532 = vmatpush1.bf16.msra.mxu0 %v6230
    %6533 = vmatprep.subr.bf16.mxu0 %v6235
    %6534 = vmatpush1.bf16.msra.mxu0 %v6234
    %6535 = vmatprep.subr.bf16.mxu0 %v6239
    %6536 = vmatpush1.bf16.msra.mxu0 %v6238
    %6537 = vmatprep.subr.bf16.mxu0 %v6243
    %6538 = vmatpush1.bf16.msra.mxu0 %v6242
    %6539 = vmatprep.subr.bf16.mxu0 %v6247
    %6540 = vmatpush1.bf16.msra.mxu0 %v6246
    %6541 = vmatprep.subr.bf16.mxu0 %v6251
    %6542 = vmatpush1.bf16.msra.mxu0 %v6250
    %6543 = vmatprep.subr.bf16.mxu0 %v6255
    %6544 = vmatpush1.bf16.msra.mxu0 %v6254
    %6545 = vmatprep.subr.bf16.mxu0 %v6259
    %6546 = vmatpush1.bf16.msra.mxu0 %v6258
    %6547 = vmatprep.subr.bf16.mxu0 %v6263
    %6548 = vmatpush1.bf16.msra.mxu0 %v6262
    %6549 = vmatprep.subr.bf16.mxu0 %v6267
    %6550 = vmatpush1.bf16.msra.mxu0 %v6266
    %6551 = vmatprep.mubr.bf16.mxu0 %v5605
    %6552 = vmatmul.mubr.bf16.gmra.mrb[0].mxu0 %v5604
    %v6553 = vpop.f32.mrb[0].mxu0
    %v6554 = vadd.f32 %v6513, %v6553
    %v6555 = vpop.f32.mrb[0].mxu0
    %v6556 = vadd.f32 %v6515, %v6555
    %v6557 = vpop.f32.mrb[0].mxu0
    %v6558 = vpop.f32.mrb[0].mxu0
    %6559 = vdwg.mxu0
    %v6560 = vmax.f32 %v6472, 0.0
    %v6561 = vmax.f32 %v6474, 0.0
    %v6562 = vmax.f32 %v6554, 0.0
    %v6563 = vmax.f32 %v6556, 0.0
    %v6564 = vpack.c.bf16 %v6560, %v6560
    %v6565 = vpack.c.bf16 %v6561, %v6561
    %v6566 = vpack.c.bf16 %v6562, %v6562
    %v6567 = vpack.c.bf16 %v6563, %v6563
    %s6568 = scalar_lea.vmem [#allocation17], 1024
    %v6569 = vld [vmem:[%s6568] sm:$0xff]
    %v6570 = vld [vmem:[%s6568 + $0x8] sm:$0xff]
    %v6571 = vld [vmem:[%s6568 + $0x10] sm:$0xff]
    %v6572 = vld [vmem:[%s6568 + $0x18] sm:$0xff]
    %v6573 = vld [vmem:[%s6568 + $0x20] sm:$0xff]
    %v6574 = vld [vmem:[%s6568 + $0x28] sm:$0xff]
    %v6575 = vld [vmem:[%s6568 + $0x30] sm:$0xff]
    %v6576 = vld [vmem:[%s6568 + $0x38] sm:$0xff]
    %v6577 = vld [vmem:[%s6568 + $0x40] sm:$0xff]
    %v6578 = vld [vmem:[%s6568 + $0x48] sm:$0xff]
    %v6579 = vld [vmem:[%s6568 + $0x50] sm:$0xff]
    %v6580 = vld [vmem:[%s6568 + $0x58] sm:$0xff]
    %v6581 = vld [vmem:[%s6568 + $0x60] sm:$0xff]
    %v6582 = vld [vmem:[%s6568 + $0x68] sm:$0xff]
    %v6583 = vld [vmem:[%s6568 + $0x70] sm:$0xff]
    %v6584 = vld [vmem:[%s6568 + $0x78] sm:$0xff]
    %v6585 = vld [vmem:[%s6568 + $0x80] sm:$0xff]
    %v6586 = vld [vmem:[%s6568 + $0x88] sm:$0xff]
    %v6587 = vld [vmem:[%s6568 + $0x90] sm:$0xff]
    %v6588 = vld [vmem:[%s6568 + $0x98] sm:$0xff]
    %v6589 = vld [vmem:[%s6568 + $0xa0] sm:$0xff]
    %v6590 = vld [vmem:[%s6568 + $0xa8] sm:$0xff]
    %v6591 = vld [vmem:[%s6568 + $0xb0] sm:$0xff]
    %v6592 = vld [vmem:[%s6568 + $0xb8] sm:$0xff]
    %v6593 = vld [vmem:[%s6568 + $0xc0] sm:$0xff]
    %v6594 = vld [vmem:[%s6568 + $0xc8] sm:$0xff]
    %v6595 = vld [vmem:[%s6568 + $0xd0] sm:$0xff]
    %v6596 = vld [vmem:[%s6568 + $0xd8] sm:$0xff]
    %v6597 = vld [vmem:[%s6568 + $0xe0] sm:$0xff]
    %v6598 = vld [vmem:[%s6568 + $0xe8] sm:$0xff]
    %v6599 = vld [vmem:[%s6568 + $0xf0] sm:$0xff]
    %v6600 = vld [vmem:[%s6568 + $0xf8] sm:$0xff]
    %v6601 = vld [vmem:[%s6568 + $0x100] sm:$0xff]
    %v6602 = vld [vmem:[%s6568 + $0x108] sm:$0xff]
    %v6603 = vld [vmem:[%s6568 + $0x110] sm:$0xff]
    %v6604 = vld [vmem:[%s6568 + $0x118] sm:$0xff]
    %v6605 = vld [vmem:[%s6568 + $0x120] sm:$0xff]
    %v6606 = vld [vmem:[%s6568 + $0x128] sm:$0xff]
    %v6607 = vld [vmem:[%s6568 + $0x130] sm:$0xff]
    %v6608 = vld [vmem:[%s6568 + $0x138] sm:$0xff]
    %v6609 = vld [vmem:[%s6568 + $0x140] sm:$0xff]
    %v6610 = vld [vmem:[%s6568 + $0x148] sm:$0xff]
    %v6611 = vld [vmem:[%s6568 + $0x150] sm:$0xff]
    %v6612 = vld [vmem:[%s6568 + $0x158] sm:$0xff]
    %v6613 = vld [vmem:[%s6568 + $0x160] sm:$0xff]
    %v6614 = vld [vmem:[%s6568 + $0x168] sm:$0xff]
    %v6615 = vld [vmem:[%s6568 + $0x170] sm:$0xff]
    %v6616 = vld [vmem:[%s6568 + $0x178] sm:$0xff]
    %v6617 = vld [vmem:[%s6568 + $0x180] sm:$0xff]
    %v6618 = vld [vmem:[%s6568 + $0x188] sm:$0xff]
    %v6619 = vld [vmem:[%s6568 + $0x190] sm:$0xff]
    %v6620 = vld [vmem:[%s6568 + $0x198] sm:$0xff]
    %v6621 = vld [vmem:[%s6568 + $0x1a0] sm:$0xff]
    %v6622 = vld [vmem:[%s6568 + $0x1a8] sm:$0xff]
    %v6623 = vld [vmem:[%s6568 + $0x1b0] sm:$0xff]
    %v6624 = vld [vmem:[%s6568 + $0x1b8] sm:$0xff]
    %v6625 = vld [vmem:[%s6568 + $0x1c0] sm:$0xff]
    %v6626 = vld [vmem:[%s6568 + $0x1c8] sm:$0xff]
    %v6627 = vld [vmem:[%s6568 + $0x1d0] sm:$0xff]
    %v6628 = vld [vmem:[%s6568 + $0x1d8] sm:$0xff]
    %v6629 = vld [vmem:[%s6568 + $0x1e0] sm:$0xff]
    %v6630 = vld [vmem:[%s6568 + $0x1e8] sm:$0xff]
    %v6631 = vld [vmem:[%s6568 + $0x1f0] sm:$0xff]
    %v6632 = vld [vmem:[%s6568 + $0x1f8] sm:$0xff]
    %v6633 = vld [vmem:[%s6568 + $0x200] sm:$0xff]
    %v6634 = vld [vmem:[%s6568 + $0x208] sm:$0xff]
    %v6635 = vld [vmem:[%s6568 + $0x210] sm:$0xff]
    %v6636 = vld [vmem:[%s6568 + $0x218] sm:$0xff]
    %v6637 = vld [vmem:[%s6568 + $0x220] sm:$0xff]
    %v6638 = vld [vmem:[%s6568 + $0x228] sm:$0xff]
    %v6639 = vld [vmem:[%s6568 + $0x230] sm:$0xff]
    %v6640 = vld [vmem:[%s6568 + $0x238] sm:$0xff]
    %v6641 = vld [vmem:[%s6568 + $0x240] sm:$0xff]
    %v6642 = vld [vmem:[%s6568 + $0x248] sm:$0xff]
    %v6643 = vld [vmem:[%s6568 + $0x250] sm:$0xff]
    %v6644 = vld [vmem:[%s6568 + $0x258] sm:$0xff]
    %v6645 = vld [vmem:[%s6568 + $0x260] sm:$0xff]
    %v6646 = vld [vmem:[%s6568 + $0x268] sm:$0xff]
    %v6647 = vld [vmem:[%s6568 + $0x270] sm:$0xff]
    %v6648 = vld [vmem:[%s6568 + $0x278] sm:$0xff]
    %v6649 = vld [vmem:[%s6568 + $0x280] sm:$0xff]
    %v6650 = vld [vmem:[%s6568 + $0x288] sm:$0xff]
    %v6651 = vld [vmem:[%s6568 + $0x290] sm:$0xff]
    %v6652 = vld [vmem:[%s6568 + $0x298] sm:$0xff]
    %v6653 = vld [vmem:[%s6568 + $0x2a0] sm:$0xff]
    %v6654 = vld [vmem:[%s6568 + $0x2a8] sm:$0xff]
    %v6655 = vld [vmem:[%s6568 + $0x2b0] sm:$0xff]
    %v6656 = vld [vmem:[%s6568 + $0x2b8] sm:$0xff]
    %v6657 = vld [vmem:[%s6568 + $0x2c0] sm:$0xff]
    %v6658 = vld [vmem:[%s6568 + $0x2c8] sm:$0xff]
    %v6659 = vld [vmem:[%s6568 + $0x2d0] sm:$0xff]
    %v6660 = vld [vmem:[%s6568 + $0x2d8] sm:$0xff]
    %v6661 = vld [vmem:[%s6568 + $0x2e0] sm:$0xff]
    %v6662 = vld [vmem:[%s6568 + $0x2e8] sm:$0xff]
    %v6663 = vld [vmem:[%s6568 + $0x2f0] sm:$0xff]
    %v6664 = vld [vmem:[%s6568 + $0x2f8] sm:$0xff]
    %v6665 = vld [vmem:[%s6568 + $0x300] sm:$0xff]
    %v6666 = vld [vmem:[%s6568 + $0x308] sm:$0xff]
    %v6667 = vld [vmem:[%s6568 + $0x310] sm:$0xff]
    %v6668 = vld [vmem:[%s6568 + $0x318] sm:$0xff]
    %v6669 = vld [vmem:[%s6568 + $0x320] sm:$0xff]
    %v6670 = vld [vmem:[%s6568 + $0x328] sm:$0xff]
    %v6671 = vld [vmem:[%s6568 + $0x330] sm:$0xff]
    %v6672 = vld [vmem:[%s6568 + $0x338] sm:$0xff]
    %v6673 = vld [vmem:[%s6568 + $0x340] sm:$0xff]
    %v6674 = vld [vmem:[%s6568 + $0x348] sm:$0xff]
    %v6675 = vld [vmem:[%s6568 + $0x350] sm:$0xff]
    %v6676 = vld [vmem:[%s6568 + $0x358] sm:$0xff]
    %v6677 = vld [vmem:[%s6568 + $0x360] sm:$0xff]
    %v6678 = vld [vmem:[%s6568 + $0x368] sm:$0xff]
    %v6679 = vld [vmem:[%s6568 + $0x370] sm:$0xff]
    %v6680 = vld [vmem:[%s6568 + $0x378] sm:$0xff]
    %v6681 = vld [vmem:[%s6568 + $0x380] sm:$0xff]
    %v6682 = vld [vmem:[%s6568 + $0x388] sm:$0xff]
    %v6683 = vld [vmem:[%s6568 + $0x390] sm:$0xff]
    %v6684 = vld [vmem:[%s6568 + $0x398] sm:$0xff]
    %v6685 = vld [vmem:[%s6568 + $0x3a0] sm:$0xff]
    %v6686 = vld [vmem:[%s6568 + $0x3a8] sm:$0xff]
    %v6687 = vld [vmem:[%s6568 + $0x3b0] sm:$0xff]
    %v6688 = vld [vmem:[%s6568 + $0x3b8] sm:$0xff]
    %v6689 = vld [vmem:[%s6568 + $0x3c0] sm:$0xff]
    %v6690 = vld [vmem:[%s6568 + $0x3c8] sm:$0xff]
    %v6691 = vld [vmem:[%s6568 + $0x3d0] sm:$0xff]
    %v6692 = vld [vmem:[%s6568 + $0x3d8] sm:$0xff]
    %v6693 = vld [vmem:[%s6568 + $0x3e0] sm:$0xff]
    %v6694 = vld [vmem:[%s6568 + $0x3e8] sm:$0xff]
    %v6695 = vld [vmem:[%s6568 + $0x3f0] sm:$0xff]
    %v6696 = vld [vmem:[%s6568 + $0x3f8] sm:$0xff]
    %s6697 = scalar_lea.vmem [#allocation18], 4
    %v6698 = vld [vmem:[%s6697] sm:$0xf]
    %v6700 = vlaneseq
    %v6701 = vshrl.u32 %v6700, 7
    %v6702 = vsub.s32 0, %v6701
    %v6703 = vrot.slane %v6698, %v6702
    %v6704 = vlaneseq
    %v6705 = vshrl.u32 %v6704, 7
    %v6706 = vsub.s32 1, %v6705
    %v6707 = vrot.slane %v6698, %v6706
    %v6708 = vlaneseq
    %v6709 = vshrl.u32 %v6708, 7
    %v6710 = vsub.s32 2, %v6709
    %v6711 = vrot.slane %v6698, %v6710
    %v6712 = vlaneseq
    %v6713 = vshrl.u32 %v6712, 7
    %v6714 = vsub.s32 3, %v6713
    %v6715 = vrot.slane %v6698, %v6714
    %v6848 = vunpack.c.l.b16 %v6569
    %v6849 = vunpack.c.h.b16 %v6569
    %v6850 = vunpack.c.l.b16 %v6570
    %v6851 = vunpack.c.h.b16 %v6570
    %v6852 = vunpack.c.l.b16 %v6571
    %v6853 = vunpack.c.h.b16 %v6571
    %v6854 = vunpack.c.l.b16 %v6572
    %v6855 = vunpack.c.h.b16 %v6572
    %v6856 = vunpack.c.l.b16 %v6573
    %v6857 = vunpack.c.h.b16 %v6573
    %v6858 = vunpack.c.l.b16 %v6574
    %v6859 = vunpack.c.h.b16 %v6574
    %v6860 = vunpack.c.l.b16 %v6575
    %v6861 = vunpack.c.h.b16 %v6575
    %v6862 = vunpack.c.l.b16 %v6576
    %v6863 = vunpack.c.h.b16 %v6576
    %v6864 = vunpack.c.l.b16 %v6577
    %v6865 = vunpack.c.h.b16 %v6577
    %v6866 = vunpack.c.l.b16 %v6578
    %v6867 = vunpack.c.h.b16 %v6578
    %v6868 = vunpack.c.l.b16 %v6579
    %v6869 = vunpack.c.h.b16 %v6579
    %v6870 = vunpack.c.l.b16 %v6580
    %v6871 = vunpack.c.h.b16 %v6580
    %v6872 = vunpack.c.l.b16 %v6581
    %v6873 = vunpack.c.h.b16 %v6581
    %v6874 = vunpack.c.l.b16 %v6582
    %v6875 = vunpack.c.h.b16 %v6582
    %v6876 = vunpack.c.l.b16 %v6583
    %v6877 = vunpack.c.h.b16 %v6583
    %v6878 = vunpack.c.l.b16 %v6584
    %v6879 = vunpack.c.h.b16 %v6584
    %v6880 = vunpack.c.l.b16 %v6585
    %v6881 = vunpack.c.h.b16 %v6585
    %v6882 = vunpack.c.l.b16 %v6586
    %v6883 = vunpack.c.h.b16 %v6586
    %v6884 = vunpack.c.l.b16 %v6587
    %v6885 = vunpack.c.h.b16 %v6587
    %v6886 = vunpack.c.l.b16 %v6588
    %v6887 = vunpack.c.h.b16 %v6588
    %v6888 = vunpack.c.l.b16 %v6589
    %v6889 = vunpack.c.h.b16 %v6589
    %v6890 = vunpack.c.l.b16 %v6590
    %v6891 = vunpack.c.h.b16 %v6590
    %v6892 = vunpack.c.l.b16 %v6591
    %v6893 = vunpack.c.h.b16 %v6591
    %v6894 = vunpack.c.l.b16 %v6592
    %v6895 = vunpack.c.h.b16 %v6592
    %v6896 = vunpack.c.l.b16 %v6593
    %v6897 = vunpack.c.h.b16 %v6593
    %v6898 = vunpack.c.l.b16 %v6594
    %v6899 = vunpack.c.h.b16 %v6594
    %v6900 = vunpack.c.l.b16 %v6595
    %v6901 = vunpack.c.h.b16 %v6595
    %v6902 = vunpack.c.l.b16 %v6596
    %v6903 = vunpack.c.h.b16 %v6596
    %v6904 = vunpack.c.l.b16 %v6597
    %v6905 = vunpack.c.h.b16 %v6597
    %v6906 = vunpack.c.l.b16 %v6598
    %v6907 = vunpack.c.h.b16 %v6598
    %v6908 = vunpack.c.l.b16 %v6599
    %v6909 = vunpack.c.h.b16 %v6599
    %v6910 = vunpack.c.l.b16 %v6600
    %v6911 = vunpack.c.h.b16 %v6600
    %v6912 = vunpack.c.l.b16 %v6601
    %v6913 = vunpack.c.h.b16 %v6601
    %v6914 = vunpack.c.l.b16 %v6602
    %v6915 = vunpack.c.h.b16 %v6602
    %v6916 = vunpack.c.l.b16 %v6603
    %v6917 = vunpack.c.h.b16 %v6603
    %v6918 = vunpack.c.l.b16 %v6604
    %v6919 = vunpack.c.h.b16 %v6604
    %v6920 = vunpack.c.l.b16 %v6605
    %v6921 = vunpack.c.h.b16 %v6605
    %v6922 = vunpack.c.l.b16 %v6606
    %v6923 = vunpack.c.h.b16 %v6606
    %v6924 = vunpack.c.l.b16 %v6607
    %v6925 = vunpack.c.h.b16 %v6607
    %v6926 = vunpack.c.l.b16 %v6608
    %v6927 = vunpack.c.h.b16 %v6608
    %v6928 = vunpack.c.l.b16 %v6609
    %v6929 = vunpack.c.h.b16 %v6609
    %v6930 = vunpack.c.l.b16 %v6610
    %v6931 = vunpack.c.h.b16 %v6610
    %v6932 = vunpack.c.l.b16 %v6611
    %v6933 = vunpack.c.h.b16 %v6611
    %v6934 = vunpack.c.l.b16 %v6612
    %v6935 = vunpack.c.h.b16 %v6612
    %v6936 = vunpack.c.l.b16 %v6613
    %v6937 = vunpack.c.h.b16 %v6613
    %v6938 = vunpack.c.l.b16 %v6614
    %v6939 = vunpack.c.h.b16 %v6614
    %v6940 = vunpack.c.l.b16 %v6615
    %v6941 = vunpack.c.h.b16 %v6615
    %v6942 = vunpack.c.l.b16 %v6616
    %v6943 = vunpack.c.h.b16 %v6616
    %v6944 = vunpack.c.l.b16 %v6617
    %v6945 = vunpack.c.h.b16 %v6617
    %v6946 = vunpack.c.l.b16 %v6618
    %v6947 = vunpack.c.h.b16 %v6618
    %v6948 = vunpack.c.l.b16 %v6619
    %v6949 = vunpack.c.h.b16 %v6619
    %v6950 = vunpack.c.l.b16 %v6620
    %v6951 = vunpack.c.h.b16 %v6620
    %v6952 = vunpack.c.l.b16 %v6621
    %v6953 = vunpack.c.h.b16 %v6621
    %v6954 = vunpack.c.l.b16 %v6622
    %v6955 = vunpack.c.h.b16 %v6622
    %v6956 = vunpack.c.l.b16 %v6623
    %v6957 = vunpack.c.h.b16 %v6623
    %v6958 = vunpack.c.l.b16 %v6624
    %v6959 = vunpack.c.h.b16 %v6624
    %v6960 = vunpack.c.l.b16 %v6625
    %v6961 = vunpack.c.h.b16 %v6625
    %v6962 = vunpack.c.l.b16 %v6626
    %v6963 = vunpack.c.h.b16 %v6626
    %v6964 = vunpack.c.l.b16 %v6627
    %v6965 = vunpack.c.h.b16 %v6627
    %v6966 = vunpack.c.l.b16 %v6628
    %v6967 = vunpack.c.h.b16 %v6628
    %v6968 = vunpack.c.l.b16 %v6629
    %v6969 = vunpack.c.h.b16 %v6629
    %v6970 = vunpack.c.l.b16 %v6630
    %v6971 = vunpack.c.h.b16 %v6630
    %v6972 = vunpack.c.l.b16 %v6631
    %v6973 = vunpack.c.h.b16 %v6631
    %v6974 = vunpack.c.l.b16 %v6632
    %v6975 = vunpack.c.h.b16 %v6632
    %v6976 = vunpack.c.l.b16 %v6633
    %v6977 = vunpack.c.h.b16 %v6633
    %v6978 = vunpack.c.l.b16 %v6634
    %v6979 = vunpack.c.h.b16 %v6634
    %v6980 = vunpack.c.l.b16 %v6635
    %v6981 = vunpack.c.h.b16 %v6635
    %v6982 = vunpack.c.l.b16 %v6636
    %v6983 = vunpack.c.h.b16 %v6636
    %v6984 = vunpack.c.l.b16 %v6637
    %v6985 = vunpack.c.h.b16 %v6637
    %v6986 = vunpack.c.l.b16 %v6638
    %v6987 = vunpack.c.h.b16 %v6638
    %v6988 = vunpack.c.l.b16 %v6639
    %v6989 = vunpack.c.h.b16 %v6639
    %v6990 = vunpack.c.l.b16 %v6640
    %v6991 = vunpack.c.h.b16 %v6640
    %v6992 = vunpack.c.l.b16 %v6641
    %v6993 = vunpack.c.h.b16 %v6641
    %v6994 = vunpack.c.l.b16 %v6642
    %v6995 = vunpack.c.h.b16 %v6642
    %v6996 = vunpack.c.l.b16 %v6643
    %v6997 = vunpack.c.h.b16 %v6643
    %v6998 = vunpack.c.l.b16 %v6644
    %v6999 = vunpack.c.h.b16 %v6644
    %v7000 = vunpack.c.l.b16 %v6645
    %v7001 = vunpack.c.h.b16 %v6645
    %v7002 = vunpack.c.l.b16 %v6646
    %v7003 = vunpack.c.h.b16 %v6646
    %v7004 = vunpack.c.l.b16 %v6647
    %v7005 = vunpack.c.h.b16 %v6647
    %v7006 = vunpack.c.l.b16 %v6648
    %v7007 = vunpack.c.h.b16 %v6648
    %v7008 = vunpack.c.l.b16 %v6649
    %v7009 = vunpack.c.h.b16 %v6649
    %v7010 = vunpack.c.l.b16 %v6650
    %v7011 = vunpack.c.h.b16 %v6650
    %v7012 = vunpack.c.l.b16 %v6651
    %v7013 = vunpack.c.h.b16 %v6651
    %v7014 = vunpack.c.l.b16 %v6652
    %v7015 = vunpack.c.h.b16 %v6652
    %v7016 = vunpack.c.l.b16 %v6653
    %v7017 = vunpack.c.h.b16 %v6653
    %v7018 = vunpack.c.l.b16 %v6654
    %v7019 = vunpack.c.h.b16 %v6654
    %v7020 = vunpack.c.l.b16 %v6655
    %v7021 = vunpack.c.h.b16 %v6655
    %v7022 = vunpack.c.l.b16 %v6656
    %v7023 = vunpack.c.h.b16 %v6656
    %v7024 = vunpack.c.l.b16 %v6657
    %v7025 = vunpack.c.h.b16 %v6657
    %v7026 = vunpack.c.l.b16 %v6658
    %v7027 = vunpack.c.h.b16 %v6658
    %v7028 = vunpack.c.l.b16 %v6659
    %v7029 = vunpack.c.h.b16 %v6659
    %v7030 = vunpack.c.l.b16 %v6660
    %v7031 = vunpack.c.h.b16 %v6660
    %v7032 = vunpack.c.l.b16 %v6661
    %v7033 = vunpack.c.h.b16 %v6661
    %v7034 = vunpack.c.l.b16 %v6662
    %v7035 = vunpack.c.h.b16 %v6662
    %v7036 = vunpack.c.l.b16 %v6663
    %v7037 = vunpack.c.h.b16 %v6663
    %v7038 = vunpack.c.l.b16 %v6664
    %v7039 = vunpack.c.h.b16 %v6664
    %v7040 = vunpack.c.l.b16 %v6665
    %v7041 = vunpack.c.h.b16 %v6665
    %v7042 = vunpack.c.l.b16 %v6666
    %v7043 = vunpack.c.h.b16 %v6666
    %v7044 = vunpack.c.l.b16 %v6667
    %v7045 = vunpack.c.h.b16 %v6667
    %v7046 = vunpack.c.l.b16 %v6668
    %v7047 = vunpack.c.h.b16 %v6668
    %v7048 = vunpack.c.l.b16 %v6669
    %v7049 = vunpack.c.h.b16 %v6669
    %v7050 = vunpack.c.l.b16 %v6670
    %v7051 = vunpack.c.h.b16 %v6670
    %v7052 = vunpack.c.l.b16 %v6671
    %v7053 = vunpack.c.h.b16 %v6671
    %v7054 = vunpack.c.l.b16 %v6672
    %v7055 = vunpack.c.h.b16 %v6672
    %v7056 = vunpack.c.l.b16 %v6673
    %v7057 = vunpack.c.h.b16 %v6673
    %v7058 = vunpack.c.l.b16 %v6674
    %v7059 = vunpack.c.h.b16 %v6674
    %v7060 = vunpack.c.l.b16 %v6675
    %v7061 = vunpack.c.h.b16 %v6675
    %v7062 = vunpack.c.l.b16 %v6676
    %v7063 = vunpack.c.h.b16 %v6676
    %v7064 = vunpack.c.l.b16 %v6677
    %v7065 = vunpack.c.h.b16 %v6677
    %v7066 = vunpack.c.l.b16 %v6678
    %v7067 = vunpack.c.h.b16 %v6678
    %v7068 = vunpack.c.l.b16 %v6679
    %v7069 = vunpack.c.h.b16 %v6679
    %v7070 = vunpack.c.l.b16 %v6680
    %v7071 = vunpack.c.h.b16 %v6680
    %v7072 = vunpack.c.l.b16 %v6681
    %v7073 = vunpack.c.h.b16 %v6681
    %v7074 = vunpack.c.l.b16 %v6682
    %v7075 = vunpack.c.h.b16 %v6682
    %v7076 = vunpack.c.l.b16 %v6683
    %v7077 = vunpack.c.h.b16 %v6683
    %v7078 = vunpack.c.l.b16 %v6684
    %v7079 = vunpack.c.h.b16 %v6684
    %v7080 = vunpack.c.l.b16 %v6685
    %v7081 = vunpack.c.h.b16 %v6685
    %v7082 = vunpack.c.l.b16 %v6686
    %v7083 = vunpack.c.h.b16 %v6686
    %v7084 = vunpack.c.l.b16 %v6687
    %v7085 = vunpack.c.h.b16 %v6687
    %v7086 = vunpack.c.l.b16 %v6688
    %v7087 = vunpack.c.h.b16 %v6688
    %v7088 = vunpack.c.l.b16 %v6689
    %v7089 = vunpack.c.h.b16 %v6689
    %v7090 = vunpack.c.l.b16 %v6690
    %v7091 = vunpack.c.h.b16 %v6690
    %v7092 = vunpack.c.l.b16 %v6691
    %v7093 = vunpack.c.h.b16 %v6691
    %v7094 = vunpack.c.l.b16 %v6692
    %v7095 = vunpack.c.h.b16 %v6692
    %v7096 = vunpack.c.l.b16 %v6693
    %v7097 = vunpack.c.h.b16 %v6693
    %v7098 = vunpack.c.l.b16 %v6694
    %v7099 = vunpack.c.h.b16 %v6694
    %v7100 = vunpack.c.l.b16 %v6695
    %v7101 = vunpack.c.h.b16 %v6695
    %v7102 = vunpack.c.l.b16 %v6696
    %v7103 = vunpack.c.h.b16 %v6696
    %v7104 = vpack.c.b16 %v6852, %v6848
    %v7105 = vpack.c.b16 %v6853, %v6849
    %v7106 = vpack.c.b16 %v6854, %v6850
    %v7107 = vpack.c.b16 %v6855, %v6851
    %v7108 = vpack.c.b16 %v6860, %v6856
    %v7109 = vpack.c.b16 %v6861, %v6857
    %v7110 = vpack.c.b16 %v6862, %v6858
    %v7111 = vpack.c.b16 %v6863, %v6859
    %v7112 = vpack.c.b16 %v6868, %v6864
    %v7113 = vpack.c.b16 %v6869, %v6865
    %v7114 = vpack.c.b16 %v6870, %v6866
    %v7115 = vpack.c.b16 %v6871, %v6867
    %v7116 = vpack.c.b16 %v6876, %v6872
    %v7117 = vpack.c.b16 %v6877, %v6873
    %v7118 = vpack.c.b16 %v6878, %v6874
    %v7119 = vpack.c.b16 %v6879, %v6875
    %v7120 = vpack.c.b16 %v6884, %v6880
    %v7121 = vpack.c.b16 %v6885, %v6881
    %v7122 = vpack.c.b16 %v6886, %v6882
    %v7123 = vpack.c.b16 %v6887, %v6883
    %v7124 = vpack.c.b16 %v6892, %v6888
    %v7125 = vpack.c.b16 %v6893, %v6889
    %v7126 = vpack.c.b16 %v6894, %v6890
    %v7127 = vpack.c.b16 %v6895, %v6891
    %v7128 = vpack.c.b16 %v6900, %v6896
    %v7129 = vpack.c.b16 %v6901, %v6897
    %v7130 = vpack.c.b16 %v6902, %v6898
    %v7131 = vpack.c.b16 %v6903, %v6899
    %v7132 = vpack.c.b16 %v6908, %v6904
    %v7133 = vpack.c.b16 %v6909, %v6905
    %v7134 = vpack.c.b16 %v6910, %v6906
    %v7135 = vpack.c.b16 %v6911, %v6907
    %v7136 = vpack.c.b16 %v6916, %v6912
    %v7137 = vpack.c.b16 %v6917, %v6913
    %v7138 = vpack.c.b16 %v6918, %v6914
    %v7139 = vpack.c.b16 %v6919, %v6915
    %v7140 = vpack.c.b16 %v6924, %v6920
    %v7141 = vpack.c.b16 %v6925, %v6921
    %v7142 = vpack.c.b16 %v6926, %v6922
    %v7143 = vpack.c.b16 %v6927, %v6923
    %v7144 = vpack.c.b16 %v6932, %v6928
    %v7145 = vpack.c.b16 %v6933, %v6929
    %v7146 = vpack.c.b16 %v6934, %v6930
    %v7147 = vpack.c.b16 %v6935, %v6931
    %v7148 = vpack.c.b16 %v6940, %v6936
    %v7149 = vpack.c.b16 %v6941, %v6937
    %v7150 = vpack.c.b16 %v6942, %v6938
    %v7151 = vpack.c.b16 %v6943, %v6939
    %v7152 = vpack.c.b16 %v6948, %v6944
    %v7153 = vpack.c.b16 %v6949, %v6945
    %v7154 = vpack.c.b16 %v6950, %v6946
    %v7155 = vpack.c.b16 %v6951, %v6947
    %v7156 = vpack.c.b16 %v6956, %v6952
    %v7157 = vpack.c.b16 %v6957, %v6953
    %v7158 = vpack.c.b16 %v6958, %v6954
    %v7159 = vpack.c.b16 %v6959, %v6955
    %v7160 = vpack.c.b16 %v6964, %v6960
    %v7161 = vpack.c.b16 %v6965, %v6961
    %v7162 = vpack.c.b16 %v6966, %v6962
    %v7163 = vpack.c.b16 %v6967, %v6963
    %v7164 = vpack.c.b16 %v6972, %v6968
    %v7165 = vpack.c.b16 %v6973, %v6969
    %v7166 = vpack.c.b16 %v6974, %v6970
    %v7167 = vpack.c.b16 %v6975, %v6971
    %v7168 = vpack.c.b16 %v6980, %v6976
    %v7169 = vpack.c.b16 %v6981, %v6977
    %v7170 = vpack.c.b16 %v6982, %v6978
    %v7171 = vpack.c.b16 %v6983, %v6979
    %v7172 = vpack.c.b16 %v6988, %v6984
    %v7173 = vpack.c.b16 %v6989, %v6985
    %v7174 = vpack.c.b16 %v6990, %v6986
    %v7175 = vpack.c.b16 %v6991, %v6987
    %v7176 = vpack.c.b16 %v6996, %v6992
    %v7177 = vpack.c.b16 %v6997, %v6993
    %v7178 = vpack.c.b16 %v6998, %v6994
    %v7179 = vpack.c.b16 %v6999, %v6995
    %v7180 = vpack.c.b16 %v7004, %v7000
    %v7181 = vpack.c.b16 %v7005, %v7001
    %v7182 = vpack.c.b16 %v7006, %v7002
    %v7183 = vpack.c.b16 %v7007, %v7003
    %v7184 = vpack.c.b16 %v7012, %v7008
    %v7185 = vpack.c.b16 %v7013, %v7009
    %v7186 = vpack.c.b16 %v7014, %v7010
    %v7187 = vpack.c.b16 %v7015, %v7011
    %v7188 = vpack.c.b16 %v7020, %v7016
    %v7189 = vpack.c.b16 %v7021, %v7017
    %v7190 = vpack.c.b16 %v7022, %v7018
    %v7191 = vpack.c.b16 %v7023, %v7019
    %v7192 = vpack.c.b16 %v7028, %v7024
    %v7193 = vpack.c.b16 %v7029, %v7025
    %v7194 = vpack.c.b16 %v7030, %v7026
    %v7195 = vpack.c.b16 %v7031, %v7027
    %v7196 = vpack.c.b16 %v7036, %v7032
    %v7197 = vpack.c.b16 %v7037, %v7033
    %v7198 = vpack.c.b16 %v7038, %v7034
    %v7199 = vpack.c.b16 %v7039, %v7035
    %v7200 = vpack.c.b16 %v7044, %v7040
    %v7201 = vpack.c.b16 %v7045, %v7041
    %v7202 = vpack.c.b16 %v7046, %v7042
    %v7203 = vpack.c.b16 %v7047, %v7043
    %v7204 = vpack.c.b16 %v7052, %v7048
    %v7205 = vpack.c.b16 %v7053, %v7049
    %v7206 = vpack.c.b16 %v7054, %v7050
    %v7207 = vpack.c.b16 %v7055, %v7051
    %v7208 = vpack.c.b16 %v7060, %v7056
    %v7209 = vpack.c.b16 %v7061, %v7057
    %v7210 = vpack.c.b16 %v7062, %v7058
    %v7211 = vpack.c.b16 %v7063, %v7059
    %v7212 = vpack.c.b16 %v7068, %v7064
    %v7213 = vpack.c.b16 %v7069, %v7065
    %v7214 = vpack.c.b16 %v7070, %v7066
    %v7215 = vpack.c.b16 %v7071, %v7067
    %v7216 = vpack.c.b16 %v7076, %v7072
    %v7217 = vpack.c.b16 %v7077, %v7073
    %v7218 = vpack.c.b16 %v7078, %v7074
    %v7219 = vpack.c.b16 %v7079, %v7075
    %v7220 = vpack.c.b16 %v7084, %v7080
    %v7221 = vpack.c.b16 %v7085, %v7081
    %v7222 = vpack.c.b16 %v7086, %v7082
    %v7223 = vpack.c.b16 %v7087, %v7083
    %v7224 = vpack.c.b16 %v7092, %v7088
    %v7225 = vpack.c.b16 %v7093, %v7089
    %v7226 = vpack.c.b16 %v7094, %v7090
    %v7227 = vpack.c.b16 %v7095, %v7091
    %v7228 = vpack.c.b16 %v7100, %v7096
    %v7229 = vpack.c.b16 %v7101, %v7097
    %v7230 = vpack.c.b16 %v7102, %v7098
    %v7231 = vpack.c.b16 %v7103, %v7099
    %7360 = vmatprep.subr.bf16.mxu0 %v7105
    %7361 = vmatpush1.bf16.msra.mxu0 %v7104
    %7362 = vmatprep.subr.bf16.mxu0 %v7109
    %7363 = vmatpush1.bf16.msra.mxu0 %v7108
    %7364 = vmatprep.subr.bf16.mxu0 %v7113
    %7365 = vmatpush1.bf16.msra.mxu0 %v7112
    %7366 = vmatprep.subr.bf16.mxu0 %v7117
    %7367 = vmatpush1.bf16.msra.mxu0 %v7116
    %7368 = vmatprep.subr.bf16.mxu0 %v7121
    %7369 = vmatpush1.bf16.msra.mxu0 %v7120
    %7370 = vmatprep.subr.bf16.mxu0 %v7125
    %7371 = vmatpush1.bf16.msra.mxu0 %v7124
    %7372 = vmatprep.subr.bf16.mxu0 %v7129
    %7373 = vmatpush1.bf16.msra.mxu0 %v7128
    %7374 = vmatprep.subr.bf16.mxu0 %v7133
    %7375 = vmatpush1.bf16.msra.mxu0 %v7132
    %7376 = vmatprep.subr.bf16.mxu0 %v7137
    %7377 = vmatpush1.bf16.msra.mxu0 %v7136
    %7378 = vmatprep.subr.bf16.mxu0 %v7141
    %7379 = vmatpush1.bf16.msra.mxu0 %v7140
    %7380 = vmatprep.subr.bf16.mxu0 %v7145
    %7381 = vmatpush1.bf16.msra.mxu0 %v7144
    %7382 = vmatprep.subr.bf16.mxu0 %v7149
    %7383 = vmatpush1.bf16.msra.mxu0 %v7148
    %7384 = vmatprep.subr.bf16.mxu0 %v7153
    %7385 = vmatpush1.bf16.msra.mxu0 %v7152
    %7386 = vmatprep.subr.bf16.mxu0 %v7157
    %7387 = vmatpush1.bf16.msra.mxu0 %v7156
    %7388 = vmatprep.subr.bf16.mxu0 %v7161
    %7389 = vmatpush1.bf16.msra.mxu0 %v7160
    %7390 = vmatprep.subr.bf16.mxu0 %v7165
    %7391 = vmatpush1.bf16.msra.mxu0 %v7164
    %7392 = vmatprep.mubr.bf16.mxu0 %v6565
    %7393 = vmatmul.mubr.bf16.gmra.mrb[0].mxu0 %v6564
    %v7394 = vpop.f32.mrb[0].mxu0
    %v7395 = vadd.f32 %v6703, %v7394
    %v7396 = vpop.f32.mrb[0].mxu0
    %v7397 = vadd.f32 %v6707, %v7396
    %v7398 = vpop.f32.mrb[0].mxu0
    %v7399 = vpop.f32.mrb[0].mxu0
    %7400 = vdwg.mxu0
    %7401 = vmatprep.subr.bf16.mxu0 %v7169
    %7402 = vmatpush1.bf16.msra.mxu0 %v7168
    %7403 = vmatprep.subr.bf16.mxu0 %v7173
    %7404 = vmatpush1.bf16.msra.mxu0 %v7172
    %7405 = vmatprep.subr.bf16.mxu0 %v7177
    %7406 = vmatpush1.bf16.msra.mxu0 %v7176
    %7407 = vmatprep.subr.bf16.mxu0 %v7181
    %7408 = vmatpush1.bf16.msra.mxu0 %v7180
    %7409 = vmatprep.subr.bf16.mxu0 %v7185
    %7410 = vmatpush1.bf16.msra.mxu0 %v7184
    %7411 = vmatprep.subr.bf16.mxu0 %v7189
    %7412 = vmatpush1.bf16.msra.mxu0 %v7188
    %7413 = vmatprep.subr.bf16.mxu0 %v7193
    %7414 = vmatpush1.bf16.msra.mxu0 %v7192
    %7415 = vmatprep.subr.bf16.mxu0 %v7197
    %7416 = vmatpush1.bf16.msra.mxu0 %v7196
    %7417 = vmatprep.subr.bf16.mxu0 %v7201
    %7418 = vmatpush1.bf16.msra.mxu0 %v7200
    %7419 = vmatprep.subr.bf16.mxu0 %v7205
    %7420 = vmatpush1.bf16.msra.mxu0 %v7204
    %7421 = vmatprep.subr.bf16.mxu0 %v7209
    %7422 = vmatpush1.bf16.msra.mxu0 %v7208
    %7423 = vmatprep.subr.bf16.mxu0 %v7213
    %7424 = vmatpush1.bf16.msra.mxu0 %v7212
    %7425 = vmatprep.subr.bf16.mxu0 %v7217
    %7426 = vmatpush1.bf16.msra.mxu0 %v7216
    %7427 = vmatprep.subr.bf16.mxu0 %v7221
    %7428 = vmatpush1.bf16.msra.mxu0 %v7220
    %7429 = vmatprep.subr.bf16.mxu0 %v7225
    %7430 = vmatpush1.bf16.msra.mxu0 %v7224
    %7431 = vmatprep.subr.bf16.mxu0 %v7229
    %7432 = vmatpush1.bf16.msra.mxu0 %v7228
    %7433 = vmatprep.mubr.bf16.mxu0 %v6567
    %7434 = vmatmul.mubr.bf16.gmra.mrb[0].mxu0 %v6566
    %v7435 = vpop.f32.mrb[0].mxu0
    %v7436 = vadd.f32 %v7395, %v7435
    %v7437 = vpop.f32.mrb[0].mxu0
    %v7438 = vadd.f32 %v7397, %v7437
    %v7439 = vpop.f32.mrb[0].mxu0
    %v7440 = vpop.f32.mrb[0].mxu0
    %7441 = vdwg.mxu0
    %7442 = vmatprep.subr.bf16.mxu0 %v7107
    %7443 = vmatpush1.bf16.msra.mxu0 %v7106
    %7444 = vmatprep.subr.bf16.mxu0 %v7111
    %7445 = vmatpush1.bf16.msra.mxu0 %v7110
    %7446 = vmatprep.subr.bf16.mxu0 %v7115
    %7447 = vmatpush1.bf16.msra.mxu0 %v7114
    %7448 = vmatprep.subr.bf16.mxu0 %v7119
    %7449 = vmatpush1.bf16.msra.mxu0 %v7118
    %7450 = vmatprep.subr.bf16.mxu0 %v7123
    %7451 = vmatpush1.bf16.msra.mxu0 %v7122
    %7452 = vmatprep.subr.bf16.mxu0 %v7127
    %7453 = vmatpush1.bf16.msra.mxu0 %v7126
    %7454 = vmatprep.subr.bf16.mxu0 %v7131
    %7455 = vmatpush1.bf16.msra.mxu0 %v7130
    %7456 = vmatprep.subr.bf16.mxu0 %v7135
    %7457 = vmatpush1.bf16.msra.mxu0 %v7134
    %7458 = vmatprep.subr.bf16.mxu0 %v7139
    %7459 = vmatpush1.bf16.msra.mxu0 %v7138
    %7460 = vmatprep.subr.bf16.mxu0 %v7143
    %7461 = vmatpush1.bf16.msra.mxu0 %v7142
    %7462 = vmatprep.subr.bf16.mxu0 %v7147
    %7463 = vmatpush1.bf16.msra.mxu0 %v7146
    %7464 = vmatprep.subr.bf16.mxu0 %v7151
    %7465 = vmatpush1.bf16.msra.mxu0 %v7150
    %7466 = vmatprep.subr.bf16.mxu0 %v7155
    %7467 = vmatpush1.bf16.msra.mxu0 %v7154
    %7468 = vmatprep.subr.bf16.mxu0 %v7159
    %7469 = vmatpush1.bf16.msra.mxu0 %v7158
    %7470 = vmatprep.subr.bf16.mxu0 %v7163
    %7471 = vmatpush1.bf16.msra.mxu0 %v7162
    %7472 = vmatprep.subr.bf16.mxu0 %v7167
    %7473 = vmatpush1.bf16.msra.mxu0 %v7166
    %7474 = vmatprep.mubr.bf16.mxu0 %v6565
    %7475 = vmatmul.mubr.bf16.gmra.mrb[0].mxu0 %v6564
    %v7476 = vpop.f32.mrb[0].mxu0
    %v7477 = vadd.f32 %v6711, %v7476
    %v7478 = vpop.f32.mrb[0].mxu0
    %v7479 = vadd.f32 %v6715, %v7478
    %v7480 = vpop.f32.mrb[0].mxu0
    %v7481 = vpop.f32.mrb[0].mxu0
    %7482 = vdwg.mxu0
    %7483 = vmatprep.subr.bf16.mxu0 %v7171
    %7484 = vmatpush1.bf16.msra.mxu0 %v7170
    %7485 = vmatprep.subr.bf16.mxu0 %v7175
    %7486 = vmatpush1.bf16.msra.mxu0 %v7174
    %7487 = vmatprep.subr.bf16.mxu0 %v7179
    %7488 = vmatpush1.bf16.msra.mxu0 %v7178
    %7489 = vmatprep.subr.bf16.mxu0 %v7183
    %7490 = vmatpush1.bf16.msra.mxu0 %v7182
    %7491 = vmatprep.subr.bf16.mxu0 %v7187
    %7492 = vmatpush1.bf16.msra.mxu0 %v7186
    %7493 = vmatprep.subr.bf16.mxu0 %v7191
    %7494 = vmatpush1.bf16.msra.mxu0 %v7190
    %7495 = vmatprep.subr.bf16.mxu0 %v7195
    %7496 = vmatpush1.bf16.msra.mxu0 %v7194
    %7497 = vmatprep.subr.bf16.mxu0 %v7199
    %7498 = vmatpush1.bf16.msra.mxu0 %v7198
    %7499 = vmatprep.subr.bf16.mxu0 %v7203
    %7500 = vmatpush1.bf16.msra.mxu0 %v7202
    %7501 = vmatprep.subr.bf16.mxu0 %v7207
    %7502 = vmatpush1.bf16.msra.mxu0 %v7206
    %7503 = vmatprep.subr.bf16.mxu0 %v7211
    %7504 = vmatpush1.bf16.msra.mxu0 %v7210
    %7505 = vmatprep.subr.bf16.mxu0 %v7215
    %7506 = vmatpush1.bf16.msra.mxu0 %v7214
    %7507 = vmatprep.subr.bf16.mxu0 %v7219
    %7508 = vmatpush1.bf16.msra.mxu0 %v7218
    %7509 = vmatprep.subr.bf16.mxu0 %v7223
    %7510 = vmatpush1.bf16.msra.mxu0 %v7222
    %7511 = vmatprep.subr.bf16.mxu0 %v7227
    %7512 = vmatpush1.bf16.msra.mxu0 %v7226
    %7513 = vmatprep.subr.bf16.mxu0 %v7231
    %7514 = vmatpush1.bf16.msra.mxu0 %v7230
    %7515 = vmatprep.mubr.bf16.mxu0 %v6567
    %7516 = vmatmul.mubr.bf16.gmra.mrb[0].mxu0 %v6566
    %v7517 = vpop.f32.mrb[0].mxu0
    %v7518 = vadd.f32 %v7477, %v7517
    %v7519 = vpop.f32.mrb[0].mxu0
    %v7520 = vadd.f32 %v7479, %v7519
    %v7521 = vpop.f32.mrb[0].mxu0
    %v7522 = vpop.f32.mrb[0].mxu0
    %7523 = vdwg.mxu0
    %v7524 = vmax.f32 %v7436, 0.0
    %v7525 = vmax.f32 %v7438, 0.0
    %v7526 = vmax.f32 %v7518, 0.0
    %v7527 = vmax.f32 %v7520, 0.0
    %v7528 = vpack.c.bf16 %v7524, %v7524
    %v7529 = vpack.c.bf16 %v7525, %v7525
    %v7530 = vpack.c.bf16 %v7526, %v7526
    %v7531 = vpack.c.bf16 %v7527, %v7527
    %s7532 = scalar_lea.vmem [#allocation17], 2048
    %v7533 = vld [vmem:[%s7532] sm:$0xff]
    %v7534 = vld [vmem:[%s7532 + $0x8] sm:$0xff]
    %v7535 = vld [vmem:[%s7532 + $0x10] sm:$0xff]
    %v7536 = vld [vmem:[%s7532 + $0x18] sm:$0xff]
    %v7537 = vld [vmem:[%s7532 + $0x20] sm:$0xff]
    %v7538 = vld [vmem:[%s7532 + $0x28] sm:$0xff]
    %v7539 = vld [vmem:[%s7532 + $0x30] sm:$0xff]
    %v7540 = vld [vmem:[%s7532 + $0x38] sm:$0xff]
    %v7541 = vld [vmem:[%s7532 + $0x40] sm:$0xff]
    %v7542 = vld [vmem:[%s7532 + $0x48] sm:$0xff]
    %v7543 = vld [vmem:[%s7532 + $0x50] sm:$0xff]
    %v7544 = vld [vmem:[%s7532 + $0x58] sm:$0xff]
    %v7545 = vld [vmem:[%s7532 + $0x60] sm:$0xff]
    %v7546 = vld [vmem:[%s7532 + $0x68] sm:$0xff]
    %v7547 = vld [vmem:[%s7532 + $0x70] sm:$0xff]
    %v7548 = vld [vmem:[%s7532 + $0x78] sm:$0xff]
    %v7549 = vld [vmem:[%s7532 + $0x80] sm:$0xff]
    %v7550 = vld [vmem:[%s7532 + $0x88] sm:$0xff]
    %v7551 = vld [vmem:[%s7532 + $0x90] sm:$0xff]
    %v7552 = vld [vmem:[%s7532 + $0x98] sm:$0xff]
    %v7553 = vld [vmem:[%s7532 + $0xa0] sm:$0xff]
    %v7554 = vld [vmem:[%s7532 + $0xa8] sm:$0xff]
    %v7555 = vld [vmem:[%s7532 + $0xb0] sm:$0xff]
    %v7556 = vld [vmem:[%s7532 + $0xb8] sm:$0xff]
    %v7557 = vld [vmem:[%s7532 + $0xc0] sm:$0xff]
    %v7558 = vld [vmem:[%s7532 + $0xc8] sm:$0xff]
    %v7559 = vld [vmem:[%s7532 + $0xd0] sm:$0xff]
    %v7560 = vld [vmem:[%s7532 + $0xd8] sm:$0xff]
    %v7561 = vld [vmem:[%s7532 + $0xe0] sm:$0xff]
    %v7562 = vld [vmem:[%s7532 + $0xe8] sm:$0xff]
    %v7563 = vld [vmem:[%s7532 + $0xf0] sm:$0xff]
    %v7564 = vld [vmem:[%s7532 + $0xf8] sm:$0xff]
    %v7565 = vld [vmem:[%s7532 + $0x100] sm:$0xff]
    %v7566 = vld [vmem:[%s7532 + $0x108] sm:$0xff]
    %v7567 = vld [vmem:[%s7532 + $0x110] sm:$0xff]
    %v7568 = vld [vmem:[%s7532 + $0x118] sm:$0xff]
    %v7569 = vld [vmem:[%s7532 + $0x120] sm:$0xff]
    %v7570 = vld [vmem:[%s7532 + $0x128] sm:$0xff]
    %v7571 = vld [vmem:[%s7532 + $0x130] sm:$0xff]
    %v7572 = vld [vmem:[%s7532 + $0x138] sm:$0xff]
    %v7573 = vld [vmem:[%s7532 + $0x140] sm:$0xff]
    %v7574 = vld [vmem:[%s7532 + $0x148] sm:$0xff]
    %v7575 = vld [vmem:[%s7532 + $0x150] sm:$0xff]
    %v7576 = vld [vmem:[%s7532 + $0x158] sm:$0xff]
    %v7577 = vld [vmem:[%s7532 + $0x160] sm:$0xff]
    %v7578 = vld [vmem:[%s7532 + $0x168] sm:$0xff]
    %v7579 = vld [vmem:[%s7532 + $0x170] sm:$0xff]
    %v7580 = vld [vmem:[%s7532 + $0x178] sm:$0xff]
    %v7581 = vld [vmem:[%s7532 + $0x180] sm:$0xff]
    %v7582 = vld [vmem:[%s7532 + $0x188] sm:$0xff]
    %v7583 = vld [vmem:[%s7532 + $0x190] sm:$0xff]
    %v7584 = vld [vmem:[%s7532 + $0x198] sm:$0xff]
    %v7585 = vld [vmem:[%s7532 + $0x1a0] sm:$0xff]
    %v7586 = vld [vmem:[%s7532 + $0x1a8] sm:$0xff]
    %v7587 = vld [vmem:[%s7532 + $0x1b0] sm:$0xff]
    %v7588 = vld [vmem:[%s7532 + $0x1b8] sm:$0xff]
    %v7589 = vld [vmem:[%s7532 + $0x1c0] sm:$0xff]
    %v7590 = vld [vmem:[%s7532 + $0x1c8] sm:$0xff]
    %v7591 = vld [vmem:[%s7532 + $0x1d0] sm:$0xff]
    %v7592 = vld [vmem:[%s7532 + $0x1d8] sm:$0xff]
    %v7593 = vld [vmem:[%s7532 + $0x1e0] sm:$0xff]
    %v7594 = vld [vmem:[%s7532 + $0x1e8] sm:$0xff]
    %v7595 = vld [vmem:[%s7532 + $0x1f0] sm:$0xff]
    %v7596 = vld [vmem:[%s7532 + $0x1f8] sm:$0xff]
    %v7597 = vld [vmem:[%s7532 + $0x200] sm:$0xff]
    %v7598 = vld [vmem:[%s7532 + $0x208] sm:$0xff]
    %v7599 = vld [vmem:[%s7532 + $0x210] sm:$0xff]
    %v7600 = vld [vmem:[%s7532 + $0x218] sm:$0xff]
    %v7601 = vld [vmem:[%s7532 + $0x220] sm:$0xff]
    %v7602 = vld [vmem:[%s7532 + $0x228] sm:$0xff]
    %v7603 = vld [vmem:[%s7532 + $0x230] sm:$0xff]
    %v7604 = vld [vmem:[%s7532 + $0x238] sm:$0xff]
    %v7605 = vld [vmem:[%s7532 + $0x240] sm:$0xff]
    %v7606 = vld [vmem:[%s7532 + $0x248] sm:$0xff]
    %v7607 = vld [vmem:[%s7532 + $0x250] sm:$0xff]
    %v7608 = vld [vmem:[%s7532 + $0x258] sm:$0xff]
    %v7609 = vld [vmem:[%s7532 + $0x260] sm:$0xff]
    %v7610 = vld [vmem:[%s7532 + $0x268] sm:$0xff]
    %v7611 = vld [vmem:[%s7532 + $0x270] sm:$0xff]
    %v7612 = vld [vmem:[%s7532 + $0x278] sm:$0xff]
    %v7613 = vld [vmem:[%s7532 + $0x280] sm:$0xff]
    %v7614 = vld [vmem:[%s7532 + $0x288] sm:$0xff]
    %v7615 = vld [vmem:[%s7532 + $0x290] sm:$0xff]
    %v7616 = vld [vmem:[%s7532 + $0x298] sm:$0xff]
    %v7617 = vld [vmem:[%s7532 + $0x2a0] sm:$0xff]
    %v7618 = vld [vmem:[%s7532 + $0x2a8] sm:$0xff]
    %v7619 = vld [vmem:[%s7532 + $0x2b0] sm:$0xff]
    %v7620 = vld [vmem:[%s7532 + $0x2b8] sm:$0xff]
    %v7621 = vld [vmem:[%s7532 + $0x2c0] sm:$0xff]
    %v7622 = vld [vmem:[%s7532 + $0x2c8] sm:$0xff]
    %v7623 = vld [vmem:[%s7532 + $0x2d0] sm:$0xff]
    %v7624 = vld [vmem:[%s7532 + $0x2d8] sm:$0xff]
    %v7625 = vld [vmem:[%s7532 + $0x2e0] sm:$0xff]
    %v7626 = vld [vmem:[%s7532 + $0x2e8] sm:$0xff]
    %v7627 = vld [vmem:[%s7532 + $0x2f0] sm:$0xff]
    %v7628 = vld [vmem:[%s7532 + $0x2f8] sm:$0xff]
    %v7629 = vld [vmem:[%s7532 + $0x300] sm:$0xff]
    %v7630 = vld [vmem:[%s7532 + $0x308] sm:$0xff]
    %v7631 = vld [vmem:[%s7532 + $0x310] sm:$0xff]
    %v7632 = vld [vmem:[%s7532 + $0x318] sm:$0xff]
    %v7633 = vld [vmem:[%s7532 + $0x320] sm:$0xff]
    %v7634 = vld [vmem:[%s7532 + $0x328] sm:$0xff]
    %v7635 = vld [vmem:[%s7532 + $0x330] sm:$0xff]
    %v7636 = vld [vmem:[%s7532 + $0x338] sm:$0xff]
    %v7637 = vld [vmem:[%s7532 + $0x340] sm:$0xff]
    %v7638 = vld [vmem:[%s7532 + $0x348] sm:$0xff]
    %v7639 = vld [vmem:[%s7532 + $0x350] sm:$0xff]
    %v7640 = vld [vmem:[%s7532 + $0x358] sm:$0xff]
    %v7641 = vld [vmem:[%s7532 + $0x360] sm:$0xff]
    %v7642 = vld [vmem:[%s7532 + $0x368] sm:$0xff]
    %v7643 = vld [vmem:[%s7532 + $0x370] sm:$0xff]
    %v7644 = vld [vmem:[%s7532 + $0x378] sm:$0xff]
    %v7645 = vld [vmem:[%s7532 + $0x380] sm:$0xff]
    %v7646 = vld [vmem:[%s7532 + $0x388] sm:$0xff]
    %v7647 = vld [vmem:[%s7532 + $0x390] sm:$0xff]
    %v7648 = vld [vmem:[%s7532 + $0x398] sm:$0xff]
    %v7649 = vld [vmem:[%s7532 + $0x3a0] sm:$0xff]
    %v7650 = vld [vmem:[%s7532 + $0x3a8] sm:$0xff]
    %v7651 = vld [vmem:[%s7532 + $0x3b0] sm:$0xff]
    %v7652 = vld [vmem:[%s7532 + $0x3b8] sm:$0xff]
    %v7653 = vld [vmem:[%s7532 + $0x3c0] sm:$0xff]
    %v7654 = vld [vmem:[%s7532 + $0x3c8] sm:$0xff]
    %v7655 = vld [vmem:[%s7532 + $0x3d0] sm:$0xff]
    %v7656 = vld [vmem:[%s7532 + $0x3d8] sm:$0xff]
    %v7657 = vld [vmem:[%s7532 + $0x3e0] sm:$0xff]
    %v7658 = vld [vmem:[%s7532 + $0x3e8] sm:$0xff]
    %v7659 = vld [vmem:[%s7532 + $0x3f0] sm:$0xff]
    %v7660 = vld [vmem:[%s7532 + $0x3f8] sm:$0xff]
    %s7661 = scalar_lea.vmem [#allocation18], 8
    %v7662 = vld [vmem:[%s7661] sm:$0xf]
    %v7664 = vlaneseq
    %v7665 = vshrl.u32 %v7664, 7
    %v7666 = vsub.s32 0, %v7665
    %v7667 = vrot.slane %v7662, %v7666
    %v7668 = vlaneseq
    %v7669 = vshrl.u32 %v7668, 7
    %v7670 = vsub.s32 1, %v7669
    %v7671 = vrot.slane %v7662, %v7670
    %v7672 = vlaneseq
    %v7673 = vshrl.u32 %v7672, 7
    %v7674 = vsub.s32 2, %v7673
    %v7675 = vrot.slane %v7662, %v7674
    %v7676 = vlaneseq
    %v7677 = vshrl.u32 %v7676, 7
    %v7678 = vsub.s32 3, %v7677
    %v7679 = vrot.slane %v7662, %v7678
    %v7812 = vunpack.c.l.b16 %v7533
    %v7813 = vunpack.c.h.b16 %v7533
    %v7814 = vunpack.c.l.b16 %v7534
    %v7815 = vunpack.c.h.b16 %v7534
    %v7816 = vunpack.c.l.b16 %v7535
    %v7817 = vunpack.c.h.b16 %v7535
    %v7818 = vunpack.c.l.b16 %v7536
    %v7819 = vunpack.c.h.b16 %v7536
    %v7820 = vunpack.c.l.b16 %v7537
    %v7821 = vunpack.c.h.b16 %v7537
    %v7822 = vunpack.c.l.b16 %v7538
    %v7823 = vunpack.c.h.b16 %v7538
    %v7824 = vunpack.c.l.b16 %v7539
    %v7825 = vunpack.c.h.b16 %v7539
    %v7826 = vunpack.c.l.b16 %v7540
    %v7827 = vunpack.c.h.b16 %v7540
    %v7828 = vunpack.c.l.b16 %v7541
    %v7829 = vunpack.c.h.b16 %v7541
    %v7830 = vunpack.c.l.b16 %v7542
    %v7831 = vunpack.c.h.b16 %v7542
    %v7832 = vunpack.c.l.b16 %v7543
    %v7833 = vunpack.c.h.b16 %v7543
    %v7834 = vunpack.c.l.b16 %v7544
    %v7835 = vunpack.c.h.b16 %v7544
    %v7836 = vunpack.c.l.b16 %v7545
    %v7837 = vunpack.c.h.b16 %v7545
    %v7838 = vunpack.c.l.b16 %v7546
    %v7839 = vunpack.c.h.b16 %v7546
    %v7840 = vunpack.c.l.b16 %v7547
    %v7841 = vunpack.c.h.b16 %v7547
    %v7842 = vunpack.c.l.b16 %v7548
    %v7843 = vunpack.c.h.b16 %v7548
    %v7844 = vunpack.c.l.b16 %v7549
    %v7845 = vunpack.c.h.b16 %v7549
    %v7846 = vunpack.c.l.b16 %v7550
    %v7847 = vunpack.c.h.b16 %v7550
    %v7848 = vunpack.c.l.b16 %v7551
    %v7849 = vunpack.c.h.b16 %v7551
    %v7850 = vunpack.c.l.b16 %v7552
    %v7851 = vunpack.c.h.b16 %v7552
    %v7852 = vunpack.c.l.b16 %v7553
    %v7853 = vunpack.c.h.b16 %v7553
    %v7854 = vunpack.c.l.b16 %v7554
    %v7855 = vunpack.c.h.b16 %v7554
    %v7856 = vunpack.c.l.b16 %v7555
    %v7857 = vunpack.c.h.b16 %v7555
    %v7858 = vunpack.c.l.b16 %v7556
    %v7859 = vunpack.c.h.b16 %v7556
    %v7860 = vunpack.c.l.b16 %v7557
    %v7861 = vunpack.c.h.b16 %v7557
    %v7862 = vunpack.c.l.b16 %v7558
    %v7863 = vunpack.c.h.b16 %v7558
    %v7864 = vunpack.c.l.b16 %v7559
    %v7865 = vunpack.c.h.b16 %v7559
    %v7866 = vunpack.c.l.b16 %v7560
    %v7867 = vunpack.c.h.b16 %v7560
    %v7868 = vunpack.c.l.b16 %v7561
    %v7869 = vunpack.c.h.b16 %v7561
    %v7870 = vunpack.c.l.b16 %v7562
    %v7871 = vunpack.c.h.b16 %v7562
    %v7872 = vunpack.c.l.b16 %v7563
    %v7873 = vunpack.c.h.b16 %v7563
    %v7874 = vunpack.c.l.b16 %v7564
    %v7875 = vunpack.c.h.b16 %v7564
    %v7876 = vunpack.c.l.b16 %v7565
    %v7877 = vunpack.c.h.b16 %v7565
    %v7878 = vunpack.c.l.b16 %v7566
    %v7879 = vunpack.c.h.b16 %v7566
    %v7880 = vunpack.c.l.b16 %v7567
    %v7881 = vunpack.c.h.b16 %v7567
    %v7882 = vunpack.c.l.b16 %v7568
    %v7883 = vunpack.c.h.b16 %v7568
    %v7884 = vunpack.c.l.b16 %v7569
    %v7885 = vunpack.c.h.b16 %v7569
    %v7886 = vunpack.c.l.b16 %v7570
    %v7887 = vunpack.c.h.b16 %v7570
    %v7888 = vunpack.c.l.b16 %v7571
    %v7889 = vunpack.c.h.b16 %v7571
    %v7890 = vunpack.c.l.b16 %v7572
    %v7891 = vunpack.c.h.b16 %v7572
    %v7892 = vunpack.c.l.b16 %v7573
    %v7893 = vunpack.c.h.b16 %v7573
    %v7894 = vunpack.c.l.b16 %v7574
    %v7895 = vunpack.c.h.b16 %v7574
    %v7896 = vunpack.c.l.b16 %v7575
    %v7897 = vunpack.c.h.b16 %v7575
    %v7898 = vunpack.c.l.b16 %v7576
    %v7899 = vunpack.c.h.b16 %v7576
    %v7900 = vunpack.c.l.b16 %v7577
    %v7901 = vunpack.c.h.b16 %v7577
    %v7902 = vunpack.c.l.b16 %v7578
    %v7903 = vunpack.c.h.b16 %v7578
    %v7904 = vunpack.c.l.b16 %v7579
    %v7905 = vunpack.c.h.b16 %v7579
    %v7906 = vunpack.c.l.b16 %v7580
    %v7907 = vunpack.c.h.b16 %v7580
    %v7908 = vunpack.c.l.b16 %v7581
    %v7909 = vunpack.c.h.b16 %v7581
    %v7910 = vunpack.c.l.b16 %v7582
    %v7911 = vunpack.c.h.b16 %v7582
    %v7912 = vunpack.c.l.b16 %v7583
    %v7913 = vunpack.c.h.b16 %v7583
    %v7914 = vunpack.c.l.b16 %v7584
    %v7915 = vunpack.c.h.b16 %v7584
    %v7916 = vunpack.c.l.b16 %v7585
    %v7917 = vunpack.c.h.b16 %v7585
    %v7918 = vunpack.c.l.b16 %v7586
    %v7919 = vunpack.c.h.b16 %v7586
    %v7920 = vunpack.c.l.b16 %v7587
    %v7921 = vunpack.c.h.b16 %v7587
    %v7922 = vunpack.c.l.b16 %v7588
    %v7923 = vunpack.c.h.b16 %v7588
    %v7924 = vunpack.c.l.b16 %v7589
    %v7925 = vunpack.c.h.b16 %v7589
    %v7926 = vunpack.c.l.b16 %v7590
    %v7927 = vunpack.c.h.b16 %v7590
    %v7928 = vunpack.c.l.b16 %v7591
    %v7929 = vunpack.c.h.b16 %v7591
    %v7930 = vunpack.c.l.b16 %v7592
    %v7931 = vunpack.c.h.b16 %v7592
    %v7932 = vunpack.c.l.b16 %v7593
    %v7933 = vunpack.c.h.b16 %v7593
    %v7934 = vunpack.c.l.b16 %v7594
    %v7935 = vunpack.c.h.b16 %v7594
    %v7936 = vunpack.c.l.b16 %v7595
    %v7937 = vunpack.c.h.b16 %v7595
    %v7938 = vunpack.c.l.b16 %v7596
    %v7939 = vunpack.c.h.b16 %v7596
    %v7940 = vunpack.c.l.b16 %v7597
    %v7941 = vunpack.c.h.b16 %v7597
    %v7942 = vunpack.c.l.b16 %v7598
    %v7943 = vunpack.c.h.b16 %v7598
    %v7944 = vunpack.c.l.b16 %v7599
    %v7945 = vunpack.c.h.b16 %v7599
    %v7946 = vunpack.c.l.b16 %v7600
    %v7947 = vunpack.c.h.b16 %v7600
    %v7948 = vunpack.c.l.b16 %v7601
    %v7949 = vunpack.c.h.b16 %v7601
    %v7950 = vunpack.c.l.b16 %v7602
    %v7951 = vunpack.c.h.b16 %v7602
    %v7952 = vunpack.c.l.b16 %v7603
    %v7953 = vunpack.c.h.b16 %v7603
    %v7954 = vunpack.c.l.b16 %v7604
    %v7955 = vunpack.c.h.b16 %v7604
    %v7956 = vunpack.c.l.b16 %v7605
    %v7957 = vunpack.c.h.b16 %v7605
    %v7958 = vunpack.c.l.b16 %v7606
    %v7959 = vunpack.c.h.b16 %v7606
    %v7960 = vunpack.c.l.b16 %v7607
    %v7961 = vunpack.c.h.b16 %v7607
    %v7962 = vunpack.c.l.b16 %v7608
    %v7963 = vunpack.c.h.b16 %v7608
    %v7964 = vunpack.c.l.b16 %v7609
    %v7965 = vunpack.c.h.b16 %v7609
    %v7966 = vunpack.c.l.b16 %v7610
    %v7967 = vunpack.c.h.b16 %v7610
    %v7968 = vunpack.c.l.b16 %v7611
    %v7969 = vunpack.c.h.b16 %v7611
    %v7970 = vunpack.c.l.b16 %v7612
    %v7971 = vunpack.c.h.b16 %v7612
    %v7972 = vunpack.c.l.b16 %v7613
    %v7973 = vunpack.c.h.b16 %v7613
    %v7974 = vunpack.c.l.b16 %v7614
    %v7975 = vunpack.c.h.b16 %v7614
    %v7976 = vunpack.c.l.b16 %v7615
    %v7977 = vunpack.c.h.b16 %v7615
    %v7978 = vunpack.c.l.b16 %v7616
    %v7979 = vunpack.c.h.b16 %v7616
    %v7980 = vunpack.c.l.b16 %v7617
    %v7981 = vunpack.c.h.b16 %v7617
    %v7982 = vunpack.c.l.b16 %v7618
    %v7983 = vunpack.c.h.b16 %v7618
    %v7984 = vunpack.c.l.b16 %v7619
    %v7985 = vunpack.c.h.b16 %v7619
    %v7986 = vunpack.c.l.b16 %v7620
    %v7987 = vunpack.c.h.b16 %v7620
    %v7988 = vunpack.c.l.b16 %v7621
    %v7989 = vunpack.c.h.b16 %v7621
    %v7990 = vunpack.c.l.b16 %v7622
    %v7991 = vunpack.c.h.b16 %v7622
    %v7992 = vunpack.c.l.b16 %v7623
    %v7993 = vunpack.c.h.b16 %v7623
    %v7994 = vunpack.c.l.b16 %v7624
    %v7995 = vunpack.c.h.b16 %v7624
    %v7996 = vunpack.c.l.b16 %v7625
    %v7997 = vunpack.c.h.b16 %v7625
    %v7998 = vunpack.c.l.b16 %v7626
    %v7999 = vunpack.c.h.b16 %v7626
    %v8000 = vunpack.c.l.b16 %v7627
    %v8001 = vunpack.c.h.b16 %v7627
    %v8002 = vunpack.c.l.b16 %v7628
    %v8003 = vunpack.c.h.b16 %v7628
    %v8004 = vunpack.c.l.b16 %v7629
    %v8005 = vunpack.c.h.b16 %v7629
    %v8006 = vunpack.c.l.b16 %v7630
    %v8007 = vunpack.c.h.b16 %v7630
    %v8008 = vunpack.c.l.b16 %v7631
    %v8009 = vunpack.c.h.b16 %v7631
    %v8010 = vunpack.c.l.b16 %v7632
    %v8011 = vunpack.c.h.b16 %v7632
    %v8012 = vunpack.c.l.b16 %v7633
    %v8013 = vunpack.c.h.b16 %v7633
    %v8014 = vunpack.c.l.b16 %v7634
    %v8015 = vunpack.c.h.b16 %v7634
    %v8016 = vunpack.c.l.b16 %v7635
    %v8017 = vunpack.c.h.b16 %v7635
    %v8018 = vunpack.c.l.b16 %v7636
    %v8019 = vunpack.c.h.b16 %v7636
    %v8020 = vunpack.c.l.b16 %v7637
    %v8021 = vunpack.c.h.b16 %v7637
    %v8022 = vunpack.c.l.b16 %v7638
    %v8023 = vunpack.c.h.b16 %v7638
    %v8024 = vunpack.c.l.b16 %v7639
    %v8025 = vunpack.c.h.b16 %v7639
    %v8026 = vunpack.c.l.b16 %v7640
    %v8027 = vunpack.c.h.b16 %v7640
    %v8028 = vunpack.c.l.b16 %v7641
    %v8029 = vunpack.c.h.b16 %v7641
    %v8030 = vunpack.c.l.b16 %v7642
    %v8031 = vunpack.c.h.b16 %v7642
    %v8032 = vunpack.c.l.b16 %v7643
    %v8033 = vunpack.c.h.b16 %v7643
    %v8034 = vunpack.c.l.b16 %v7644
    %v8035 = vunpack.c.h.b16 %v7644
    %v8036 = vunpack.c.l.b16 %v7645
    %v8037 = vunpack.c.h.b16 %v7645
    %v8038 = vunpack.c.l.b16 %v7646
    %v8039 = vunpack.c.h.b16 %v7646
    %v8040 = vunpack.c.l.b16 %v7647
    %v8041 = vunpack.c.h.b16 %v7647
    %v8042 = vunpack.c.l.b16 %v7648
    %v8043 = vunpack.c.h.b16 %v7648
    %v8044 = vunpack.c.l.b16 %v7649
    %v8045 = vunpack.c.h.b16 %v7649
    %v8046 = vunpack.c.l.b16 %v7650
    %v8047 = vunpack.c.h.b16 %v7650
    %v8048 = vunpack.c.l.b16 %v7651
    %v8049 = vunpack.c.h.b16 %v7651
    %v8050 = vunpack.c.l.b16 %v7652
    %v8051 = vunpack.c.h.b16 %v7652
    %v8052 = vunpack.c.l.b16 %v7653
    %v8053 = vunpack.c.h.b16 %v7653
    %v8054 = vunpack.c.l.b16 %v7654
    %v8055 = vunpack.c.h.b16 %v7654
    %v8056 = vunpack.c.l.b16 %v7655
    %v8057 = vunpack.c.h.b16 %v7655
    %v8058 = vunpack.c.l.b16 %v7656
    %v8059 = vunpack.c.h.b16 %v7656
    %v8060 = vunpack.c.l.b16 %v7657
    %v8061 = vunpack.c.h.b16 %v7657
    %v8062 = vunpack.c.l.b16 %v7658
    %v8063 = vunpack.c.h.b16 %v7658
    %v8064 = vunpack.c.l.b16 %v7659
    %v8065 = vunpack.c.h.b16 %v7659
    %v8066 = vunpack.c.l.b16 %v7660
    %v8067 = vunpack.c.h.b16 %v7660
    %v8068 = vpack.c.b16 %v7816, %v7812
    %v8069 = vpack.c.b16 %v7817, %v7813
    %v8070 = vpack.c.b16 %v7818, %v7814
    %v8071 = vpack.c.b16 %v7819, %v7815
    %v8072 = vpack.c.b16 %v7824, %v7820
    %v8073 = vpack.c.b16 %v7825, %v7821
    %v8074 = vpack.c.b16 %v7826, %v7822
    %v8075 = vpack.c.b16 %v7827, %v7823
    %v8076 = vpack.c.b16 %v7832, %v7828
    %v8077 = vpack.c.b16 %v7833, %v7829
    %v8078 = vpack.c.b16 %v7834, %v7830
    %v8079 = vpack.c.b16 %v7835, %v7831
    %v8080 = vpack.c.b16 %v7840, %v7836
    %v8081 = vpack.c.b16 %v7841, %v7837
    %v8082 = vpack.c.b16 %v7842, %v7838
    %v8083 = vpack.c.b16 %v7843, %v7839
    %v8084 = vpack.c.b16 %v7848, %v7844
    %v8085 = vpack.c.b16 %v7849, %v7845
    %v8086 = vpack.c.b16 %v7850, %v7846
    %v8087 = vpack.c.b16 %v7851, %v7847
    %v8088 = vpack.c.b16 %v7856, %v7852
    %v8089 = vpack.c.b16 %v7857, %v7853
    %v8090 = vpack.c.b16 %v7858, %v7854
    %v8091 = vpack.c.b16 %v7859, %v7855
    %v8092 = vpack.c.b16 %v7864, %v7860
    %v8093 = vpack.c.b16 %v7865, %v7861
    %v8094 = vpack.c.b16 %v7866, %v7862
    %v8095 = vpack.c.b16 %v7867, %v7863
    %v8096 = vpack.c.b16 %v7872, %v7868
    %v8097 = vpack.c.b16 %v7873, %v7869
    %v8098 = vpack.c.b16 %v7874, %v7870
    %v8099 = vpack.c.b16 %v7875, %v7871
    %v8100 = vpack.c.b16 %v7880, %v7876
    %v8101 = vpack.c.b16 %v7881, %v7877
    %v8102 = vpack.c.b16 %v7882, %v7878
    %v8103 = vpack.c.b16 %v7883, %v7879
    %v8104 = vpack.c.b16 %v7888, %v7884
    %v8105 = vpack.c.b16 %v7889, %v7885
    %v8106 = vpack.c.b16 %v7890, %v7886
    %v8107 = vpack.c.b16 %v7891, %v7887
    %v8108 = vpack.c.b16 %v7896, %v7892
    %v8109 = vpack.c.b16 %v7897, %v7893
    %v8110 = vpack.c.b16 %v7898, %v7894
    %v8111 = vpack.c.b16 %v7899, %v7895
    %v8112 = vpack.c.b16 %v7904, %v7900
    %v8113 = vpack.c.b16 %v7905, %v7901
    %v8114 = vpack.c.b16 %v7906, %v7902
    %v8115 = vpack.c.b16 %v7907, %v7903
    %v8116 = vpack.c.b16 %v7912, %v7908
    %v8117 = vpack.c.b16 %v7913, %v7909
    %v8118 = vpack.c.b16 %v7914, %v7910
    %v8119 = vpack.c.b16 %v7915, %v7911
    %v8120 = vpack.c.b16 %v7920, %v7916
    %v8121 = vpack.c.b16 %v7921, %v7917
    %v8122 = vpack.c.b16 %v7922, %v7918
    %v8123 = vpack.c.b16 %v7923, %v7919
    %v8124 = vpack.c.b16 %v7928, %v7924
    %v8125 = vpack.c.b16 %v7929, %v7925
    %v8126 = vpack.c.b16 %v7930, %v7926
    %v8127 = vpack.c.b16 %v7931, %v7927
    %v8128 = vpack.c.b16 %v7936, %v7932
    %v8129 = vpack.c.b16 %v7937, %v7933
    %v8130 = vpack.c.b16 %v7938, %v7934
    %v8131 = vpack.c.b16 %v7939, %v7935
    %v8132 = vpack.c.b16 %v7944, %v7940
    %v8133 = vpack.c.b16 %v7945, %v7941
    %v8134 = vpack.c.b16 %v7946, %v7942
    %v8135 = vpack.c.b16 %v7947, %v7943
    %v8136 = vpack.c.b16 %v7952, %v7948
    %v8137 = vpack.c.b16 %v7953, %v7949
    %v8138 = vpack.c.b16 %v7954, %v7950
    %v8139 = vpack.c.b16 %v7955, %v7951
    %v8140 = vpack.c.b16 %v7960, %v7956
    %v8141 = vpack.c.b16 %v7961, %v7957
    %v8142 = vpack.c.b16 %v7962, %v7958
    %v8143 = vpack.c.b16 %v7963, %v7959
    %v8144 = vpack.c.b16 %v7968, %v7964
    %v8145 = vpack.c.b16 %v7969, %v7965
    %v8146 = vpack.c.b16 %v7970, %v7966
    %v8147 = vpack.c.b16 %v7971, %v7967
    %v8148 = vpack.c.b16 %v7976, %v7972
    %v8149 = vpack.c.b16 %v7977, %v7973
    %v8150 = vpack.c.b16 %v7978, %v7974
    %v8151 = vpack.c.b16 %v7979, %v7975
    %v8152 = vpack.c.b16 %v7984, %v7980
    %v8153 = vpack.c.b16 %v7985, %v7981
    %v8154 = vpack.c.b16 %v7986, %v7982
    %v8155 = vpack.c.b16 %v7987, %v7983
    %v8156 = vpack.c.b16 %v7992, %v7988
    %v8157 = vpack.c.b16 %v7993, %v7989
    %v8158 = vpack.c.b16 %v7994, %v7990
    %v8159 = vpack.c.b16 %v7995, %v7991
    %v8160 = vpack.c.b16 %v8000, %v7996
    %v8161 = vpack.c.b16 %v8001, %v7997
    %v8162 = vpack.c.b16 %v8002, %v7998
    %v8163 = vpack.c.b16 %v8003, %v7999
    %v8164 = vpack.c.b16 %v8008, %v8004
    %v8165 = vpack.c.b16 %v8009, %v8005
    %v8166 = vpack.c.b16 %v8010, %v8006
    %v8167 = vpack.c.b16 %v8011, %v8007
    %v8168 = vpack.c.b16 %v8016, %v8012
    %v8169 = vpack.c.b16 %v8017, %v8013
    %v8170 = vpack.c.b16 %v8018, %v8014
    %v8171 = vpack.c.b16 %v8019, %v8015
    %v8172 = vpack.c.b16 %v8024, %v8020
    %v8173 = vpack.c.b16 %v8025, %v8021
    %v8174 = vpack.c.b16 %v8026, %v8022
    %v8175 = vpack.c.b16 %v8027, %v8023
    %v8176 = vpack.c.b16 %v8032, %v8028
    %v8177 = vpack.c.b16 %v8033, %v8029
    %v8178 = vpack.c.b16 %v8034, %v8030
    %v8179 = vpack.c.b16 %v8035, %v8031
    %v8180 = vpack.c.b16 %v8040, %v8036
    %v8181 = vpack.c.b16 %v8041, %v8037
    %v8182 = vpack.c.b16 %v8042, %v8038
    %v8183 = vpack.c.b16 %v8043, %v8039
    %v8184 = vpack.c.b16 %v8048, %v8044
    %v8185 = vpack.c.b16 %v8049, %v8045
    %v8186 = vpack.c.b16 %v8050, %v8046
    %v8187 = vpack.c.b16 %v8051, %v8047
    %v8188 = vpack.c.b16 %v8056, %v8052
    %v8189 = vpack.c.b16 %v8057, %v8053
    %v8190 = vpack.c.b16 %v8058, %v8054
    %v8191 = vpack.c.b16 %v8059, %v8055
    %v8192 = vpack.c.b16 %v8064, %v8060
    %v8193 = vpack.c.b16 %v8065, %v8061
    %v8194 = vpack.c.b16 %v8066, %v8062
    %v8195 = vpack.c.b16 %v8067, %v8063
    %8324 = vmatprep.subr.bf16.mxu0 %v8069
    %8325 = vmatpush1.bf16.msra.mxu0 %v8068
    %8326 = vmatprep.subr.bf16.mxu0 %v8073
    %8327 = vmatpush1.bf16.msra.mxu0 %v8072
    %8328 = vmatprep.subr.bf16.mxu0 %v8077
    %8329 = vmatpush1.bf16.msra.mxu0 %v8076
    %8330 = vmatprep.subr.bf16.mxu0 %v8081
    %8331 = vmatpush1.bf16.msra.mxu0 %v8080
    %8332 = vmatprep.subr.bf16.mxu0 %v8085
    %8333 = vmatpush1.bf16.msra.mxu0 %v8084
    %8334 = vmatprep.subr.bf16.mxu0 %v8089
    %8335 = vmatpush1.bf16.msra.mxu0 %v8088
    %8336 = vmatprep.subr.bf16.mxu0 %v8093
    %8337 = vmatpush1.bf16.msra.mxu0 %v8092
    %8338 = vmatprep.subr.bf16.mxu0 %v8097
    %8339 = vmatpush1.bf16.msra.mxu0 %v8096
    %8340 = vmatprep.subr.bf16.mxu0 %v8101
    %8341 = vmatpush1.bf16.msra.mxu0 %v8100
    %8342 = vmatprep.subr.bf16.mxu0 %v8105
    %8343 = vmatpush1.bf16.msra.mxu0 %v8104
    %8344 = vmatprep.subr.bf16.mxu0 %v8109
    %8345 = vmatpush1.bf16.msra.mxu0 %v8108
    %8346 = vmatprep.subr.bf16.mxu0 %v8113
    %8347 = vmatpush1.bf16.msra.mxu0 %v8112
    %8348 = vmatprep.subr.bf16.mxu0 %v8117
    %8349 = vmatpush1.bf16.msra.mxu0 %v8116
    %8350 = vmatprep.subr.bf16.mxu0 %v8121
    %8351 = vmatpush1.bf16.msra.mxu0 %v8120
    %8352 = vmatprep.subr.bf16.mxu0 %v8125
    %8353 = vmatpush1.bf16.msra.mxu0 %v8124
    %8354 = vmatprep.subr.bf16.mxu0 %v8129
    %8355 = vmatpush1.bf16.msra.mxu0 %v8128
    %8356 = vmatprep.mubr.bf16.mxu0 %v7529
    %8357 = vmatmul.mubr.bf16.gmra.mrb[0].mxu0 %v7528
    %v8358 = vpop.f32.mrb[0].mxu0
    %v8359 = vadd.f32 %v7667, %v8358
    %v8360 = vpop.f32.mrb[0].mxu0
    %v8361 = vadd.f32 %v7671, %v8360
    %v8362 = vpop.f32.mrb[0].mxu0
    %v8363 = vpop.f32.mrb[0].mxu0
    %8364 = vdwg.mxu0
    %8365 = vmatprep.subr.bf16.mxu0 %v8133
    %8366 = vmatpush1.bf16.msra.mxu0 %v8132
    %8367 = vmatprep.subr.bf16.mxu0 %v8137
    %8368 = vmatpush1.bf16.msra.mxu0 %v8136
    %8369 = vmatprep.subr.bf16.mxu0 %v8141
    %8370 = vmatpush1.bf16.msra.mxu0 %v8140
    %8371 = vmatprep.subr.bf16.mxu0 %v8145
    %8372 = vmatpush1.bf16.msra.mxu0 %v8144
    %8373 = vmatprep.subr.bf16.mxu0 %v8149
    %8374 = vmatpush1.bf16.msra.mxu0 %v8148
    %8375 = vmatprep.subr.bf16.mxu0 %v8153
    %8376 = vmatpush1.bf16.msra.mxu0 %v8152
    %8377 = vmatprep.subr.bf16.mxu0 %v8157
    %8378 = vmatpush1.bf16.msra.mxu0 %v8156
    %8379 = vmatprep.subr.bf16.mxu0 %v8161
    %8380 = vmatpush1.bf16.msra.mxu0 %v8160
    %8381 = vmatprep.subr.bf16.mxu0 %v8165
    %8382 = vmatpush1.bf16.msra.mxu0 %v8164
    %8383 = vmatprep.subr.bf16.mxu0 %v8169
    %8384 = vmatpush1.bf16.msra.mxu0 %v8168
    %8385 = vmatprep.subr.bf16.mxu0 %v8173
    %8386 = vmatpush1.bf16.msra.mxu0 %v8172
    %8387 = vmatprep.subr.bf16.mxu0 %v8177
    %8388 = vmatpush1.bf16.msra.mxu0 %v8176
    %8389 = vmatprep.subr.bf16.mxu0 %v8181
    %8390 = vmatpush1.bf16.msra.mxu0 %v8180
    %8391 = vmatprep.subr.bf16.mxu0 %v8185
    %8392 = vmatpush1.bf16.msra.mxu0 %v8184
    %8393 = vmatprep.subr.bf16.mxu0 %v8189
    %8394 = vmatpush1.bf16.msra.mxu0 %v8188
    %8395 = vmatprep.subr.bf16.mxu0 %v8193
    %8396 = vmatpush1.bf16.msra.mxu0 %v8192
    %8397 = vmatprep.mubr.bf16.mxu0 %v7531
    %8398 = vmatmul.mubr.bf16.gmra.mrb[0].mxu0 %v7530
    %v8399 = vpop.f32.mrb[0].mxu0
    %v8400 = vadd.f32 %v8359, %v8399
    %v8401 = vpop.f32.mrb[0].mxu0
    %v8402 = vadd.f32 %v8361, %v8401
    %v8403 = vpop.f32.mrb[0].mxu0
    %v8404 = vpop.f32.mrb[0].mxu0
    %8405 = vdwg.mxu0
    %8406 = vmatprep.subr.bf16.mxu0 %v8071
    %8407 = vmatpush1.bf16.msra.mxu0 %v8070
    %8408 = vmatprep.subr.bf16.mxu0 %v8075
    %8409 = vmatpush1.bf16.msra.mxu0 %v8074
    %8410 = vmatprep.subr.bf16.mxu0 %v8079
    %8411 = vmatpush1.bf16.msra.mxu0 %v8078
    %8412 = vmatprep.subr.bf16.mxu0 %v8083
    %8413 = vmatpush1.bf16.msra.mxu0 %v8082
    %8414 = vmatprep.subr.bf16.mxu0 %v8087
    %8415 = vmatpush1.bf16.msra.mxu0 %v8086
    %8416 = vmatprep.subr.bf16.mxu0 %v8091
    %8417 = vmatpush1.bf16.msra.mxu0 %v8090
    %8418 = vmatprep.subr.bf16.mxu0 %v8095
    %8419 = vmatpush1.bf16.msra.mxu0 %v8094
    %8420 = vmatprep.subr.bf16.mxu0 %v8099
    %8421 = vmatpush1.bf16.msra.mxu0 %v8098
    %8422 = vmatprep.subr.bf16.mxu0 %v8103
    %8423 = vmatpush1.bf16.msra.mxu0 %v8102
    %8424 = vmatprep.subr.bf16.mxu0 %v8107
    %8425 = vmatpush1.bf16.msra.mxu0 %v8106
    %8426 = vmatprep.subr.bf16.mxu0 %v8111
    %8427 = vmatpush1.bf16.msra.mxu0 %v8110
    %8428 = vmatprep.subr.bf16.mxu0 %v8115
    %8429 = vmatpush1.bf16.msra.mxu0 %v8114
    %8430 = vmatprep.subr.bf16.mxu0 %v8119
    %8431 = vmatpush1.bf16.msra.mxu0 %v8118
    %8432 = vmatprep.subr.bf16.mxu0 %v8123
    %8433 = vmatpush1.bf16.msra.mxu0 %v8122
    %8434 = vmatprep.subr.bf16.mxu0 %v8127
    %8435 = vmatpush1.bf16.msra.mxu0 %v8126
    %8436 = vmatprep.subr.bf16.mxu0 %v8131
    %8437 = vmatpush1.bf16.msra.mxu0 %v8130
    %8438 = vmatprep.mubr.bf16.mxu0 %v7529
    %8439 = vmatmul.mubr.bf16.gmra.mrb[0].mxu0 %v7528
    %v8440 = vpop.f32.mrb[0].mxu0
    %v8441 = vadd.f32 %v7675, %v8440
    %v8442 = vpop.f32.mrb[0].mxu0
    %v8443 = vadd.f32 %v7679, %v8442
    %v8444 = vpop.f32.mrb[0].mxu0
    %v8445 = vpop.f32.mrb[0].mxu0
    %8446 = vdwg.mxu0
    %8447 = vmatprep.subr.bf16.mxu0 %v8135
    %8448 = vmatpush1.bf16.msra.mxu0 %v8134
    %8449 = vmatprep.subr.bf16.mxu0 %v8139
    %8450 = vmatpush1.bf16.msra.mxu0 %v8138
    %8451 = vmatprep.subr.bf16.mxu0 %v8143
    %8452 = vmatpush1.bf16.msra.mxu0 %v8142
    %8453 = vmatprep.subr.bf16.mxu0 %v8147
    %8454 = vmatpush1.bf16.msra.mxu0 %v8146
    %8455 = vmatprep.subr.bf16.mxu0 %v8151
    %8456 = vmatpush1.bf16.msra.mxu0 %v8150
    %8457 = vmatprep.subr.bf16.mxu0 %v8155
    %8458 = vmatpush1.bf16.msra.mxu0 %v8154
    %8459 = vmatprep.subr.bf16.mxu0 %v8159
    %8460 = vmatpush1.bf16.msra.mxu0 %v8158
    %8461 = vmatprep.subr.bf16.mxu0 %v8163
    %8462 = vmatpush1.bf16.msra.mxu0 %v8162
    %8463 = vmatprep.subr.bf16.mxu0 %v8167
    %8464 = vmatpush1.bf16.msra.mxu0 %v8166
    %8465 = vmatprep.subr.bf16.mxu0 %v8171
    %8466 = vmatpush1.bf16.msra.mxu0 %v8170
    %8467 = vmatprep.subr.bf16.mxu0 %v8175
    %8468 = vmatpush1.bf16.msra.mxu0 %v8174
    %8469 = vmatprep.subr.bf16.mxu0 %v8179
    %8470 = vmatpush1.bf16.msra.mxu0 %v8178
    %8471 = vmatprep.subr.bf16.mxu0 %v8183
    %8472 = vmatpush1.bf16.msra.mxu0 %v8182
    %8473 = vmatprep.subr.bf16.mxu0 %v8187
    %8474 = vmatpush1.bf16.msra.mxu0 %v8186
    %8475 = vmatprep.subr.bf16.mxu0 %v8191
    %8476 = vmatpush1.bf16.msra.mxu0 %v8190
    %8477 = vmatprep.subr.bf16.mxu0 %v8195
    %8478 = vmatpush1.bf16.msra.mxu0 %v8194
    %8479 = vmatprep.mubr.bf16.mxu0 %v7531
    %8480 = vmatmul.mubr.bf16.gmra.mrb[0].mxu0 %v7530
    %v8481 = vpop.f32.mrb[0].mxu0
    %v8482 = vadd.f32 %v8441, %v8481
    %v8483 = vpop.f32.mrb[0].mxu0
    %v8484 = vadd.f32 %v8443, %v8483
    %v8485 = vpop.f32.mrb[0].mxu0
    %v8486 = vpop.f32.mrb[0].mxu0
    %8487 = vdwg.mxu0
    %v8488 = vmax.f32 %v8400, 0.0
    %v8489 = vmax.f32 %v8402, 0.0
    %v8490 = vmax.f32 %v8482, 0.0
    %v8491 = vmax.f32 %v8484, 0.0
    %v8492 = vpack.c.bf16 %v8488, %v8488
    %v8493 = vpack.c.bf16 %v8489, %v8489
    %v8494 = vpack.c.bf16 %v8490, %v8490
    %v8495 = vpack.c.bf16 %v8491, %v8491
    %s8496 = scalar_lea.vmem [#allocation17], 3072
    %v8497 = vld [vmem:[%s8496] sm:$0xff]
    %v8498 = vld [vmem:[%s8496 + $0x8] sm:$0xff]
    %v8499 = vld [vmem:[%s8496 + $0x10] sm:$0xff]
    %v8500 = vld [vmem:[%s8496 + $0x18] sm:$0xff]
    %v8501 = vld [vmem:[%s8496 + $0x20] sm:$0xff]
    %v8502 = vld [vmem:[%s8496 + $0x28] sm:$0xff]
    %v8503 = vld [vmem:[%s8496 + $0x30] sm:$0xff]
    %v8504 = vld [vmem:[%s8496 + $0x38] sm:$0xff]
    %v8505 = vld [vmem:[%s8496 + $0x40] sm:$0xff]
    %v8506 = vld [vmem:[%s8496 + $0x48] sm:$0xff]
    %v8507 = vld [vmem:[%s8496 + $0x50] sm:$0xff]
    %v8508 = vld [vmem:[%s8496 + $0x58] sm:$0xff]
    %v8509 = vld [vmem:[%s8496 + $0x60] sm:$0xff]
    %v8510 = vld [vmem:[%s8496 + $0x68] sm:$0xff]
    %v8511 = vld [vmem:[%s8496 + $0x70] sm:$0xff]
    %v8512 = vld [vmem:[%s8496 + $0x78] sm:$0xff]
    %v8513 = vld [vmem:[%s8496 + $0x80] sm:$0xff]
    %v8514 = vld [vmem:[%s8496 + $0x88] sm:$0xff]
    %v8515 = vld [vmem:[%s8496 + $0x90] sm:$0xff]
    %v8516 = vld [vmem:[%s8496 + $0x98] sm:$0xff]
    %v8517 = vld [vmem:[%s8496 + $0xa0] sm:$0xff]
    %v8518 = vld [vmem:[%s8496 + $0xa8] sm:$0xff]
    %v8519 = vld [vmem:[%s8496 + $0xb0] sm:$0xff]
    %v8520 = vld [vmem:[%s8496 + $0xb8] sm:$0xff]
    %v8521 = vld [vmem:[%s8496 + $0xc0] sm:$0xff]
    %v8522 = vld [vmem:[%s8496 + $0xc8] sm:$0xff]
    %v8523 = vld [vmem:[%s8496 + $0xd0] sm:$0xff]
    %v8524 = vld [vmem:[%s8496 + $0xd8] sm:$0xff]
    %v8525 = vld [vmem:[%s8496 + $0xe0] sm:$0xff]
    %v8526 = vld [vmem:[%s8496 + $0xe8] sm:$0xff]
    %v8527 = vld [vmem:[%s8496 + $0xf0] sm:$0xff]
    %v8528 = vld [vmem:[%s8496 + $0xf8] sm:$0xff]
    %v8529 = vld [vmem:[%s8496 + $0x100] sm:$0xff]
    %v8530 = vld [vmem:[%s8496 + $0x108] sm:$0xff]
    %v8531 = vld [vmem:[%s8496 + $0x110] sm:$0xff]
    %v8532 = vld [vmem:[%s8496 + $0x118] sm:$0xff]
    %v8533 = vld [vmem:[%s8496 + $0x120] sm:$0xff]
    %v8534 = vld [vmem:[%s8496 + $0x128] sm:$0xff]
    %v8535 = vld [vmem:[%s8496 + $0x130] sm:$0xff]
    %v8536 = vld [vmem:[%s8496 + $0x138] sm:$0xff]
    %v8537 = vld [vmem:[%s8496 + $0x140] sm:$0xff]
    %v8538 = vld [vmem:[%s8496 + $0x148] sm:$0xff]
    %v8539 = vld [vmem:[%s8496 + $0x150] sm:$0xff]
    %v8540 = vld [vmem:[%s8496 + $0x158] sm:$0xff]
    %v8541 = vld [vmem:[%s8496 + $0x160] sm:$0xff]
    %v8542 = vld [vmem:[%s8496 + $0x168] sm:$0xff]
    %v8543 = vld [vmem:[%s8496 + $0x170] sm:$0xff]
    %v8544 = vld [vmem:[%s8496 + $0x178] sm:$0xff]
    %v8545 = vld [vmem:[%s8496 + $0x180] sm:$0xff]
    %v8546 = vld [vmem:[%s8496 + $0x188] sm:$0xff]
    %v8547 = vld [vmem:[%s8496 + $0x190] sm:$0xff]
    %v8548 = vld [vmem:[%s8496 + $0x198] sm:$0xff]
    %v8549 = vld [vmem:[%s8496 + $0x1a0] sm:$0xff]
    %v8550 = vld [vmem:[%s8496 + $0x1a8] sm:$0xff]
    %v8551 = vld [vmem:[%s8496 + $0x1b0] sm:$0xff]
    %v8552 = vld [vmem:[%s8496 + $0x1b8] sm:$0xff]
    %v8553 = vld [vmem:[%s8496 + $0x1c0] sm:$0xff]
    %v8554 = vld [vmem:[%s8496 + $0x1c8] sm:$0xff]
    %v8555 = vld [vmem:[%s8496 + $0x1d0] sm:$0xff]
    %v8556 = vld [vmem:[%s8496 + $0x1d8] sm:$0xff]
    %v8557 = vld [vmem:[%s8496 + $0x1e0] sm:$0xff]
    %v8558 = vld [vmem:[%s8496 + $0x1e8] sm:$0xff]
    %v8559 = vld [vmem:[%s8496 + $0x1f0] sm:$0xff]
    %v8560 = vld [vmem:[%s8496 + $0x1f8] sm:$0xff]
    %v8561 = vld [vmem:[%s8496 + $0x200] sm:$0xff]
    %v8562 = vld [vmem:[%s8496 + $0x208] sm:$0xff]
    %v8563 = vld [vmem:[%s8496 + $0x210] sm:$0xff]
    %v8564 = vld [vmem:[%s8496 + $0x218] sm:$0xff]
    %v8565 = vld [vmem:[%s8496 + $0x220] sm:$0xff]
    %v8566 = vld [vmem:[%s8496 + $0x228] sm:$0xff]
    %v8567 = vld [vmem:[%s8496 + $0x230] sm:$0xff]
    %v8568 = vld [vmem:[%s8496 + $0x238] sm:$0xff]
    %v8569 = vld [vmem:[%s8496 + $0x240] sm:$0xff]
    %v8570 = vld [vmem:[%s8496 + $0x248] sm:$0xff]
    %v8571 = vld [vmem:[%s8496 + $0x250] sm:$0xff]
    %v8572 = vld [vmem:[%s8496 + $0x258] sm:$0xff]
    %v8573 = vld [vmem:[%s8496 + $0x260] sm:$0xff]
    %v8574 = vld [vmem:[%s8496 + $0x268] sm:$0xff]
    %v8575 = vld [vmem:[%s8496 + $0x270] sm:$0xff]
    %v8576 = vld [vmem:[%s8496 + $0x278] sm:$0xff]
    %v8577 = vld [vmem:[%s8496 + $0x280] sm:$0xff]
    %v8578 = vld [vmem:[%s8496 + $0x288] sm:$0xff]
    %v8579 = vld [vmem:[%s8496 + $0x290] sm:$0xff]
    %v8580 = vld [vmem:[%s8496 + $0x298] sm:$0xff]
    %v8581 = vld [vmem:[%s8496 + $0x2a0] sm:$0xff]
    %v8582 = vld [vmem:[%s8496 + $0x2a8] sm:$0xff]
    %v8583 = vld [vmem:[%s8496 + $0x2b0] sm:$0xff]
    %v8584 = vld [vmem:[%s8496 + $0x2b8] sm:$0xff]
    %v8585 = vld [vmem:[%s8496 + $0x2c0] sm:$0xff]
    %v8586 = vld [vmem:[%s8496 + $0x2c8] sm:$0xff]
    %v8587 = vld [vmem:[%s8496 + $0x2d0] sm:$0xff]
    %v8588 = vld [vmem:[%s8496 + $0x2d8] sm:$0xff]
    %v8589 = vld [vmem:[%s8496 + $0x2e0] sm:$0xff]
    %v8590 = vld [vmem:[%s8496 + $0x2e8] sm:$0xff]
    %v8591 = vld [vmem:[%s8496 + $0x2f0] sm:$0xff]
    %v8592 = vld [vmem:[%s8496 + $0x2f8] sm:$0xff]
    %v8593 = vld [vmem:[%s8496 + $0x300] sm:$0xff]
    %v8594 = vld [vmem:[%s8496 + $0x308] sm:$0xff]
    %v8595 = vld [vmem:[%s8496 + $0x310] sm:$0xff]
    %v8596 = vld [vmem:[%s8496 + $0x318] sm:$0xff]
    %v8597 = vld [vmem:[%s8496 + $0x320] sm:$0xff]
    %v8598 = vld [vmem:[%s8496 + $0x328] sm:$0xff]
    %v8599 = vld [vmem:[%s8496 + $0x330] sm:$0xff]
    %v8600 = vld [vmem:[%s8496 + $0x338] sm:$0xff]
    %v8601 = vld [vmem:[%s8496 + $0x340] sm:$0xff]
    %v8602 = vld [vmem:[%s8496 + $0x348] sm:$0xff]
    %v8603 = vld [vmem:[%s8496 + $0x350] sm:$0xff]
    %v8604 = vld [vmem:[%s8496 + $0x358] sm:$0xff]
    %v8605 = vld [vmem:[%s8496 + $0x360] sm:$0xff]
    %v8606 = vld [vmem:[%s8496 + $0x368] sm:$0xff]
    %v8607 = vld [vmem:[%s8496 + $0x370] sm:$0xff]
    %v8608 = vld [vmem:[%s8496 + $0x378] sm:$0xff]
    %v8609 = vld [vmem:[%s8496 + $0x380] sm:$0xff]
    %v8610 = vld [vmem:[%s8496 + $0x388] sm:$0xff]
    %v8611 = vld [vmem:[%s8496 + $0x390] sm:$0xff]
    %v8612 = vld [vmem:[%s8496 + $0x398] sm:$0xff]
    %v8613 = vld [vmem:[%s8496 + $0x3a0] sm:$0xff]
    %v8614 = vld [vmem:[%s8496 + $0x3a8] sm:$0xff]
    %v8615 = vld [vmem:[%s8496 + $0x3b0] sm:$0xff]
    %v8616 = vld [vmem:[%s8496 + $0x3b8] sm:$0xff]
    %v8617 = vld [vmem:[%s8496 + $0x3c0] sm:$0xff]
    %v8618 = vld [vmem:[%s8496 + $0x3c8] sm:$0xff]
    %v8619 = vld [vmem:[%s8496 + $0x3d0] sm:$0xff]
    %v8620 = vld [vmem:[%s8496 + $0x3d8] sm:$0xff]
    %v8621 = vld [vmem:[%s8496 + $0x3e0] sm:$0xff]
    %v8622 = vld [vmem:[%s8496 + $0x3e8] sm:$0xff]
    %v8623 = vld [vmem:[%s8496 + $0x3f0] sm:$0xff]
    %v8624 = vld [vmem:[%s8496 + $0x3f8] sm:$0xff]
    %s8625 = scalar_lea.vmem [#allocation18], 12
    %v8626 = vld [vmem:[%s8625] sm:$0xf]
    %v8628 = vlaneseq
    %v8629 = vshrl.u32 %v8628, 7
    %v8630 = vsub.s32 0, %v8629
    %v8631 = vrot.slane %v8626, %v8630
    %v8632 = vlaneseq
    %v8633 = vshrl.u32 %v8632, 7
    %v8634 = vsub.s32 1, %v8633
    %v8635 = vrot.slane %v8626, %v8634
    %v8636 = vlaneseq
    %v8637 = vshrl.u32 %v8636, 7
    %v8638 = vsub.s32 2, %v8637
    %v8639 = vrot.slane %v8626, %v8638
    %v8640 = vlaneseq
    %v8641 = vshrl.u32 %v8640, 7
    %v8642 = vsub.s32 3, %v8641
    %v8643 = vrot.slane %v8626, %v8642
    %v8776 = vunpack.c.l.b16 %v8497
    %v8777 = vunpack.c.h.b16 %v8497
    %v8778 = vunpack.c.l.b16 %v8498
    %v8779 = vunpack.c.h.b16 %v8498
    %v8780 = vunpack.c.l.b16 %v8499
    %v8781 = vunpack.c.h.b16 %v8499
    %v8782 = vunpack.c.l.b16 %v8500
    %v8783 = vunpack.c.h.b16 %v8500
    %v8784 = vunpack.c.l.b16 %v8501
    %v8785 = vunpack.c.h.b16 %v8501
    %v8786 = vunpack.c.l.b16 %v8502
    %v8787 = vunpack.c.h.b16 %v8502
    %v8788 = vunpack.c.l.b16 %v8503
    %v8789 = vunpack.c.h.b16 %v8503
    %v8790 = vunpack.c.l.b16 %v8504
    %v8791 = vunpack.c.h.b16 %v8504
    %v8792 = vunpack.c.l.b16 %v8505
    %v8793 = vunpack.c.h.b16 %v8505
    %v8794 = vunpack.c.l.b16 %v8506
    %v8795 = vunpack.c.h.b16 %v8506
    %v8796 = vunpack.c.l.b16 %v8507
    %v8797 = vunpack.c.h.b16 %v8507
    %v8798 = vunpack.c.l.b16 %v8508
    %v8799 = vunpack.c.h.b16 %v8508
    %v8800 = vunpack.c.l.b16 %v8509
    %v8801 = vunpack.c.h.b16 %v8509
    %v8802 = vunpack.c.l.b16 %v8510
    %v8803 = vunpack.c.h.b16 %v8510
    %v8804 = vunpack.c.l.b16 %v8511
    %v8805 = vunpack.c.h.b16 %v8511
    %v8806 = vunpack.c.l.b16 %v8512
    %v8807 = vunpack.c.h.b16 %v8512
    %v8808 = vunpack.c.l.b16 %v8513
    %v8809 = vunpack.c.h.b16 %v8513
    %v8810 = vunpack.c.l.b16 %v8514
    %v8811 = vunpack.c.h.b16 %v8514
    %v8812 = vunpack.c.l.b16 %v8515
    %v8813 = vunpack.c.h.b16 %v8515
    %v8814 = vunpack.c.l.b16 %v8516
    %v8815 = vunpack.c.h.b16 %v8516
    %v8816 = vunpack.c.l.b16 %v8517
    %v8817 = vunpack.c.h.b16 %v8517
    %v8818 = vunpack.c.l.b16 %v8518
    %v8819 = vunpack.c.h.b16 %v8518
    %v8820 = vunpack.c.l.b16 %v8519
    %v8821 = vunpack.c.h.b16 %v8519
    %v8822 = vunpack.c.l.b16 %v8520
    %v8823 = vunpack.c.h.b16 %v8520
    %v8824 = vunpack.c.l.b16 %v8521
    %v8825 = vunpack.c.h.b16 %v8521
    %v8826 = vunpack.c.l.b16 %v8522
    %v8827 = vunpack.c.h.b16 %v8522
    %v8828 = vunpack.c.l.b16 %v8523
    %v8829 = vunpack.c.h.b16 %v8523
    %v8830 = vunpack.c.l.b16 %v8524
    %v8831 = vunpack.c.h.b16 %v8524
    %v8832 = vunpack.c.l.b16 %v8525
    %v8833 = vunpack.c.h.b16 %v8525
    %v8834 = vunpack.c.l.b16 %v8526
    %v8835 = vunpack.c.h.b16 %v8526
    %v8836 = vunpack.c.l.b16 %v8527
    %v8837 = vunpack.c.h.b16 %v8527
    %v8838 = vunpack.c.l.b16 %v8528
    %v8839 = vunpack.c.h.b16 %v8528
    %v8840 = vunpack.c.l.b16 %v8529
    %v8841 = vunpack.c.h.b16 %v8529
    %v8842 = vunpack.c.l.b16 %v8530
    %v8843 = vunpack.c.h.b16 %v8530
    %v8844 = vunpack.c.l.b16 %v8531
    %v8845 = vunpack.c.h.b16 %v8531
    %v8846 = vunpack.c.l.b16 %v8532
    %v8847 = vunpack.c.h.b16 %v8532
    %v8848 = vunpack.c.l.b16 %v8533
    %v8849 = vunpack.c.h.b16 %v8533
    %v8850 = vunpack.c.l.b16 %v8534
    %v8851 = vunpack.c.h.b16 %v8534
    %v8852 = vunpack.c.l.b16 %v8535
    %v8853 = vunpack.c.h.b16 %v8535
    %v8854 = vunpack.c.l.b16 %v8536
    %v8855 = vunpack.c.h.b16 %v8536
    %v8856 = vunpack.c.l.b16 %v8537
    %v8857 = vunpack.c.h.b16 %v8537
    %v8858 = vunpack.c.l.b16 %v8538
    %v8859 = vunpack.c.h.b16 %v8538
    %v8860 = vunpack.c.l.b16 %v8539
    %v8861 = vunpack.c.h.b16 %v8539
    %v8862 = vunpack.c.l.b16 %v8540
    %v8863 = vunpack.c.h.b16 %v8540
    %v8864 = vunpack.c.l.b16 %v8541
    %v8865 = vunpack.c.h.b16 %v8541
    %v8866 = vunpack.c.l.b16 %v8542
    %v8867 = vunpack.c.h.b16 %v8542
    %v8868 = vunpack.c.l.b16 %v8543
    %v8869 = vunpack.c.h.b16 %v8543
    %v8870 = vunpack.c.l.b16 %v8544
    %v8871 = vunpack.c.h.b16 %v8544
    %v8872 = vunpack.c.l.b16 %v8545
    %v8873 = vunpack.c.h.b16 %v8545
    %v8874 = vunpack.c.l.b16 %v8546
    %v8875 = vunpack.c.h.b16 %v8546
    %v8876 = vunpack.c.l.b16 %v8547
    %v8877 = vunpack.c.h.b16 %v8547
    %v8878 = vunpack.c.l.b16 %v8548
    %v8879 = vunpack.c.h.b16 %v8548
    %v8880 = vunpack.c.l.b16 %v8549
    %v8881 = vunpack.c.h.b16 %v8549
    %v8882 = vunpack.c.l.b16 %v8550
    %v8883 = vunpack.c.h.b16 %v8550
    %v8884 = vunpack.c.l.b16 %v8551
    %v8885 = vunpack.c.h.b16 %v8551
    %v8886 = vunpack.c.l.b16 %v8552
    %v8887 = vunpack.c.h.b16 %v8552
    %v8888 = vunpack.c.l.b16 %v8553
    %v8889 = vunpack.c.h.b16 %v8553
    %v8890 = vunpack.c.l.b16 %v8554
    %v8891 = vunpack.c.h.b16 %v8554
    %v8892 = vunpack.c.l.b16 %v8555
    %v8893 = vunpack.c.h.b16 %v8555
    %v8894 = vunpack.c.l.b16 %v8556
    %v8895 = vunpack.c.h.b16 %v8556
    %v8896 = vunpack.c.l.b16 %v8557
    %v8897 = vunpack.c.h.b16 %v8557
    %v8898 = vunpack.c.l.b16 %v8558
    %v8899 = vunpack.c.h.b16 %v8558
    %v8900 = vunpack.c.l.b16 %v8559
    %v8901 = vunpack.c.h.b16 %v8559
    %v8902 = vunpack.c.l.b16 %v8560
    %v8903 = vunpack.c.h.b16 %v8560
    %v8904 = vunpack.c.l.b16 %v8561
    %v8905 = vunpack.c.h.b16 %v8561
    %v8906 = vunpack.c.l.b16 %v8562
    %v8907 = vunpack.c.h.b16 %v8562
    %v8908 = vunpack.c.l.b16 %v8563
    %v8909 = vunpack.c.h.b16 %v8563
    %v8910 = vunpack.c.l.b16 %v8564
    %v8911 = vunpack.c.h.b16 %v8564
    %v8912 = vunpack.c.l.b16 %v8565
    %v8913 = vunpack.c.h.b16 %v8565
    %v8914 = vunpack.c.l.b16 %v8566
    %v8915 = vunpack.c.h.b16 %v8566
    %v8916 = vunpack.c.l.b16 %v8567
    %v8917 = vunpack.c.h.b16 %v8567
    %v8918 = vunpack.c.l.b16 %v8568
    %v8919 = vunpack.c.h.b16 %v8568
    %v8920 = vunpack.c.l.b16 %v8569
    %v8921 = vunpack.c.h.b16 %v8569
    %v8922 = vunpack.c.l.b16 %v8570
    %v8923 = vunpack.c.h.b16 %v8570
    %v8924 = vunpack.c.l.b16 %v8571
    %v8925 = vunpack.c.h.b16 %v8571
    %v8926 = vunpack.c.l.b16 %v8572
    %v8927 = vunpack.c.h.b16 %v8572
    %v8928 = vunpack.c.l.b16 %v8573
    %v8929 = vunpack.c.h.b16 %v8573
    %v8930 = vunpack.c.l.b16 %v8574
    %v8931 = vunpack.c.h.b16 %v8574
    %v8932 = vunpack.c.l.b16 %v8575
    %v8933 = vunpack.c.h.b16 %v8575
    %v8934 = vunpack.c.l.b16 %v8576
    %v8935 = vunpack.c.h.b16 %v8576
    %v8936 = vunpack.c.l.b16 %v8577
    %v8937 = vunpack.c.h.b16 %v8577
    %v8938 = vunpack.c.l.b16 %v8578
    %v8939 = vunpack.c.h.b16 %v8578
    %v8940 = vunpack.c.l.b16 %v8579
    %v8941 = vunpack.c.h.b16 %v8579
    %v8942 = vunpack.c.l.b16 %v8580
    %v8943 = vunpack.c.h.b16 %v8580
    %v8944 = vunpack.c.l.b16 %v8581
    %v8945 = vunpack.c.h.b16 %v8581
    %v8946 = vunpack.c.l.b16 %v8582
    %v8947 = vunpack.c.h.b16 %v8582
    %v8948 = vunpack.c.l.b16 %v8583
    %v8949 = vunpack.c.h.b16 %v8583
    %v8950 = vunpack.c.l.b16 %v8584
    %v8951 = vunpack.c.h.b16 %v8584
    %v8952 = vunpack.c.l.b16 %v8585
    %v8953 = vunpack.c.h.b16 %v8585
    %v8954 = vunpack.c.l.b16 %v8586
    %v8955 = vunpack.c.h.b16 %v8586
    %v8956 = vunpack.c.l.b16 %v8587
    %v8957 = vunpack.c.h.b16 %v8587
    %v8958 = vunpack.c.l.b16 %v8588
    %v8959 = vunpack.c.h.b16 %v8588
    %v8960 = vunpack.c.l.b16 %v8589
    %v8961 = vunpack.c.h.b16 %v8589
    %v8962 = vunpack.c.l.b16 %v8590
    %v8963 = vunpack.c.h.b16 %v8590
    %v8964 = vunpack.c.l.b16 %v8591
    %v8965 = vunpack.c.h.b16 %v8591
    %v8966 = vunpack.c.l.b16 %v8592
    %v8967 = vunpack.c.h.b16 %v8592
    %v8968 = vunpack.c.l.b16 %v8593
    %v8969 = vunpack.c.h.b16 %v8593
    %v8970 = vunpack.c.l.b16 %v8594
    %v8971 = vunpack.c.h.b16 %v8594
    %v8972 = vunpack.c.l.b16 %v8595
    %v8973 = vunpack.c.h.b16 %v8595
    %v8974 = vunpack.c.l.b16 %v8596
    %v8975 = vunpack.c.h.b16 %v8596
    %v8976 = vunpack.c.l.b16 %v8597
    %v8977 = vunpack.c.h.b16 %v8597
    %v8978 = vunpack.c.l.b16 %v8598
    %v8979 = vunpack.c.h.b16 %v8598
    %v8980 = vunpack.c.l.b16 %v8599
    %v8981 = vunpack.c.h.b16 %v8599
    %v8982 = vunpack.c.l.b16 %v8600
    %v8983 = vunpack.c.h.b16 %v8600
    %v8984 = vunpack.c.l.b16 %v8601
    %v8985 = vunpack.c.h.b16 %v8601
    %v8986 = vunpack.c.l.b16 %v8602
    %v8987 = vunpack.c.h.b16 %v8602
    %v8988 = vunpack.c.l.b16 %v8603
    %v8989 = vunpack.c.h.b16 %v8603
    %v8990 = vunpack.c.l.b16 %v8604
    %v8991 = vunpack.c.h.b16 %v8604
    %v8992 = vunpack.c.l.b16 %v8605
    %v8993 = vunpack.c.h.b16 %v8605
    %v8994 = vunpack.c.l.b16 %v8606
    %v8995 = vunpack.c.h.b16 %v8606
    %v8996 = vunpack.c.l.b16 %v8607
    %v8997 = vunpack.c.h.b16 %v8607
    %v8998 = vunpack.c.l.b16 %v8608
    %v8999 = vunpack.c.h.b16 %v8608
    %v9000 = vunpack.c.l.b16 %v8609
    %v9001 = vunpack.c.h.b16 %v8609
    %v9002 = vunpack.c.l.b16 %v8610
    %v9003 = vunpack.c.h.b16 %v8610
    %v9004 = vunpack.c.l.b16 %v8611
    %v9005 = vunpack.c.h.b16 %v8611
    %v9006 = vunpack.c.l.b16 %v8612
    %v9007 = vunpack.c.h.b16 %v8612
    %v9008 = vunpack.c.l.b16 %v8613
    %v9009 = vunpack.c.h.b16 %v8613
    %v9010 = vunpack.c.l.b16 %v8614
    %v9011 = vunpack.c.h.b16 %v8614
    %v9012 = vunpack.c.l.b16 %v8615
    %v9013 = vunpack.c.h.b16 %v8615
    %v9014 = vunpack.c.l.b16 %v8616
    %v9015 = vunpack.c.h.b16 %v8616
    %v9016 = vunpack.c.l.b16 %v8617
    %v9017 = vunpack.c.h.b16 %v8617
    %v9018 = vunpack.c.l.b16 %v8618
    %v9019 = vunpack.c.h.b16 %v8618
    %v9020 = vunpack.c.l.b16 %v8619
    %v9021 = vunpack.c.h.b16 %v8619
    %v9022 = vunpack.c.l.b16 %v8620
    %v9023 = vunpack.c.h.b16 %v8620
    %v9024 = vunpack.c.l.b16 %v8621
    %v9025 = vunpack.c.h.b16 %v8621
    %v9026 = vunpack.c.l.b16 %v8622
    %v9027 = vunpack.c.h.b16 %v8622
    %v9028 = vunpack.c.l.b16 %v8623
    %v9029 = vunpack.c.h.b16 %v8623
    %v9030 = vunpack.c.l.b16 %v8624
    %v9031 = vunpack.c.h.b16 %v8624
    %v9032 = vpack.c.b16 %v8780, %v8776
    %v9033 = vpack.c.b16 %v8781, %v8777
    %v9034 = vpack.c.b16 %v8782, %v8778
    %v9035 = vpack.c.b16 %v8783, %v8779
    %v9036 = vpack.c.b16 %v8788, %v8784
    %v9037 = vpack.c.b16 %v8789, %v8785
    %v9038 = vpack.c.b16 %v8790, %v8786
    %v9039 = vpack.c.b16 %v8791, %v8787
    %v9040 = vpack.c.b16 %v8796, %v8792
    %v9041 = vpack.c.b16 %v8797, %v8793
    %v9042 = vpack.c.b16 %v8798, %v8794
    %v9043 = vpack.c.b16 %v8799, %v8795
    %v9044 = vpack.c.b16 %v8804, %v8800
    %v9045 = vpack.c.b16 %v8805, %v8801
    %v9046 = vpack.c.b16 %v8806, %v8802
    %v9047 = vpack.c.b16 %v8807, %v8803
    %v9048 = vpack.c.b16 %v8812, %v8808
    %v9049 = vpack.c.b16 %v8813, %v8809
    %v9050 = vpack.c.b16 %v8814, %v8810
    %v9051 = vpack.c.b16 %v8815, %v8811
    %v9052 = vpack.c.b16 %v8820, %v8816
    %v9053 = vpack.c.b16 %v8821, %v8817
    %v9054 = vpack.c.b16 %v8822, %v8818
    %v9055 = vpack.c.b16 %v8823, %v8819
    %v9056 = vpack.c.b16 %v8828, %v8824
    %v9057 = vpack.c.b16 %v8829, %v8825
    %v9058 = vpack.c.b16 %v8830, %v8826
    %v9059 = vpack.c.b16 %v8831, %v8827
    %v9060 = vpack.c.b16 %v8836, %v8832
    %v9061 = vpack.c.b16 %v8837, %v8833
    %v9062 = vpack.c.b16 %v8838, %v8834
    %v9063 = vpack.c.b16 %v8839, %v8835
    %v9064 = vpack.c.b16 %v8844, %v8840
    %v9065 = vpack.c.b16 %v8845, %v8841
    %v9066 = vpack.c.b16 %v8846, %v8842
    %v9067 = vpack.c.b16 %v8847, %v8843
    %v9068 = vpack.c.b16 %v8852, %v8848
    %v9069 = vpack.c.b16 %v8853, %v8849
    %v9070 = vpack.c.b16 %v8854, %v8850
    %v9071 = vpack.c.b16 %v8855, %v8851
    %v9072 = vpack.c.b16 %v8860, %v8856
    %v9073 = vpack.c.b16 %v8861, %v8857
    %v9074 = vpack.c.b16 %v8862, %v8858
    %v9075 = vpack.c.b16 %v8863, %v8859
    %v9076 = vpack.c.b16 %v8868, %v8864
    %v9077 = vpack.c.b16 %v8869, %v8865
    %v9078 = vpack.c.b16 %v8870, %v8866
    %v9079 = vpack.c.b16 %v8871, %v8867
    %v9080 = vpack.c.b16 %v8876, %v8872
    %v9081 = vpack.c.b16 %v8877, %v8873
    %v9082 = vpack.c.b16 %v8878, %v8874
    %v9083 = vpack.c.b16 %v8879, %v8875
    %v9084 = vpack.c.b16 %v8884, %v8880
    %v9085 = vpack.c.b16 %v8885, %v8881
    %v9086 = vpack.c.b16 %v8886, %v8882
    %v9087 = vpack.c.b16 %v8887, %v8883
    %v9088 = vpack.c.b16 %v8892, %v8888
    %v9089 = vpack.c.b16 %v8893, %v8889
    %v9090 = vpack.c.b16 %v8894, %v8890
    %v9091 = vpack.c.b16 %v8895, %v8891
    %v9092 = vpack.c.b16 %v8900, %v8896
    %v9093 = vpack.c.b16 %v8901, %v8897
    %v9094 = vpack.c.b16 %v8902, %v8898
    %v9095 = vpack.c.b16 %v8903, %v8899
    %v9096 = vpack.c.b16 %v8908, %v8904
    %v9097 = vpack.c.b16 %v8909, %v8905
    %v9098 = vpack.c.b16 %v8910, %v8906
    %v9099 = vpack.c.b16 %v8911, %v8907
    %v9100 = vpack.c.b16 %v8916, %v8912
    %v9101 = vpack.c.b16 %v8917, %v8913
    %v9102 = vpack.c.b16 %v8918, %v8914
    %v9103 = vpack.c.b16 %v8919, %v8915
    %v9104 = vpack.c.b16 %v8924, %v8920
    %v9105 = vpack.c.b16 %v8925, %v8921
    %v9106 = vpack.c.b16 %v8926, %v8922
    %v9107 = vpack.c.b16 %v8927, %v8923
    %v9108 = vpack.c.b16 %v8932, %v8928
    %v9109 = vpack.c.b16 %v8933, %v8929
    %v9110 = vpack.c.b16 %v8934, %v8930
    %v9111 = vpack.c.b16 %v8935, %v8931
    %v9112 = vpack.c.b16 %v8940, %v8936
    %v9113 = vpack.c.b16 %v8941, %v8937
    %v9114 = vpack.c.b16 %v8942, %v8938
    %v9115 = vpack.c.b16 %v8943, %v8939
    %v9116 = vpack.c.b16 %v8948, %v8944
    %v9117 = vpack.c.b16 %v8949, %v8945
    %v9118 = vpack.c.b16 %v8950, %v8946
    %v9119 = vpack.c.b16 %v8951, %v8947
    %v9120 = vpack.c.b16 %v8956, %v8952
    %v9121 = vpack.c.b16 %v8957, %v8953
    %v9122 = vpack.c.b16 %v8958, %v8954
    %v9123 = vpack.c.b16 %v8959, %v8955
    %v9124 = vpack.c.b16 %v8964, %v8960
    %v9125 = vpack.c.b16 %v8965, %v8961
    %v9126 = vpack.c.b16 %v8966, %v8962
    %v9127 = vpack.c.b16 %v8967, %v8963
    %v9128 = vpack.c.b16 %v8972, %v8968
    %v9129 = vpack.c.b16 %v8973, %v8969
    %v9130 = vpack.c.b16 %v8974, %v8970
    %v9131 = vpack.c.b16 %v8975, %v8971
    %v9132 = vpack.c.b16 %v8980, %v8976
    %v9133 = vpack.c.b16 %v8981, %v8977
    %v9134 = vpack.c.b16 %v8982, %v8978
    %v9135 = vpack.c.b16 %v8983, %v8979
    %v9136 = vpack.c.b16 %v8988, %v8984
    %v9137 = vpack.c.b16 %v8989, %v8985
    %v9138 = vpack.c.b16 %v8990, %v8986
    %v9139 = vpack.c.b16 %v8991, %v8987
    %v9140 = vpack.c.b16 %v8996, %v8992
    %v9141 = vpack.c.b16 %v8997, %v8993
    %v9142 = vpack.c.b16 %v8998, %v8994
    %v9143 = vpack.c.b16 %v8999, %v8995
    %v9144 = vpack.c.b16 %v9004, %v9000
    %v9145 = vpack.c.b16 %v9005, %v9001
    %v9146 = vpack.c.b16 %v9006, %v9002
    %v9147 = vpack.c.b16 %v9007, %v9003
    %v9148 = vpack.c.b16 %v9012, %v9008
    %v9149 = vpack.c.b16 %v9013, %v9009
    %v9150 = vpack.c.b16 %v9014, %v9010
    %v9151 = vpack.c.b16 %v9015, %v9011
    %v9152 = vpack.c.b16 %v9020, %v9016
    %v9153 = vpack.c.b16 %v9021, %v9017
    %v9154 = vpack.c.b16 %v9022, %v9018
    %v9155 = vpack.c.b16 %v9023, %v9019
    %v9156 = vpack.c.b16 %v9028, %v9024
    %v9157 = vpack.c.b16 %v9029, %v9025
    %v9158 = vpack.c.b16 %v9030, %v9026
    %v9159 = vpack.c.b16 %v9031, %v9027
    %9288 = vmatprep.subr.bf16.mxu0 %v9033
    %9289 = vmatpush1.bf16.msra.mxu0 %v9032
    %9290 = vmatprep.subr.bf16.mxu0 %v9037
    %9291 = vmatpush1.bf16.msra.mxu0 %v9036
    %9292 = vmatprep.subr.bf16.mxu0 %v9041
    %9293 = vmatpush1.bf16.msra.mxu0 %v9040
    %9294 = vmatprep.subr.bf16.mxu0 %v9045
    %9295 = vmatpush1.bf16.msra.mxu0 %v9044
    %9296 = vmatprep.subr.bf16.mxu0 %v9049
    %9297 = vmatpush1.bf16.msra.mxu0 %v9048
    %9298 = vmatprep.subr.bf16.mxu0 %v9053
    %9299 = vmatpush1.bf16.msra.mxu0 %v9052
    %9300 = vmatprep.subr.bf16.mxu0 %v9057
    %9301 = vmatpush1.bf16.msra.mxu0 %v9056
    %9302 = vmatprep.subr.bf16.mxu0 %v9061
    %9303 = vmatpush1.bf16.msra.mxu0 %v9060
    %9304 = vmatprep.subr.bf16.mxu0 %v9065
    %9305 = vmatpush1.bf16.msra.mxu0 %v9064
    %9306 = vmatprep.subr.bf16.mxu0 %v9069
    %9307 = vmatpush1.bf16.msra.mxu0 %v9068
    %9308 = vmatprep.subr.bf16.mxu0 %v9073
    %9309 = vmatpush1.bf16.msra.mxu0 %v9072
    %9310 = vmatprep.subr.bf16.mxu0 %v9077
    %9311 = vmatpush1.bf16.msra.mxu0 %v9076
    %9312 = vmatprep.subr.bf16.mxu0 %v9081
    %9313 = vmatpush1.bf16.msra.mxu0 %v9080
    %9314 = vmatprep.subr.bf16.mxu0 %v9085
    %9315 = vmatpush1.bf16.msra.mxu0 %v9084
    %9316 = vmatprep.subr.bf16.mxu0 %v9089
    %9317 = vmatpush1.bf16.msra.mxu0 %v9088
    %9318 = vmatprep.subr.bf16.mxu0 %v9093
    %9319 = vmatpush1.bf16.msra.mxu0 %v9092
    %9320 = vmatprep.mubr.bf16.mxu0 %v8493
    %9321 = vmatmul.mubr.bf16.gmra.mrb[0].mxu0 %v8492
    %v9322 = vpop.f32.mrb[0].mxu0
    %v9323 = vadd.f32 %v8631, %v9322
    %v9324 = vpop.f32.mrb[0].mxu0
    %v9325 = vadd.f32 %v8635, %v9324
    %v9326 = vpop.f32.mrb[0].mxu0
    %v9327 = vpop.f32.mrb[0].mxu0
    %9328 = vdwg.mxu0
    %9329 = vmatprep.subr.bf16.mxu0 %v9097
    %9330 = vmatpush1.bf16.msra.mxu0 %v9096
    %9331 = vmatprep.subr.bf16.mxu0 %v9101
    %9332 = vmatpush1.bf16.msra.mxu0 %v9100
    %9333 = vmatprep.subr.bf16.mxu0 %v9105
    %9334 = vmatpush1.bf16.msra.mxu0 %v9104
    %9335 = vmatprep.subr.bf16.mxu0 %v9109
    %9336 = vmatpush1.bf16.msra.mxu0 %v9108
    %9337 = vmatprep.subr.bf16.mxu0 %v9113
    %9338 = vmatpush1.bf16.msra.mxu0 %v9112
    %9339 = vmatprep.subr.bf16.mxu0 %v9117
    %9340 = vmatpush1.bf16.msra.mxu0 %v9116
    %9341 = vmatprep.subr.bf16.mxu0 %v9121
    %9342 = vmatpush1.bf16.msra.mxu0 %v9120
    %9343 = vmatprep.subr.bf16.mxu0 %v9125
    %9344 = vmatpush1.bf16.msra.mxu0 %v9124
    %9345 = vmatprep.subr.bf16.mxu0 %v9129
    %9346 = vmatpush1.bf16.msra.mxu0 %v9128
    %9347 = vmatprep.subr.bf16.mxu0 %v9133
    %9348 = vmatpush1.bf16.msra.mxu0 %v9132
    %9349 = vmatprep.subr.bf16.mxu0 %v9137
    %9350 = vmatpush1.bf16.msra.mxu0 %v9136
    %9351 = vmatprep.subr.bf16.mxu0 %v9141
    %9352 = vmatpush1.bf16.msra.mxu0 %v9140
    %9353 = vmatprep.subr.bf16.mxu0 %v9145
    %9354 = vmatpush1.bf16.msra.mxu0 %v9144
    %9355 = vmatprep.subr.bf16.mxu0 %v9149
    %9356 = vmatpush1.bf16.msra.mxu0 %v9148
    %9357 = vmatprep.subr.bf16.mxu0 %v9153
    %9358 = vmatpush1.bf16.msra.mxu0 %v9152
    %9359 = vmatprep.subr.bf16.mxu0 %v9157
    %9360 = vmatpush1.bf16.msra.mxu0 %v9156
    %9361 = vmatprep.mubr.bf16.mxu0 %v8495
    %9362 = vmatmul.mubr.bf16.gmra.mrb[0].mxu0 %v8494
    %v9363 = vpop.f32.mrb[0].mxu0
    %v9364 = vadd.f32 %v9323, %v9363
    %v9365 = vpop.f32.mrb[0].mxu0
    %v9366 = vadd.f32 %v9325, %v9365
    %v9367 = vpop.f32.mrb[0].mxu0
    %v9368 = vpop.f32.mrb[0].mxu0
    %9369 = vdwg.mxu0
    %9370 = vmatprep.subr.bf16.mxu0 %v9035
    %9371 = vmatpush1.bf16.msra.mxu0 %v9034
    %9372 = vmatprep.subr.bf16.mxu0 %v9039
    %9373 = vmatpush1.bf16.msra.mxu0 %v9038
    %9374 = vmatprep.subr.bf16.mxu0 %v9043
    %9375 = vmatpush1.bf16.msra.mxu0 %v9042
    %9376 = vmatprep.subr.bf16.mxu0 %v9047
    %9377 = vmatpush1.bf16.msra.mxu0 %v9046
    %9378 = vmatprep.subr.bf16.mxu0 %v9051
    %9379 = vmatpush1.bf16.msra.mxu0 %v9050
    %9380 = vmatprep.subr.bf16.mxu0 %v9055
    %9381 = vmatpush1.bf16.msra.mxu0 %v9054
    %9382 = vmatprep.subr.bf16.mxu0 %v9059
    %9383 = vmatpush1.bf16.msra.mxu0 %v9058
    %9384 = vmatprep.subr.bf16.mxu0 %v9063
    %9385 = vmatpush1.bf16.msra.mxu0 %v9062
    %9386 = vmatprep.subr.bf16.mxu0 %v9067
    %9387 = vmatpush1.bf16.msra.mxu0 %v9066
    %9388 = vmatprep.subr.bf16.mxu0 %v9071
    %9389 = vmatpush1.bf16.msra.mxu0 %v9070
    %9390 = vmatprep.subr.bf16.mxu0 %v9075
    %9391 = vmatpush1.bf16.msra.mxu0 %v9074
    %9392 = vmatprep.subr.bf16.mxu0 %v9079
    %9393 = vmatpush1.bf16.msra.mxu0 %v9078
    %9394 = vmatprep.subr.bf16.mxu0 %v9083
    %9395 = vmatpush1.bf16.msra.mxu0 %v9082
    %9396 = vmatprep.subr.bf16.mxu0 %v9087
    %9397 = vmatpush1.bf16.msra.mxu0 %v9086
    %9398 = vmatprep.subr.bf16.mxu0 %v9091
    %9399 = vmatpush1.bf16.msra.mxu0 %v9090
    %9400 = vmatprep.subr.bf16.mxu0 %v9095
    %9401 = vmatpush1.bf16.msra.mxu0 %v9094
    %9402 = vmatprep.mubr.bf16.mxu0 %v8493
    %9403 = vmatmul.mubr.bf16.gmra.mrb[0].mxu0 %v8492
    %v9404 = vpop.f32.mrb[0].mxu0
    %v9405 = vadd.f32 %v8639, %v9404
    %v9406 = vpop.f32.mrb[0].mxu0
    %v9407 = vadd.f32 %v8643, %v9406
    %v9408 = vpop.f32.mrb[0].mxu0
    %v9409 = vpop.f32.mrb[0].mxu0
    %9410 = vdwg.mxu0
    %9411 = vmatprep.subr.bf16.mxu0 %v9099
    %9412 = vmatpush1.bf16.msra.mxu0 %v9098
    %9413 = vmatprep.subr.bf16.mxu0 %v9103
    %9414 = vmatpush1.bf16.msra.mxu0 %v9102
    %9415 = vmatprep.subr.bf16.mxu0 %v9107
    %9416 = vmatpush1.bf16.msra.mxu0 %v9106
    %9417 = vmatprep.subr.bf16.mxu0 %v9111
    %9418 = vmatpush1.bf16.msra.mxu0 %v9110
    %9419 = vmatprep.subr.bf16.mxu0 %v9115
    %9420 = vmatpush1.bf16.msra.mxu0 %v9114
    %9421 = vmatprep.subr.bf16.mxu0 %v9119
    %9422 = vmatpush1.bf16.msra.mxu0 %v9118
    %9423 = vmatprep.subr.bf16.mxu0 %v9123
    %9424 = vmatpush1.bf16.msra.mxu0 %v9122
    %9425 = vmatprep.subr.bf16.mxu0 %v9127
    %9426 = vmatpush1.bf16.msra.mxu0 %v9126
    %9427 = vmatprep.subr.bf16.mxu0 %v9131
    %9428 = vmatpush1.bf16.msra.mxu0 %v9130
    %9429 = vmatprep.subr.bf16.mxu0 %v9135
    %9430 = vmatpush1.bf16.msra.mxu0 %v9134
    %9431 = vmatprep.subr.bf16.mxu0 %v9139
    %9432 = vmatpush1.bf16.msra.mxu0 %v9138
    %9433 = vmatprep.subr.bf16.mxu0 %v9143
    %9434 = vmatpush1.bf16.msra.mxu0 %v9142
    %9435 = vmatprep.subr.bf16.mxu0 %v9147
    %9436 = vmatpush1.bf16.msra.mxu0 %v9146
    %9437 = vmatprep.subr.bf16.mxu0 %v9151
    %9438 = vmatpush1.bf16.msra.mxu0 %v9150
    %9439 = vmatprep.subr.bf16.mxu0 %v9155
    %9440 = vmatpush1.bf16.msra.mxu0 %v9154
    %9441 = vmatprep.subr.bf16.mxu0 %v9159
    %9442 = vmatpush1.bf16.msra.mxu0 %v9158
    %9443 = vmatprep.mubr.bf16.mxu0 %v8495
    %9444 = vmatmul.mubr.bf16.gmra.mrb[0].mxu0 %v8494
    %v9445 = vpop.f32.mrb[0].mxu0
    %v9446 = vadd.f32 %v9405, %v9445
    %v9447 = vpop.f32.mrb[0].mxu0
    %v9448 = vadd.f32 %v9407, %v9447
    %v9449 = vpop.f32.mrb[0].mxu0
    %v9450 = vpop.f32.mrb[0].mxu0
    %9451 = vdwg.mxu0
    %v9452 = vmax.f32 %v9364, 0.0
    %v9453 = vmax.f32 %v9366, 0.0
    %v9454 = vmax.f32 %v9446, 0.0
    %v9455 = vmax.f32 %v9448, 0.0
    %v9456 = vld [vmem:[#allocation20] sm:$0xf]
    %v9458 = vlaneseq
    %v9459 = vshrl.u32 %v9458, 7
    %v9460 = vsub.s32 0, %v9459
    %v9461 = vrot.slane %v9456, %v9460
    %v9462 = vlaneseq
    %v9463 = vshrl.u32 %v9462, 7
    %v9464 = vsub.s32 1, %v9463
    %v9465 = vrot.slane %v9456, %v9464
    %v9466 = vlaneseq
    %v9467 = vshrl.u32 %v9466, 7
    %v9468 = vsub.s32 2, %v9467
    %v9469 = vrot.slane %v9456, %v9468
    %v9470 = vlaneseq
    %v9471 = vshrl.u32 %v9470, 7
    %v9472 = vsub.s32 3, %v9471
    %v9473 = vrot.slane %v9456, %v9472
    %v9478 = vmul.f32 %v9452, %v9461
    %v9479 = vmul.f32 %v9453, %v9465
    %v9480 = vmul.f32 %v9454, %v9469
    %v9481 = vmul.f32 %v9455, %v9473
    %v9482 = vadd.f32 %v9478, %v9479
    %v9483 = vadd.f32 %v9482, %v9480
    %v9484 = vadd.f32 %v9483, %v9481
    %9485 = vadd.xlane.f32.xlu0 %v9484
    %v9486 = vpop.xlane.xlu0 %9485
    %v9487 = vld [vmem:[#allocation2] sm:$0x1]
    %v9489 = vlaneseq
    %v9490 = vshrl.u32 %v9489, 7
    %v9491 = vsub.s32 0, %v9490
    %v9492 = vrot.slane %v9487, %v9491
    %v9494 = vadd.f32 %v9486, %v9492
    %vm9495 = vcmask 7168
    %9496 = vst.msk [vmem:[#allocation21] sm:$0xff] %vm9495, %v9494
    // Predicated region
    $region94: #{_forward_impl.1} parent=1 // pred_check
      _
    $region95: #{_forward_impl.1} parent=1 // pred_check_branch
      %9498 = sbr.rel (0) target = $region97
    $region96: #{_forward_impl.1} parent=1 // pred_region
      %s9500 = ssub.s32 128, 128
      %9501 = vsyncadd [#allocation5], %s9500
      %s9503 = sshll.u32 [#allocation21], 4
      %s9504 = int_to_ptr.vmem [resolvable:$true] %s9503
      %9506 = dma.vmem_to_hbm [thread:$0]  %s9504, 128, %s12, [#allocation5]
    $region97: #{_forward_impl.1} parent=1 // pred_fallthru
      _
    // Predicated region
    $region98: #{_forward_impl.1} parent=1 // pred_check
      _
    $region99: #{_forward_impl.1} parent=1 // pred_check_branch
      %9508 = sbr.rel (0) target = $region101
    $region100: #{_forward_impl.1} parent=1 // pred_region
      %9509 = dma.done [#allocation5], 128
    $region101: #{_forward_impl.1} parent=1 // pred_fallthru
      _
    %9510 = vsyncpa [#allocation4], 1
    %9511 = vsyncpa [#allocation7], 1
    %9512 = vsyncpa [#allocation10], 1
    %9513 = vsyncpa [#allocation13], 1
    %9514 = vsyncpa [#allocation16], 1
    %9515 = vsyncpa [#allocation19], 1
    %9516 = vsyncpa [#allocation5], 1

</llo_original>
